<compile_context>
chip_gen: v7x
topology: tpu7x:2x2x1
jax: 0.10.0
libtpu: 0.0.40
codegen_flags: <defaults>
</compile_context>

<pallas_src>
import functools

import jax
import jax.numpy as jnp
from jax.experimental import pallas as pl
from jax.experimental.pallas import tpu as pltpu

BN_EPS = 1e-5
LANE = 128


def _round_up(n, m):
    return (n + m - 1) // m * m


def _generator_kernel(*refs, bn_relu, eps):
    """Fully fused MLP with manual weight prefetch.

    refs = (x, w0_hbm, p0, w1_hbm, p1, ..., w5_hbm, p5, out,
            w0_buf, ..., w5_buf, dma_sems)

    w_i : (K_i, N_i) bf16 weight in HBM (stored transposed vs PyTorch: y = x@W)
    p_i : (2, N_i) f32 packed [gamma; beta] for BN layers (bias is cancelled by
          train-mode BN), (1, N_i) f32 packed [bias] for the final layer.
    """
    n_layers = len(bn_relu)
    x_ref = refs[0]
    w_hbm = [refs[1 + 2 * i] for i in range(n_layers)]
    p_refs = [refs[2 + 2 * i] for i in range(n_layers)]
    o_ref = refs[1 + 2 * n_layers]
    w_bufs = list(refs[2 + 2 * n_layers: 2 + 3 * n_layers])
    sems = refs[2 + 3 * n_layers]

    # Kick off ALL weight DMAs up front so the full ~10 MiB stream is in
    # flight; per-layer compute then hides under the remaining transfers.
    copies = []
    for i in range(n_layers):
        cp = pltpu.make_async_copy(w_hbm[i], w_bufs[i], sems.at[i])
        cp.start()
        copies.append(cp)

    h = x_ref[...]                                            # (B, K0) f32
    for i, use_bn in enumerate(bn_relu):
        copies[i].wait()                                      # weight i landed
        y = jnp.dot(h.astype(jnp.bfloat16), w_bufs[i][...],
                    preferred_element_type=jnp.float32)       # (B, N_i) f32
        if use_bn:
            # BatchNorm1d (training mode) over the full, resident batch.
            # The Linear bias is omitted: it cancels against the mean.
            mean = jnp.mean(y, axis=0, keepdims=True)
            var = jnp.mean((y - mean) ** 2, axis=0, keepdims=True)
            y = p_refs[i][0:1, :] * (y - mean) * jax.lax.rsqrt(var + eps) \
                + p_refs[i][1:2, :]
            y = jnp.maximum(y, 0.0)                           # ReLU
        else:
            y = y + p_refs[i][0:1, :]                         # final bias
        h = y
    o_ref[...] = h.astype(o_ref.dtype)


def generator_forward(x, device_params, output_dim):
    """Run the fused Generator forward pass.

    device_params: list of (w_bf16 (K_pad, N_pad), packed_f32 (rows, N_pad), use_bn)
    """
    B, in_dim = x.shape
    k0_pad = device_params[0][0].shape[0]
    if in_dim != k0_pad:                      # pad input features to 128 lanes
        x = jnp.pad(x, ((0, 0), (0, k0_pad - in_dim)))
    n_last_pad = device_params[-1][0].shape[1]
    n_layers = len(device_params)

    flags = tuple(bool(p[2]) for p in device_params)
    kernel = functools.partial(_generator_kernel, bn_relu=flags, eps=BN_EPS)

    flat_inputs = [x]
    in_specs = [pl.BlockSpec(memory_space=pltpu.MemorySpace.VMEM)]
    for (w, pbg, _) in device_params:
        flat_inputs.append(w)
        in_specs.append(pl.BlockSpec(memory_space=pl.ANY))     # stream manually
        flat_inputs.append(pbg)
        in_specs.append(pl.BlockSpec(memory_space=pltpu.MemorySpace.VMEM))

    scratch_shapes = [pltpu.VMEM(w.shape, w.dtype) for (w, _, _) in device_params]
    scratch_shapes.append(pltpu.SemaphoreType.DMA((n_layers,)))

    out = pl.pallas_call(
        kernel,
        out_shape=jax.ShapeDtypeStruct((B, n_last_pad), jnp.float32),
        in_specs=in_specs,
        out_specs=pl.BlockSpec(memory_space=pltpu.MemorySpace.VMEM),
        scratch_shapes=scratch_shapes,
        compiler_params=pltpu.CompilerParams(
            # ~10.3 MiB weight scratch + <1 MiB params/activations/out.
            # Explicit (do not rely on v5e's 16 MiB default scoped limit);
            # trimmed for v7x's 64 MiB physical VMEM.
            vmem_limit_bytes=16 * 1024 * 1024),
    )(*flat_inputs)
    return out[:, :output_dim]


def init_generator_params(key, input_dim, output_dim):
    """Deterministic synthetic f32 parameters matching the PyTorch module's shapes."""
    dims = [input_dim, 512, 1024, 2048, 1024, 512, output_dim]
    params = []
    for i in range(len(dims) - 1):
        fan_in, fan_out = dims[i], dims[i + 1]
        key, kw, kb = jax.random.split(key, 3)
        bound = 1.0 / jnp.sqrt(fan_in)
        w = jax.random.uniform(kw, (fan_in, fan_out), jnp.float32, -bound, bound)
        b = jax.random.uniform(kb, (fan_out,), jnp.float32, -bound, bound)
        is_last = i == len(dims) - 2
        if not is_last:
            key, kg, kbe = jax.random.split(key, 3)
            gamma = 1.0 + 0.1 * jax.random.normal(kg, (fan_out,), jnp.float32)
            beta = 0.1 * jax.random.normal(kbe, (fan_out,), jnp.float32)
        else:
            gamma = jnp.ones((fan_out,), jnp.float32)   # unused (no BN on last layer)
            beta = jnp.zeros((fan_out,), jnp.float32)
        params.append((w, b, gamma, beta, not is_last))
    return params


def pack_device_params(params):
    """bf16 weights (lane-padded, zero-filled) + packed f32 params.

    BN layers: (2, N_pad) = [gamma; beta] (bias dropped, cancelled by BN mean).
    Final layer: (1, N_pad) = [bias].
    Padded columns MUST stay zero in both weights and gamma/beta so the
    BN rsqrt(eps) blow-up in the padded region is multiplied away.
    """
    device = []
    prev_n_pad = None
    for idx, (w, b, gamma, beta, use_bn) in enumerate(params):
        k, n = w.shape
        k_pad = _round_up(k, LANE) if idx == 0 else prev_n_pad
        n_pad = _round_up(n, LANE)
        w_p = jnp.zeros((k_pad, n_pad), jnp.float32).at[:k, :n].set(w)
        if use_bn:
            pbg = jnp.zeros((2, n_pad), jnp.float32)
            pbg = pbg.at[0, :n].set(gamma).at[1, :n].set(beta)
            # Invariant: padded region of gamma/beta stays exactly zero.
            assert n == n_pad or float(jnp.max(jnp.abs(pbg[:, n:]))) == 0.0
        else:
            pbg = jnp.zeros((1, n_pad), jnp.float32).at[0, :n].set(b)
        device.append((w_p.astype(jnp.bfloat16), pbg, use_bn))
        prev_n_pad = n_pad
    return device


def generator_forward_ref(x, params):
    """Pure-JAX reference (bias included; train-mode BN cancels it exactly)."""
    h = x
    for (w, b, gamma, beta, use_bn) in params:
        y = jnp.dot(h.astype(jnp.bfloat16), w.astype(jnp.bfloat16),
                    preferred_element_type=jnp.float32) + b
        if use_bn:
            mean = jnp.mean(y, axis=0, keepdims=True)
            var = jnp.mean((y - mean) ** 2, axis=0, keepdims=True)
            y = gamma * (y - mean) * jax.lax.rsqrt(var + BN_EPS) + beta
            y = jnp.maximum(y, 0.0)
        h = y
    return h


if __name__ == "__main__":
    input_dim = 100
    output_dim = 28   # stands in for data.shape[1] of the (unavailable) dataset
    batch = 8         # small; BN(train) needs batch >= 2

    key = jax.random.PRNGKey(0)
    key, kx = jax.random.split(key)
    x = jax.random.normal(kx, (batch, input_dim), jnp.float32)

    params = init_generator_params(key, input_dim, output_dim)
    device_params = pack_device_params(params)

    out = generator_forward(x, device_params, output_dim)
    out = jax.block_until_ready(out)

    ref = generator_forward_ref(x, params)
    assert out.shape == (batch, output_dim)
    # bf16 weight streaming: tolerance loosened vs a pure-f32 check.
    assert jnp.allclose(out, ref, rtol=2e-2, atol=2e-2), "mismatch vs JAX reference"

    print("KERNEL_OK")
</pallas_src>

<mosaic_0001>
module attributes {stable_mosaic.version = 11 : i64} {
  func.func @_generator_kernel(%arg0: memref<8x128xf32, #tpu.memory_space<vmem>>, %arg1: memref<128x512xbf16, #tpu.memory_space<any>>, %arg2: memref<2x512xf32, #tpu.memory_space<vmem>>, %arg3: memref<512x1024xbf16, #tpu.memory_space<any>>, %arg4: memref<2x1024xf32, #tpu.memory_space<vmem>>, %arg5: memref<1024x2048xbf16, #tpu.memory_space<any>>, %arg6: memref<2x2048xf32, #tpu.memory_space<vmem>>, %arg7: memref<2048x1024xbf16, #tpu.memory_space<any>>, %arg8: memref<2x1024xf32, #tpu.memory_space<vmem>>, %arg9: memref<1024x512xbf16, #tpu.memory_space<any>>, %arg10: memref<2x512xf32, #tpu.memory_space<vmem>>, %arg11: memref<512x128xbf16, #tpu.memory_space<any>>, %arg12: memref<1x128xf32, #tpu.memory_space<vmem>>, %arg13: memref<8x128xf32, #tpu.memory_space<vmem>>, %arg14: memref<128x512xbf16, #tpu.memory_space<vmem>>, %arg15: memref<512x1024xbf16, #tpu.memory_space<vmem>>, %arg16: memref<1024x2048xbf16, #tpu.memory_space<vmem>>, %arg17: memref<2048x1024xbf16, #tpu.memory_space<vmem>>, %arg18: memref<1024x512xbf16, #tpu.memory_space<vmem>>, %arg19: memref<512x128xbf16, #tpu.memory_space<vmem>>, %arg20: memref<6x!tpu.dma_semaphore, #tpu.memory_space<semaphore_mem>>) attributes {dimension_semantics = [], scalar_prefetch = 0 : i64, scratch_operands = 7 : i64, tpu.core_type = #tpu.core_type<tc>} {
    %c0_i32 = arith.constant 0 : i32
    %0 = tpu.memref_slice %arg20[%c0_i32] : memref<6x!tpu.dma_semaphore, #tpu.memory_space<semaphore_mem>> -> memref<1x!tpu.dma_semaphore, #tpu.memory_space<semaphore_mem>>
    %1 = tpu.memref_squeeze %0 : memref<1x!tpu.dma_semaphore, #tpu.memory_space<semaphore_mem>> -> memref<!tpu.dma_semaphore, #tpu.memory_space<semaphore_mem>>
    tpu.enqueue_dma source(%arg1 : memref<128x512xbf16, #tpu.memory_space<any>>) target(%arg14 : memref<128x512xbf16, #tpu.memory_space<vmem>>) target_semaphore(%1 : memref<!tpu.dma_semaphore, #tpu.memory_space<semaphore_mem>>)
    %c1_i32 = arith.constant 1 : i32
    %2 = tpu.memref_slice %arg20[%c1_i32] : memref<6x!tpu.dma_semaphore, #tpu.memory_space<semaphore_mem>> -> memref<1x!tpu.dma_semaphore, #tpu.memory_space<semaphore_mem>>
    %3 = tpu.memref_squeeze %2 : memref<1x!tpu.dma_semaphore, #tpu.memory_space<semaphore_mem>> -> memref<!tpu.dma_semaphore, #tpu.memory_space<semaphore_mem>>
    tpu.enqueue_dma source(%arg3 : memref<512x1024xbf16, #tpu.memory_space<any>>) target(%arg15 : memref<512x1024xbf16, #tpu.memory_space<vmem>>) target_semaphore(%3 : memref<!tpu.dma_semaphore, #tpu.memory_space<semaphore_mem>>)
    %c2_i32 = arith.constant 2 : i32
    %4 = tpu.memref_slice %arg20[%c2_i32] : memref<6x!tpu.dma_semaphore, #tpu.memory_space<semaphore_mem>> -> memref<1x!tpu.dma_semaphore, #tpu.memory_space<semaphore_mem>>
    %5 = tpu.memref_squeeze %4 : memref<1x!tpu.dma_semaphore, #tpu.memory_space<semaphore_mem>> -> memref<!tpu.dma_semaphore, #tpu.memory_space<semaphore_mem>>
    tpu.enqueue_dma source(%arg5 : memref<1024x2048xbf16, #tpu.memory_space<any>>) target(%arg16 : memref<1024x2048xbf16, #tpu.memory_space<vmem>>) target_semaphore(%5 : memref<!tpu.dma_semaphore, #tpu.memory_space<semaphore_mem>>)
    %c3_i32 = arith.constant 3 : i32
    %6 = tpu.memref_slice %arg20[%c3_i32] : memref<6x!tpu.dma_semaphore, #tpu.memory_space<semaphore_mem>> -> memref<1x!tpu.dma_semaphore, #tpu.memory_space<semaphore_mem>>
    %7 = tpu.memref_squeeze %6 : memref<1x!tpu.dma_semaphore, #tpu.memory_space<semaphore_mem>> -> memref<!tpu.dma_semaphore, #tpu.memory_space<semaphore_mem>>
    tpu.enqueue_dma source(%arg7 : memref<2048x1024xbf16, #tpu.memory_space<any>>) target(%arg17 : memref<2048x1024xbf16, #tpu.memory_space<vmem>>) target_semaphore(%7 : memref<!tpu.dma_semaphore, #tpu.memory_space<semaphore_mem>>)
    %c4_i32 = arith.constant 4 : i32
    %8 = tpu.memref_slice %arg20[%c4_i32] : memref<6x!tpu.dma_semaphore, #tpu.memory_space<semaphore_mem>> -> memref<1x!tpu.dma_semaphore, #tpu.memory_space<semaphore_mem>>
    %9 = tpu.memref_squeeze %8 : memref<1x!tpu.dma_semaphore, #tpu.memory_space<semaphore_mem>> -> memref<!tpu.dma_semaphore, #tpu.memory_space<semaphore_mem>>
    tpu.enqueue_dma source(%arg9 : memref<1024x512xbf16, #tpu.memory_space<any>>) target(%arg18 : memref<1024x512xbf16, #tpu.memory_space<vmem>>) target_semaphore(%9 : memref<!tpu.dma_semaphore, #tpu.memory_space<semaphore_mem>>)
    %c5_i32 = arith.constant 5 : i32
    %10 = tpu.memref_slice %arg20[%c5_i32] : memref<6x!tpu.dma_semaphore, #tpu.memory_space<semaphore_mem>> -> memref<1x!tpu.dma_semaphore, #tpu.memory_space<semaphore_mem>>
    %11 = tpu.memref_squeeze %10 : memref<1x!tpu.dma_semaphore, #tpu.memory_space<semaphore_mem>> -> memref<!tpu.dma_semaphore, #tpu.memory_space<semaphore_mem>>
    tpu.enqueue_dma source(%arg11 : memref<512x128xbf16, #tpu.memory_space<any>>) target(%arg19 : memref<512x128xbf16, #tpu.memory_space<vmem>>) target_semaphore(%11 : memref<!tpu.dma_semaphore, #tpu.memory_space<semaphore_mem>>)
    %c0 = arith.constant 0 : index
    %c0_0 = arith.constant 0 : index
    %12 = vector.load %arg0[%c0, %c0_0] : memref<8x128xf32, #tpu.memory_space<vmem>>, vector<8x128xf32>
    %c0_i32_1 = arith.constant 0 : i32
    %13 = tpu.memref_slice %arg20[%c0_i32_1] : memref<6x!tpu.dma_semaphore, #tpu.memory_space<semaphore_mem>> -> memref<1x!tpu.dma_semaphore, #tpu.memory_space<semaphore_mem>>
    %14 = tpu.memref_squeeze %13 : memref<1x!tpu.dma_semaphore, #tpu.memory_space<semaphore_mem>> -> memref<!tpu.dma_semaphore, #tpu.memory_space<semaphore_mem>>
    tpu.wait_dma2 semaphore(%14 : memref<!tpu.dma_semaphore, #tpu.memory_space<semaphore_mem>>) src(%arg1 : memref<128x512xbf16, #tpu.memory_space<any>>) dst(%arg14 : memref<128x512xbf16, #tpu.memory_space<vmem>>)
    %15 = arith.truncf %12 : vector<8x128xf32> to vector<8x128xbf16>
    %c0_2 = arith.constant 0 : index
    %c0_3 = arith.constant 0 : index
    %16 = vector.load %arg14[%c0_2, %c0_3] : memref<128x512xbf16, #tpu.memory_space<vmem>>, vector<128x512xbf16>
    %cst = arith.constant dense<0.000000e+00> : vector<8x512xf32>
    %17 = tpu.matmul %15, %16, %cst {dimension_numbers = #tpu.dot_dimension_numbers<[1], [0], [0], [1], [0, 0, 1, 1], [], []>} : vector<8x128xbf16>, vector<128x512xbf16>, vector<8x512xf32> -> vector<8x512xf32>
    %cst_4 = arith.constant dense<0.000000e+00> : vector<512xf32>
    %18 = vector.multi_reduction <add>, %17, %cst_4 [0] : vector<8x512xf32> to vector<512xf32>
    %19 = vector.shape_cast %18 : vector<512xf32> to vector<1x512xf32>
    %cst_5 = arith.constant 8.000000e+00 : f32
    %20 = vector.broadcast %cst_5 : f32 to vector<1x512xf32>
    %21 = arith.divf %19, %20 : vector<1x512xf32>
    %22 = vector.broadcast %21 : vector<1x512xf32> to vector<8x512xf32>
    %23 = arith.subf %17, %22 : vector<8x512xf32>
    %24 = arith.mulf %23, %23 : vector<8x512xf32>
    %cst_6 = arith.constant dense<0.000000e+00> : vector<512xf32>
    %25 = vector.multi_reduction <add>, %24, %cst_6 [0] : vector<8x512xf32> to vector<512xf32>
    %26 = vector.shape_cast %25 : vector<512xf32> to vector<1x512xf32>
    %cst_7 = arith.constant 8.000000e+00 : f32
    %27 = vector.broadcast %cst_7 : f32 to vector<1x512xf32>
    %28 = arith.divf %26, %27 : vector<1x512xf32>
    %c0_8 = arith.constant 0 : index
    %c0_9 = arith.constant 0 : index
    %29 = vector.load %arg2[%c0_8, %c0_9] : memref<2x512xf32, #tpu.memory_space<vmem>>, vector<1x512xf32>
    %30 = vector.broadcast %21 : vector<1x512xf32> to vector<8x512xf32>
    %31 = arith.subf %17, %30 : vector<8x512xf32>
    %32 = vector.broadcast %29 : vector<1x512xf32> to vector<8x512xf32>
    %33 = arith.mulf %32, %31 : vector<8x512xf32>
    %cst_10 = arith.constant 9.99999974E-6 : f32
    %34 = vector.broadcast %cst_10 : f32 to vector<1x512xf32>
    %35 = arith.addf %28, %34 : vector<1x512xf32>
    %36 = math.rsqrt %35 : vector<1x512xf32>
    %37 = vector.broadcast %36 : vector<1x512xf32> to vector<8x512xf32>
    %38 = arith.mulf %33, %37 : vector<8x512xf32>
    %c1 = arith.constant 1 : index
    %c0_11 = arith.constant 0 : index
    %39 = vector.load %arg2[%c1, %c0_11] : memref<2x512xf32, #tpu.memory_space<vmem>>, vector<1x512xf32>
    %40 = vector.broadcast %39 : vector<1x512xf32> to vector<8x512xf32>
    %41 = arith.addf %38, %40 : vector<8x512xf32>
    %cst_12 = arith.constant 0.000000e+00 : f32
    %42 = vector.broadcast %cst_12 : f32 to vector<8x512xf32>
    %43 = arith.maximumf %41, %42 : vector<8x512xf32>
    %c1_i32_13 = arith.constant 1 : i32
    %44 = tpu.memref_slice %arg20[%c1_i32_13] : memref<6x!tpu.dma_semaphore, #tpu.memory_space<semaphore_mem>> -> memref<1x!tpu.dma_semaphore, #tpu.memory_space<semaphore_mem>>
    %45 = tpu.memref_squeeze %44 : memref<1x!tpu.dma_semaphore, #tpu.memory_space<semaphore_mem>> -> memref<!tpu.dma_semaphore, #tpu.memory_space<semaphore_mem>>
    tpu.wait_dma2 semaphore(%45 : memref<!tpu.dma_semaphore, #tpu.memory_space<semaphore_mem>>) src(%arg3 : memref<512x1024xbf16, #tpu.memory_space<any>>) dst(%arg15 : memref<512x1024xbf16, #tpu.memory_space<vmem>>)
    %46 = arith.truncf %43 : vector<8x512xf32> to vector<8x512xbf16>
    %c0_14 = arith.constant 0 : index
    %c0_15 = arith.constant 0 : index
    %47 = vector.load %arg15[%c0_14, %c0_15] : memref<512x1024xbf16, #tpu.memory_space<vmem>>, vector<512x1024xbf16>
    %cst_16 = arith.constant dense<0.000000e+00> : vector<8x1024xf32>
    %48 = tpu.matmul %46, %47, %cst_16 {dimension_numbers = #tpu.dot_dimension_numbers<[1], [0], [0], [1], [0, 0, 1, 1], [], []>} : vector<8x512xbf16>, vector<512x1024xbf16>, vector<8x1024xf32> -> vector<8x1024xf32>
    %cst_17 = arith.constant dense<0.000000e+00> : vector<1024xf32>
    %49 = vector.multi_reduction <add>, %48, %cst_17 [0] : vector<8x1024xf32> to vector<1024xf32>
    %50 = vector.shape_cast %49 : vector<1024xf32> to vector<1x1024xf32>
    %cst_18 = arith.constant 8.000000e+00 : f32
    %51 = vector.broadcast %cst_18 : f32 to vector<1x1024xf32>
    %52 = arith.divf %50, %51 : vector<1x1024xf32>
    %53 = vector.broadcast %52 : vector<1x1024xf32> to vector<8x1024xf32>
    %54 = arith.subf %48, %53 : vector<8x1024xf32>
    %55 = arith.mulf %54, %54 : vector<8x1024xf32>
    %cst_19 = arith.constant dense<0.000000e+00> : vector<1024xf32>
    %56 = vector.multi_reduction <add>, %55, %cst_19 [0] : vector<8x1024xf32> to vector<1024xf32>
    %57 = vector.shape_cast %56 : vector<1024xf32> to vector<1x1024xf32>
    %cst_20 = arith.constant 8.000000e+00 : f32
    %58 = vector.broadcast %cst_20 : f32 to vector<1x1024xf32>
    %59 = arith.divf %57, %58 : vector<1x1024xf32>
    %c0_21 = arith.constant 0 : index
    %c0_22 = arith.constant 0 : index
    %60 = vector.load %arg4[%c0_21, %c0_22] : memref<2x1024xf32, #tpu.memory_space<vmem>>, vector<1x1024xf32>
    %61 = vector.broadcast %52 : vector<1x1024xf32> to vector<8x1024xf32>
    %62 = arith.subf %48, %61 : vector<8x1024xf32>
    %63 = vector.broadcast %60 : vector<1x1024xf32> to vector<8x1024xf32>
    %64 = arith.mulf %63, %62 : vector<8x1024xf32>
    %cst_23 = arith.constant 9.99999974E-6 : f32
    %65 = vector.broadcast %cst_23 : f32 to vector<1x1024xf32>
    %66 = arith.addf %59, %65 : vector<1x1024xf32>
    %67 = math.rsqrt %66 : vector<1x1024xf32>
    %68 = vector.broadcast %67 : vector<1x1024xf32> to vector<8x1024xf32>
    %69 = arith.mulf %64, %68 : vector<8x1024xf32>
    %c1_24 = arith.constant 1 : index
    %c0_25 = arith.constant 0 : index
    %70 = vector.load %arg4[%c1_24, %c0_25] : memref<2x1024xf32, #tpu.memory_space<vmem>>, vector<1x1024xf32>
    %71 = vector.broadcast %70 : vector<1x1024xf32> to vector<8x1024xf32>
    %72 = arith.addf %69, %71 : vector<8x1024xf32>
    %cst_26 = arith.constant 0.000000e+00 : f32
    %73 = vector.broadcast %cst_26 : f32 to vector<8x1024xf32>
    %74 = arith.maximumf %72, %73 : vector<8x1024xf32>
    %c2_i32_27 = arith.constant 2 : i32
    %75 = tpu.memref_slice %arg20[%c2_i32_27] : memref<6x!tpu.dma_semaphore, #tpu.memory_space<semaphore_mem>> -> memref<1x!tpu.dma_semaphore, #tpu.memory_space<semaphore_mem>>
    %76 = tpu.memref_squeeze %75 : memref<1x!tpu.dma_semaphore, #tpu.memory_space<semaphore_mem>> -> memref<!tpu.dma_semaphore, #tpu.memory_space<semaphore_mem>>
    tpu.wait_dma2 semaphore(%76 : memref<!tpu.dma_semaphore, #tpu.memory_space<semaphore_mem>>) src(%arg5 : memref<1024x2048xbf16, #tpu.memory_space<any>>) dst(%arg16 : memref<1024x2048xbf16, #tpu.memory_space<vmem>>)
    %77 = arith.truncf %74 : vector<8x1024xf32> to vector<8x1024xbf16>
    %c0_28 = arith.constant 0 : index
    %c0_29 = arith.constant 0 : index
    %78 = vector.load %arg16[%c0_28, %c0_29] : memref<1024x2048xbf16, #tpu.memory_space<vmem>>, vector<1024x2048xbf16>
    %cst_30 = arith.constant dense<0.000000e+00> : vector<8x2048xf32>
    %79 = tpu.matmul %77, %78, %cst_30 {dimension_numbers = #tpu.dot_dimension_numbers<[1], [0], [0], [1], [0, 0, 1, 1], [], []>} : vector<8x1024xbf16>, vector<1024x2048xbf16>, vector<8x2048xf32> -> vector<8x2048xf32>
    %cst_31 = arith.constant dense<0.000000e+00> : vector<2048xf32>
    %80 = vector.multi_reduction <add>, %79, %cst_31 [0] : vector<8x2048xf32> to vector<2048xf32>
    %81 = vector.shape_cast %80 : vector<2048xf32> to vector<1x2048xf32>
    %cst_32 = arith.constant 8.000000e+00 : f32
    %82 = vector.broadcast %cst_32 : f32 to vector<1x2048xf32>
    %83 = arith.divf %81, %82 : vector<1x2048xf32>
    %84 = vector.broadcast %83 : vector<1x2048xf32> to vector<8x2048xf32>
    %85 = arith.subf %79, %84 : vector<8x2048xf32>
    %86 = arith.mulf %85, %85 : vector<8x2048xf32>
    %cst_33 = arith.constant dense<0.000000e+00> : vector<2048xf32>
    %87 = vector.multi_reduction <add>, %86, %cst_33 [0] : vector<8x2048xf32> to vector<2048xf32>
    %88 = vector.shape_cast %87 : vector<2048xf32> to vector<1x2048xf32>
    %cst_34 = arith.constant 8.000000e+00 : f32
    %89 = vector.broadcast %cst_34 : f32 to vector<1x2048xf32>
    %90 = arith.divf %88, %89 : vector<1x2048xf32>
    %c0_35 = arith.constant 0 : index
    %c0_36 = arith.constant 0 : index
    %91 = vector.load %arg6[%c0_35, %c0_36] : memref<2x2048xf32, #tpu.memory_space<vmem>>, vector<1x2048xf32>
    %92 = vector.broadcast %83 : vector<1x2048xf32> to vector<8x2048xf32>
    %93 = arith.subf %79, %92 : vector<8x2048xf32>
    %94 = vector.broadcast %91 : vector<1x2048xf32> to vector<8x2048xf32>
    %95 = arith.mulf %94, %93 : vector<8x2048xf32>
    %cst_37 = arith.constant 9.99999974E-6 : f32
    %96 = vector.broadcast %cst_37 : f32 to vector<1x2048xf32>
    %97 = arith.addf %90, %96 : vector<1x2048xf32>
    %98 = math.rsqrt %97 : vector<1x2048xf32>
    %99 = vector.broadcast %98 : vector<1x2048xf32> to vector<8x2048xf32>
    %100 = arith.mulf %95, %99 : vector<8x2048xf32>
    %c1_38 = arith.constant 1 : index
    %c0_39 = arith.constant 0 : index
    %101 = vector.load %arg6[%c1_38, %c0_39] : memref<2x2048xf32, #tpu.memory_space<vmem>>, vector<1x2048xf32>
    %102 = vector.broadcast %101 : vector<1x2048xf32> to vector<8x2048xf32>
    %103 = arith.addf %100, %102 : vector<8x2048xf32>
    %cst_40 = arith.constant 0.000000e+00 : f32
    %104 = vector.broadcast %cst_40 : f32 to vector<8x2048xf32>
    %105 = arith.maximumf %103, %104 : vector<8x2048xf32>
    %c3_i32_41 = arith.constant 3 : i32
    %106 = tpu.memref_slice %arg20[%c3_i32_41] : memref<6x!tpu.dma_semaphore, #tpu.memory_space<semaphore_mem>> -> memref<1x!tpu.dma_semaphore, #tpu.memory_space<semaphore_mem>>
    %107 = tpu.memref_squeeze %106 : memref<1x!tpu.dma_semaphore, #tpu.memory_space<semaphore_mem>> -> memref<!tpu.dma_semaphore, #tpu.memory_space<semaphore_mem>>
    tpu.wait_dma2 semaphore(%107 : memref<!tpu.dma_semaphore, #tpu.memory_space<semaphore_mem>>) src(%arg7 : memref<2048x1024xbf16, #tpu.memory_space<any>>) dst(%arg17 : memref<2048x1024xbf16, #tpu.memory_space<vmem>>)
    %108 = arith.truncf %105 : vector<8x2048xf32> to vector<8x2048xbf16>
    %c0_42 = arith.constant 0 : index
    %c0_43 = arith.constant 0 : index
    %109 = vector.load %arg17[%c0_42, %c0_43] : memref<2048x1024xbf16, #tpu.memory_space<vmem>>, vector<2048x1024xbf16>
    %cst_44 = arith.constant dense<0.000000e+00> : vector<8x1024xf32>
    %110 = tpu.matmul %108, %109, %cst_44 {dimension_numbers = #tpu.dot_dimension_numbers<[1], [0], [0], [1], [0, 0, 1, 1], [], []>} : vector<8x2048xbf16>, vector<2048x1024xbf16>, vector<8x1024xf32> -> vector<8x1024xf32>
    %cst_45 = arith.constant dense<0.000000e+00> : vector<1024xf32>
    %111 = vector.multi_reduction <add>, %110, %cst_45 [0] : vector<8x1024xf32> to vector<1024xf32>
    %112 = vector.shape_cast %111 : vector<1024xf32> to vector<1x1024xf32>
    %cst_46 = arith.constant 8.000000e+00 : f32
    %113 = vector.broadcast %cst_46 : f32 to vector<1x1024xf32>
    %114 = arith.divf %112, %113 : vector<1x1024xf32>
    %115 = vector.broadcast %114 : vector<1x1024xf32> to vector<8x1024xf32>
    %116 = arith.subf %110, %115 : vector<8x1024xf32>
    %117 = arith.mulf %116, %116 : vector<8x1024xf32>
    %cst_47 = arith.constant dense<0.000000e+00> : vector<1024xf32>
    %118 = vector.multi_reduction <add>, %117, %cst_47 [0] : vector<8x1024xf32> to vector<1024xf32>
    %119 = vector.shape_cast %118 : vector<1024xf32> to vector<1x1024xf32>
    %cst_48 = arith.constant 8.000000e+00 : f32
    %120 = vector.broadcast %cst_48 : f32 to vector<1x1024xf32>
    %121 = arith.divf %119, %120 : vector<1x1024xf32>
    %c0_49 = arith.constant 0 : index
    %c0_50 = arith.constant 0 : index
    %122 = vector.load %arg8[%c0_49, %c0_50] : memref<2x1024xf32, #tpu.memory_space<vmem>>, vector<1x1024xf32>
    %123 = vector.broadcast %114 : vector<1x1024xf32> to vector<8x1024xf32>
    %124 = arith.subf %110, %123 : vector<8x1024xf32>
    %125 = vector.broadcast %122 : vector<1x1024xf32> to vector<8x1024xf32>
    %126 = arith.mulf %125, %124 : vector<8x1024xf32>
    %cst_51 = arith.constant 9.99999974E-6 : f32
    %127 = vector.broadcast %cst_51 : f32 to vector<1x1024xf32>
    %128 = arith.addf %121, %127 : vector<1x1024xf32>
    %129 = math.rsqrt %128 : vector<1x1024xf32>
    %130 = vector.broadcast %129 : vector<1x1024xf32> to vector<8x1024xf32>
    %131 = arith.mulf %126, %130 : vector<8x1024xf32>
    %c1_52 = arith.constant 1 : index
    %c0_53 = arith.constant 0 : index
    %132 = vector.load %arg8[%c1_52, %c0_53] : memref<2x1024xf32, #tpu.memory_space<vmem>>, vector<1x1024xf32>
    %133 = vector.broadcast %132 : vector<1x1024xf32> to vector<8x1024xf32>
    %134 = arith.addf %131, %133 : vector<8x1024xf32>
    %cst_54 = arith.constant 0.000000e+00 : f32
    %135 = vector.broadcast %cst_54 : f32 to vector<8x1024xf32>
    %136 = arith.maximumf %134, %135 : vector<8x1024xf32>
    %c4_i32_55 = arith.constant 4 : i32
    %137 = tpu.memref_slice %arg20[%c4_i32_55] : memref<6x!tpu.dma_semaphore, #tpu.memory_space<semaphore_mem>> -> memref<1x!tpu.dma_semaphore, #tpu.memory_space<semaphore_mem>>
    %138 = tpu.memref_squeeze %137 : memref<1x!tpu.dma_semaphore, #tpu.memory_space<semaphore_mem>> -> memref<!tpu.dma_semaphore, #tpu.memory_space<semaphore_mem>>
    tpu.wait_dma2 semaphore(%138 : memref<!tpu.dma_semaphore, #tpu.memory_space<semaphore_mem>>) src(%arg9 : memref<1024x512xbf16, #tpu.memory_space<any>>) dst(%arg18 : memref<1024x512xbf16, #tpu.memory_space<vmem>>)
    %139 = arith.truncf %136 : vector<8x1024xf32> to vector<8x1024xbf16>
    %c0_56 = arith.constant 0 : index
    %c0_57 = arith.constant 0 : index
    %140 = vector.load %arg18[%c0_56, %c0_57] : memref<1024x512xbf16, #tpu.memory_space<vmem>>, vector<1024x512xbf16>
    %cst_58 = arith.constant dense<0.000000e+00> : vector<8x512xf32>
    %141 = tpu.matmul %139, %140, %cst_58 {dimension_numbers = #tpu.dot_dimension_numbers<[1], [0], [0], [1], [0, 0, 1, 1], [], []>} : vector<8x1024xbf16>, vector<1024x512xbf16>, vector<8x512xf32> -> vector<8x512xf32>
    %cst_59 = arith.constant dense<0.000000e+00> : vector<512xf32>
    %142 = vector.multi_reduction <add>, %141, %cst_59 [0] : vector<8x512xf32> to vector<512xf32>
    %143 = vector.shape_cast %142 : vector<512xf32> to vector<1x512xf32>
    %cst_60 = arith.constant 8.000000e+00 : f32
    %144 = vector.broadcast %cst_60 : f32 to vector<1x512xf32>
    %145 = arith.divf %143, %144 : vector<1x512xf32>
    %146 = vector.broadcast %145 : vector<1x512xf32> to vector<8x512xf32>
    %147 = arith.subf %141, %146 : vector<8x512xf32>
    %148 = arith.mulf %147, %147 : vector<8x512xf32>
    %cst_61 = arith.constant dense<0.000000e+00> : vector<512xf32>
    %149 = vector.multi_reduction <add>, %148, %cst_61 [0] : vector<8x512xf32> to vector<512xf32>
    %150 = vector.shape_cast %149 : vector<512xf32> to vector<1x512xf32>
    %cst_62 = arith.constant 8.000000e+00 : f32
    %151 = vector.broadcast %cst_62 : f32 to vector<1x512xf32>
    %152 = arith.divf %150, %151 : vector<1x512xf32>
    %c0_63 = arith.constant 0 : index
    %c0_64 = arith.constant 0 : index
    %153 = vector.load %arg10[%c0_63, %c0_64] : memref<2x512xf32, #tpu.memory_space<vmem>>, vector<1x512xf32>
    %154 = vector.broadcast %145 : vector<1x512xf32> to vector<8x512xf32>
    %155 = arith.subf %141, %154 : vector<8x512xf32>
    %156 = vector.broadcast %153 : vector<1x512xf32> to vector<8x512xf32>
    %157 = arith.mulf %156, %155 : vector<8x512xf32>
    %cst_65 = arith.constant 9.99999974E-6 : f32
    %158 = vector.broadcast %cst_65 : f32 to vector<1x512xf32>
    %159 = arith.addf %152, %158 : vector<1x512xf32>
    %160 = math.rsqrt %159 : vector<1x512xf32>
    %161 = vector.broadcast %160 : vector<1x512xf32> to vector<8x512xf32>
    %162 = arith.mulf %157, %161 : vector<8x512xf32>
    %c1_66 = arith.constant 1 : index
    %c0_67 = arith.constant 0 : index
    %163 = vector.load %arg10[%c1_66, %c0_67] : memref<2x512xf32, #tpu.memory_space<vmem>>, vector<1x512xf32>
    %164 = vector.broadcast %163 : vector<1x512xf32> to vector<8x512xf32>
    %165 = arith.addf %162, %164 : vector<8x512xf32>
    %cst_68 = arith.constant 0.000000e+00 : f32
    %166 = vector.broadcast %cst_68 : f32 to vector<8x512xf32>
    %167 = arith.maximumf %165, %166 : vector<8x512xf32>
    %c5_i32_69 = arith.constant 5 : i32
    %168 = tpu.memref_slice %arg20[%c5_i32_69] : memref<6x!tpu.dma_semaphore, #tpu.memory_space<semaphore_mem>> -> memref<1x!tpu.dma_semaphore, #tpu.memory_space<semaphore_mem>>
    %169 = tpu.memref_squeeze %168 : memref<1x!tpu.dma_semaphore, #tpu.memory_space<semaphore_mem>> -> memref<!tpu.dma_semaphore, #tpu.memory_space<semaphore_mem>>
    tpu.wait_dma2 semaphore(%169 : memref<!tpu.dma_semaphore, #tpu.memory_space<semaphore_mem>>) src(%arg11 : memref<512x128xbf16, #tpu.memory_space<any>>) dst(%arg19 : memref<512x128xbf16, #tpu.memory_space<vmem>>)
    %170 = arith.truncf %167 : vector<8x512xf32> to vector<8x512xbf16>
    %c0_70 = arith.constant 0 : index
    %c0_71 = arith.constant 0 : index
    %171 = vector.load %arg19[%c0_70, %c0_71] : memref<512x128xbf16, #tpu.memory_space<vmem>>, vector<512x128xbf16>
    %cst_72 = arith.constant dense<0.000000e+00> : vector<8x128xf32>
    %172 = tpu.matmul %170, %171, %cst_72 {dimension_numbers = #tpu.dot_dimension_numbers<[1], [0], [0], [1], [0, 0, 1, 1], [], []>} : vector<8x512xbf16>, vector<512x128xbf16>, vector<8x128xf32> -> vector<8x128xf32>
    %c0_73 = arith.constant 0 : index
    %c0_74 = arith.constant 0 : index
    %173 = vector.load %arg12[%c0_73, %c0_74] : memref<1x128xf32, #tpu.memory_space<vmem>>, vector<1x128xf32>
    %174 = vector.broadcast %173 : vector<1x128xf32> to vector<8x128xf32>
    %175 = arith.addf %172, %174 : vector<8x128xf32>
    %c0_75 = arith.constant 0 : index
    %c0_76 = arith.constant 0 : index
    %176 = vector.load %arg13[%c0_75, %c0_76] : memref<8x128xf32, #tpu.memory_space<vmem>>, vector<8x128xf32>
    tpu.vector_store %arg13[%c0_75, %c0_76], %175 {strides = array<i32>} : memref<8x128xf32, #tpu.memory_space<vmem>>, vector<8x128xf32>,
    return
  }
}

</mosaic_0001>

<llo_original>
// kernel: tpu_custom_call.1
$region0: #{tpu_custom_call.1}
  #allocation0 [shape = 'u32[]', space=smem, size = 0x4, offset = 0x4, fixed_abs, tag = 'smem constant byte address 0x4 - core index']
  #allocation1 [shape = 'u32[144,128]{1,0:T(1,128)}', space=vmem, size = 0x12000, scoped, tag = 'internal scratch']
  #allocation2 [shape = 'bf16[128,512]{1,0:T(16,128)(2,1)}', space=vmem, size = 0x20000, scoped, tag = 'scratch operand']
  #allocation3 [shape = 'bf16[512,1024]{1,0:T(16,128)(2,1)}', space=vmem, size = 0x100000, scoped, tag = 'scratch operand']
  #allocation4 [shape = 'bf16[1024,2048]{1,0:T(16,128)(2,1)}', space=vmem, size = 0x400000, scoped, tag = 'scratch operand']
  #allocation5 [shape = 'bf16[2048,1024]{1,0:T(16,128)(2,1)}', space=vmem, size = 0x400000, scoped, tag = 'scratch operand']
  #allocation6 [shape = 'bf16[1024,512]{1,0:T(16,128)(2,1)}', space=vmem, size = 0x100000, scoped, tag = 'scratch operand']
  #allocation7 [shape = 'bf16[512,128]{1,0:T(16,128)(2,1)}', space=vmem, size = 0x20000, scoped, tag = 'scratch operand']
  #allocation8 [shape = 's32[6]{0}', space=sflag, size = 0x18, scoped, tag = 'scratch operand']
  #allocation22 [shape = 's32[]', space=sflag, size = 0x4, offset = 0, fixed_abs, tag = 'sflag constant byte address 0x0 - dummy sync flag']
  #allocation24 [shape = 's32[]', space=sflag, size = 0x4, offset = 0, fixed_abs, tag = 'sflag constant byte address 0x0 - dummy sync flag']
  #allocation26 [shape = 's32[]', space=sflag, size = 0x4, offset = 0, fixed_abs, tag = 'sflag constant byte address 0x0 - dummy sync flag']
  #allocation28 [shape = 's32[]', space=sflag, size = 0x4, offset = 0, fixed_abs, tag = 'sflag constant byte address 0x0 - dummy sync flag']
  #allocation30 [shape = 's32[]', space=sflag, size = 0x4, offset = 0, fixed_abs, tag = 'sflag constant byte address 0x0 - dummy sync flag']
  #allocation32 [shape = 's32[]', space=sflag, size = 0x4, offset = 0, fixed_abs, tag = 'sflag constant byte address 0x0 - dummy sync flag']
  #allocation33 [shape = 's32[]', space=sflag, size = 0x4, offset = 0, fixed_abs, tag = 'sflag constant byte address 0x0 - dummy sync flag']
  #allocation34 [shape = 'u32[]', space=smem, size = 0x4, offset = 0x44, fixed_abs, tag = 'smem constant byte address 0x44 - assertion arg 0']
  #allocation35 [shape = 'u32[]', space=smem, size = 0x4, offset = 0x48, fixed_abs, tag = 'smem constant byte address 0x48 - assertion arg 1']
  %s0 = inlined_call_operand.hbm [shape: f32[8,128], index: 0, kind: input, shape index: {}]
  %s1 = inlined_call_operand.hbm [shape: bf16[128,512], index: 1, kind: input, shape index: {}]
  %s2 = inlined_call_operand.hbm [shape: f32[2,512], index: 2, kind: input, shape index: {}]
  %s3 = inlined_call_operand.hbm [shape: bf16[512,1024], index: 3, kind: input, shape index: {}]
  %s4 = inlined_call_operand.hbm [shape: f32[2,1024], index: 4, kind: input, shape index: {}]
  %s5 = inlined_call_operand.hbm [shape: bf16[1024,2048], index: 5, kind: input, shape index: {}]
  %s6 = inlined_call_operand.hbm [shape: f32[2,2048], index: 6, kind: input, shape index: {}]
  %s7 = inlined_call_operand.hbm [shape: bf16[2048,1024], index: 7, kind: input, shape index: {}]
  %s8 = inlined_call_operand.hbm [shape: f32[2,1024], index: 8, kind: input, shape index: {}]
  %s9 = inlined_call_operand.hbm [shape: bf16[1024,512], index: 9, kind: input, shape index: {}]
  %s10 = inlined_call_operand.hbm [shape: f32[2,512], index: 10, kind: input, shape index: {}]
  %s11 = inlined_call_operand.hbm [shape: bf16[512,128], index: 11, kind: input, shape index: {}]
  %s12 = inlined_call_operand.hbm [shape: f32[1,128], index: 12, kind: input, shape index: {}]
  %s13 = inlined_call_operand.hbm [shape: f32[8,128], index: 13, kind: output, shape index: {}]
  %s14 = sld [smem:[#allocation0]]
  $region70: #{tpu_custom_call.1} parent=0
    _
  %s16 = ssub.s32 1, %s14
  %s17 = scalar_select 0, %s16, %s14
  $region1: #{tpu_custom_call.1} parent=0
    #allocation9 [shape = 'u8[4096]{0}', space=vmem, size = 0x1000, scoped, tag = 'input window, operand 0, single buffered']
    #allocation10 [shape = 's32[1]{0}', space=sflag, size = 0x4, scoped, tag = 'scoped memory for tpu_custom_call.1']
    #allocation11 [shape = 's32[1]{0}', space=sflag, size = 0x4, scoped, tag = 'scoped memory for tpu_custom_call.1']
    #allocation12 [shape = 'u8[4096]{0}', space=vmem, size = 0x1000, scoped, tag = 'input window, operand 2, single buffered']
    #allocation13 [shape = 's32[1]{0}', space=sflag, size = 0x4, scoped, tag = 'scoped memory for tpu_custom_call.1']
    #allocation14 [shape = 'u8[8192]{0}', space=vmem, size = 0x2000, scoped, tag = 'input window, operand 4, single buffered']
    #allocation15 [shape = 'u8[16384]{0}', space=vmem, size = 0x4000, scoped, tag = 'input window, operand 6, single buffered']
    #allocation16 [shape = 's32[1]{0}', space=sflag, size = 0x4, scoped, tag = 'scoped memory for tpu_custom_call.1']
    #allocation17 [shape = 'u8[8192]{0}', space=vmem, size = 0x2000, scoped, tag = 'input window, operand 8, single buffered']
    #allocation18 [shape = 'u8[4096]{0}', space=vmem, size = 0x1000, scoped, tag = 'input window, operand 10, single buffered']
    #allocation19 [shape = 's32[1]{0}', space=sflag, size = 0x4, scoped, tag = 'scoped memory for tpu_custom_call.1']
    #allocation20 [shape = 'u8[512]{0}', space=vmem, size = 0x400, scoped, tag = 'input window, operand 12, single buffered']
    #allocation21 [shape = 'u8[4096]{0}', space=vmem, size = 0x1000, scoped, tag = 'output window, operand 0, single buffered']
    #allocation23 [shape = 'u32[9]{0}', space=smem, size = 0x24, scoped, tag = 'DMA stride descriptor']
    #allocation25 [shape = 'u32[9]{0}', space=smem, size = 0x24, scoped, tag = 'DMA stride descriptor']
    #allocation27 [shape = 'u32[9]{0}', space=smem, size = 0x24, scoped, tag = 'DMA stride descriptor']
    #allocation29 [shape = 'u32[9]{0}', space=smem, size = 0x24, scoped, tag = 'DMA stride descriptor']
    #allocation31 [shape = 'u32[9]{0}', space=smem, size = 0x24, scoped, tag = 'DMA stride descriptor']
    %18 = vsyncpa [#allocation10], 0
    %19 = vsyncpa [#allocation13], 0
    %20 = vsyncpa [#allocation16], 0
    %21 = vsyncpa [#allocation19], 0
    %22 = vsyncpa [#allocation11], 0
    // Predicated region
    $region2: #{tpu_custom_call.1} parent=1 // pred_check
      _
    $region3: #{tpu_custom_call.1} parent=1 // pred_check_branch
      %24 = sbr.rel (0) target = $region5
    $region4: #{tpu_custom_call.1} parent=1 // pred_region
      %s26 = ssub.s32 128, 128
      %27 = vsyncadd [#allocation10], %s26
      %s29 = sshll.u32 [#allocation9], 4
      %s30 = int_to_ptr.vmem [resolvable:$true] %s29
      %32 = dma.hbm_to_vmem [thread:$0]  %s0, 128, %s30, [#allocation10]
    $region5: #{tpu_custom_call.1} parent=1 // pred_fallthru
      _
    // Predicated region
    $region6: #{tpu_custom_call.1} parent=1 // pred_check
      _
    $region7: #{tpu_custom_call.1} parent=1 // pred_check_branch
      %34 = sbr.rel (0) target = $region9
    $region8: #{tpu_custom_call.1} parent=1 // pred_region
      %s36 = ssub.s32 128, 128
      %37 = vsyncadd [#allocation13], %s36
      %s39 = sshll.u32 [#allocation12], 4
      %s40 = int_to_ptr.vmem [resolvable:$true] %s39
      %42 = dma.hbm_to_vmem [thread:$0]  %s2, 128, %s40, [#allocation13]
    $region9: #{tpu_custom_call.1} parent=1 // pred_fallthru
      _
    // Predicated region
    $region10: #{tpu_custom_call.1} parent=1 // pred_check
      _
    $region11: #{tpu_custom_call.1} parent=1 // pred_check_branch
      %44 = sbr.rel (0) target = $region13
    $region12: #{tpu_custom_call.1} parent=1 // pred_region
      %s46 = ssub.s32 256, 256
      %47 = vsyncadd [#allocation13], %s46
      %s49 = sshll.u32 [#allocation14], 4
      %s50 = int_to_ptr.vmem [resolvable:$true] %s49
      %52 = dma.hbm_to_vmem [thread:$0]  %s4, 256, %s50, [#allocation13]
    $region13: #{tpu_custom_call.1} parent=1 // pred_fallthru
      _
    // Predicated region
    $region14: #{tpu_custom_call.1} parent=1 // pred_check
      _
    $region15: #{tpu_custom_call.1} parent=1 // pred_check_branch
      %54 = sbr.rel (0) target = $region17
    $region16: #{tpu_custom_call.1} parent=1 // pred_region
      %s56 = ssub.s32 512, 512
      %57 = vsyncadd [#allocation16], %s56
      %s59 = sshll.u32 [#allocation15], 4
      %s60 = int_to_ptr.vmem [resolvable:$true] %s59
      %62 = dma.hbm_to_vmem [thread:$0]  %s6, 512, %s60, [#allocation16]
    $region17: #{tpu_custom_call.1} parent=1 // pred_fallthru
      _
    // Predicated region
    $region18: #{tpu_custom_call.1} parent=1 // pred_check
      _
    $region19: #{tpu_custom_call.1} parent=1 // pred_check_branch
      %64 = sbr.rel (0) target = $region21
    $region20: #{tpu_custom_call.1} parent=1 // pred_region
      %s66 = ssub.s32 256, 256
      %67 = vsyncadd [#allocation16], %s66
      %s69 = sshll.u32 [#allocation17], 4
      %s70 = int_to_ptr.vmem [resolvable:$true] %s69
      %72 = dma.hbm_to_vmem [thread:$0]  %s8, 256, %s70, [#allocation16]
    $region21: #{tpu_custom_call.1} parent=1 // pred_fallthru
      _
    // Predicated region
    $region22: #{tpu_custom_call.1} parent=1 // pred_check
      _
    $region23: #{tpu_custom_call.1} parent=1 // pred_check_branch
      %74 = sbr.rel (0) target = $region25
    $region24: #{tpu_custom_call.1} parent=1 // pred_region
      %s76 = ssub.s32 128, 128
      %77 = vsyncadd [#allocation19], %s76
      %s79 = sshll.u32 [#allocation18], 4
      %s80 = int_to_ptr.vmem [resolvable:$true] %s79
      %82 = dma.hbm_to_vmem [thread:$0]  %s10, 128, %s80, [#allocation19]
    $region25: #{tpu_custom_call.1} parent=1 // pred_fallthru
      _
    // Predicated region
    $region26: #{tpu_custom_call.1} parent=1 // pred_check
      _
    $region27: #{tpu_custom_call.1} parent=1 // pred_check_branch
      %84 = sbr.rel (0) target = $region29
    $region28: #{tpu_custom_call.1} parent=1 // pred_region
      %s86 = ssub.s32 16, 16
      %87 = vsyncadd [#allocation19], %s86
      %s89 = sshll.u32 [#allocation20], 4
      %s90 = int_to_ptr.vmem [resolvable:$true] %s89
      %92 = dma.hbm_to_vmem [thread:$0]  %s12, 16, %s90, [#allocation19]
    $region29: #{tpu_custom_call.1} parent=1 // pred_fallthru
      _
    // Predicated region
    $region30: #{tpu_custom_call.1} parent=1 // pred_check
      _
    $region31: #{tpu_custom_call.1} parent=1 // pred_check_branch
      %94 = sbr.rel (0) target = $region33
    $region32: #{tpu_custom_call.1} parent=1 // pred_region
      %95 = dma.done [#allocation10], 128
    $region33: #{tpu_custom_call.1} parent=1 // pred_fallthru
      _
    // Predicated region
    $region34: #{tpu_custom_call.1} parent=1 // pred_check
      _
    $region35: #{tpu_custom_call.1} parent=1 // pred_check_branch
      %97 = sbr.rel (0) target = $region37
    $region36: #{tpu_custom_call.1} parent=1 // pred_region
      %98 = dma.done [#allocation13], 128
    $region37: #{tpu_custom_call.1} parent=1 // pred_fallthru
      _
    // Predicated region
    $region38: #{tpu_custom_call.1} parent=1 // pred_check
      _
    $region39: #{tpu_custom_call.1} parent=1 // pred_check_branch
      %100 = sbr.rel (0) target = $region41
    $region40: #{tpu_custom_call.1} parent=1 // pred_region
      %101 = dma.done [#allocation13], 256
    $region41: #{tpu_custom_call.1} parent=1 // pred_fallthru
      _
    // Predicated region
    $region42: #{tpu_custom_call.1} parent=1 // pred_check
      _
    $region43: #{tpu_custom_call.1} parent=1 // pred_check_branch
      %103 = sbr.rel (0) target = $region45
    $region44: #{tpu_custom_call.1} parent=1 // pred_region
      %104 = dma.done [#allocation16], 512
    $region45: #{tpu_custom_call.1} parent=1 // pred_fallthru
      _
    // Predicated region
    $region46: #{tpu_custom_call.1} parent=1 // pred_check
      _
    $region47: #{tpu_custom_call.1} parent=1 // pred_check_branch
      %106 = sbr.rel (0) target = $region49
    $region48: #{tpu_custom_call.1} parent=1 // pred_region
      %107 = dma.done [#allocation16], 256
    $region49: #{tpu_custom_call.1} parent=1 // pred_fallthru
      _
    // Predicated region
    $region50: #{tpu_custom_call.1} parent=1 // pred_check
      _
    $region51: #{tpu_custom_call.1} parent=1 // pred_check_branch
      %109 = sbr.rel (0) target = $region53
    $region52: #{tpu_custom_call.1} parent=1 // pred_region
      %110 = dma.done [#allocation19], 128
    $region53: #{tpu_custom_call.1} parent=1 // pred_fallthru
      _
    // Predicated region
    $region54: #{tpu_custom_call.1} parent=1 // pred_check
      _
    $region55: #{tpu_custom_call.1} parent=1 // pred_check_branch
      %112 = sbr.rel (0) target = $region57
    $region56: #{tpu_custom_call.1} parent=1 // pred_region
      %113 = dma.done [#allocation19], 16
    $region57: #{tpu_custom_call.1} parent=1 // pred_fallthru
      _
    %s116 = sshll.u32 1, 14
    %s117 = sxor.u32 4294967295, %s116
    %s119 = sld [smem:[#allocation0]]
    %s120 = sadd.s32 2, %s119
    %s122 = sshll.u32 7, 26
    %s123 = sxor.u32 4294967295, %s122
    %s124 = sand.u32 0, %s123
    %s125 = sshll.u32 %s120, 26
    %s126 = sor.u32 %s124, %s125
    %s127 = sshll.u32 [#allocation2], 4
    %s128 = int_to_ptr.vmem [resolvable:$true] %s127
    %131 = sst [smem:[#allocation23]] 512
    %s132 = scalar_lea.smem [#allocation23], 1
    %133 = sst [smem:[%s132]] 512
    %s134 = scalar_lea.smem [#allocation23], 2
    %135 = sst [smem:[%s134]] 4
    %s136 = scalar_lea.smem [#allocation23], 3
    %137 = sst [smem:[%s136]] 64
    %s138 = scalar_lea.smem [#allocation23], 4
    %139 = sst [smem:[%s138]] 128
    %s140 = scalar_lea.smem [#allocation23], 5
    %141 = sst [smem:[%s140]] 2
    %s142 = scalar_lea.smem [#allocation23], 6
    %143 = sst [smem:[%s142]] 256
    %s144 = scalar_lea.smem [#allocation23], 7
    %145 = sst [smem:[%s144]] 64
    %s146 = scalar_lea.smem [#allocation23], 8
    %147 = sst [smem:[%s146]] 4
    %149 = dma.general %s1, 4096, %s128, [#allocation8], [#allocation22], [#allocation23], %s126, 0
    %s150 = scalar_lea.sflag [#allocation8], 1
    %s152 = sshll.u32 1, 14
    %s153 = sxor.u32 4294967295, %s152
    %s155 = sadd.s32 2, %s119
    %s157 = sshll.u32 7, 26
    %s158 = sxor.u32 4294967295, %s157
    %s159 = sand.u32 0, %s158
    %s160 = sshll.u32 %s155, 26
    %s161 = sor.u32 %s159, %s160
    %s162 = sshll.u32 [#allocation3], 4
    %s163 = int_to_ptr.vmem [resolvable:$true] %s162
    %166 = sst [smem:[#allocation25]] 1024
    %s167 = scalar_lea.smem [#allocation25], 1
    %168 = sst [smem:[%s167]] 1024
    %s169 = scalar_lea.smem [#allocation25], 2
    %170 = sst [smem:[%s169]] 8
    %s171 = scalar_lea.smem [#allocation25], 3
    %172 = sst [smem:[%s171]] 64
    %s173 = scalar_lea.smem [#allocation25], 4
    %174 = sst [smem:[%s173]] 128
    %s175 = scalar_lea.smem [#allocation25], 5
    %176 = sst [smem:[%s175]] 2
    %s177 = scalar_lea.smem [#allocation25], 6
    %178 = sst [smem:[%s177]] 512
    %s179 = scalar_lea.smem [#allocation25], 7
    %180 = sst [smem:[%s179]] 64
    %s181 = scalar_lea.smem [#allocation25], 8
    %182 = sst [smem:[%s181]] 4
    %184 = dma.general %s3, 32768, %s163, %s150, [#allocation24], [#allocation25], %s161, 0
    %s185 = scalar_lea.sflag [#allocation8], 2
    %s187 = sshll.u32 1, 14
    %s188 = sxor.u32 4294967295, %s187
    %s190 = sadd.s32 2, %s119
    %s192 = sshll.u32 7, 26
    %s193 = sxor.u32 4294967295, %s192
    %s194 = sand.u32 0, %s193
    %s195 = sshll.u32 %s190, 26
    %s196 = sor.u32 %s194, %s195
    %s197 = sshll.u32 [#allocation4], 4
    %s198 = int_to_ptr.vmem [resolvable:$true] %s197
    %201 = sst [smem:[#allocation27]] 2048
    %s202 = scalar_lea.smem [#allocation27], 1
    %203 = sst [smem:[%s202]] 2048
    %s204 = scalar_lea.smem [#allocation27], 2
    %205 = sst [smem:[%s204]] 16
    %s206 = scalar_lea.smem [#allocation27], 3
    %207 = sst [smem:[%s206]] 64
    %s208 = scalar_lea.smem [#allocation27], 4
    %209 = sst [smem:[%s208]] 128
    %s210 = scalar_lea.smem [#allocation27], 5
    %211 = sst [smem:[%s210]] 2
    %s212 = scalar_lea.smem [#allocation27], 6
    %213 = sst [smem:[%s212]] 1024
    %s214 = scalar_lea.smem [#allocation27], 7
    %215 = sst [smem:[%s214]] 64
    %s216 = scalar_lea.smem [#allocation27], 8
    %217 = sst [smem:[%s216]] 4
    %219 = dma.general %s5, 131072, %s198, %s185, [#allocation26], [#allocation27], %s196, 0
    %s220 = scalar_lea.sflag [#allocation8], 3
    %s222 = sshll.u32 1, 14
    %s223 = sxor.u32 4294967295, %s222
    %s225 = sadd.s32 2, %s119
    %s227 = sshll.u32 7, 26
    %s228 = sxor.u32 4294967295, %s227
    %s229 = sand.u32 0, %s228
    %s230 = sshll.u32 %s225, 26
    %s231 = sor.u32 %s229, %s230
    %s232 = sshll.u32 [#allocation5], 4
    %s233 = int_to_ptr.vmem [resolvable:$true] %s232
    %236 = sst [smem:[#allocation29]] 1024
    %s237 = scalar_lea.smem [#allocation29], 1
    %238 = sst [smem:[%s237]] 1024
    %s239 = scalar_lea.smem [#allocation29], 2
    %240 = sst [smem:[%s239]] 8
    %s241 = scalar_lea.smem [#allocation29], 3
    %242 = sst [smem:[%s241]] 64
    %s243 = scalar_lea.smem [#allocation29], 4
    %244 = sst [smem:[%s243]] 128
    %s245 = scalar_lea.smem [#allocation29], 5
    %246 = sst [smem:[%s245]] 2
    %s247 = scalar_lea.smem [#allocation29], 6
    %248 = sst [smem:[%s247]] 512
    %s249 = scalar_lea.smem [#allocation29], 7
    %250 = sst [smem:[%s249]] 64
    %s251 = scalar_lea.smem [#allocation29], 8
    %252 = sst [smem:[%s251]] 4
    %254 = dma.general %s7, 131072, %s233, %s220, [#allocation28], [#allocation29], %s231, 0
    %s255 = scalar_lea.sflag [#allocation8], 4
    %s257 = sshll.u32 1, 14
    %s258 = sxor.u32 4294967295, %s257
    %s260 = sadd.s32 2, %s119
    %s262 = sshll.u32 7, 26
    %s263 = sxor.u32 4294967295, %s262
    %s264 = sand.u32 0, %s263
    %s265 = sshll.u32 %s260, 26
    %s266 = sor.u32 %s264, %s265
    %s267 = sshll.u32 [#allocation6], 4
    %s268 = int_to_ptr.vmem [resolvable:$true] %s267
    %271 = sst [smem:[#allocation31]] 512
    %s272 = scalar_lea.smem [#allocation31], 1
    %273 = sst [smem:[%s272]] 512
    %s274 = scalar_lea.smem [#allocation31], 2
    %275 = sst [smem:[%s274]] 4
    %s276 = scalar_lea.smem [#allocation31], 3
    %277 = sst [smem:[%s276]] 64
    %s278 = scalar_lea.smem [#allocation31], 4
    %279 = sst [smem:[%s278]] 128
    %s280 = scalar_lea.smem [#allocation31], 5
    %281 = sst [smem:[%s280]] 2
    %s282 = scalar_lea.smem [#allocation31], 6
    %283 = sst [smem:[%s282]] 256
    %s284 = scalar_lea.smem [#allocation31], 7
    %285 = sst [smem:[%s284]] 64
    %s286 = scalar_lea.smem [#allocation31], 8
    %287 = sst [smem:[%s286]] 4
    %289 = dma.general %s9, 32768, %s268, %s255, [#allocation30], [#allocation31], %s266, 0
    %s290 = scalar_lea.sflag [#allocation8], 5
    // Predicated region
    $region58: #{tpu_custom_call.1} parent=1 // pred_check
      _
    $region59: #{tpu_custom_call.1} parent=1 // pred_check_branch
      %292 = sbr.rel target = $region61
    $region60: #{tpu_custom_call.1} parent=1 // pred_region
      %293 = sst [smem:[#allocation34]] [#allocation33]
      %294 = sst [smem:[#allocation35]] [#allocation32]
    $region61: #{tpu_custom_call.1} parent=1 // pred_fallthru
      _
    %296 = shalt.err (0)
    %s298 = sshll.u32 [#allocation7], 4
    %s299 = int_to_ptr.vmem [resolvable:$true] %s298
    %301 = dma.hbm_to_vmem [thread:$0]  %s11, 4096, %s299, %s290
    %v302 = vld [vmem:[#allocation9] sm:$0xff]
    %s303 = smul.u32 4, 16
    %s304 = smul.u32 %s303, 4
    %s305 = sshll.u32 %s304, 4
    %306 = dma.done [#allocation8], %s305
    %v307 = vpack.c.bf16 %v302, %v302
    %v308 = vld [vmem:[#allocation2] sm:$0xff]
    %v309 = vld [vmem:[#allocation2 + $0x8] sm:$0xff]
    %v310 = vld [vmem:[#allocation2 + $0x10] sm:$0xff]
    %v311 = vld [vmem:[#allocation2 + $0x18] sm:$0xff]
    %v312 = vld [vmem:[#allocation2 + $0x20] sm:$0xff]
    %v313 = vld [vmem:[#allocation2 + $0x28] sm:$0xff]
    %v314 = vld [vmem:[#allocation2 + $0x30] sm:$0xff]
    %v315 = vld [vmem:[#allocation2 + $0x38] sm:$0xff]
    %v316 = vld [vmem:[#allocation2 + $0x40] sm:$0xff]
    %v317 = vld [vmem:[#allocation2 + $0x48] sm:$0xff]
    %v318 = vld [vmem:[#allocation2 + $0x50] sm:$0xff]
    %v319 = vld [vmem:[#allocation2 + $0x58] sm:$0xff]
    %v320 = vld [vmem:[#allocation2 + $0x60] sm:$0xff]
    %v321 = vld [vmem:[#allocation2 + $0x68] sm:$0xff]
    %v322 = vld [vmem:[#allocation2 + $0x70] sm:$0xff]
    %v323 = vld [vmem:[#allocation2 + $0x78] sm:$0xff]
    %v324 = vld [vmem:[#allocation2 + $0x80] sm:$0xff]
    %v325 = vld [vmem:[#allocation2 + $0x88] sm:$0xff]
    %v326 = vld [vmem:[#allocation2 + $0x90] sm:$0xff]
    %v327 = vld [vmem:[#allocation2 + $0x98] sm:$0xff]
    %v328 = vld [vmem:[#allocation2 + $0xa0] sm:$0xff]
    %v329 = vld [vmem:[#allocation2 + $0xa8] sm:$0xff]
    %v330 = vld [vmem:[#allocation2 + $0xb0] sm:$0xff]
    %v331 = vld [vmem:[#allocation2 + $0xb8] sm:$0xff]
    %v332 = vld [vmem:[#allocation2 + $0xc0] sm:$0xff]
    %v333 = vld [vmem:[#allocation2 + $0xc8] sm:$0xff]
    %v334 = vld [vmem:[#allocation2 + $0xd0] sm:$0xff]
    %v335 = vld [vmem:[#allocation2 + $0xd8] sm:$0xff]
    %v336 = vld [vmem:[#allocation2 + $0xe0] sm:$0xff]
    %v337 = vld [vmem:[#allocation2 + $0xe8] sm:$0xff]
    %v338 = vld [vmem:[#allocation2 + $0xf0] sm:$0xff]
    %v339 = vld [vmem:[#allocation2 + $0xf8] sm:$0xff]
    %340 = vmatprep.subr.bf16.mxu0 %v309
    %341 = vmatpush1.bf16.msra.mxu0 %v308
    %342 = vmatprep.subr.bf16.mxu0 %v313
    %343 = vmatpush1.bf16.msra.mxu0 %v312
    %344 = vmatprep.subr.bf16.mxu0 %v317
    %345 = vmatpush1.bf16.msra.mxu0 %v316
    %346 = vmatprep.subr.bf16.mxu0 %v321
    %347 = vmatpush1.bf16.msra.mxu0 %v320
    %348 = vmatprep.subr.bf16.mxu0 %v325
    %349 = vmatpush1.bf16.msra.mxu0 %v324
    %350 = vmatprep.subr.bf16.mxu0 %v329
    %351 = vmatpush1.bf16.msra.mxu0 %v328
    %352 = vmatprep.subr.bf16.mxu0 %v333
    %353 = vmatpush1.bf16.msra.mxu0 %v332
    %354 = vmatprep.subr.bf16.mxu0 %v337
    %355 = vmatpush1.bf16.msra.mxu0 %v336
    %356 = vmatprep.subr.bf16.mxu0 0
    %357 = vmatpush1.bf16.msra.mxu0 0
    %358 = vmatprep.subr.bf16.mxu0 0
    %359 = vmatpush1.bf16.msra.mxu0 0
    %360 = vmatprep.subr.bf16.mxu0 0
    %361 = vmatpush1.bf16.msra.mxu0 0
    %362 = vmatprep.subr.bf16.mxu0 0
    %363 = vmatpush1.bf16.msra.mxu0 0
    %364 = vmatprep.subr.bf16.mxu0 0
    %365 = vmatpush1.bf16.msra.mxu0 0
    %366 = vmatprep.subr.bf16.mxu0 0
    %367 = vmatpush1.bf16.msra.mxu0 0
    %368 = vmatprep.subr.bf16.mxu0 0
    %369 = vmatpush1.bf16.msra.mxu0 0
    %370 = vmatprep.subr.bf16.mxu0 0
    %371 = vmatpush1.bf16.msra.mxu0 0
    %372 = vmatprep.mubr.bf16.mxu0 0
    %373 = vmatmul.mubr.bf16.gmra.mrb[0].mxu0 %v307
    %v374 = vpop.f32.mrb[0].mxu0
    %v375 = vadd.f32 0.0, %v374
    %v376 = vpop.f32.mrb[0].mxu0
    %v377 = vadd.f32 0.0, %v376
    %v378 = vpop.f32.mrb[0].mxu0
    %v379 = vpop.f32.mrb[0].mxu0
    %380 = vdwg.mxu0
    %381 = vmatprep.subr.bf16.mxu0 %v311
    %382 = vmatpush1.bf16.msra.mxu0 %v310
    %383 = vmatprep.subr.bf16.mxu0 %v315
    %384 = vmatpush1.bf16.msra.mxu0 %v314
    %385 = vmatprep.subr.bf16.mxu0 %v319
    %386 = vmatpush1.bf16.msra.mxu0 %v318
    %387 = vmatprep.subr.bf16.mxu0 %v323
    %388 = vmatpush1.bf16.msra.mxu0 %v322
    %389 = vmatprep.subr.bf16.mxu0 %v327
    %390 = vmatpush1.bf16.msra.mxu0 %v326
    %391 = vmatprep.subr.bf16.mxu0 %v331
    %392 = vmatpush1.bf16.msra.mxu0 %v330
    %393 = vmatprep.subr.bf16.mxu0 %v335
    %394 = vmatpush1.bf16.msra.mxu0 %v334
    %395 = vmatprep.subr.bf16.mxu0 %v339
    %396 = vmatpush1.bf16.msra.mxu0 %v338
    %397 = vmatprep.subr.bf16.mxu0 0
    %398 = vmatpush1.bf16.msra.mxu0 0
    %399 = vmatprep.subr.bf16.mxu0 0
    %400 = vmatpush1.bf16.msra.mxu0 0
    %401 = vmatprep.subr.bf16.mxu0 0
    %402 = vmatpush1.bf16.msra.mxu0 0
    %403 = vmatprep.subr.bf16.mxu0 0
    %404 = vmatpush1.bf16.msra.mxu0 0
    %405 = vmatprep.subr.bf16.mxu0 0
    %406 = vmatpush1.bf16.msra.mxu0 0
    %407 = vmatprep.subr.bf16.mxu0 0
    %408 = vmatpush1.bf16.msra.mxu0 0
    %409 = vmatprep.subr.bf16.mxu0 0
    %410 = vmatpush1.bf16.msra.mxu0 0
    %411 = vmatprep.subr.bf16.mxu0 0
    %412 = vmatpush1.bf16.msra.mxu0 0
    %413 = vmatprep.mubr.bf16.mxu0 0
    %414 = vmatmul.mubr.bf16.gmra.mrb[0].mxu0 %v307
    %v415 = vpop.f32.mrb[0].mxu0
    %v416 = vadd.f32 0.0, %v415
    %v417 = vpop.f32.mrb[0].mxu0
    %v418 = vadd.f32 0.0, %v417
    %v419 = vpop.f32.mrb[0].mxu0
    %v420 = vpop.f32.mrb[0].mxu0
    %421 = vdwg.mxu0
    %v422 = vrot.slane %v375, 4
    %v423 = vadd.f32 %v375, %v422
    %v424 = vrot.slane %v423, 2
    %v425 = vadd.f32 %v423, %v424
    %v426 = vrot.slane %v425, 1
    %v427 = vadd.f32 %v425, %v426
    %v428 = vrot.slane %v377, 4
    %v429 = vadd.f32 %v377, %v428
    %v430 = vrot.slane %v429, 2
    %v431 = vadd.f32 %v429, %v430
    %v432 = vrot.slane %v431, 1
    %v433 = vadd.f32 %v431, %v432
    %v434 = vrot.slane %v416, 4
    %v435 = vadd.f32 %v416, %v434
    %v436 = vrot.slane %v435, 2
    %v437 = vadd.f32 %v435, %v436
    %v438 = vrot.slane %v437, 1
    %v439 = vadd.f32 %v437, %v438
    %v440 = vrot.slane %v418, 4
    %v441 = vadd.f32 %v418, %v440
    %v442 = vrot.slane %v441, 2
    %v443 = vadd.f32 %v441, %v442
    %v444 = vrot.slane %v443, 1
    %v445 = vadd.f32 %v443, %v444
    %v446 = vrcp.pop 8.0
    %v447 = vmul.f32 %v427, %v446
    %v448 = vmul.f32 %v433, %v446
    %v449 = vmul.f32 %v439, %v446
    %v450 = vmul.f32 %v445, %v446
    %v451 = vsub.f32 %v375, %v447
    %v452 = vsub.f32 %v377, %v448
    %v453 = vsub.f32 %v416, %v449
    %v454 = vsub.f32 %v418, %v450
    %v455 = vmul.f32 %v451, %v451
    %v456 = vmul.f32 %v452, %v452
    %v457 = vmul.f32 %v453, %v453
    %v458 = vmul.f32 %v454, %v454
    %v459 = vrot.slane %v455, 4
    %v460 = vadd.f32 %v455, %v459
    %v461 = vrot.slane %v460, 2
    %v462 = vadd.f32 %v460, %v461
    %v463 = vrot.slane %v462, 1
    %v464 = vadd.f32 %v462, %v463
    %v465 = vrot.slane %v456, 4
    %v466 = vadd.f32 %v456, %v465
    %v467 = vrot.slane %v466, 2
    %v468 = vadd.f32 %v466, %v467
    %v469 = vrot.slane %v468, 1
    %v470 = vadd.f32 %v468, %v469
    %v471 = vrot.slane %v457, 4
    %v472 = vadd.f32 %v457, %v471
    %v473 = vrot.slane %v472, 2
    %v474 = vadd.f32 %v472, %v473
    %v475 = vrot.slane %v474, 1
    %v476 = vadd.f32 %v474, %v475
    %v477 = vrot.slane %v458, 4
    %v478 = vadd.f32 %v458, %v477
    %v479 = vrot.slane %v478, 2
    %v480 = vadd.f32 %v478, %v479
    %v481 = vrot.slane %v480, 1
    %v482 = vadd.f32 %v480, %v481
    %v483 = vmul.f32 %v464, %v446
    %v484 = vmul.f32 %v470, %v446
    %v485 = vmul.f32 %v476, %v446
    %v486 = vmul.f32 %v482, %v446
    %v487 = vld [vmem:[#allocation12] ss:$2 sm:$0xf]
    %v489 = vlaneseq
    %v490 = vshrl.u32 %v489, 7
    %v491 = vsub.s32 0, %v490
    %v492 = vrot.slane %v487, %v491
    %v493 = vlaneseq
    %v494 = vshrl.u32 %v493, 7
    %v495 = vsub.s32 1, %v494
    %v496 = vrot.slane %v487, %v495
    %v497 = vlaneseq
    %v498 = vshrl.u32 %v497, 7
    %v499 = vsub.s32 2, %v498
    %v500 = vrot.slane %v487, %v499
    %v501 = vlaneseq
    %v502 = vshrl.u32 %v501, 7
    %v503 = vsub.s32 3, %v502
    %v504 = vrot.slane %v487, %v503
    %v509 = vmul.f32 %v492, %v451
    %v510 = vmul.f32 %v496, %v452
    %v511 = vmul.f32 %v500, %v453
    %v512 = vmul.f32 %v504, %v454
    %v513 = vadd.f32 %v483, 1e-05
    %v514 = vadd.f32 %v484, 1e-05
    %v515 = vadd.f32 %v485, 1e-05
    %v516 = vadd.f32 %v486, 1e-05
    %v517 = vrsqrt.pop %v513
    %v518 = vrsqrt.pop %v514
    %v519 = vrsqrt.pop %v515
    %v520 = vrsqrt.pop %v516
    %v521 = vmul.f32 %v509, %v517
    %v522 = vmul.f32 %v510, %v518
    %v523 = vmul.f32 %v511, %v519
    %v524 = vmul.f32 %v512, %v520
    %s525 = scalar_lea.vmem [#allocation12], 1
    %v526 = vld [vmem:[%s525] ss:$2 sm:$0xf]
    %v528 = vlaneseq
    %v529 = vshrl.u32 %v528, 7
    %v530 = vsub.s32 0, %v529
    %v531 = vrot.slane %v526, %v530
    %v532 = vlaneseq
    %v533 = vshrl.u32 %v532, 7
    %v534 = vsub.s32 1, %v533
    %v535 = vrot.slane %v526, %v534
    %v536 = vlaneseq
    %v537 = vshrl.u32 %v536, 7
    %v538 = vsub.s32 2, %v537
    %v539 = vrot.slane %v526, %v538
    %v540 = vlaneseq
    %v541 = vshrl.u32 %v540, 7
    %v542 = vsub.s32 3, %v541
    %v543 = vrot.slane %v526, %v542
    %v548 = vadd.f32 %v521, %v531
    %v549 = vadd.f32 %v522, %v535
    %v550 = vadd.f32 %v523, %v539
    %v551 = vadd.f32 %v524, %v543
    %v552 = vmax.f32 %v548, 0.0
    %v553 = vmax.f32 %v549, 0.0
    %v554 = vmax.f32 %v550, 0.0
    %v555 = vmax.f32 %v551, 0.0
    %s556 = smul.u32 4, 64
    %s557 = smul.u32 %s556, 8
    %s558 = sshll.u32 %s557, 4
    %559 = dma.done %s150, %s558
    %v560 = vpack.c.bf16 %v552, %v552
    %v561 = vpack.c.bf16 %v553, %v553
    %v562 = vpack.c.bf16 %v554, %v554
    %v563 = vpack.c.bf16 %v555, %v555
    %v564 = vld [vmem:[#allocation3] sm:$0xff]
    %v565 = vld [vmem:[#allocation3 + $0x8] sm:$0xff]
    %v566 = vld [vmem:[#allocation3 + $0x10] sm:$0xff]
    %v567 = vld [vmem:[#allocation3 + $0x18] sm:$0xff]
    %v568 = vld [vmem:[#allocation3 + $0x20] sm:$0xff]
    %v569 = vld [vmem:[#allocation3 + $0x28] sm:$0xff]
    %v570 = vld [vmem:[#allocation3 + $0x30] sm:$0xff]
    %v571 = vld [vmem:[#allocation3 + $0x38] sm:$0xff]
    %v572 = vld [vmem:[#allocation3 + $0x40] sm:$0xff]
    %v573 = vld [vmem:[#allocation3 + $0x48] sm:$0xff]
    %v574 = vld [vmem:[#allocation3 + $0x50] sm:$0xff]
    %v575 = vld [vmem:[#allocation3 + $0x58] sm:$0xff]
    %v576 = vld [vmem:[#allocation3 + $0x60] sm:$0xff]
    %v577 = vld [vmem:[#allocation3 + $0x68] sm:$0xff]
    %v578 = vld [vmem:[#allocation3 + $0x70] sm:$0xff]
    %v579 = vld [vmem:[#allocation3 + $0x78] sm:$0xff]
    %v580 = vld [vmem:[#allocation3 + $0x80] sm:$0xff]
    %v581 = vld [vmem:[#allocation3 + $0x88] sm:$0xff]
    %v582 = vld [vmem:[#allocation3 + $0x90] sm:$0xff]
    %v583 = vld [vmem:[#allocation3 + $0x98] sm:$0xff]
    %v584 = vld [vmem:[#allocation3 + $0xa0] sm:$0xff]
    %v585 = vld [vmem:[#allocation3 + $0xa8] sm:$0xff]
    %v586 = vld [vmem:[#allocation3 + $0xb0] sm:$0xff]
    %v587 = vld [vmem:[#allocation3 + $0xb8] sm:$0xff]
    %v588 = vld [vmem:[#allocation3 + $0xc0] sm:$0xff]
    %v589 = vld [vmem:[#allocation3 + $0xc8] sm:$0xff]
    %v590 = vld [vmem:[#allocation3 + $0xd0] sm:$0xff]
    %v591 = vld [vmem:[#allocation3 + $0xd8] sm:$0xff]
    %v592 = vld [vmem:[#allocation3 + $0xe0] sm:$0xff]
    %v593 = vld [vmem:[#allocation3 + $0xe8] sm:$0xff]
    %v594 = vld [vmem:[#allocation3 + $0xf0] sm:$0xff]
    %v595 = vld [vmem:[#allocation3 + $0xf8] sm:$0xff]
    %v596 = vld [vmem:[#allocation3 + $0x100] sm:$0xff]
    %v597 = vld [vmem:[#allocation3 + $0x108] sm:$0xff]
    %v598 = vld [vmem:[#allocation3 + $0x110] sm:$0xff]
    %v599 = vld [vmem:[#allocation3 + $0x118] sm:$0xff]
    %v600 = vld [vmem:[#allocation3 + $0x120] sm:$0xff]
    %v601 = vld [vmem:[#allocation3 + $0x128] sm:$0xff]
    %v602 = vld [vmem:[#allocation3 + $0x130] sm:$0xff]
    %v603 = vld [vmem:[#allocation3 + $0x138] sm:$0xff]
    %v604 = vld [vmem:[#allocation3 + $0x140] sm:$0xff]
    %v605 = vld [vmem:[#allocation3 + $0x148] sm:$0xff]
    %v606 = vld [vmem:[#allocation3 + $0x150] sm:$0xff]
    %v607 = vld [vmem:[#allocation3 + $0x158] sm:$0xff]
    %v608 = vld [vmem:[#allocation3 + $0x160] sm:$0xff]
    %v609 = vld [vmem:[#allocation3 + $0x168] sm:$0xff]
    %v610 = vld [vmem:[#allocation3 + $0x170] sm:$0xff]
    %v611 = vld [vmem:[#allocation3 + $0x178] sm:$0xff]
    %v612 = vld [vmem:[#allocation3 + $0x180] sm:$0xff]
    %v613 = vld [vmem:[#allocation3 + $0x188] sm:$0xff]
    %v614 = vld [vmem:[#allocation3 + $0x190] sm:$0xff]
    %v615 = vld [vmem:[#allocation3 + $0x198] sm:$0xff]
    %v616 = vld [vmem:[#allocation3 + $0x1a0] sm:$0xff]
    %v617 = vld [vmem:[#allocation3 + $0x1a8] sm:$0xff]
    %v618 = vld [vmem:[#allocation3 + $0x1b0] sm:$0xff]
    %v619 = vld [vmem:[#allocation3 + $0x1b8] sm:$0xff]
    %v620 = vld [vmem:[#allocation3 + $0x1c0] sm:$0xff]
    %v621 = vld [vmem:[#allocation3 + $0x1c8] sm:$0xff]
    %v622 = vld [vmem:[#allocation3 + $0x1d0] sm:$0xff]
    %v623 = vld [vmem:[#allocation3 + $0x1d8] sm:$0xff]
    %v624 = vld [vmem:[#allocation3 + $0x1e0] sm:$0xff]
    %v625 = vld [vmem:[#allocation3 + $0x1e8] sm:$0xff]
    %v626 = vld [vmem:[#allocation3 + $0x1f0] sm:$0xff]
    %v627 = vld [vmem:[#allocation3 + $0x1f8] sm:$0xff]
    %v628 = vld [vmem:[#allocation3 + $0x200] sm:$0xff]
    %v629 = vld [vmem:[#allocation3 + $0x208] sm:$0xff]
    %v630 = vld [vmem:[#allocation3 + $0x210] sm:$0xff]
    %v631 = vld [vmem:[#allocation3 + $0x218] sm:$0xff]
    %v632 = vld [vmem:[#allocation3 + $0x220] sm:$0xff]
    %v633 = vld [vmem:[#allocation3 + $0x228] sm:$0xff]
    %v634 = vld [vmem:[#allocation3 + $0x230] sm:$0xff]
    %v635 = vld [vmem:[#allocation3 + $0x238] sm:$0xff]
    %v636 = vld [vmem:[#allocation3 + $0x240] sm:$0xff]
    %v637 = vld [vmem:[#allocation3 + $0x248] sm:$0xff]
    %v638 = vld [vmem:[#allocation3 + $0x250] sm:$0xff]
    %v639 = vld [vmem:[#allocation3 + $0x258] sm:$0xff]
    %v640 = vld [vmem:[#allocation3 + $0x260] sm:$0xff]
    %v641 = vld [vmem:[#allocation3 + $0x268] sm:$0xff]
    %v642 = vld [vmem:[#allocation3 + $0x270] sm:$0xff]
    %v643 = vld [vmem:[#allocation3 + $0x278] sm:$0xff]
    %v644 = vld [vmem:[#allocation3 + $0x280] sm:$0xff]
    %v645 = vld [vmem:[#allocation3 + $0x288] sm:$0xff]
    %v646 = vld [vmem:[#allocation3 + $0x290] sm:$0xff]
    %v647 = vld [vmem:[#allocation3 + $0x298] sm:$0xff]
    %v648 = vld [vmem:[#allocation3 + $0x2a0] sm:$0xff]
    %v649 = vld [vmem:[#allocation3 + $0x2a8] sm:$0xff]
    %v650 = vld [vmem:[#allocation3 + $0x2b0] sm:$0xff]
    %v651 = vld [vmem:[#allocation3 + $0x2b8] sm:$0xff]
    %v652 = vld [vmem:[#allocation3 + $0x2c0] sm:$0xff]
    %v653 = vld [vmem:[#allocation3 + $0x2c8] sm:$0xff]
    %v654 = vld [vmem:[#allocation3 + $0x2d0] sm:$0xff]
    %v655 = vld [vmem:[#allocation3 + $0x2d8] sm:$0xff]
    %v656 = vld [vmem:[#allocation3 + $0x2e0] sm:$0xff]
    %v657 = vld [vmem:[#allocation3 + $0x2e8] sm:$0xff]
    %v658 = vld [vmem:[#allocation3 + $0x2f0] sm:$0xff]
    %v659 = vld [vmem:[#allocation3 + $0x2f8] sm:$0xff]
    %v660 = vld [vmem:[#allocation3 + $0x300] sm:$0xff]
    %v661 = vld [vmem:[#allocation3 + $0x308] sm:$0xff]
    %v662 = vld [vmem:[#allocation3 + $0x310] sm:$0xff]
    %v663 = vld [vmem:[#allocation3 + $0x318] sm:$0xff]
    %v664 = vld [vmem:[#allocation3 + $0x320] sm:$0xff]
    %v665 = vld [vmem:[#allocation3 + $0x328] sm:$0xff]
    %v666 = vld [vmem:[#allocation3 + $0x330] sm:$0xff]
    %v667 = vld [vmem:[#allocation3 + $0x338] sm:$0xff]
    %v668 = vld [vmem:[#allocation3 + $0x340] sm:$0xff]
    %v669 = vld [vmem:[#allocation3 + $0x348] sm:$0xff]
    %v670 = vld [vmem:[#allocation3 + $0x350] sm:$0xff]
    %v671 = vld [vmem:[#allocation3 + $0x358] sm:$0xff]
    %v672 = vld [vmem:[#allocation3 + $0x360] sm:$0xff]
    %v673 = vld [vmem:[#allocation3 + $0x368] sm:$0xff]
    %v674 = vld [vmem:[#allocation3 + $0x370] sm:$0xff]
    %v675 = vld [vmem:[#allocation3 + $0x378] sm:$0xff]
    %v676 = vld [vmem:[#allocation3 + $0x380] sm:$0xff]
    %v677 = vld [vmem:[#allocation3 + $0x388] sm:$0xff]
    %v678 = vld [vmem:[#allocation3 + $0x390] sm:$0xff]
    %v679 = vld [vmem:[#allocation3 + $0x398] sm:$0xff]
    %v680 = vld [vmem:[#allocation3 + $0x3a0] sm:$0xff]
    %v681 = vld [vmem:[#allocation3 + $0x3a8] sm:$0xff]
    %v682 = vld [vmem:[#allocation3 + $0x3b0] sm:$0xff]
    %v683 = vld [vmem:[#allocation3 + $0x3b8] sm:$0xff]
    %v684 = vld [vmem:[#allocation3 + $0x3c0] sm:$0xff]
    %v685 = vld [vmem:[#allocation3 + $0x3c8] sm:$0xff]
    %v686 = vld [vmem:[#allocation3 + $0x3d0] sm:$0xff]
    %v687 = vld [vmem:[#allocation3 + $0x3d8] sm:$0xff]
    %v688 = vld [vmem:[#allocation3 + $0x3e0] sm:$0xff]
    %v689 = vld [vmem:[#allocation3 + $0x3e8] sm:$0xff]
    %v690 = vld [vmem:[#allocation3 + $0x3f0] sm:$0xff]
    %v691 = vld [vmem:[#allocation3 + $0x3f8] sm:$0xff]
    %v692 = vld [vmem:[#allocation3 + $0x400] sm:$0xff]
    %v693 = vld [vmem:[#allocation3 + $0x408] sm:$0xff]
    %v694 = vld [vmem:[#allocation3 + $0x410] sm:$0xff]
    %v695 = vld [vmem:[#allocation3 + $0x418] sm:$0xff]
    %v696 = vld [vmem:[#allocation3 + $0x420] sm:$0xff]
    %v697 = vld [vmem:[#allocation3 + $0x428] sm:$0xff]
    %v698 = vld [vmem:[#allocation3 + $0x430] sm:$0xff]
    %v699 = vld [vmem:[#allocation3 + $0x438] sm:$0xff]
    %v700 = vld [vmem:[#allocation3 + $0x440] sm:$0xff]
    %v701 = vld [vmem:[#allocation3 + $0x448] sm:$0xff]
    %v702 = vld [vmem:[#allocation3 + $0x450] sm:$0xff]
    %v703 = vld [vmem:[#allocation3 + $0x458] sm:$0xff]
    %v704 = vld [vmem:[#allocation3 + $0x460] sm:$0xff]
    %v705 = vld [vmem:[#allocation3 + $0x468] sm:$0xff]
    %v706 = vld [vmem:[#allocation3 + $0x470] sm:$0xff]
    %v707 = vld [vmem:[#allocation3 + $0x478] sm:$0xff]
    %v708 = vld [vmem:[#allocation3 + $0x480] sm:$0xff]
    %v709 = vld [vmem:[#allocation3 + $0x488] sm:$0xff]
    %v710 = vld [vmem:[#allocation3 + $0x490] sm:$0xff]
    %v711 = vld [vmem:[#allocation3 + $0x498] sm:$0xff]
    %v712 = vld [vmem:[#allocation3 + $0x4a0] sm:$0xff]
    %v713 = vld [vmem:[#allocation3 + $0x4a8] sm:$0xff]
    %v714 = vld [vmem:[#allocation3 + $0x4b0] sm:$0xff]
    %v715 = vld [vmem:[#allocation3 + $0x4b8] sm:$0xff]
    %v716 = vld [vmem:[#allocation3 + $0x4c0] sm:$0xff]
    %v717 = vld [vmem:[#allocation3 + $0x4c8] sm:$0xff]
    %v718 = vld [vmem:[#allocation3 + $0x4d0] sm:$0xff]
    %v719 = vld [vmem:[#allocation3 + $0x4d8] sm:$0xff]
    %v720 = vld [vmem:[#allocation3 + $0x4e0] sm:$0xff]
    %v721 = vld [vmem:[#allocation3 + $0x4e8] sm:$0xff]
    %v722 = vld [vmem:[#allocation3 + $0x4f0] sm:$0xff]
    %v723 = vld [vmem:[#allocation3 + $0x4f8] sm:$0xff]
    %v724 = vld [vmem:[#allocation3 + $0x500] sm:$0xff]
    %v725 = vld [vmem:[#allocation3 + $0x508] sm:$0xff]
    %v726 = vld [vmem:[#allocation3 + $0x510] sm:$0xff]
    %v727 = vld [vmem:[#allocation3 + $0x518] sm:$0xff]
    %v728 = vld [vmem:[#allocation3 + $0x520] sm:$0xff]
    %v729 = vld [vmem:[#allocation3 + $0x528] sm:$0xff]
    %v730 = vld [vmem:[#allocation3 + $0x530] sm:$0xff]
    %v731 = vld [vmem:[#allocation3 + $0x538] sm:$0xff]
    %v732 = vld [vmem:[#allocation3 + $0x540] sm:$0xff]
    %v733 = vld [vmem:[#allocation3 + $0x548] sm:$0xff]
    %v734 = vld [vmem:[#allocation3 + $0x550] sm:$0xff]
    %v735 = vld [vmem:[#allocation3 + $0x558] sm:$0xff]
    %v736 = vld [vmem:[#allocation3 + $0x560] sm:$0xff]
    %v737 = vld [vmem:[#allocation3 + $0x568] sm:$0xff]
    %v738 = vld [vmem:[#allocation3 + $0x570] sm:$0xff]
    %v739 = vld [vmem:[#allocation3 + $0x578] sm:$0xff]
    %v740 = vld [vmem:[#allocation3 + $0x580] sm:$0xff]
    %v741 = vld [vmem:[#allocation3 + $0x588] sm:$0xff]
    %v742 = vld [vmem:[#allocation3 + $0x590] sm:$0xff]
    %v743 = vld [vmem:[#allocation3 + $0x598] sm:$0xff]
    %v744 = vld [vmem:[#allocation3 + $0x5a0] sm:$0xff]
    %v745 = vld [vmem:[#allocation3 + $0x5a8] sm:$0xff]
    %v746 = vld [vmem:[#allocation3 + $0x5b0] sm:$0xff]
    %v747 = vld [vmem:[#allocation3 + $0x5b8] sm:$0xff]
    %v748 = vld [vmem:[#allocation3 + $0x5c0] sm:$0xff]
    %v749 = vld [vmem:[#allocation3 + $0x5c8] sm:$0xff]
    %v750 = vld [vmem:[#allocation3 + $0x5d0] sm:$0xff]
    %v751 = vld [vmem:[#allocation3 + $0x5d8] sm:$0xff]
    %v752 = vld [vmem:[#allocation3 + $0x5e0] sm:$0xff]
    %v753 = vld [vmem:[#allocation3 + $0x5e8] sm:$0xff]
    %v754 = vld [vmem:[#allocation3 + $0x5f0] sm:$0xff]
    %v755 = vld [vmem:[#allocation3 + $0x5f8] sm:$0xff]
    %v756 = vld [vmem:[#allocation3 + $0x600] sm:$0xff]
    %v757 = vld [vmem:[#allocation3 + $0x608] sm:$0xff]
    %v758 = vld [vmem:[#allocation3 + $0x610] sm:$0xff]
    %v759 = vld [vmem:[#allocation3 + $0x618] sm:$0xff]
    %v760 = vld [vmem:[#allocation3 + $0x620] sm:$0xff]
    %v761 = vld [vmem:[#allocation3 + $0x628] sm:$0xff]
    %v762 = vld [vmem:[#allocation3 + $0x630] sm:$0xff]
    %v763 = vld [vmem:[#allocation3 + $0x638] sm:$0xff]
    %v764 = vld [vmem:[#allocation3 + $0x640] sm:$0xff]
    %v765 = vld [vmem:[#allocation3 + $0x648] sm:$0xff]
    %v766 = vld [vmem:[#allocation3 + $0x650] sm:$0xff]
    %v767 = vld [vmem:[#allocation3 + $0x658] sm:$0xff]
    %v768 = vld [vmem:[#allocation3 + $0x660] sm:$0xff]
    %v769 = vld [vmem:[#allocation3 + $0x668] sm:$0xff]
    %v770 = vld [vmem:[#allocation3 + $0x670] sm:$0xff]
    %v771 = vld [vmem:[#allocation3 + $0x678] sm:$0xff]
    %v772 = vld [vmem:[#allocation3 + $0x680] sm:$0xff]
    %v773 = vld [vmem:[#allocation3 + $0x688] sm:$0xff]
    %v774 = vld [vmem:[#allocation3 + $0x690] sm:$0xff]
    %v775 = vld [vmem:[#allocation3 + $0x698] sm:$0xff]
    %v776 = vld [vmem:[#allocation3 + $0x6a0] sm:$0xff]
    %v777 = vld [vmem:[#allocation3 + $0x6a8] sm:$0xff]
    %v778 = vld [vmem:[#allocation3 + $0x6b0] sm:$0xff]
    %v779 = vld [vmem:[#allocation3 + $0x6b8] sm:$0xff]
    %v780 = vld [vmem:[#allocation3 + $0x6c0] sm:$0xff]
    %v781 = vld [vmem:[#allocation3 + $0x6c8] sm:$0xff]
    %v782 = vld [vmem:[#allocation3 + $0x6d0] sm:$0xff]
    %v783 = vld [vmem:[#allocation3 + $0x6d8] sm:$0xff]
    %v784 = vld [vmem:[#allocation3 + $0x6e0] sm:$0xff]
    %v785 = vld [vmem:[#allocation3 + $0x6e8] sm:$0xff]
    %v786 = vld [vmem:[#allocation3 + $0x6f0] sm:$0xff]
    %v787 = vld [vmem:[#allocation3 + $0x6f8] sm:$0xff]
    %v788 = vld [vmem:[#allocation3 + $0x700] sm:$0xff]
    %v789 = vld [vmem:[#allocation3 + $0x708] sm:$0xff]
    %v790 = vld [vmem:[#allocation3 + $0x710] sm:$0xff]
    %v791 = vld [vmem:[#allocation3 + $0x718] sm:$0xff]
    %v792 = vld [vmem:[#allocation3 + $0x720] sm:$0xff]
    %v793 = vld [vmem:[#allocation3 + $0x728] sm:$0xff]
    %v794 = vld [vmem:[#allocation3 + $0x730] sm:$0xff]
    %v795 = vld [vmem:[#allocation3 + $0x738] sm:$0xff]
    %v796 = vld [vmem:[#allocation3 + $0x740] sm:$0xff]
    %v797 = vld [vmem:[#allocation3 + $0x748] sm:$0xff]
    %v798 = vld [vmem:[#allocation3 + $0x750] sm:$0xff]
    %v799 = vld [vmem:[#allocation3 + $0x758] sm:$0xff]
    %v800 = vld [vmem:[#allocation3 + $0x760] sm:$0xff]
    %v801 = vld [vmem:[#allocation3 + $0x768] sm:$0xff]
    %v802 = vld [vmem:[#allocation3 + $0x770] sm:$0xff]
    %v803 = vld [vmem:[#allocation3 + $0x778] sm:$0xff]
    %v804 = vld [vmem:[#allocation3 + $0x780] sm:$0xff]
    %v805 = vld [vmem:[#allocation3 + $0x788] sm:$0xff]
    %v806 = vld [vmem:[#allocation3 + $0x790] sm:$0xff]
    %v807 = vld [vmem:[#allocation3 + $0x798] sm:$0xff]
    %v808 = vld [vmem:[#allocation3 + $0x7a0] sm:$0xff]
    %v809 = vld [vmem:[#allocation3 + $0x7a8] sm:$0xff]
    %v810 = vld [vmem:[#allocation3 + $0x7b0] sm:$0xff]
    %v811 = vld [vmem:[#allocation3 + $0x7b8] sm:$0xff]
    %v812 = vld [vmem:[#allocation3 + $0x7c0] sm:$0xff]
    %v813 = vld [vmem:[#allocation3 + $0x7c8] sm:$0xff]
    %v814 = vld [vmem:[#allocation3 + $0x7d0] sm:$0xff]
    %v815 = vld [vmem:[#allocation3 + $0x7d8] sm:$0xff]
    %v816 = vld [vmem:[#allocation3 + $0x7e0] sm:$0xff]
    %v817 = vld [vmem:[#allocation3 + $0x7e8] sm:$0xff]
    %v818 = vld [vmem:[#allocation3 + $0x7f0] sm:$0xff]
    %v819 = vld [vmem:[#allocation3 + $0x7f8] sm:$0xff]
    %820 = vmatprep.subr.bf16.mxu0 %v565
    %821 = vmatpush1.bf16.msra.mxu0 %v564
    %822 = vmatprep.subr.bf16.mxu0 %v573
    %823 = vmatpush1.bf16.msra.mxu0 %v572
    %824 = vmatprep.subr.bf16.mxu0 %v581
    %825 = vmatpush1.bf16.msra.mxu0 %v580
    %826 = vmatprep.subr.bf16.mxu0 %v589
    %827 = vmatpush1.bf16.msra.mxu0 %v588
    %828 = vmatprep.subr.bf16.mxu0 %v597
    %829 = vmatpush1.bf16.msra.mxu0 %v596
    %830 = vmatprep.subr.bf16.mxu0 %v605
    %831 = vmatpush1.bf16.msra.mxu0 %v604
    %832 = vmatprep.subr.bf16.mxu0 %v613
    %833 = vmatpush1.bf16.msra.mxu0 %v612
    %834 = vmatprep.subr.bf16.mxu0 %v621
    %835 = vmatpush1.bf16.msra.mxu0 %v620
    %836 = vmatprep.subr.bf16.mxu0 %v629
    %837 = vmatpush1.bf16.msra.mxu0 %v628
    %838 = vmatprep.subr.bf16.mxu0 %v637
    %839 = vmatpush1.bf16.msra.mxu0 %v636
    %840 = vmatprep.subr.bf16.mxu0 %v645
    %841 = vmatpush1.bf16.msra.mxu0 %v644
    %842 = vmatprep.subr.bf16.mxu0 %v653
    %843 = vmatpush1.bf16.msra.mxu0 %v652
    %844 = vmatprep.subr.bf16.mxu0 %v661
    %845 = vmatpush1.bf16.msra.mxu0 %v660
    %846 = vmatprep.subr.bf16.mxu0 %v669
    %847 = vmatpush1.bf16.msra.mxu0 %v668
    %848 = vmatprep.subr.bf16.mxu0 %v677
    %849 = vmatpush1.bf16.msra.mxu0 %v676
    %850 = vmatprep.subr.bf16.mxu0 %v685
    %851 = vmatpush1.bf16.msra.mxu0 %v684
    %852 = vmatprep.mubr.bf16.mxu0 %v561
    %853 = vmatmul.mubr.bf16.gmra.mrb[0].mxu0 %v560
    %v854 = vpop.f32.mrb[0].mxu0
    %v855 = vadd.f32 0.0, %v854
    %v856 = vpop.f32.mrb[0].mxu0
    %v857 = vadd.f32 0.0, %v856
    %v858 = vpop.f32.mrb[0].mxu0
    %v859 = vpop.f32.mrb[0].mxu0
    %860 = vdwg.mxu0
    %861 = vmatprep.subr.bf16.mxu0 %v693
    %862 = vmatpush1.bf16.msra.mxu0 %v692
    %863 = vmatprep.subr.bf16.mxu0 %v701
    %864 = vmatpush1.bf16.msra.mxu0 %v700
    %865 = vmatprep.subr.bf16.mxu0 %v709
    %866 = vmatpush1.bf16.msra.mxu0 %v708
    %867 = vmatprep.subr.bf16.mxu0 %v717
    %868 = vmatpush1.bf16.msra.mxu0 %v716
    %869 = vmatprep.subr.bf16.mxu0 %v725
    %870 = vmatpush1.bf16.msra.mxu0 %v724
    %871 = vmatprep.subr.bf16.mxu0 %v733
    %872 = vmatpush1.bf16.msra.mxu0 %v732
    %873 = vmatprep.subr.bf16.mxu0 %v741
    %874 = vmatpush1.bf16.msra.mxu0 %v740
    %875 = vmatprep.subr.bf16.mxu0 %v749
    %876 = vmatpush1.bf16.msra.mxu0 %v748
    %877 = vmatprep.subr.bf16.mxu0 %v757
    %878 = vmatpush1.bf16.msra.mxu0 %v756
    %879 = vmatprep.subr.bf16.mxu0 %v765
    %880 = vmatpush1.bf16.msra.mxu0 %v764
    %881 = vmatprep.subr.bf16.mxu0 %v773
    %882 = vmatpush1.bf16.msra.mxu0 %v772
    %883 = vmatprep.subr.bf16.mxu0 %v781
    %884 = vmatpush1.bf16.msra.mxu0 %v780
    %885 = vmatprep.subr.bf16.mxu0 %v789
    %886 = vmatpush1.bf16.msra.mxu0 %v788
    %887 = vmatprep.subr.bf16.mxu0 %v797
    %888 = vmatpush1.bf16.msra.mxu0 %v796
    %889 = vmatprep.subr.bf16.mxu0 %v805
    %890 = vmatpush1.bf16.msra.mxu0 %v804
    %891 = vmatprep.subr.bf16.mxu0 %v813
    %892 = vmatpush1.bf16.msra.mxu0 %v812
    %893 = vmatprep.mubr.bf16.mxu0 %v563
    %894 = vmatmul.mubr.bf16.gmra.mrb[0].mxu0 %v562
    %v895 = vpop.f32.mrb[0].mxu0
    %v896 = vadd.f32 %v855, %v895
    %v897 = vpop.f32.mrb[0].mxu0
    %v898 = vadd.f32 %v857, %v897
    %v899 = vpop.f32.mrb[0].mxu0
    %v900 = vpop.f32.mrb[0].mxu0
    %901 = vdwg.mxu0
    %902 = vmatprep.subr.bf16.mxu0 %v567
    %903 = vmatpush1.bf16.msra.mxu0 %v566
    %904 = vmatprep.subr.bf16.mxu0 %v575
    %905 = vmatpush1.bf16.msra.mxu0 %v574
    %906 = vmatprep.subr.bf16.mxu0 %v583
    %907 = vmatpush1.bf16.msra.mxu0 %v582
    %908 = vmatprep.subr.bf16.mxu0 %v591
    %909 = vmatpush1.bf16.msra.mxu0 %v590
    %910 = vmatprep.subr.bf16.mxu0 %v599
    %911 = vmatpush1.bf16.msra.mxu0 %v598
    %912 = vmatprep.subr.bf16.mxu0 %v607
    %913 = vmatpush1.bf16.msra.mxu0 %v606
    %914 = vmatprep.subr.bf16.mxu0 %v615
    %915 = vmatpush1.bf16.msra.mxu0 %v614
    %916 = vmatprep.subr.bf16.mxu0 %v623
    %917 = vmatpush1.bf16.msra.mxu0 %v622
    %918 = vmatprep.subr.bf16.mxu0 %v631
    %919 = vmatpush1.bf16.msra.mxu0 %v630
    %920 = vmatprep.subr.bf16.mxu0 %v639
    %921 = vmatpush1.bf16.msra.mxu0 %v638
    %922 = vmatprep.subr.bf16.mxu0 %v647
    %923 = vmatpush1.bf16.msra.mxu0 %v646
    %924 = vmatprep.subr.bf16.mxu0 %v655
    %925 = vmatpush1.bf16.msra.mxu0 %v654
    %926 = vmatprep.subr.bf16.mxu0 %v663
    %927 = vmatpush1.bf16.msra.mxu0 %v662
    %928 = vmatprep.subr.bf16.mxu0 %v671
    %929 = vmatpush1.bf16.msra.mxu0 %v670
    %930 = vmatprep.subr.bf16.mxu0 %v679
    %931 = vmatpush1.bf16.msra.mxu0 %v678
    %932 = vmatprep.subr.bf16.mxu0 %v687
    %933 = vmatpush1.bf16.msra.mxu0 %v686
    %934 = vmatprep.mubr.bf16.mxu0 %v561
    %935 = vmatmul.mubr.bf16.gmra.mrb[0].mxu0 %v560
    %v936 = vpop.f32.mrb[0].mxu0
    %v937 = vadd.f32 0.0, %v936
    %v938 = vpop.f32.mrb[0].mxu0
    %v939 = vadd.f32 0.0, %v938
    %v940 = vpop.f32.mrb[0].mxu0
    %v941 = vpop.f32.mrb[0].mxu0
    %942 = vdwg.mxu0
    %943 = vmatprep.subr.bf16.mxu0 %v695
    %944 = vmatpush1.bf16.msra.mxu0 %v694
    %945 = vmatprep.subr.bf16.mxu0 %v703
    %946 = vmatpush1.bf16.msra.mxu0 %v702
    %947 = vmatprep.subr.bf16.mxu0 %v711
    %948 = vmatpush1.bf16.msra.mxu0 %v710
    %949 = vmatprep.subr.bf16.mxu0 %v719
    %950 = vmatpush1.bf16.msra.mxu0 %v718
    %951 = vmatprep.subr.bf16.mxu0 %v727
    %952 = vmatpush1.bf16.msra.mxu0 %v726
    %953 = vmatprep.subr.bf16.mxu0 %v735
    %954 = vmatpush1.bf16.msra.mxu0 %v734
    %955 = vmatprep.subr.bf16.mxu0 %v743
    %956 = vmatpush1.bf16.msra.mxu0 %v742
    %957 = vmatprep.subr.bf16.mxu0 %v751
    %958 = vmatpush1.bf16.msra.mxu0 %v750
    %959 = vmatprep.subr.bf16.mxu0 %v759
    %960 = vmatpush1.bf16.msra.mxu0 %v758
    %961 = vmatprep.subr.bf16.mxu0 %v767
    %962 = vmatpush1.bf16.msra.mxu0 %v766
    %963 = vmatprep.subr.bf16.mxu0 %v775
    %964 = vmatpush1.bf16.msra.mxu0 %v774
    %965 = vmatprep.subr.bf16.mxu0 %v783
    %966 = vmatpush1.bf16.msra.mxu0 %v782
    %967 = vmatprep.subr.bf16.mxu0 %v791
    %968 = vmatpush1.bf16.msra.mxu0 %v790
    %969 = vmatprep.subr.bf16.mxu0 %v799
    %970 = vmatpush1.bf16.msra.mxu0 %v798
    %971 = vmatprep.subr.bf16.mxu0 %v807
    %972 = vmatpush1.bf16.msra.mxu0 %v806
    %973 = vmatprep.subr.bf16.mxu0 %v815
    %974 = vmatpush1.bf16.msra.mxu0 %v814
    %975 = vmatprep.mubr.bf16.mxu0 %v563
    %976 = vmatmul.mubr.bf16.gmra.mrb[0].mxu0 %v562
    %v977 = vpop.f32.mrb[0].mxu0
    %v978 = vadd.f32 %v937, %v977
    %v979 = vpop.f32.mrb[0].mxu0
    %v980 = vadd.f32 %v939, %v979
    %v981 = vpop.f32.mrb[0].mxu0
    %v982 = vpop.f32.mrb[0].mxu0
    %983 = vdwg.mxu0
    %984 = vmatprep.subr.bf16.mxu0 %v569
    %985 = vmatpush1.bf16.msra.mxu0 %v568
    %986 = vmatprep.subr.bf16.mxu0 %v577
    %987 = vmatpush1.bf16.msra.mxu0 %v576
    %988 = vmatprep.subr.bf16.mxu0 %v585
    %989 = vmatpush1.bf16.msra.mxu0 %v584
    %990 = vmatprep.subr.bf16.mxu0 %v593
    %991 = vmatpush1.bf16.msra.mxu0 %v592
    %992 = vmatprep.subr.bf16.mxu0 %v601
    %993 = vmatpush1.bf16.msra.mxu0 %v600
    %994 = vmatprep.subr.bf16.mxu0 %v609
    %995 = vmatpush1.bf16.msra.mxu0 %v608
    %996 = vmatprep.subr.bf16.mxu0 %v617
    %997 = vmatpush1.bf16.msra.mxu0 %v616
    %998 = vmatprep.subr.bf16.mxu0 %v625
    %999 = vmatpush1.bf16.msra.mxu0 %v624
    %1000 = vmatprep.subr.bf16.mxu0 %v633
    %1001 = vmatpush1.bf16.msra.mxu0 %v632
    %1002 = vmatprep.subr.bf16.mxu0 %v641
    %1003 = vmatpush1.bf16.msra.mxu0 %v640
    %1004 = vmatprep.subr.bf16.mxu0 %v649
    %1005 = vmatpush1.bf16.msra.mxu0 %v648
    %1006 = vmatprep.subr.bf16.mxu0 %v657
    %1007 = vmatpush1.bf16.msra.mxu0 %v656
    %1008 = vmatprep.subr.bf16.mxu0 %v665
    %1009 = vmatpush1.bf16.msra.mxu0 %v664
    %1010 = vmatprep.subr.bf16.mxu0 %v673
    %1011 = vmatpush1.bf16.msra.mxu0 %v672
    %1012 = vmatprep.subr.bf16.mxu0 %v681
    %1013 = vmatpush1.bf16.msra.mxu0 %v680
    %1014 = vmatprep.subr.bf16.mxu0 %v689
    %1015 = vmatpush1.bf16.msra.mxu0 %v688
    %1016 = vmatprep.mubr.bf16.mxu0 %v561
    %1017 = vmatmul.mubr.bf16.gmra.mrb[0].mxu0 %v560
    %v1018 = vpop.f32.mrb[0].mxu0
    %v1019 = vadd.f32 0.0, %v1018
    %v1020 = vpop.f32.mrb[0].mxu0
    %v1021 = vadd.f32 0.0, %v1020
    %v1022 = vpop.f32.mrb[0].mxu0
    %v1023 = vpop.f32.mrb[0].mxu0
    %1024 = vdwg.mxu0
    %1025 = vmatprep.subr.bf16.mxu0 %v697
    %1026 = vmatpush1.bf16.msra.mxu0 %v696
    %1027 = vmatprep.subr.bf16.mxu0 %v705
    %1028 = vmatpush1.bf16.msra.mxu0 %v704
    %1029 = vmatprep.subr.bf16.mxu0 %v713
    %1030 = vmatpush1.bf16.msra.mxu0 %v712
    %1031 = vmatprep.subr.bf16.mxu0 %v721
    %1032 = vmatpush1.bf16.msra.mxu0 %v720
    %1033 = vmatprep.subr.bf16.mxu0 %v729
    %1034 = vmatpush1.bf16.msra.mxu0 %v728
    %1035 = vmatprep.subr.bf16.mxu0 %v737
    %1036 = vmatpush1.bf16.msra.mxu0 %v736
    %1037 = vmatprep.subr.bf16.mxu0 %v745
    %1038 = vmatpush1.bf16.msra.mxu0 %v744
    %1039 = vmatprep.subr.bf16.mxu0 %v753
    %1040 = vmatpush1.bf16.msra.mxu0 %v752
    %1041 = vmatprep.subr.bf16.mxu0 %v761
    %1042 = vmatpush1.bf16.msra.mxu0 %v760
    %1043 = vmatprep.subr.bf16.mxu0 %v769
    %1044 = vmatpush1.bf16.msra.mxu0 %v768
    %1045 = vmatprep.subr.bf16.mxu0 %v777
    %1046 = vmatpush1.bf16.msra.mxu0 %v776
    %1047 = vmatprep.subr.bf16.mxu0 %v785
    %1048 = vmatpush1.bf16.msra.mxu0 %v784
    %1049 = vmatprep.subr.bf16.mxu0 %v793
    %1050 = vmatpush1.bf16.msra.mxu0 %v792
    %1051 = vmatprep.subr.bf16.mxu0 %v801
    %1052 = vmatpush1.bf16.msra.mxu0 %v800
    %1053 = vmatprep.subr.bf16.mxu0 %v809
    %1054 = vmatpush1.bf16.msra.mxu0 %v808
    %1055 = vmatprep.subr.bf16.mxu0 %v817
    %1056 = vmatpush1.bf16.msra.mxu0 %v816
    %1057 = vmatprep.mubr.bf16.mxu0 %v563
    %1058 = vmatmul.mubr.bf16.gmra.mrb[0].mxu0 %v562
    %v1059 = vpop.f32.mrb[0].mxu0
    %v1060 = vadd.f32 %v1019, %v1059
    %v1061 = vpop.f32.mrb[0].mxu0
    %v1062 = vadd.f32 %v1021, %v1061
    %v1063 = vpop.f32.mrb[0].mxu0
    %v1064 = vpop.f32.mrb[0].mxu0
    %1065 = vdwg.mxu0
    %1066 = vmatprep.subr.bf16.mxu0 %v571
    %1067 = vmatpush1.bf16.msra.mxu0 %v570
    %1068 = vmatprep.subr.bf16.mxu0 %v579
    %1069 = vmatpush1.bf16.msra.mxu0 %v578
    %1070 = vmatprep.subr.bf16.mxu0 %v587
    %1071 = vmatpush1.bf16.msra.mxu0 %v586
    %1072 = vmatprep.subr.bf16.mxu0 %v595
    %1073 = vmatpush1.bf16.msra.mxu0 %v594
    %1074 = vmatprep.subr.bf16.mxu0 %v603
    %1075 = vmatpush1.bf16.msra.mxu0 %v602
    %1076 = vmatprep.subr.bf16.mxu0 %v611
    %1077 = vmatpush1.bf16.msra.mxu0 %v610
    %1078 = vmatprep.subr.bf16.mxu0 %v619
    %1079 = vmatpush1.bf16.msra.mxu0 %v618
    %1080 = vmatprep.subr.bf16.mxu0 %v627
    %1081 = vmatpush1.bf16.msra.mxu0 %v626
    %1082 = vmatprep.subr.bf16.mxu0 %v635
    %1083 = vmatpush1.bf16.msra.mxu0 %v634
    %1084 = vmatprep.subr.bf16.mxu0 %v643
    %1085 = vmatpush1.bf16.msra.mxu0 %v642
    %1086 = vmatprep.subr.bf16.mxu0 %v651
    %1087 = vmatpush1.bf16.msra.mxu0 %v650
    %1088 = vmatprep.subr.bf16.mxu0 %v659
    %1089 = vmatpush1.bf16.msra.mxu0 %v658
    %1090 = vmatprep.subr.bf16.mxu0 %v667
    %1091 = vmatpush1.bf16.msra.mxu0 %v666
    %1092 = vmatprep.subr.bf16.mxu0 %v675
    %1093 = vmatpush1.bf16.msra.mxu0 %v674
    %1094 = vmatprep.subr.bf16.mxu0 %v683
    %1095 = vmatpush1.bf16.msra.mxu0 %v682
    %1096 = vmatprep.subr.bf16.mxu0 %v691
    %1097 = vmatpush1.bf16.msra.mxu0 %v690
    %1098 = vmatprep.mubr.bf16.mxu0 %v561
    %1099 = vmatmul.mubr.bf16.gmra.mrb[0].mxu0 %v560
    %v1100 = vpop.f32.mrb[0].mxu0
    %v1101 = vadd.f32 0.0, %v1100
    %v1102 = vpop.f32.mrb[0].mxu0
    %v1103 = vadd.f32 0.0, %v1102
    %v1104 = vpop.f32.mrb[0].mxu0
    %v1105 = vpop.f32.mrb[0].mxu0
    %1106 = vdwg.mxu0
    %1107 = vmatprep.subr.bf16.mxu0 %v699
    %1108 = vmatpush1.bf16.msra.mxu0 %v698
    %1109 = vmatprep.subr.bf16.mxu0 %v707
    %1110 = vmatpush1.bf16.msra.mxu0 %v706
    %1111 = vmatprep.subr.bf16.mxu0 %v715
    %1112 = vmatpush1.bf16.msra.mxu0 %v714
    %1113 = vmatprep.subr.bf16.mxu0 %v723
    %1114 = vmatpush1.bf16.msra.mxu0 %v722
    %1115 = vmatprep.subr.bf16.mxu0 %v731
    %1116 = vmatpush1.bf16.msra.mxu0 %v730
    %1117 = vmatprep.subr.bf16.mxu0 %v739
    %1118 = vmatpush1.bf16.msra.mxu0 %v738
    %1119 = vmatprep.subr.bf16.mxu0 %v747
    %1120 = vmatpush1.bf16.msra.mxu0 %v746
    %1121 = vmatprep.subr.bf16.mxu0 %v755
    %1122 = vmatpush1.bf16.msra.mxu0 %v754
    %1123 = vmatprep.subr.bf16.mxu0 %v763
    %1124 = vmatpush1.bf16.msra.mxu0 %v762
    %1125 = vmatprep.subr.bf16.mxu0 %v771
    %1126 = vmatpush1.bf16.msra.mxu0 %v770
    %1127 = vmatprep.subr.bf16.mxu0 %v779
    %1128 = vmatpush1.bf16.msra.mxu0 %v778
    %1129 = vmatprep.subr.bf16.mxu0 %v787
    %1130 = vmatpush1.bf16.msra.mxu0 %v786
    %1131 = vmatprep.subr.bf16.mxu0 %v795
    %1132 = vmatpush1.bf16.msra.mxu0 %v794
    %1133 = vmatprep.subr.bf16.mxu0 %v803
    %1134 = vmatpush1.bf16.msra.mxu0 %v802
    %1135 = vmatprep.subr.bf16.mxu0 %v811
    %1136 = vmatpush1.bf16.msra.mxu0 %v810
    %1137 = vmatprep.subr.bf16.mxu0 %v819
    %1138 = vmatpush1.bf16.msra.mxu0 %v818
    %1139 = vmatprep.mubr.bf16.mxu0 %v563
    %1140 = vmatmul.mubr.bf16.gmra.mrb[0].mxu0 %v562
    %v1141 = vpop.f32.mrb[0].mxu0
    %v1142 = vadd.f32 %v1101, %v1141
    %v1143 = vpop.f32.mrb[0].mxu0
    %v1144 = vadd.f32 %v1103, %v1143
    %v1145 = vpop.f32.mrb[0].mxu0
    %v1146 = vpop.f32.mrb[0].mxu0
    %1147 = vdwg.mxu0
    %v1148 = vrot.slane %v896, 4
    %v1149 = vadd.f32 %v896, %v1148
    %v1150 = vrot.slane %v1149, 2
    %v1151 = vadd.f32 %v1149, %v1150
    %v1152 = vrot.slane %v1151, 1
    %v1153 = vadd.f32 %v1151, %v1152
    %v1154 = vrot.slane %v898, 4
    %v1155 = vadd.f32 %v898, %v1154
    %v1156 = vrot.slane %v1155, 2
    %v1157 = vadd.f32 %v1155, %v1156
    %v1158 = vrot.slane %v1157, 1
    %v1159 = vadd.f32 %v1157, %v1158
    %v1160 = vrot.slane %v978, 4
    %v1161 = vadd.f32 %v978, %v1160
    %v1162 = vrot.slane %v1161, 2
    %v1163 = vadd.f32 %v1161, %v1162
    %v1164 = vrot.slane %v1163, 1
    %v1165 = vadd.f32 %v1163, %v1164
    %v1166 = vrot.slane %v980, 4
    %v1167 = vadd.f32 %v980, %v1166
    %v1168 = vrot.slane %v1167, 2
    %v1169 = vadd.f32 %v1167, %v1168
    %v1170 = vrot.slane %v1169, 1
    %v1171 = vadd.f32 %v1169, %v1170
    %v1172 = vrot.slane %v1060, 4
    %v1173 = vadd.f32 %v1060, %v1172
    %v1174 = vrot.slane %v1173, 2
    %v1175 = vadd.f32 %v1173, %v1174
    %v1176 = vrot.slane %v1175, 1
    %v1177 = vadd.f32 %v1175, %v1176
    %v1178 = vrot.slane %v1062, 4
    %v1179 = vadd.f32 %v1062, %v1178
    %v1180 = vrot.slane %v1179, 2
    %v1181 = vadd.f32 %v1179, %v1180
    %v1182 = vrot.slane %v1181, 1
    %v1183 = vadd.f32 %v1181, %v1182
    %v1184 = vrot.slane %v1142, 4
    %v1185 = vadd.f32 %v1142, %v1184
    %v1186 = vrot.slane %v1185, 2
    %v1187 = vadd.f32 %v1185, %v1186
    %v1188 = vrot.slane %v1187, 1
    %v1189 = vadd.f32 %v1187, %v1188
    %v1190 = vrot.slane %v1144, 4
    %v1191 = vadd.f32 %v1144, %v1190
    %v1192 = vrot.slane %v1191, 2
    %v1193 = vadd.f32 %v1191, %v1192
    %v1194 = vrot.slane %v1193, 1
    %v1195 = vadd.f32 %v1193, %v1194
    %v1196 = vmul.f32 %v1153, %v446
    %v1197 = vmul.f32 %v1159, %v446
    %v1198 = vmul.f32 %v1165, %v446
    %v1199 = vmul.f32 %v1171, %v446
    %v1200 = vmul.f32 %v1177, %v446
    %v1201 = vmul.f32 %v1183, %v446
    %v1202 = vmul.f32 %v1189, %v446
    %v1203 = vmul.f32 %v1195, %v446
    %v1204 = vsub.f32 %v896, %v1196
    %v1205 = vsub.f32 %v898, %v1197
    %v1206 = vsub.f32 %v978, %v1198
    %v1207 = vsub.f32 %v980, %v1199
    %v1208 = vsub.f32 %v1060, %v1200
    %v1209 = vsub.f32 %v1062, %v1201
    %v1210 = vsub.f32 %v1142, %v1202
    %v1211 = vsub.f32 %v1144, %v1203
    %v1212 = vmul.f32 %v1204, %v1204
    %v1213 = vmul.f32 %v1205, %v1205
    %v1214 = vmul.f32 %v1206, %v1206
    %v1215 = vmul.f32 %v1207, %v1207
    %v1216 = vmul.f32 %v1208, %v1208
    %v1217 = vmul.f32 %v1209, %v1209
    %v1218 = vmul.f32 %v1210, %v1210
    %v1219 = vmul.f32 %v1211, %v1211
    %v1220 = vrot.slane %v1212, 4
    %v1221 = vadd.f32 %v1212, %v1220
    %v1222 = vrot.slane %v1221, 2
    %v1223 = vadd.f32 %v1221, %v1222
    %v1224 = vrot.slane %v1223, 1
    %v1225 = vadd.f32 %v1223, %v1224
    %v1226 = vrot.slane %v1213, 4
    %v1227 = vadd.f32 %v1213, %v1226
    %v1228 = vrot.slane %v1227, 2
    %v1229 = vadd.f32 %v1227, %v1228
    %v1230 = vrot.slane %v1229, 1
    %v1231 = vadd.f32 %v1229, %v1230
    %v1232 = vrot.slane %v1214, 4
    %v1233 = vadd.f32 %v1214, %v1232
    %v1234 = vrot.slane %v1233, 2
    %v1235 = vadd.f32 %v1233, %v1234
    %v1236 = vrot.slane %v1235, 1
    %v1237 = vadd.f32 %v1235, %v1236
    %v1238 = vrot.slane %v1215, 4
    %v1239 = vadd.f32 %v1215, %v1238
    %v1240 = vrot.slane %v1239, 2
    %v1241 = vadd.f32 %v1239, %v1240
    %v1242 = vrot.slane %v1241, 1
    %v1243 = vadd.f32 %v1241, %v1242
    %v1244 = vrot.slane %v1216, 4
    %v1245 = vadd.f32 %v1216, %v1244
    %v1246 = vrot.slane %v1245, 2
    %v1247 = vadd.f32 %v1245, %v1246
    %v1248 = vrot.slane %v1247, 1
    %v1249 = vadd.f32 %v1247, %v1248
    %v1250 = vrot.slane %v1217, 4
    %v1251 = vadd.f32 %v1217, %v1250
    %v1252 = vrot.slane %v1251, 2
    %v1253 = vadd.f32 %v1251, %v1252
    %v1254 = vrot.slane %v1253, 1
    %v1255 = vadd.f32 %v1253, %v1254
    %v1256 = vrot.slane %v1218, 4
    %v1257 = vadd.f32 %v1218, %v1256
    %v1258 = vrot.slane %v1257, 2
    %v1259 = vadd.f32 %v1257, %v1258
    %v1260 = vrot.slane %v1259, 1
    %v1261 = vadd.f32 %v1259, %v1260
    %v1262 = vrot.slane %v1219, 4
    %v1263 = vadd.f32 %v1219, %v1262
    %v1264 = vrot.slane %v1263, 2
    %v1265 = vadd.f32 %v1263, %v1264
    %v1266 = vrot.slane %v1265, 1
    %v1267 = vadd.f32 %v1265, %v1266
    %v1268 = vmul.f32 %v1225, %v446
    %v1269 = vmul.f32 %v1231, %v446
    %v1270 = vmul.f32 %v1237, %v446
    %v1271 = vmul.f32 %v1243, %v446
    %v1272 = vmul.f32 %v1249, %v446
    %v1273 = vmul.f32 %v1255, %v446
    %v1274 = vmul.f32 %v1261, %v446
    %v1275 = vmul.f32 %v1267, %v446
    %v1276 = vld [vmem:[#allocation14] ss:$2 sm:$0xff]
    %v1278 = vlaneseq
    %v1279 = vshrl.u32 %v1278, 7
    %v1280 = vsub.s32 0, %v1279
    %v1281 = vrot.slane %v1276, %v1280
    %v1282 = vlaneseq
    %v1283 = vshrl.u32 %v1282, 7
    %v1284 = vsub.s32 1, %v1283
    %v1285 = vrot.slane %v1276, %v1284
    %v1286 = vlaneseq
    %v1287 = vshrl.u32 %v1286, 7
    %v1288 = vsub.s32 2, %v1287
    %v1289 = vrot.slane %v1276, %v1288
    %v1290 = vlaneseq
    %v1291 = vshrl.u32 %v1290, 7
    %v1292 = vsub.s32 3, %v1291
    %v1293 = vrot.slane %v1276, %v1292
    %v1294 = vlaneseq
    %v1295 = vshrl.u32 %v1294, 7
    %v1296 = vsub.s32 4, %v1295
    %v1297 = vrot.slane %v1276, %v1296
    %v1298 = vlaneseq
    %v1299 = vshrl.u32 %v1298, 7
    %v1300 = vsub.s32 5, %v1299
    %v1301 = vrot.slane %v1276, %v1300
    %v1302 = vlaneseq
    %v1303 = vshrl.u32 %v1302, 7
    %v1304 = vsub.s32 6, %v1303
    %v1305 = vrot.slane %v1276, %v1304
    %v1306 = vlaneseq
    %v1307 = vshrl.u32 %v1306, 7
    %v1308 = vsub.s32 7, %v1307
    %v1309 = vrot.slane %v1276, %v1308
    %v1318 = vmul.f32 %v1281, %v1204
    %v1319 = vmul.f32 %v1285, %v1205
    %v1320 = vmul.f32 %v1289, %v1206
    %v1321 = vmul.f32 %v1293, %v1207
    %v1322 = vmul.f32 %v1297, %v1208
    %v1323 = vmul.f32 %v1301, %v1209
    %v1324 = vmul.f32 %v1305, %v1210
    %v1325 = vmul.f32 %v1309, %v1211
    %v1326 = vadd.f32 %v1268, 1e-05
    %v1327 = vadd.f32 %v1269, 1e-05
    %v1328 = vadd.f32 %v1270, 1e-05
    %v1329 = vadd.f32 %v1271, 1e-05
    %v1330 = vadd.f32 %v1272, 1e-05
    %v1331 = vadd.f32 %v1273, 1e-05
    %v1332 = vadd.f32 %v1274, 1e-05
    %v1333 = vadd.f32 %v1275, 1e-05
    %v1334 = vrsqrt.pop %v1326
    %v1335 = vrsqrt.pop %v1327
    %v1336 = vrsqrt.pop %v1328
    %v1337 = vrsqrt.pop %v1329
    %v1338 = vrsqrt.pop %v1330
    %v1339 = vrsqrt.pop %v1331
    %v1340 = vrsqrt.pop %v1332
    %v1341 = vrsqrt.pop %v1333
    %v1342 = vmul.f32 %v1318, %v1334
    %v1343 = vmul.f32 %v1319, %v1335
    %v1344 = vmul.f32 %v1320, %v1336
    %v1345 = vmul.f32 %v1321, %v1337
    %v1346 = vmul.f32 %v1322, %v1338
    %v1347 = vmul.f32 %v1323, %v1339
    %v1348 = vmul.f32 %v1324, %v1340
    %v1349 = vmul.f32 %v1325, %v1341
    %s1350 = scalar_lea.vmem [#allocation14], 1
    %v1351 = vld [vmem:[%s1350] ss:$2 sm:$0xff]
    %v1353 = vlaneseq
    %v1354 = vshrl.u32 %v1353, 7
    %v1355 = vsub.s32 0, %v1354
    %v1356 = vrot.slane %v1351, %v1355
    %v1357 = vlaneseq
    %v1358 = vshrl.u32 %v1357, 7
    %v1359 = vsub.s32 1, %v1358
    %v1360 = vrot.slane %v1351, %v1359
    %v1361 = vlaneseq
    %v1362 = vshrl.u32 %v1361, 7
    %v1363 = vsub.s32 2, %v1362
    %v1364 = vrot.slane %v1351, %v1363
    %v1365 = vlaneseq
    %v1366 = vshrl.u32 %v1365, 7
    %v1367 = vsub.s32 3, %v1366
    %v1368 = vrot.slane %v1351, %v1367
    %v1369 = vlaneseq
    %v1370 = vshrl.u32 %v1369, 7
    %v1371 = vsub.s32 4, %v1370
    %v1372 = vrot.slane %v1351, %v1371
    %v1373 = vlaneseq
    %v1374 = vshrl.u32 %v1373, 7
    %v1375 = vsub.s32 5, %v1374
    %v1376 = vrot.slane %v1351, %v1375
    %v1377 = vlaneseq
    %v1378 = vshrl.u32 %v1377, 7
    %v1379 = vsub.s32 6, %v1378
    %v1380 = vrot.slane %v1351, %v1379
    %v1381 = vlaneseq
    %v1382 = vshrl.u32 %v1381, 7
    %v1383 = vsub.s32 7, %v1382
    %v1384 = vrot.slane %v1351, %v1383
    %v1393 = vadd.f32 %v1342, %v1356
    %v1394 = vadd.f32 %v1343, %v1360
    %v1395 = vadd.f32 %v1344, %v1364
    %v1396 = vadd.f32 %v1345, %v1368
    %v1397 = vadd.f32 %v1346, %v1372
    %v1398 = vadd.f32 %v1347, %v1376
    %v1399 = vadd.f32 %v1348, %v1380
    %v1400 = vadd.f32 %v1349, %v1384
    %v1401 = vmax.f32 %v1393, 0.0
    %v1402 = vmax.f32 %v1394, 0.0
    %v1403 = vmax.f32 %v1395, 0.0
    %v1404 = vmax.f32 %v1396, 0.0
    %v1405 = vmax.f32 %v1397, 0.0
    %v1406 = vmax.f32 %v1398, 0.0
    %v1407 = vmax.f32 %v1399, 0.0
    %v1408 = vmax.f32 %v1400, 0.0
    %s1409 = smul.u32 4, 128
    %s1410 = smul.u32 %s1409, 16
    %s1411 = sshll.u32 %s1410, 4
    %1412 = dma.done %s185, %s1411
    %v1413 = vpack.c.bf16 %v1401, %v1401
    %v1414 = vpack.c.bf16 %v1402, %v1402
    %v1415 = vpack.c.bf16 %v1403, %v1403
    %v1416 = vpack.c.bf16 %v1404, %v1404
    %v1417 = vpack.c.bf16 %v1405, %v1405
    %v1418 = vpack.c.bf16 %v1406, %v1406
    %v1419 = vpack.c.bf16 %v1407, %v1407
    %v1420 = vpack.c.bf16 %v1408, %v1408
    %v1421 = vld [vmem:[#allocation4] sm:$0xff]
    %v1422 = vld [vmem:[#allocation4 + $0x8] sm:$0xff]
    %v1423 = vld [vmem:[#allocation4 + $0x10] sm:$0xff]
    %v1424 = vld [vmem:[#allocation4 + $0x18] sm:$0xff]
    %v1425 = vld [vmem:[#allocation4 + $0x20] sm:$0xff]
    %v1426 = vld [vmem:[#allocation4 + $0x28] sm:$0xff]
    %v1427 = vld [vmem:[#allocation4 + $0x30] sm:$0xff]
    %v1428 = vld [vmem:[#allocation4 + $0x38] sm:$0xff]
    %v1429 = vld [vmem:[#allocation4 + $0x40] sm:$0xff]
    %v1430 = vld [vmem:[#allocation4 + $0x48] sm:$0xff]
    %v1431 = vld [vmem:[#allocation4 + $0x50] sm:$0xff]
    %v1432 = vld [vmem:[#allocation4 + $0x58] sm:$0xff]
    %v1433 = vld [vmem:[#allocation4 + $0x60] sm:$0xff]
    %v1434 = vld [vmem:[#allocation4 + $0x68] sm:$0xff]
    %v1435 = vld [vmem:[#allocation4 + $0x70] sm:$0xff]
    %v1436 = vld [vmem:[#allocation4 + $0x78] sm:$0xff]
    %v1437 = vld [vmem:[#allocation4 + $0x80] sm:$0xff]
    %v1438 = vld [vmem:[#allocation4 + $0x88] sm:$0xff]
    %v1439 = vld [vmem:[#allocation4 + $0x90] sm:$0xff]
    %v1440 = vld [vmem:[#allocation4 + $0x98] sm:$0xff]
    %v1441 = vld [vmem:[#allocation4 + $0xa0] sm:$0xff]
    %v1442 = vld [vmem:[#allocation4 + $0xa8] sm:$0xff]
    %v1443 = vld [vmem:[#allocation4 + $0xb0] sm:$0xff]
    %v1444 = vld [vmem:[#allocation4 + $0xb8] sm:$0xff]
    %v1445 = vld [vmem:[#allocation4 + $0xc0] sm:$0xff]
    %v1446 = vld [vmem:[#allocation4 + $0xc8] sm:$0xff]
    %v1447 = vld [vmem:[#allocation4 + $0xd0] sm:$0xff]
    %v1448 = vld [vmem:[#allocation4 + $0xd8] sm:$0xff]
    %v1449 = vld [vmem:[#allocation4 + $0xe0] sm:$0xff]
    %v1450 = vld [vmem:[#allocation4 + $0xe8] sm:$0xff]
    %v1451 = vld [vmem:[#allocation4 + $0xf0] sm:$0xff]
    %v1452 = vld [vmem:[#allocation4 + $0xf8] sm:$0xff]
    %v1453 = vld [vmem:[#allocation4 + $0x100] sm:$0xff]
    %v1454 = vld [vmem:[#allocation4 + $0x108] sm:$0xff]
    %v1455 = vld [vmem:[#allocation4 + $0x110] sm:$0xff]
    %v1456 = vld [vmem:[#allocation4 + $0x118] sm:$0xff]
    %v1457 = vld [vmem:[#allocation4 + $0x120] sm:$0xff]
    %v1458 = vld [vmem:[#allocation4 + $0x128] sm:$0xff]
    %v1459 = vld [vmem:[#allocation4 + $0x130] sm:$0xff]
    %v1460 = vld [vmem:[#allocation4 + $0x138] sm:$0xff]
    %v1461 = vld [vmem:[#allocation4 + $0x140] sm:$0xff]
    %v1462 = vld [vmem:[#allocation4 + $0x148] sm:$0xff]
    %v1463 = vld [vmem:[#allocation4 + $0x150] sm:$0xff]
    %v1464 = vld [vmem:[#allocation4 + $0x158] sm:$0xff]
    %v1465 = vld [vmem:[#allocation4 + $0x160] sm:$0xff]
    %v1466 = vld [vmem:[#allocation4 + $0x168] sm:$0xff]
    %v1467 = vld [vmem:[#allocation4 + $0x170] sm:$0xff]
    %v1468 = vld [vmem:[#allocation4 + $0x178] sm:$0xff]
    %v1469 = vld [vmem:[#allocation4 + $0x180] sm:$0xff]
    %v1470 = vld [vmem:[#allocation4 + $0x188] sm:$0xff]
    %v1471 = vld [vmem:[#allocation4 + $0x190] sm:$0xff]
    %v1472 = vld [vmem:[#allocation4 + $0x198] sm:$0xff]
    %v1473 = vld [vmem:[#allocation4 + $0x1a0] sm:$0xff]
    %v1474 = vld [vmem:[#allocation4 + $0x1a8] sm:$0xff]
    %v1475 = vld [vmem:[#allocation4 + $0x1b0] sm:$0xff]
    %v1476 = vld [vmem:[#allocation4 + $0x1b8] sm:$0xff]
    %v1477 = vld [vmem:[#allocation4 + $0x1c0] sm:$0xff]
    %v1478 = vld [vmem:[#allocation4 + $0x1c8] sm:$0xff]
    %v1479 = vld [vmem:[#allocation4 + $0x1d0] sm:$0xff]
    %v1480 = vld [vmem:[#allocation4 + $0x1d8] sm:$0xff]
    %v1481 = vld [vmem:[#allocation4 + $0x1e0] sm:$0xff]
    %v1482 = vld [vmem:[#allocation4 + $0x1e8] sm:$0xff]
    %v1483 = vld [vmem:[#allocation4 + $0x1f0] sm:$0xff]
    %v1484 = vld [vmem:[#allocation4 + $0x1f8] sm:$0xff]
    %v1485 = vld [vmem:[#allocation4 + $0x200] sm:$0xff]
    %v1486 = vld [vmem:[#allocation4 + $0x208] sm:$0xff]
    %v1487 = vld [vmem:[#allocation4 + $0x210] sm:$0xff]
    %v1488 = vld [vmem:[#allocation4 + $0x218] sm:$0xff]
    %v1489 = vld [vmem:[#allocation4 + $0x220] sm:$0xff]
    %v1490 = vld [vmem:[#allocation4 + $0x228] sm:$0xff]
    %v1491 = vld [vmem:[#allocation4 + $0x230] sm:$0xff]
    %v1492 = vld [vmem:[#allocation4 + $0x238] sm:$0xff]
    %v1493 = vld [vmem:[#allocation4 + $0x240] sm:$0xff]
    %v1494 = vld [vmem:[#allocation4 + $0x248] sm:$0xff]
    %v1495 = vld [vmem:[#allocation4 + $0x250] sm:$0xff]
    %v1496 = vld [vmem:[#allocation4 + $0x258] sm:$0xff]
    %v1497 = vld [vmem:[#allocation4 + $0x260] sm:$0xff]
    %v1498 = vld [vmem:[#allocation4 + $0x268] sm:$0xff]
    %v1499 = vld [vmem:[#allocation4 + $0x270] sm:$0xff]
    %v1500 = vld [vmem:[#allocation4 + $0x278] sm:$0xff]
    %v1501 = vld [vmem:[#allocation4 + $0x280] sm:$0xff]
    %v1502 = vld [vmem:[#allocation4 + $0x288] sm:$0xff]
    %v1503 = vld [vmem:[#allocation4 + $0x290] sm:$0xff]
    %v1504 = vld [vmem:[#allocation4 + $0x298] sm:$0xff]
    %v1505 = vld [vmem:[#allocation4 + $0x2a0] sm:$0xff]
    %v1506 = vld [vmem:[#allocation4 + $0x2a8] sm:$0xff]
    %v1507 = vld [vmem:[#allocation4 + $0x2b0] sm:$0xff]
    %v1508 = vld [vmem:[#allocation4 + $0x2b8] sm:$0xff]
    %v1509 = vld [vmem:[#allocation4 + $0x2c0] sm:$0xff]
    %v1510 = vld [vmem:[#allocation4 + $0x2c8] sm:$0xff]
    %v1511 = vld [vmem:[#allocation4 + $0x2d0] sm:$0xff]
    %v1512 = vld [vmem:[#allocation4 + $0x2d8] sm:$0xff]
    %v1513 = vld [vmem:[#allocation4 + $0x2e0] sm:$0xff]
    %v1514 = vld [vmem:[#allocation4 + $0x2e8] sm:$0xff]
    %v1515 = vld [vmem:[#allocation4 + $0x2f0] sm:$0xff]
    %v1516 = vld [vmem:[#allocation4 + $0x2f8] sm:$0xff]
    %v1517 = vld [vmem:[#allocation4 + $0x300] sm:$0xff]
    %v1518 = vld [vmem:[#allocation4 + $0x308] sm:$0xff]
    %v1519 = vld [vmem:[#allocation4 + $0x310] sm:$0xff]
    %v1520 = vld [vmem:[#allocation4 + $0x318] sm:$0xff]
    %v1521 = vld [vmem:[#allocation4 + $0x320] sm:$0xff]
    %v1522 = vld [vmem:[#allocation4 + $0x328] sm:$0xff]
    %v1523 = vld [vmem:[#allocation4 + $0x330] sm:$0xff]
    %v1524 = vld [vmem:[#allocation4 + $0x338] sm:$0xff]
    %v1525 = vld [vmem:[#allocation4 + $0x340] sm:$0xff]
    %v1526 = vld [vmem:[#allocation4 + $0x348] sm:$0xff]
    %v1527 = vld [vmem:[#allocation4 + $0x350] sm:$0xff]
    %v1528 = vld [vmem:[#allocation4 + $0x358] sm:$0xff]
    %v1529 = vld [vmem:[#allocation4 + $0x360] sm:$0xff]
    %v1530 = vld [vmem:[#allocation4 + $0x368] sm:$0xff]
    %v1531 = vld [vmem:[#allocation4 + $0x370] sm:$0xff]
    %v1532 = vld [vmem:[#allocation4 + $0x378] sm:$0xff]
    %v1533 = vld [vmem:[#allocation4 + $0x380] sm:$0xff]
    %v1534 = vld [vmem:[#allocation4 + $0x388] sm:$0xff]
    %v1535 = vld [vmem:[#allocation4 + $0x390] sm:$0xff]
    %v1536 = vld [vmem:[#allocation4 + $0x398] sm:$0xff]
    %v1537 = vld [vmem:[#allocation4 + $0x3a0] sm:$0xff]
    %v1538 = vld [vmem:[#allocation4 + $0x3a8] sm:$0xff]
    %v1539 = vld [vmem:[#allocation4 + $0x3b0] sm:$0xff]
    %v1540 = vld [vmem:[#allocation4 + $0x3b8] sm:$0xff]
    %v1541 = vld [vmem:[#allocation4 + $0x3c0] sm:$0xff]
    %v1542 = vld [vmem:[#allocation4 + $0x3c8] sm:$0xff]
    %v1543 = vld [vmem:[#allocation4 + $0x3d0] sm:$0xff]
    %v1544 = vld [vmem:[#allocation4 + $0x3d8] sm:$0xff]
    %v1545 = vld [vmem:[#allocation4 + $0x3e0] sm:$0xff]
    %v1546 = vld [vmem:[#allocation4 + $0x3e8] sm:$0xff]
    %v1547 = vld [vmem:[#allocation4 + $0x3f0] sm:$0xff]
    %v1548 = vld [vmem:[#allocation4 + $0x3f8] sm:$0xff]
    %v1549 = vld [vmem:[#allocation4 + $0x400] sm:$0xff]
    %v1550 = vld [vmem:[#allocation4 + $0x408] sm:$0xff]
    %v1551 = vld [vmem:[#allocation4 + $0x410] sm:$0xff]
    %v1552 = vld [vmem:[#allocation4 + $0x418] sm:$0xff]
    %v1553 = vld [vmem:[#allocation4 + $0x420] sm:$0xff]
    %v1554 = vld [vmem:[#allocation4 + $0x428] sm:$0xff]
    %v1555 = vld [vmem:[#allocation4 + $0x430] sm:$0xff]
    %v1556 = vld [vmem:[#allocation4 + $0x438] sm:$0xff]
    %v1557 = vld [vmem:[#allocation4 + $0x440] sm:$0xff]
    %v1558 = vld [vmem:[#allocation4 + $0x448] sm:$0xff]
    %v1559 = vld [vmem:[#allocation4 + $0x450] sm:$0xff]
    %v1560 = vld [vmem:[#allocation4 + $0x458] sm:$0xff]
    %v1561 = vld [vmem:[#allocation4 + $0x460] sm:$0xff]
    %v1562 = vld [vmem:[#allocation4 + $0x468] sm:$0xff]
    %v1563 = vld [vmem:[#allocation4 + $0x470] sm:$0xff]
    %v1564 = vld [vmem:[#allocation4 + $0x478] sm:$0xff]
    %v1565 = vld [vmem:[#allocation4 + $0x480] sm:$0xff]
    %v1566 = vld [vmem:[#allocation4 + $0x488] sm:$0xff]
    %v1567 = vld [vmem:[#allocation4 + $0x490] sm:$0xff]
    %v1568 = vld [vmem:[#allocation4 + $0x498] sm:$0xff]
    %v1569 = vld [vmem:[#allocation4 + $0x4a0] sm:$0xff]
    %v1570 = vld [vmem:[#allocation4 + $0x4a8] sm:$0xff]
    %v1571 = vld [vmem:[#allocation4 + $0x4b0] sm:$0xff]
    %v1572 = vld [vmem:[#allocation4 + $0x4b8] sm:$0xff]
    %v1573 = vld [vmem:[#allocation4 + $0x4c0] sm:$0xff]
    %v1574 = vld [vmem:[#allocation4 + $0x4c8] sm:$0xff]
    %v1575 = vld [vmem:[#allocation4 + $0x4d0] sm:$0xff]
    %v1576 = vld [vmem:[#allocation4 + $0x4d8] sm:$0xff]
    %v1577 = vld [vmem:[#allocation4 + $0x4e0] sm:$0xff]
    %v1578 = vld [vmem:[#allocation4 + $0x4e8] sm:$0xff]
    %v1579 = vld [vmem:[#allocation4 + $0x4f0] sm:$0xff]
    %v1580 = vld [vmem:[#allocation4 + $0x4f8] sm:$0xff]
    %v1581 = vld [vmem:[#allocation4 + $0x500] sm:$0xff]
    %v1582 = vld [vmem:[#allocation4 + $0x508] sm:$0xff]
    %v1583 = vld [vmem:[#allocation4 + $0x510] sm:$0xff]
    %v1584 = vld [vmem:[#allocation4 + $0x518] sm:$0xff]
    %v1585 = vld [vmem:[#allocation4 + $0x520] sm:$0xff]
    %v1586 = vld [vmem:[#allocation4 + $0x528] sm:$0xff]
    %v1587 = vld [vmem:[#allocation4 + $0x530] sm:$0xff]
    %v1588 = vld [vmem:[#allocation4 + $0x538] sm:$0xff]
    %v1589 = vld [vmem:[#allocation4 + $0x540] sm:$0xff]
    %v1590 = vld [vmem:[#allocation4 + $0x548] sm:$0xff]
    %v1591 = vld [vmem:[#allocation4 + $0x550] sm:$0xff]
    %v1592 = vld [vmem:[#allocation4 + $0x558] sm:$0xff]
    %v1593 = vld [vmem:[#allocation4 + $0x560] sm:$0xff]
    %v1594 = vld [vmem:[#allocation4 + $0x568] sm:$0xff]
    %v1595 = vld [vmem:[#allocation4 + $0x570] sm:$0xff]
    %v1596 = vld [vmem:[#allocation4 + $0x578] sm:$0xff]
    %v1597 = vld [vmem:[#allocation4 + $0x580] sm:$0xff]
    %v1598 = vld [vmem:[#allocation4 + $0x588] sm:$0xff]
    %v1599 = vld [vmem:[#allocation4 + $0x590] sm:$0xff]
    %v1600 = vld [vmem:[#allocation4 + $0x598] sm:$0xff]
    %v1601 = vld [vmem:[#allocation4 + $0x5a0] sm:$0xff]
    %v1602 = vld [vmem:[#allocation4 + $0x5a8] sm:$0xff]
    %v1603 = vld [vmem:[#allocation4 + $0x5b0] sm:$0xff]
    %v1604 = vld [vmem:[#allocation4 + $0x5b8] sm:$0xff]
    %v1605 = vld [vmem:[#allocation4 + $0x5c0] sm:$0xff]
    %v1606 = vld [vmem:[#allocation4 + $0x5c8] sm:$0xff]
    %v1607 = vld [vmem:[#allocation4 + $0x5d0] sm:$0xff]
    %v1608 = vld [vmem:[#allocation4 + $0x5d8] sm:$0xff]
    %v1609 = vld [vmem:[#allocation4 + $0x5e0] sm:$0xff]
    %v1610 = vld [vmem:[#allocation4 + $0x5e8] sm:$0xff]
    %v1611 = vld [vmem:[#allocation4 + $0x5f0] sm:$0xff]
    %v1612 = vld [vmem:[#allocation4 + $0x5f8] sm:$0xff]
    %v1613 = vld [vmem:[#allocation4 + $0x600] sm:$0xff]
    %v1614 = vld [vmem:[#allocation4 + $0x608] sm:$0xff]
    %v1615 = vld [vmem:[#allocation4 + $0x610] sm:$0xff]
    %v1616 = vld [vmem:[#allocation4 + $0x618] sm:$0xff]
    %v1617 = vld [vmem:[#allocation4 + $0x620] sm:$0xff]
    %v1618 = vld [vmem:[#allocation4 + $0x628] sm:$0xff]
    %v1619 = vld [vmem:[#allocation4 + $0x630] sm:$0xff]
    %v1620 = vld [vmem:[#allocation4 + $0x638] sm:$0xff]
    %v1621 = vld [vmem:[#allocation4 + $0x640] sm:$0xff]
    %v1622 = vld [vmem:[#allocation4 + $0x648] sm:$0xff]
    %v1623 = vld [vmem:[#allocation4 + $0x650] sm:$0xff]
    %v1624 = vld [vmem:[#allocation4 + $0x658] sm:$0xff]
    %v1625 = vld [vmem:[#allocation4 + $0x660] sm:$0xff]
    %v1626 = vld [vmem:[#allocation4 + $0x668] sm:$0xff]
    %v1627 = vld [vmem:[#allocation4 + $0x670] sm:$0xff]
    %v1628 = vld [vmem:[#allocation4 + $0x678] sm:$0xff]
    %v1629 = vld [vmem:[#allocation4 + $0x680] sm:$0xff]
    %v1630 = vld [vmem:[#allocation4 + $0x688] sm:$0xff]
    %v1631 = vld [vmem:[#allocation4 + $0x690] sm:$0xff]
    %v1632 = vld [vmem:[#allocation4 + $0x698] sm:$0xff]
    %v1633 = vld [vmem:[#allocation4 + $0x6a0] sm:$0xff]
    %v1634 = vld [vmem:[#allocation4 + $0x6a8] sm:$0xff]
    %v1635 = vld [vmem:[#allocation4 + $0x6b0] sm:$0xff]
    %v1636 = vld [vmem:[#allocation4 + $0x6b8] sm:$0xff]
    %v1637 = vld [vmem:[#allocation4 + $0x6c0] sm:$0xff]
    %v1638 = vld [vmem:[#allocation4 + $0x6c8] sm:$0xff]
    %v1639 = vld [vmem:[#allocation4 + $0x6d0] sm:$0xff]
    %v1640 = vld [vmem:[#allocation4 + $0x6d8] sm:$0xff]
    %v1641 = vld [vmem:[#allocation4 + $0x6e0] sm:$0xff]
    %v1642 = vld [vmem:[#allocation4 + $0x6e8] sm:$0xff]
    %v1643 = vld [vmem:[#allocation4 + $0x6f0] sm:$0xff]
    %v1644 = vld [vmem:[#allocation4 + $0x6f8] sm:$0xff]
    %v1645 = vld [vmem:[#allocation4 + $0x700] sm:$0xff]
    %v1646 = vld [vmem:[#allocation4 + $0x708] sm:$0xff]
    %v1647 = vld [vmem:[#allocation4 + $0x710] sm:$0xff]
    %v1648 = vld [vmem:[#allocation4 + $0x718] sm:$0xff]
    %v1649 = vld [vmem:[#allocation4 + $0x720] sm:$0xff]
    %v1650 = vld [vmem:[#allocation4 + $0x728] sm:$0xff]
    %v1651 = vld [vmem:[#allocation4 + $0x730] sm:$0xff]
    %v1652 = vld [vmem:[#allocation4 + $0x738] sm:$0xff]
    %v1653 = vld [vmem:[#allocation4 + $0x740] sm:$0xff]
    %v1654 = vld [vmem:[#allocation4 + $0x748] sm:$0xff]
    %v1655 = vld [vmem:[#allocation4 + $0x750] sm:$0xff]
    %v1656 = vld [vmem:[#allocation4 + $0x758] sm:$0xff]
    %v1657 = vld [vmem:[#allocation4 + $0x760] sm:$0xff]
    %v1658 = vld [vmem:[#allocation4 + $0x768] sm:$0xff]
    %v1659 = vld [vmem:[#allocation4 + $0x770] sm:$0xff]
    %v1660 = vld [vmem:[#allocation4 + $0x778] sm:$0xff]
    %v1661 = vld [vmem:[#allocation4 + $0x780] sm:$0xff]
    %v1662 = vld [vmem:[#allocation4 + $0x788] sm:$0xff]
    %v1663 = vld [vmem:[#allocation4 + $0x790] sm:$0xff]
    %v1664 = vld [vmem:[#allocation4 + $0x798] sm:$0xff]
    %v1665 = vld [vmem:[#allocation4 + $0x7a0] sm:$0xff]
    %v1666 = vld [vmem:[#allocation4 + $0x7a8] sm:$0xff]
    %v1667 = vld [vmem:[#allocation4 + $0x7b0] sm:$0xff]
    %v1668 = vld [vmem:[#allocation4 + $0x7b8] sm:$0xff]
    %v1669 = vld [vmem:[#allocation4 + $0x7c0] sm:$0xff]
    %v1670 = vld [vmem:[#allocation4 + $0x7c8] sm:$0xff]
    %v1671 = vld [vmem:[#allocation4 + $0x7d0] sm:$0xff]
    %v1672 = vld [vmem:[#allocation4 + $0x7d8] sm:$0xff]
    %v1673 = vld [vmem:[#allocation4 + $0x7e0] sm:$0xff]
    %v1674 = vld [vmem:[#allocation4 + $0x7e8] sm:$0xff]
    %v1675 = vld [vmem:[#allocation4 + $0x7f0] sm:$0xff]
    %v1676 = vld [vmem:[#allocation4 + $0x7f8] sm:$0xff]
    %v1677 = vld [vmem:[#allocation4 + $0x800] sm:$0xff]
    %v1678 = vld [vmem:[#allocation4 + $0x808] sm:$0xff]
    %v1679 = vld [vmem:[#allocation4 + $0x810] sm:$0xff]
    %v1680 = vld [vmem:[#allocation4 + $0x818] sm:$0xff]
    %v1681 = vld [vmem:[#allocation4 + $0x820] sm:$0xff]
    %v1682 = vld [vmem:[#allocation4 + $0x828] sm:$0xff]
    %v1683 = vld [vmem:[#allocation4 + $0x830] sm:$0xff]
    %v1684 = vld [vmem:[#allocation4 + $0x838] sm:$0xff]
    %v1685 = vld [vmem:[#allocation4 + $0x840] sm:$0xff]
    %v1686 = vld [vmem:[#allocation4 + $0x848] sm:$0xff]
    %v1687 = vld [vmem:[#allocation4 + $0x850] sm:$0xff]
    %v1688 = vld [vmem:[#allocation4 + $0x858] sm:$0xff]
    %v1689 = vld [vmem:[#allocation4 + $0x860] sm:$0xff]
    %v1690 = vld [vmem:[#allocation4 + $0x868] sm:$0xff]
    %v1691 = vld [vmem:[#allocation4 + $0x870] sm:$0xff]
    %v1692 = vld [vmem:[#allocation4 + $0x878] sm:$0xff]
    %v1693 = vld [vmem:[#allocation4 + $0x880] sm:$0xff]
    %v1694 = vld [vmem:[#allocation4 + $0x888] sm:$0xff]
    %v1695 = vld [vmem:[#allocation4 + $0x890] sm:$0xff]
    %v1696 = vld [vmem:[#allocation4 + $0x898] sm:$0xff]
    %v1697 = vld [vmem:[#allocation4 + $0x8a0] sm:$0xff]
    %v1698 = vld [vmem:[#allocation4 + $0x8a8] sm:$0xff]
    %v1699 = vld [vmem:[#allocation4 + $0x8b0] sm:$0xff]
    %v1700 = vld [vmem:[#allocation4 + $0x8b8] sm:$0xff]
    %v1701 = vld [vmem:[#allocation4 + $0x8c0] sm:$0xff]
    %v1702 = vld [vmem:[#allocation4 + $0x8c8] sm:$0xff]
    %v1703 = vld [vmem:[#allocation4 + $0x8d0] sm:$0xff]
    %v1704 = vld [vmem:[#allocation4 + $0x8d8] sm:$0xff]
    %v1705 = vld [vmem:[#allocation4 + $0x8e0] sm:$0xff]
    %v1706 = vld [vmem:[#allocation4 + $0x8e8] sm:$0xff]
    %v1707 = vld [vmem:[#allocation4 + $0x8f0] sm:$0xff]
    %v1708 = vld [vmem:[#allocation4 + $0x8f8] sm:$0xff]
    %v1709 = vld [vmem:[#allocation4 + $0x900] sm:$0xff]
    %v1710 = vld [vmem:[#allocation4 + $0x908] sm:$0xff]
    %v1711 = vld [vmem:[#allocation4 + $0x910] sm:$0xff]
    %v1712 = vld [vmem:[#allocation4 + $0x918] sm:$0xff]
    %v1713 = vld [vmem:[#allocation4 + $0x920] sm:$0xff]
    %v1714 = vld [vmem:[#allocation4 + $0x928] sm:$0xff]
    %v1715 = vld [vmem:[#allocation4 + $0x930] sm:$0xff]
    %v1716 = vld [vmem:[#allocation4 + $0x938] sm:$0xff]
    %v1717 = vld [vmem:[#allocation4 + $0x940] sm:$0xff]
    %v1718 = vld [vmem:[#allocation4 + $0x948] sm:$0xff]
    %v1719 = vld [vmem:[#allocation4 + $0x950] sm:$0xff]
    %v1720 = vld [vmem:[#allocation4 + $0x958] sm:$0xff]
    %v1721 = vld [vmem:[#allocation4 + $0x960] sm:$0xff]
    %v1722 = vld [vmem:[#allocation4 + $0x968] sm:$0xff]
    %v1723 = vld [vmem:[#allocation4 + $0x970] sm:$0xff]
    %v1724 = vld [vmem:[#allocation4 + $0x978] sm:$0xff]
    %v1725 = vld [vmem:[#allocation4 + $0x980] sm:$0xff]
    %v1726 = vld [vmem:[#allocation4 + $0x988] sm:$0xff]
    %v1727 = vld [vmem:[#allocation4 + $0x990] sm:$0xff]
    %v1728 = vld [vmem:[#allocation4 + $0x998] sm:$0xff]
    %v1729 = vld [vmem:[#allocation4 + $0x9a0] sm:$0xff]
    %v1730 = vld [vmem:[#allocation4 + $0x9a8] sm:$0xff]
    %v1731 = vld [vmem:[#allocation4 + $0x9b0] sm:$0xff]
    %v1732 = vld [vmem:[#allocation4 + $0x9b8] sm:$0xff]
    %v1733 = vld [vmem:[#allocation4 + $0x9c0] sm:$0xff]
    %v1734 = vld [vmem:[#allocation4 + $0x9c8] sm:$0xff]
    %v1735 = vld [vmem:[#allocation4 + $0x9d0] sm:$0xff]
    %v1736 = vld [vmem:[#allocation4 + $0x9d8] sm:$0xff]
    %v1737 = vld [vmem:[#allocation4 + $0x9e0] sm:$0xff]
    %v1738 = vld [vmem:[#allocation4 + $0x9e8] sm:$0xff]
    %v1739 = vld [vmem:[#allocation4 + $0x9f0] sm:$0xff]
    %v1740 = vld [vmem:[#allocation4 + $0x9f8] sm:$0xff]
    %v1741 = vld [vmem:[#allocation4 + $0xa00] sm:$0xff]
    %v1742 = vld [vmem:[#allocation4 + $0xa08] sm:$0xff]
    %v1743 = vld [vmem:[#allocation4 + $0xa10] sm:$0xff]
    %v1744 = vld [vmem:[#allocation4 + $0xa18] sm:$0xff]
    %v1745 = vld [vmem:[#allocation4 + $0xa20] sm:$0xff]
    %v1746 = vld [vmem:[#allocation4 + $0xa28] sm:$0xff]
    %v1747 = vld [vmem:[#allocation4 + $0xa30] sm:$0xff]
    %v1748 = vld [vmem:[#allocation4 + $0xa38] sm:$0xff]
    %v1749 = vld [vmem:[#allocation4 + $0xa40] sm:$0xff]
    %v1750 = vld [vmem:[#allocation4 + $0xa48] sm:$0xff]
    %v1751 = vld [vmem:[#allocation4 + $0xa50] sm:$0xff]
    %v1752 = vld [vmem:[#allocation4 + $0xa58] sm:$0xff]
    %v1753 = vld [vmem:[#allocation4 + $0xa60] sm:$0xff]
    %v1754 = vld [vmem:[#allocation4 + $0xa68] sm:$0xff]
    %v1755 = vld [vmem:[#allocation4 + $0xa70] sm:$0xff]
    %v1756 = vld [vmem:[#allocation4 + $0xa78] sm:$0xff]
    %v1757 = vld [vmem:[#allocation4 + $0xa80] sm:$0xff]
    %v1758 = vld [vmem:[#allocation4 + $0xa88] sm:$0xff]
    %v1759 = vld [vmem:[#allocation4 + $0xa90] sm:$0xff]
    %v1760 = vld [vmem:[#allocation4 + $0xa98] sm:$0xff]
    %v1761 = vld [vmem:[#allocation4 + $0xaa0] sm:$0xff]
    %v1762 = vld [vmem:[#allocation4 + $0xaa8] sm:$0xff]
    %v1763 = vld [vmem:[#allocation4 + $0xab0] sm:$0xff]
    %v1764 = vld [vmem:[#allocation4 + $0xab8] sm:$0xff]
    %v1765 = vld [vmem:[#allocation4 + $0xac0] sm:$0xff]
    %v1766 = vld [vmem:[#allocation4 + $0xac8] sm:$0xff]
    %v1767 = vld [vmem:[#allocation4 + $0xad0] sm:$0xff]
    %v1768 = vld [vmem:[#allocation4 + $0xad8] sm:$0xff]
    %v1769 = vld [vmem:[#allocation4 + $0xae0] sm:$0xff]
    %v1770 = vld [vmem:[#allocation4 + $0xae8] sm:$0xff]
    %v1771 = vld [vmem:[#allocation4 + $0xaf0] sm:$0xff]
    %v1772 = vld [vmem:[#allocation4 + $0xaf8] sm:$0xff]
    %v1773 = vld [vmem:[#allocation4 + $0xb00] sm:$0xff]
    %v1774 = vld [vmem:[#allocation4 + $0xb08] sm:$0xff]
    %v1775 = vld [vmem:[#allocation4 + $0xb10] sm:$0xff]
    %v1776 = vld [vmem:[#allocation4 + $0xb18] sm:$0xff]
    %v1777 = vld [vmem:[#allocation4 + $0xb20] sm:$0xff]
    %v1778 = vld [vmem:[#allocation4 + $0xb28] sm:$0xff]
    %v1779 = vld [vmem:[#allocation4 + $0xb30] sm:$0xff]
    %v1780 = vld [vmem:[#allocation4 + $0xb38] sm:$0xff]
    %v1781 = vld [vmem:[#allocation4 + $0xb40] sm:$0xff]
    %v1782 = vld [vmem:[#allocation4 + $0xb48] sm:$0xff]
    %v1783 = vld [vmem:[#allocation4 + $0xb50] sm:$0xff]
    %v1784 = vld [vmem:[#allocation4 + $0xb58] sm:$0xff]
    %v1785 = vld [vmem:[#allocation4 + $0xb60] sm:$0xff]
    %v1786 = vld [vmem:[#allocation4 + $0xb68] sm:$0xff]
    %v1787 = vld [vmem:[#allocation4 + $0xb70] sm:$0xff]
    %v1788 = vld [vmem:[#allocation4 + $0xb78] sm:$0xff]
    %v1789 = vld [vmem:[#allocation4 + $0xb80] sm:$0xff]
    %v1790 = vld [vmem:[#allocation4 + $0xb88] sm:$0xff]
    %v1791 = vld [vmem:[#allocation4 + $0xb90] sm:$0xff]
    %v1792 = vld [vmem:[#allocation4 + $0xb98] sm:$0xff]
    %v1793 = vld [vmem:[#allocation4 + $0xba0] sm:$0xff]
    %v1794 = vld [vmem:[#allocation4 + $0xba8] sm:$0xff]
    %v1795 = vld [vmem:[#allocation4 + $0xbb0] sm:$0xff]
    %v1796 = vld [vmem:[#allocation4 + $0xbb8] sm:$0xff]
    %v1797 = vld [vmem:[#allocation4 + $0xbc0] sm:$0xff]
    %v1798 = vld [vmem:[#allocation4 + $0xbc8] sm:$0xff]
    %v1799 = vld [vmem:[#allocation4 + $0xbd0] sm:$0xff]
    %v1800 = vld [vmem:[#allocation4 + $0xbd8] sm:$0xff]
    %v1801 = vld [vmem:[#allocation4 + $0xbe0] sm:$0xff]
    %v1802 = vld [vmem:[#allocation4 + $0xbe8] sm:$0xff]
    %v1803 = vld [vmem:[#allocation4 + $0xbf0] sm:$0xff]
    %v1804 = vld [vmem:[#allocation4 + $0xbf8] sm:$0xff]
    %v1805 = vld [vmem:[#allocation4 + $0xc00] sm:$0xff]
    %v1806 = vld [vmem:[#allocation4 + $0xc08] sm:$0xff]
    %v1807 = vld [vmem:[#allocation4 + $0xc10] sm:$0xff]
    %v1808 = vld [vmem:[#allocation4 + $0xc18] sm:$0xff]
    %v1809 = vld [vmem:[#allocation4 + $0xc20] sm:$0xff]
    %v1810 = vld [vmem:[#allocation4 + $0xc28] sm:$0xff]
    %v1811 = vld [vmem:[#allocation4 + $0xc30] sm:$0xff]
    %v1812 = vld [vmem:[#allocation4 + $0xc38] sm:$0xff]
    %v1813 = vld [vmem:[#allocation4 + $0xc40] sm:$0xff]
    %v1814 = vld [vmem:[#allocation4 + $0xc48] sm:$0xff]
    %v1815 = vld [vmem:[#allocation4 + $0xc50] sm:$0xff]
    %v1816 = vld [vmem:[#allocation4 + $0xc58] sm:$0xff]
    %v1817 = vld [vmem:[#allocation4 + $0xc60] sm:$0xff]
    %v1818 = vld [vmem:[#allocation4 + $0xc68] sm:$0xff]
    %v1819 = vld [vmem:[#allocation4 + $0xc70] sm:$0xff]
    %v1820 = vld [vmem:[#allocation4 + $0xc78] sm:$0xff]
    %v1821 = vld [vmem:[#allocation4 + $0xc80] sm:$0xff]
    %v1822 = vld [vmem:[#allocation4 + $0xc88] sm:$0xff]
    %v1823 = vld [vmem:[#allocation4 + $0xc90] sm:$0xff]
    %v1824 = vld [vmem:[#allocation4 + $0xc98] sm:$0xff]
    %v1825 = vld [vmem:[#allocation4 + $0xca0] sm:$0xff]
    %v1826 = vld [vmem:[#allocation4 + $0xca8] sm:$0xff]
    %v1827 = vld [vmem:[#allocation4 + $0xcb0] sm:$0xff]
    %v1828 = vld [vmem:[#allocation4 + $0xcb8] sm:$0xff]
    %v1829 = vld [vmem:[#allocation4 + $0xcc0] sm:$0xff]
    %v1830 = vld [vmem:[#allocation4 + $0xcc8] sm:$0xff]
    %v1831 = vld [vmem:[#allocation4 + $0xcd0] sm:$0xff]
    %v1832 = vld [vmem:[#allocation4 + $0xcd8] sm:$0xff]
    %v1833 = vld [vmem:[#allocation4 + $0xce0] sm:$0xff]
    %v1834 = vld [vmem:[#allocation4 + $0xce8] sm:$0xff]
    %v1835 = vld [vmem:[#allocation4 + $0xcf0] sm:$0xff]
    %v1836 = vld [vmem:[#allocation4 + $0xcf8] sm:$0xff]
    %v1837 = vld [vmem:[#allocation4 + $0xd00] sm:$0xff]
    %v1838 = vld [vmem:[#allocation4 + $0xd08] sm:$0xff]
    %v1839 = vld [vmem:[#allocation4 + $0xd10] sm:$0xff]
    %v1840 = vld [vmem:[#allocation4 + $0xd18] sm:$0xff]
    %v1841 = vld [vmem:[#allocation4 + $0xd20] sm:$0xff]
    %v1842 = vld [vmem:[#allocation4 + $0xd28] sm:$0xff]
    %v1843 = vld [vmem:[#allocation4 + $0xd30] sm:$0xff]
    %v1844 = vld [vmem:[#allocation4 + $0xd38] sm:$0xff]
    %v1845 = vld [vmem:[#allocation4 + $0xd40] sm:$0xff]
    %v1846 = vld [vmem:[#allocation4 + $0xd48] sm:$0xff]
    %v1847 = vld [vmem:[#allocation4 + $0xd50] sm:$0xff]
    %v1848 = vld [vmem:[#allocation4 + $0xd58] sm:$0xff]
    %v1849 = vld [vmem:[#allocation4 + $0xd60] sm:$0xff]
    %v1850 = vld [vmem:[#allocation4 + $0xd68] sm:$0xff]
    %v1851 = vld [vmem:[#allocation4 + $0xd70] sm:$0xff]
    %v1852 = vld [vmem:[#allocation4 + $0xd78] sm:$0xff]
    %v1853 = vld [vmem:[#allocation4 + $0xd80] sm:$0xff]
    %v1854 = vld [vmem:[#allocation4 + $0xd88] sm:$0xff]
    %v1855 = vld [vmem:[#allocation4 + $0xd90] sm:$0xff]
    %v1856 = vld [vmem:[#allocation4 + $0xd98] sm:$0xff]
    %v1857 = vld [vmem:[#allocation4 + $0xda0] sm:$0xff]
    %v1858 = vld [vmem:[#allocation4 + $0xda8] sm:$0xff]
    %v1859 = vld [vmem:[#allocation4 + $0xdb0] sm:$0xff]
    %v1860 = vld [vmem:[#allocation4 + $0xdb8] sm:$0xff]
    %v1861 = vld [vmem:[#allocation4 + $0xdc0] sm:$0xff]
    %v1862 = vld [vmem:[#allocation4 + $0xdc8] sm:$0xff]
    %v1863 = vld [vmem:[#allocation4 + $0xdd0] sm:$0xff]
    %v1864 = vld [vmem:[#allocation4 + $0xdd8] sm:$0xff]
    %v1865 = vld [vmem:[#allocation4 + $0xde0] sm:$0xff]
    %v1866 = vld [vmem:[#allocation4 + $0xde8] sm:$0xff]
    %v1867 = vld [vmem:[#allocation4 + $0xdf0] sm:$0xff]
    %v1868 = vld [vmem:[#allocation4 + $0xdf8] sm:$0xff]
    %v1869 = vld [vmem:[#allocation4 + $0xe00] sm:$0xff]
    %v1870 = vld [vmem:[#allocation4 + $0xe08] sm:$0xff]
    %v1871 = vld [vmem:[#allocation4 + $0xe10] sm:$0xff]
    %v1872 = vld [vmem:[#allocation4 + $0xe18] sm:$0xff]
    %v1873 = vld [vmem:[#allocation4 + $0xe20] sm:$0xff]
    %v1874 = vld [vmem:[#allocation4 + $0xe28] sm:$0xff]
    %v1875 = vld [vmem:[#allocation4 + $0xe30] sm:$0xff]
    %v1876 = vld [vmem:[#allocation4 + $0xe38] sm:$0xff]
    %v1877 = vld [vmem:[#allocation4 + $0xe40] sm:$0xff]
    %v1878 = vld [vmem:[#allocation4 + $0xe48] sm:$0xff]
    %v1879 = vld [vmem:[#allocation4 + $0xe50] sm:$0xff]
    %v1880 = vld [vmem:[#allocation4 + $0xe58] sm:$0xff]
    %v1881 = vld [vmem:[#allocation4 + $0xe60] sm:$0xff]
    %v1882 = vld [vmem:[#allocation4 + $0xe68] sm:$0xff]
    %v1883 = vld [vmem:[#allocation4 + $0xe70] sm:$0xff]
    %v1884 = vld [vmem:[#allocation4 + $0xe78] sm:$0xff]
    %v1885 = vld [vmem:[#allocation4 + $0xe80] sm:$0xff]
    %v1886 = vld [vmem:[#allocation4 + $0xe88] sm:$0xff]
    %v1887 = vld [vmem:[#allocation4 + $0xe90] sm:$0xff]
    %v1888 = vld [vmem:[#allocation4 + $0xe98] sm:$0xff]
    %v1889 = vld [vmem:[#allocation4 + $0xea0] sm:$0xff]
    %v1890 = vld [vmem:[#allocation4 + $0xea8] sm:$0xff]
    %v1891 = vld [vmem:[#allocation4 + $0xeb0] sm:$0xff]
    %v1892 = vld [vmem:[#allocation4 + $0xeb8] sm:$0xff]
    %v1893 = vld [vmem:[#allocation4 + $0xec0] sm:$0xff]
    %v1894 = vld [vmem:[#allocation4 + $0xec8] sm:$0xff]
    %v1895 = vld [vmem:[#allocation4 + $0xed0] sm:$0xff]
    %v1896 = vld [vmem:[#allocation4 + $0xed8] sm:$0xff]
    %v1897 = vld [vmem:[#allocation4 + $0xee0] sm:$0xff]
    %v1898 = vld [vmem:[#allocation4 + $0xee8] sm:$0xff]
    %v1899 = vld [vmem:[#allocation4 + $0xef0] sm:$0xff]
    %v1900 = vld [vmem:[#allocation4 + $0xef8] sm:$0xff]
    %v1901 = vld [vmem:[#allocation4 + $0xf00] sm:$0xff]
    %v1902 = vld [vmem:[#allocation4 + $0xf08] sm:$0xff]
    %v1903 = vld [vmem:[#allocation4 + $0xf10] sm:$0xff]
    %v1904 = vld [vmem:[#allocation4 + $0xf18] sm:$0xff]
    %v1905 = vld [vmem:[#allocation4 + $0xf20] sm:$0xff]
    %v1906 = vld [vmem:[#allocation4 + $0xf28] sm:$0xff]
    %v1907 = vld [vmem:[#allocation4 + $0xf30] sm:$0xff]
    %v1908 = vld [vmem:[#allocation4 + $0xf38] sm:$0xff]
    %v1909 = vld [vmem:[#allocation4 + $0xf40] sm:$0xff]
    %v1910 = vld [vmem:[#allocation4 + $0xf48] sm:$0xff]
    %v1911 = vld [vmem:[#allocation4 + $0xf50] sm:$0xff]
    %v1912 = vld [vmem:[#allocation4 + $0xf58] sm:$0xff]
    %v1913 = vld [vmem:[#allocation4 + $0xf60] sm:$0xff]
    %v1914 = vld [vmem:[#allocation4 + $0xf68] sm:$0xff]
    %v1915 = vld [vmem:[#allocation4 + $0xf70] sm:$0xff]
    %v1916 = vld [vmem:[#allocation4 + $0xf78] sm:$0xff]
    %v1917 = vld [vmem:[#allocation4 + $0xf80] sm:$0xff]
    %v1918 = vld [vmem:[#allocation4 + $0xf88] sm:$0xff]
    %v1919 = vld [vmem:[#allocation4 + $0xf90] sm:$0xff]
    %v1920 = vld [vmem:[#allocation4 + $0xf98] sm:$0xff]
    %v1921 = vld [vmem:[#allocation4 + $0xfa0] sm:$0xff]
    %v1922 = vld [vmem:[#allocation4 + $0xfa8] sm:$0xff]
    %v1923 = vld [vmem:[#allocation4 + $0xfb0] sm:$0xff]
    %v1924 = vld [vmem:[#allocation4 + $0xfb8] sm:$0xff]
    %v1925 = vld [vmem:[#allocation4 + $0xfc0] sm:$0xff]
    %v1926 = vld [vmem:[#allocation4 + $0xfc8] sm:$0xff]
    %v1927 = vld [vmem:[#allocation4 + $0xfd0] sm:$0xff]
    %v1928 = vld [vmem:[#allocation4 + $0xfd8] sm:$0xff]
    %v1929 = vld [vmem:[#allocation4 + $0xfe0] sm:$0xff]
    %v1930 = vld [vmem:[#allocation4 + $0xfe8] sm:$0xff]
    %v1931 = vld [vmem:[#allocation4 + $0xff0] sm:$0xff]
    %v1932 = vld [vmem:[#allocation4 + $0xff8] sm:$0xff]
    %v1933 = vld [vmem:[#allocation4 + $0x1000] sm:$0xff]
    %v1934 = vld [vmem:[#allocation4 + $0x1008] sm:$0xff]
    %v1935 = vld [vmem:[#allocation4 + $0x1010] sm:$0xff]
    %v1936 = vld [vmem:[#allocation4 + $0x1018] sm:$0xff]
    %v1937 = vld [vmem:[#allocation4 + $0x1020] sm:$0xff]
    %v1938 = vld [vmem:[#allocation4 + $0x1028] sm:$0xff]
    %v1939 = vld [vmem:[#allocation4 + $0x1030] sm:$0xff]
    %v1940 = vld [vmem:[#allocation4 + $0x1038] sm:$0xff]
    %v1941 = vld [vmem:[#allocation4 + $0x1040] sm:$0xff]
    %v1942 = vld [vmem:[#allocation4 + $0x1048] sm:$0xff]
    %v1943 = vld [vmem:[#allocation4 + $0x1050] sm:$0xff]
    %v1944 = vld [vmem:[#allocation4 + $0x1058] sm:$0xff]
    %v1945 = vld [vmem:[#allocation4 + $0x1060] sm:$0xff]
    %v1946 = vld [vmem:[#allocation4 + $0x1068] sm:$0xff]
    %v1947 = vld [vmem:[#allocation4 + $0x1070] sm:$0xff]
    %v1948 = vld [vmem:[#allocation4 + $0x1078] sm:$0xff]
    %v1949 = vld [vmem:[#allocation4 + $0x1080] sm:$0xff]
    %v1950 = vld [vmem:[#allocation4 + $0x1088] sm:$0xff]
    %v1951 = vld [vmem:[#allocation4 + $0x1090] sm:$0xff]
    %v1952 = vld [vmem:[#allocation4 + $0x1098] sm:$0xff]
    %v1953 = vld [vmem:[#allocation4 + $0x10a0] sm:$0xff]
    %v1954 = vld [vmem:[#allocation4 + $0x10a8] sm:$0xff]
    %v1955 = vld [vmem:[#allocation4 + $0x10b0] sm:$0xff]
    %v1956 = vld [vmem:[#allocation4 + $0x10b8] sm:$0xff]
    %v1957 = vld [vmem:[#allocation4 + $0x10c0] sm:$0xff]
    %v1958 = vld [vmem:[#allocation4 + $0x10c8] sm:$0xff]
    %v1959 = vld [vmem:[#allocation4 + $0x10d0] sm:$0xff]
    %v1960 = vld [vmem:[#allocation4 + $0x10d8] sm:$0xff]
    %v1961 = vld [vmem:[#allocation4 + $0x10e0] sm:$0xff]
    %v1962 = vld [vmem:[#allocation4 + $0x10e8] sm:$0xff]
    %v1963 = vld [vmem:[#allocation4 + $0x10f0] sm:$0xff]
    %v1964 = vld [vmem:[#allocation4 + $0x10f8] sm:$0xff]
    %v1965 = vld [vmem:[#allocation4 + $0x1100] sm:$0xff]
    %v1966 = vld [vmem:[#allocation4 + $0x1108] sm:$0xff]
    %v1967 = vld [vmem:[#allocation4 + $0x1110] sm:$0xff]
    %v1968 = vld [vmem:[#allocation4 + $0x1118] sm:$0xff]
    %v1969 = vld [vmem:[#allocation4 + $0x1120] sm:$0xff]
    %v1970 = vld [vmem:[#allocation4 + $0x1128] sm:$0xff]
    %v1971 = vld [vmem:[#allocation4 + $0x1130] sm:$0xff]
    %v1972 = vld [vmem:[#allocation4 + $0x1138] sm:$0xff]
    %v1973 = vld [vmem:[#allocation4 + $0x1140] sm:$0xff]
    %v1974 = vld [vmem:[#allocation4 + $0x1148] sm:$0xff]
    %v1975 = vld [vmem:[#allocation4 + $0x1150] sm:$0xff]
    %v1976 = vld [vmem:[#allocation4 + $0x1158] sm:$0xff]
    %v1977 = vld [vmem:[#allocation4 + $0x1160] sm:$0xff]
    %v1978 = vld [vmem:[#allocation4 + $0x1168] sm:$0xff]
    %v1979 = vld [vmem:[#allocation4 + $0x1170] sm:$0xff]
    %v1980 = vld [vmem:[#allocation4 + $0x1178] sm:$0xff]
    %v1981 = vld [vmem:[#allocation4 + $0x1180] sm:$0xff]
    %v1982 = vld [vmem:[#allocation4 + $0x1188] sm:$0xff]
    %v1983 = vld [vmem:[#allocation4 + $0x1190] sm:$0xff]
    %v1984 = vld [vmem:[#allocation4 + $0x1198] sm:$0xff]
    %v1985 = vld [vmem:[#allocation4 + $0x11a0] sm:$0xff]
    %v1986 = vld [vmem:[#allocation4 + $0x11a8] sm:$0xff]
    %v1987 = vld [vmem:[#allocation4 + $0x11b0] sm:$0xff]
    %v1988 = vld [vmem:[#allocation4 + $0x11b8] sm:$0xff]
    %v1989 = vld [vmem:[#allocation4 + $0x11c0] sm:$0xff]
    %v1990 = vld [vmem:[#allocation4 + $0x11c8] sm:$0xff]
    %v1991 = vld [vmem:[#allocation4 + $0x11d0] sm:$0xff]
    %v1992 = vld [vmem:[#allocation4 + $0x11d8] sm:$0xff]
    %v1993 = vld [vmem:[#allocation4 + $0x11e0] sm:$0xff]
    %v1994 = vld [vmem:[#allocation4 + $0x11e8] sm:$0xff]
    %v1995 = vld [vmem:[#allocation4 + $0x11f0] sm:$0xff]
    %v1996 = vld [vmem:[#allocation4 + $0x11f8] sm:$0xff]
    %v1997 = vld [vmem:[#allocation4 + $0x1200] sm:$0xff]
    %v1998 = vld [vmem:[#allocation4 + $0x1208] sm:$0xff]
    %v1999 = vld [vmem:[#allocation4 + $0x1210] sm:$0xff]
    %v2000 = vld [vmem:[#allocation4 + $0x1218] sm:$0xff]
    %v2001 = vld [vmem:[#allocation4 + $0x1220] sm:$0xff]
    %v2002 = vld [vmem:[#allocation4 + $0x1228] sm:$0xff]
    %v2003 = vld [vmem:[#allocation4 + $0x1230] sm:$0xff]
    %v2004 = vld [vmem:[#allocation4 + $0x1238] sm:$0xff]
    %v2005 = vld [vmem:[#allocation4 + $0x1240] sm:$0xff]
    %v2006 = vld [vmem:[#allocation4 + $0x1248] sm:$0xff]
    %v2007 = vld [vmem:[#allocation4 + $0x1250] sm:$0xff]
    %v2008 = vld [vmem:[#allocation4 + $0x1258] sm:$0xff]
    %v2009 = vld [vmem:[#allocation4 + $0x1260] sm:$0xff]
    %v2010 = vld [vmem:[#allocation4 + $0x1268] sm:$0xff]
    %v2011 = vld [vmem:[#allocation4 + $0x1270] sm:$0xff]
    %v2012 = vld [vmem:[#allocation4 + $0x1278] sm:$0xff]
    %v2013 = vld [vmem:[#allocation4 + $0x1280] sm:$0xff]
    %v2014 = vld [vmem:[#allocation4 + $0x1288] sm:$0xff]
    %v2015 = vld [vmem:[#allocation4 + $0x1290] sm:$0xff]
    %v2016 = vld [vmem:[#allocation4 + $0x1298] sm:$0xff]
    %v2017 = vld [vmem:[#allocation4 + $0x12a0] sm:$0xff]
    %v2018 = vld [vmem:[#allocation4 + $0x12a8] sm:$0xff]
    %v2019 = vld [vmem:[#allocation4 + $0x12b0] sm:$0xff]
    %v2020 = vld [vmem:[#allocation4 + $0x12b8] sm:$0xff]
    %v2021 = vld [vmem:[#allocation4 + $0x12c0] sm:$0xff]
    %v2022 = vld [vmem:[#allocation4 + $0x12c8] sm:$0xff]
    %v2023 = vld [vmem:[#allocation4 + $0x12d0] sm:$0xff]
    %v2024 = vld [vmem:[#allocation4 + $0x12d8] sm:$0xff]
    %v2025 = vld [vmem:[#allocation4 + $0x12e0] sm:$0xff]
    %v2026 = vld [vmem:[#allocation4 + $0x12e8] sm:$0xff]
    %v2027 = vld [vmem:[#allocation4 + $0x12f0] sm:$0xff]
    %v2028 = vld [vmem:[#allocation4 + $0x12f8] sm:$0xff]
    %v2029 = vld [vmem:[#allocation4 + $0x1300] sm:$0xff]
    %v2030 = vld [vmem:[#allocation4 + $0x1308] sm:$0xff]
    %v2031 = vld [vmem:[#allocation4 + $0x1310] sm:$0xff]
    %v2032 = vld [vmem:[#allocation4 + $0x1318] sm:$0xff]
    %v2033 = vld [vmem:[#allocation4 + $0x1320] sm:$0xff]
    %v2034 = vld [vmem:[#allocation4 + $0x1328] sm:$0xff]
    %v2035 = vld [vmem:[#allocation4 + $0x1330] sm:$0xff]
    %v2036 = vld [vmem:[#allocation4 + $0x1338] sm:$0xff]
    %v2037 = vld [vmem:[#allocation4 + $0x1340] sm:$0xff]
    %v2038 = vld [vmem:[#allocation4 + $0x1348] sm:$0xff]
    %v2039 = vld [vmem:[#allocation4 + $0x1350] sm:$0xff]
    %v2040 = vld [vmem:[#allocation4 + $0x1358] sm:$0xff]
    %v2041 = vld [vmem:[#allocation4 + $0x1360] sm:$0xff]
    %v2042 = vld [vmem:[#allocation4 + $0x1368] sm:$0xff]
    %v2043 = vld [vmem:[#allocation4 + $0x1370] sm:$0xff]
    %v2044 = vld [vmem:[#allocation4 + $0x1378] sm:$0xff]
    %v2045 = vld [vmem:[#allocation4 + $0x1380] sm:$0xff]
    %v2046 = vld [vmem:[#allocation4 + $0x1388] sm:$0xff]
    %v2047 = vld [vmem:[#allocation4 + $0x1390] sm:$0xff]
    %v2048 = vld [vmem:[#allocation4 + $0x1398] sm:$0xff]
    %v2049 = vld [vmem:[#allocation4 + $0x13a0] sm:$0xff]
    %v2050 = vld [vmem:[#allocation4 + $0x13a8] sm:$0xff]
    %v2051 = vld [vmem:[#allocation4 + $0x13b0] sm:$0xff]
    %v2052 = vld [vmem:[#allocation4 + $0x13b8] sm:$0xff]
    %v2053 = vld [vmem:[#allocation4 + $0x13c0] sm:$0xff]
    %v2054 = vld [vmem:[#allocation4 + $0x13c8] sm:$0xff]
    %v2055 = vld [vmem:[#allocation4 + $0x13d0] sm:$0xff]
    %v2056 = vld [vmem:[#allocation4 + $0x13d8] sm:$0xff]
    %v2057 = vld [vmem:[#allocation4 + $0x13e0] sm:$0xff]
    %v2058 = vld [vmem:[#allocation4 + $0x13e8] sm:$0xff]
    %v2059 = vld [vmem:[#allocation4 + $0x13f0] sm:$0xff]
    %v2060 = vld [vmem:[#allocation4 + $0x13f8] sm:$0xff]
    %v2061 = vld [vmem:[#allocation4 + $0x1400] sm:$0xff]
    %v2062 = vld [vmem:[#allocation4 + $0x1408] sm:$0xff]
    %v2063 = vld [vmem:[#allocation4 + $0x1410] sm:$0xff]
    %v2064 = vld [vmem:[#allocation4 + $0x1418] sm:$0xff]
    %v2065 = vld [vmem:[#allocation4 + $0x1420] sm:$0xff]
    %v2066 = vld [vmem:[#allocation4 + $0x1428] sm:$0xff]
    %v2067 = vld [vmem:[#allocation4 + $0x1430] sm:$0xff]
    %v2068 = vld [vmem:[#allocation4 + $0x1438] sm:$0xff]
    %v2069 = vld [vmem:[#allocation4 + $0x1440] sm:$0xff]
    %v2070 = vld [vmem:[#allocation4 + $0x1448] sm:$0xff]
    %v2071 = vld [vmem:[#allocation4 + $0x1450] sm:$0xff]
    %v2072 = vld [vmem:[#allocation4 + $0x1458] sm:$0xff]
    %v2073 = vld [vmem:[#allocation4 + $0x1460] sm:$0xff]
    %v2074 = vld [vmem:[#allocation4 + $0x1468] sm:$0xff]
    %v2075 = vld [vmem:[#allocation4 + $0x1470] sm:$0xff]
    %v2076 = vld [vmem:[#allocation4 + $0x1478] sm:$0xff]
    %v2077 = vld [vmem:[#allocation4 + $0x1480] sm:$0xff]
    %v2078 = vld [vmem:[#allocation4 + $0x1488] sm:$0xff]
    %v2079 = vld [vmem:[#allocation4 + $0x1490] sm:$0xff]
    %v2080 = vld [vmem:[#allocation4 + $0x1498] sm:$0xff]
    %v2081 = vld [vmem:[#allocation4 + $0x14a0] sm:$0xff]
    %v2082 = vld [vmem:[#allocation4 + $0x14a8] sm:$0xff]
    %v2083 = vld [vmem:[#allocation4 + $0x14b0] sm:$0xff]
    %v2084 = vld [vmem:[#allocation4 + $0x14b8] sm:$0xff]
    %v2085 = vld [vmem:[#allocation4 + $0x14c0] sm:$0xff]
    %v2086 = vld [vmem:[#allocation4 + $0x14c8] sm:$0xff]
    %v2087 = vld [vmem:[#allocation4 + $0x14d0] sm:$0xff]
    %v2088 = vld [vmem:[#allocation4 + $0x14d8] sm:$0xff]
    %v2089 = vld [vmem:[#allocation4 + $0x14e0] sm:$0xff]
    %v2090 = vld [vmem:[#allocation4 + $0x14e8] sm:$0xff]
    %v2091 = vld [vmem:[#allocation4 + $0x14f0] sm:$0xff]
    %v2092 = vld [vmem:[#allocation4 + $0x14f8] sm:$0xff]
    %v2093 = vld [vmem:[#allocation4 + $0x1500] sm:$0xff]
    %v2094 = vld [vmem:[#allocation4 + $0x1508] sm:$0xff]
    %v2095 = vld [vmem:[#allocation4 + $0x1510] sm:$0xff]
    %v2096 = vld [vmem:[#allocation4 + $0x1518] sm:$0xff]
    %v2097 = vld [vmem:[#allocation4 + $0x1520] sm:$0xff]
    %v2098 = vld [vmem:[#allocation4 + $0x1528] sm:$0xff]
    %v2099 = vld [vmem:[#allocation4 + $0x1530] sm:$0xff]
    %v2100 = vld [vmem:[#allocation4 + $0x1538] sm:$0xff]
    %v2101 = vld [vmem:[#allocation4 + $0x1540] sm:$0xff]
    %v2102 = vld [vmem:[#allocation4 + $0x1548] sm:$0xff]
    %v2103 = vld [vmem:[#allocation4 + $0x1550] sm:$0xff]
    %v2104 = vld [vmem:[#allocation4 + $0x1558] sm:$0xff]
    %v2105 = vld [vmem:[#allocation4 + $0x1560] sm:$0xff]
    %v2106 = vld [vmem:[#allocation4 + $0x1568] sm:$0xff]
    %v2107 = vld [vmem:[#allocation4 + $0x1570] sm:$0xff]
    %v2108 = vld [vmem:[#allocation4 + $0x1578] sm:$0xff]
    %v2109 = vld [vmem:[#allocation4 + $0x1580] sm:$0xff]
    %v2110 = vld [vmem:[#allocation4 + $0x1588] sm:$0xff]
    %v2111 = vld [vmem:[#allocation4 + $0x1590] sm:$0xff]
    %v2112 = vld [vmem:[#allocation4 + $0x1598] sm:$0xff]
    %v2113 = vld [vmem:[#allocation4 + $0x15a0] sm:$0xff]
    %v2114 = vld [vmem:[#allocation4 + $0x15a8] sm:$0xff]
    %v2115 = vld [vmem:[#allocation4 + $0x15b0] sm:$0xff]
    %v2116 = vld [vmem:[#allocation4 + $0x15b8] sm:$0xff]
    %v2117 = vld [vmem:[#allocation4 + $0x15c0] sm:$0xff]
    %v2118 = vld [vmem:[#allocation4 + $0x15c8] sm:$0xff]
    %v2119 = vld [vmem:[#allocation4 + $0x15d0] sm:$0xff]
    %v2120 = vld [vmem:[#allocation4 + $0x15d8] sm:$0xff]
    %v2121 = vld [vmem:[#allocation4 + $0x15e0] sm:$0xff]
    %v2122 = vld [vmem:[#allocation4 + $0x15e8] sm:$0xff]
    %v2123 = vld [vmem:[#allocation4 + $0x15f0] sm:$0xff]
    %v2124 = vld [vmem:[#allocation4 + $0x15f8] sm:$0xff]
    %v2125 = vld [vmem:[#allocation4 + $0x1600] sm:$0xff]
    %v2126 = vld [vmem:[#allocation4 + $0x1608] sm:$0xff]
    %v2127 = vld [vmem:[#allocation4 + $0x1610] sm:$0xff]
    %v2128 = vld [vmem:[#allocation4 + $0x1618] sm:$0xff]
    %v2129 = vld [vmem:[#allocation4 + $0x1620] sm:$0xff]
    %v2130 = vld [vmem:[#allocation4 + $0x1628] sm:$0xff]
    %v2131 = vld [vmem:[#allocation4 + $0x1630] sm:$0xff]
    %v2132 = vld [vmem:[#allocation4 + $0x1638] sm:$0xff]
    %v2133 = vld [vmem:[#allocation4 + $0x1640] sm:$0xff]
    %v2134 = vld [vmem:[#allocation4 + $0x1648] sm:$0xff]
    %v2135 = vld [vmem:[#allocation4 + $0x1650] sm:$0xff]
    %v2136 = vld [vmem:[#allocation4 + $0x1658] sm:$0xff]
    %v2137 = vld [vmem:[#allocation4 + $0x1660] sm:$0xff]
    %v2138 = vld [vmem:[#allocation4 + $0x1668] sm:$0xff]
    %v2139 = vld [vmem:[#allocation4 + $0x1670] sm:$0xff]
    %v2140 = vld [vmem:[#allocation4 + $0x1678] sm:$0xff]
    %v2141 = vld [vmem:[#allocation4 + $0x1680] sm:$0xff]
    %v2142 = vld [vmem:[#allocation4 + $0x1688] sm:$0xff]
    %v2143 = vld [vmem:[#allocation4 + $0x1690] sm:$0xff]
    %v2144 = vld [vmem:[#allocation4 + $0x1698] sm:$0xff]
    %v2145 = vld [vmem:[#allocation4 + $0x16a0] sm:$0xff]
    %v2146 = vld [vmem:[#allocation4 + $0x16a8] sm:$0xff]
    %v2147 = vld [vmem:[#allocation4 + $0x16b0] sm:$0xff]
    %v2148 = vld [vmem:[#allocation4 + $0x16b8] sm:$0xff]
    %v2149 = vld [vmem:[#allocation4 + $0x16c0] sm:$0xff]
    %v2150 = vld [vmem:[#allocation4 + $0x16c8] sm:$0xff]
    %v2151 = vld [vmem:[#allocation4 + $0x16d0] sm:$0xff]
    %v2152 = vld [vmem:[#allocation4 + $0x16d8] sm:$0xff]
    %v2153 = vld [vmem:[#allocation4 + $0x16e0] sm:$0xff]
    %v2154 = vld [vmem:[#allocation4 + $0x16e8] sm:$0xff]
    %v2155 = vld [vmem:[#allocation4 + $0x16f0] sm:$0xff]
    %v2156 = vld [vmem:[#allocation4 + $0x16f8] sm:$0xff]
    %v2157 = vld [vmem:[#allocation4 + $0x1700] sm:$0xff]
    %v2158 = vld [vmem:[#allocation4 + $0x1708] sm:$0xff]
    %v2159 = vld [vmem:[#allocation4 + $0x1710] sm:$0xff]
    %v2160 = vld [vmem:[#allocation4 + $0x1718] sm:$0xff]
    %v2161 = vld [vmem:[#allocation4 + $0x1720] sm:$0xff]
    %v2162 = vld [vmem:[#allocation4 + $0x1728] sm:$0xff]
    %v2163 = vld [vmem:[#allocation4 + $0x1730] sm:$0xff]
    %v2164 = vld [vmem:[#allocation4 + $0x1738] sm:$0xff]
    %v2165 = vld [vmem:[#allocation4 + $0x1740] sm:$0xff]
    %v2166 = vld [vmem:[#allocation4 + $0x1748] sm:$0xff]
    %v2167 = vld [vmem:[#allocation4 + $0x1750] sm:$0xff]
    %v2168 = vld [vmem:[#allocation4 + $0x1758] sm:$0xff]
    %v2169 = vld [vmem:[#allocation4 + $0x1760] sm:$0xff]
    %v2170 = vld [vmem:[#allocation4 + $0x1768] sm:$0xff]
    %v2171 = vld [vmem:[#allocation4 + $0x1770] sm:$0xff]
    %v2172 = vld [vmem:[#allocation4 + $0x1778] sm:$0xff]
    %v2173 = vld [vmem:[#allocation4 + $0x1780] sm:$0xff]
    %v2174 = vld [vmem:[#allocation4 + $0x1788] sm:$0xff]
    %v2175 = vld [vmem:[#allocation4 + $0x1790] sm:$0xff]
    %v2176 = vld [vmem:[#allocation4 + $0x1798] sm:$0xff]
    %v2177 = vld [vmem:[#allocation4 + $0x17a0] sm:$0xff]
    %v2178 = vld [vmem:[#allocation4 + $0x17a8] sm:$0xff]
    %v2179 = vld [vmem:[#allocation4 + $0x17b0] sm:$0xff]
    %v2180 = vld [vmem:[#allocation4 + $0x17b8] sm:$0xff]
    %v2181 = vld [vmem:[#allocation4 + $0x17c0] sm:$0xff]
    %v2182 = vld [vmem:[#allocation4 + $0x17c8] sm:$0xff]
    %v2183 = vld [vmem:[#allocation4 + $0x17d0] sm:$0xff]
    %v2184 = vld [vmem:[#allocation4 + $0x17d8] sm:$0xff]
    %v2185 = vld [vmem:[#allocation4 + $0x17e0] sm:$0xff]
    %v2186 = vld [vmem:[#allocation4 + $0x17e8] sm:$0xff]
    %v2187 = vld [vmem:[#allocation4 + $0x17f0] sm:$0xff]
    %v2188 = vld [vmem:[#allocation4 + $0x17f8] sm:$0xff]
    %v2189 = vld [vmem:[#allocation4 + $0x1800] sm:$0xff]
    %v2190 = vld [vmem:[#allocation4 + $0x1808] sm:$0xff]
    %v2191 = vld [vmem:[#allocation4 + $0x1810] sm:$0xff]
    %v2192 = vld [vmem:[#allocation4 + $0x1818] sm:$0xff]
    %v2193 = vld [vmem:[#allocation4 + $0x1820] sm:$0xff]
    %v2194 = vld [vmem:[#allocation4 + $0x1828] sm:$0xff]
    %v2195 = vld [vmem:[#allocation4 + $0x1830] sm:$0xff]
    %v2196 = vld [vmem:[#allocation4 + $0x1838] sm:$0xff]
    %v2197 = vld [vmem:[#allocation4 + $0x1840] sm:$0xff]
    %v2198 = vld [vmem:[#allocation4 + $0x1848] sm:$0xff]
    %v2199 = vld [vmem:[#allocation4 + $0x1850] sm:$0xff]
    %v2200 = vld [vmem:[#allocation4 + $0x1858] sm:$0xff]
    %v2201 = vld [vmem:[#allocation4 + $0x1860] sm:$0xff]
    %v2202 = vld [vmem:[#allocation4 + $0x1868] sm:$0xff]
    %v2203 = vld [vmem:[#allocation4 + $0x1870] sm:$0xff]
    %v2204 = vld [vmem:[#allocation4 + $0x1878] sm:$0xff]
    %v2205 = vld [vmem:[#allocation4 + $0x1880] sm:$0xff]
    %v2206 = vld [vmem:[#allocation4 + $0x1888] sm:$0xff]
    %v2207 = vld [vmem:[#allocation4 + $0x1890] sm:$0xff]
    %v2208 = vld [vmem:[#allocation4 + $0x1898] sm:$0xff]
    %v2209 = vld [vmem:[#allocation4 + $0x18a0] sm:$0xff]
    %v2210 = vld [vmem:[#allocation4 + $0x18a8] sm:$0xff]
    %v2211 = vld [vmem:[#allocation4 + $0x18b0] sm:$0xff]
    %v2212 = vld [vmem:[#allocation4 + $0x18b8] sm:$0xff]
    %v2213 = vld [vmem:[#allocation4 + $0x18c0] sm:$0xff]
    %v2214 = vld [vmem:[#allocation4 + $0x18c8] sm:$0xff]
    %v2215 = vld [vmem:[#allocation4 + $0x18d0] sm:$0xff]
    %v2216 = vld [vmem:[#allocation4 + $0x18d8] sm:$0xff]
    %v2217 = vld [vmem:[#allocation4 + $0x18e0] sm:$0xff]
    %v2218 = vld [vmem:[#allocation4 + $0x18e8] sm:$0xff]
    %v2219 = vld [vmem:[#allocation4 + $0x18f0] sm:$0xff]
    %v2220 = vld [vmem:[#allocation4 + $0x18f8] sm:$0xff]
    %v2221 = vld [vmem:[#allocation4 + $0x1900] sm:$0xff]
    %v2222 = vld [vmem:[#allocation4 + $0x1908] sm:$0xff]
    %v2223 = vld [vmem:[#allocation4 + $0x1910] sm:$0xff]
    %v2224 = vld [vmem:[#allocation4 + $0x1918] sm:$0xff]
    %v2225 = vld [vmem:[#allocation4 + $0x1920] sm:$0xff]
    %v2226 = vld [vmem:[#allocation4 + $0x1928] sm:$0xff]
    %v2227 = vld [vmem:[#allocation4 + $0x1930] sm:$0xff]
    %v2228 = vld [vmem:[#allocation4 + $0x1938] sm:$0xff]
    %v2229 = vld [vmem:[#allocation4 + $0x1940] sm:$0xff]
    %v2230 = vld [vmem:[#allocation4 + $0x1948] sm:$0xff]
    %v2231 = vld [vmem:[#allocation4 + $0x1950] sm:$0xff]
    %v2232 = vld [vmem:[#allocation4 + $0x1958] sm:$0xff]
    %v2233 = vld [vmem:[#allocation4 + $0x1960] sm:$0xff]
    %v2234 = vld [vmem:[#allocation4 + $0x1968] sm:$0xff]
    %v2235 = vld [vmem:[#allocation4 + $0x1970] sm:$0xff]
    %v2236 = vld [vmem:[#allocation4 + $0x1978] sm:$0xff]
    %v2237 = vld [vmem:[#allocation4 + $0x1980] sm:$0xff]
    %v2238 = vld [vmem:[#allocation4 + $0x1988] sm:$0xff]
    %v2239 = vld [vmem:[#allocation4 + $0x1990] sm:$0xff]
    %v2240 = vld [vmem:[#allocation4 + $0x1998] sm:$0xff]
    %v2241 = vld [vmem:[#allocation4 + $0x19a0] sm:$0xff]
    %v2242 = vld [vmem:[#allocation4 + $0x19a8] sm:$0xff]
    %v2243 = vld [vmem:[#allocation4 + $0x19b0] sm:$0xff]
    %v2244 = vld [vmem:[#allocation4 + $0x19b8] sm:$0xff]
    %v2245 = vld [vmem:[#allocation4 + $0x19c0] sm:$0xff]
    %v2246 = vld [vmem:[#allocation4 + $0x19c8] sm:$0xff]
    %v2247 = vld [vmem:[#allocation4 + $0x19d0] sm:$0xff]
    %v2248 = vld [vmem:[#allocation4 + $0x19d8] sm:$0xff]
    %v2249 = vld [vmem:[#allocation4 + $0x19e0] sm:$0xff]
    %v2250 = vld [vmem:[#allocation4 + $0x19e8] sm:$0xff]
    %v2251 = vld [vmem:[#allocation4 + $0x19f0] sm:$0xff]
    %v2252 = vld [vmem:[#allocation4 + $0x19f8] sm:$0xff]
    %v2253 = vld [vmem:[#allocation4 + $0x1a00] sm:$0xff]
    %v2254 = vld [vmem:[#allocation4 + $0x1a08] sm:$0xff]
    %v2255 = vld [vmem:[#allocation4 + $0x1a10] sm:$0xff]
    %v2256 = vld [vmem:[#allocation4 + $0x1a18] sm:$0xff]
    %v2257 = vld [vmem:[#allocation4 + $0x1a20] sm:$0xff]
    %v2258 = vld [vmem:[#allocation4 + $0x1a28] sm:$0xff]
    %v2259 = vld [vmem:[#allocation4 + $0x1a30] sm:$0xff]
    %v2260 = vld [vmem:[#allocation4 + $0x1a38] sm:$0xff]
    %v2261 = vld [vmem:[#allocation4 + $0x1a40] sm:$0xff]
    %v2262 = vld [vmem:[#allocation4 + $0x1a48] sm:$0xff]
    %v2263 = vld [vmem:[#allocation4 + $0x1a50] sm:$0xff]
    %v2264 = vld [vmem:[#allocation4 + $0x1a58] sm:$0xff]
    %v2265 = vld [vmem:[#allocation4 + $0x1a60] sm:$0xff]
    %v2266 = vld [vmem:[#allocation4 + $0x1a68] sm:$0xff]
    %v2267 = vld [vmem:[#allocation4 + $0x1a70] sm:$0xff]
    %v2268 = vld [vmem:[#allocation4 + $0x1a78] sm:$0xff]
    %v2269 = vld [vmem:[#allocation4 + $0x1a80] sm:$0xff]
    %v2270 = vld [vmem:[#allocation4 + $0x1a88] sm:$0xff]
    %v2271 = vld [vmem:[#allocation4 + $0x1a90] sm:$0xff]
    %v2272 = vld [vmem:[#allocation4 + $0x1a98] sm:$0xff]
    %v2273 = vld [vmem:[#allocation4 + $0x1aa0] sm:$0xff]
    %v2274 = vld [vmem:[#allocation4 + $0x1aa8] sm:$0xff]
    %v2275 = vld [vmem:[#allocation4 + $0x1ab0] sm:$0xff]
    %v2276 = vld [vmem:[#allocation4 + $0x1ab8] sm:$0xff]
    %v2277 = vld [vmem:[#allocation4 + $0x1ac0] sm:$0xff]
    %v2278 = vld [vmem:[#allocation4 + $0x1ac8] sm:$0xff]
    %v2279 = vld [vmem:[#allocation4 + $0x1ad0] sm:$0xff]
    %v2280 = vld [vmem:[#allocation4 + $0x1ad8] sm:$0xff]
    %v2281 = vld [vmem:[#allocation4 + $0x1ae0] sm:$0xff]
    %v2282 = vld [vmem:[#allocation4 + $0x1ae8] sm:$0xff]
    %v2283 = vld [vmem:[#allocation4 + $0x1af0] sm:$0xff]
    %v2284 = vld [vmem:[#allocation4 + $0x1af8] sm:$0xff]
    %v2285 = vld [vmem:[#allocation4 + $0x1b00] sm:$0xff]
    %v2286 = vld [vmem:[#allocation4 + $0x1b08] sm:$0xff]
    %v2287 = vld [vmem:[#allocation4 + $0x1b10] sm:$0xff]
    %v2288 = vld [vmem:[#allocation4 + $0x1b18] sm:$0xff]
    %v2289 = vld [vmem:[#allocation4 + $0x1b20] sm:$0xff]
    %v2290 = vld [vmem:[#allocation4 + $0x1b28] sm:$0xff]
    %v2291 = vld [vmem:[#allocation4 + $0x1b30] sm:$0xff]
    %v2292 = vld [vmem:[#allocation4 + $0x1b38] sm:$0xff]
    %v2293 = vld [vmem:[#allocation4 + $0x1b40] sm:$0xff]
    %v2294 = vld [vmem:[#allocation4 + $0x1b48] sm:$0xff]
    %v2295 = vld [vmem:[#allocation4 + $0x1b50] sm:$0xff]
    %v2296 = vld [vmem:[#allocation4 + $0x1b58] sm:$0xff]
    %v2297 = vld [vmem:[#allocation4 + $0x1b60] sm:$0xff]
    %v2298 = vld [vmem:[#allocation4 + $0x1b68] sm:$0xff]
    %v2299 = vld [vmem:[#allocation4 + $0x1b70] sm:$0xff]
    %v2300 = vld [vmem:[#allocation4 + $0x1b78] sm:$0xff]
    %v2301 = vld [vmem:[#allocation4 + $0x1b80] sm:$0xff]
    %v2302 = vld [vmem:[#allocation4 + $0x1b88] sm:$0xff]
    %v2303 = vld [vmem:[#allocation4 + $0x1b90] sm:$0xff]
    %v2304 = vld [vmem:[#allocation4 + $0x1b98] sm:$0xff]
    %v2305 = vld [vmem:[#allocation4 + $0x1ba0] sm:$0xff]
    %v2306 = vld [vmem:[#allocation4 + $0x1ba8] sm:$0xff]
    %v2307 = vld [vmem:[#allocation4 + $0x1bb0] sm:$0xff]
    %v2308 = vld [vmem:[#allocation4 + $0x1bb8] sm:$0xff]
    %v2309 = vld [vmem:[#allocation4 + $0x1bc0] sm:$0xff]
    %v2310 = vld [vmem:[#allocation4 + $0x1bc8] sm:$0xff]
    %v2311 = vld [vmem:[#allocation4 + $0x1bd0] sm:$0xff]
    %v2312 = vld [vmem:[#allocation4 + $0x1bd8] sm:$0xff]
    %v2313 = vld [vmem:[#allocation4 + $0x1be0] sm:$0xff]
    %v2314 = vld [vmem:[#allocation4 + $0x1be8] sm:$0xff]
    %v2315 = vld [vmem:[#allocation4 + $0x1bf0] sm:$0xff]
    %v2316 = vld [vmem:[#allocation4 + $0x1bf8] sm:$0xff]
    %v2317 = vld [vmem:[#allocation4 + $0x1c00] sm:$0xff]
    %v2318 = vld [vmem:[#allocation4 + $0x1c08] sm:$0xff]
    %v2319 = vld [vmem:[#allocation4 + $0x1c10] sm:$0xff]
    %v2320 = vld [vmem:[#allocation4 + $0x1c18] sm:$0xff]
    %v2321 = vld [vmem:[#allocation4 + $0x1c20] sm:$0xff]
    %v2322 = vld [vmem:[#allocation4 + $0x1c28] sm:$0xff]
    %v2323 = vld [vmem:[#allocation4 + $0x1c30] sm:$0xff]
    %v2324 = vld [vmem:[#allocation4 + $0x1c38] sm:$0xff]
    %v2325 = vld [vmem:[#allocation4 + $0x1c40] sm:$0xff]
    %v2326 = vld [vmem:[#allocation4 + $0x1c48] sm:$0xff]
    %v2327 = vld [vmem:[#allocation4 + $0x1c50] sm:$0xff]
    %v2328 = vld [vmem:[#allocation4 + $0x1c58] sm:$0xff]
    %v2329 = vld [vmem:[#allocation4 + $0x1c60] sm:$0xff]
    %v2330 = vld [vmem:[#allocation4 + $0x1c68] sm:$0xff]
    %v2331 = vld [vmem:[#allocation4 + $0x1c70] sm:$0xff]
    %v2332 = vld [vmem:[#allocation4 + $0x1c78] sm:$0xff]
    %v2333 = vld [vmem:[#allocation4 + $0x1c80] sm:$0xff]
    %v2334 = vld [vmem:[#allocation4 + $0x1c88] sm:$0xff]
    %v2335 = vld [vmem:[#allocation4 + $0x1c90] sm:$0xff]
    %v2336 = vld [vmem:[#allocation4 + $0x1c98] sm:$0xff]
    %v2337 = vld [vmem:[#allocation4 + $0x1ca0] sm:$0xff]
    %v2338 = vld [vmem:[#allocation4 + $0x1ca8] sm:$0xff]
    %v2339 = vld [vmem:[#allocation4 + $0x1cb0] sm:$0xff]
    %v2340 = vld [vmem:[#allocation4 + $0x1cb8] sm:$0xff]
    %v2341 = vld [vmem:[#allocation4 + $0x1cc0] sm:$0xff]
    %v2342 = vld [vmem:[#allocation4 + $0x1cc8] sm:$0xff]
    %v2343 = vld [vmem:[#allocation4 + $0x1cd0] sm:$0xff]
    %v2344 = vld [vmem:[#allocation4 + $0x1cd8] sm:$0xff]
    %v2345 = vld [vmem:[#allocation4 + $0x1ce0] sm:$0xff]
    %v2346 = vld [vmem:[#allocation4 + $0x1ce8] sm:$0xff]
    %v2347 = vld [vmem:[#allocation4 + $0x1cf0] sm:$0xff]
    %v2348 = vld [vmem:[#allocation4 + $0x1cf8] sm:$0xff]
    %v2349 = vld [vmem:[#allocation4 + $0x1d00] sm:$0xff]
    %v2350 = vld [vmem:[#allocation4 + $0x1d08] sm:$0xff]
    %v2351 = vld [vmem:[#allocation4 + $0x1d10] sm:$0xff]
    %v2352 = vld [vmem:[#allocation4 + $0x1d18] sm:$0xff]
    %v2353 = vld [vmem:[#allocation4 + $0x1d20] sm:$0xff]
    %v2354 = vld [vmem:[#allocation4 + $0x1d28] sm:$0xff]
    %v2355 = vld [vmem:[#allocation4 + $0x1d30] sm:$0xff]
    %v2356 = vld [vmem:[#allocation4 + $0x1d38] sm:$0xff]
    %v2357 = vld [vmem:[#allocation4 + $0x1d40] sm:$0xff]
    %v2358 = vld [vmem:[#allocation4 + $0x1d48] sm:$0xff]
    %v2359 = vld [vmem:[#allocation4 + $0x1d50] sm:$0xff]
    %v2360 = vld [vmem:[#allocation4 + $0x1d58] sm:$0xff]
    %v2361 = vld [vmem:[#allocation4 + $0x1d60] sm:$0xff]
    %v2362 = vld [vmem:[#allocation4 + $0x1d68] sm:$0xff]
    %v2363 = vld [vmem:[#allocation4 + $0x1d70] sm:$0xff]
    %v2364 = vld [vmem:[#allocation4 + $0x1d78] sm:$0xff]
    %v2365 = vld [vmem:[#allocation4 + $0x1d80] sm:$0xff]
    %v2366 = vld [vmem:[#allocation4 + $0x1d88] sm:$0xff]
    %v2367 = vld [vmem:[#allocation4 + $0x1d90] sm:$0xff]
    %v2368 = vld [vmem:[#allocation4 + $0x1d98] sm:$0xff]
    %v2369 = vld [vmem:[#allocation4 + $0x1da0] sm:$0xff]
    %v2370 = vld [vmem:[#allocation4 + $0x1da8] sm:$0xff]
    %v2371 = vld [vmem:[#allocation4 + $0x1db0] sm:$0xff]
    %v2372 = vld [vmem:[#allocation4 + $0x1db8] sm:$0xff]
    %v2373 = vld [vmem:[#allocation4 + $0x1dc0] sm:$0xff]
    %v2374 = vld [vmem:[#allocation4 + $0x1dc8] sm:$0xff]
    %v2375 = vld [vmem:[#allocation4 + $0x1dd0] sm:$0xff]
    %v2376 = vld [vmem:[#allocation4 + $0x1dd8] sm:$0xff]
    %v2377 = vld [vmem:[#allocation4 + $0x1de0] sm:$0xff]
    %v2378 = vld [vmem:[#allocation4 + $0x1de8] sm:$0xff]
    %v2379 = vld [vmem:[#allocation4 + $0x1df0] sm:$0xff]
    %v2380 = vld [vmem:[#allocation4 + $0x1df8] sm:$0xff]
    %v2381 = vld [vmem:[#allocation4 + $0x1e00] sm:$0xff]
    %v2382 = vld [vmem:[#allocation4 + $0x1e08] sm:$0xff]
    %v2383 = vld [vmem:[#allocation4 + $0x1e10] sm:$0xff]
    %v2384 = vld [vmem:[#allocation4 + $0x1e18] sm:$0xff]
    %v2385 = vld [vmem:[#allocation4 + $0x1e20] sm:$0xff]
    %v2386 = vld [vmem:[#allocation4 + $0x1e28] sm:$0xff]
    %v2387 = vld [vmem:[#allocation4 + $0x1e30] sm:$0xff]
    %v2388 = vld [vmem:[#allocation4 + $0x1e38] sm:$0xff]
    %v2389 = vld [vmem:[#allocation4 + $0x1e40] sm:$0xff]
    %v2390 = vld [vmem:[#allocation4 + $0x1e48] sm:$0xff]
    %v2391 = vld [vmem:[#allocation4 + $0x1e50] sm:$0xff]
    %v2392 = vld [vmem:[#allocation4 + $0x1e58] sm:$0xff]
    %v2393 = vld [vmem:[#allocation4 + $0x1e60] sm:$0xff]
    %v2394 = vld [vmem:[#allocation4 + $0x1e68] sm:$0xff]
    %v2395 = vld [vmem:[#allocation4 + $0x1e70] sm:$0xff]
    %v2396 = vld [vmem:[#allocation4 + $0x1e78] sm:$0xff]
    %v2397 = vld [vmem:[#allocation4 + $0x1e80] sm:$0xff]
    %v2398 = vld [vmem:[#allocation4 + $0x1e88] sm:$0xff]
    %v2399 = vld [vmem:[#allocation4 + $0x1e90] sm:$0xff]
    %v2400 = vld [vmem:[#allocation4 + $0x1e98] sm:$0xff]
    %v2401 = vld [vmem:[#allocation4 + $0x1ea0] sm:$0xff]
    %v2402 = vld [vmem:[#allocation4 + $0x1ea8] sm:$0xff]
    %v2403 = vld [vmem:[#allocation4 + $0x1eb0] sm:$0xff]
    %v2404 = vld [vmem:[#allocation4 + $0x1eb8] sm:$0xff]
    %v2405 = vld [vmem:[#allocation4 + $0x1ec0] sm:$0xff]
    %v2406 = vld [vmem:[#allocation4 + $0x1ec8] sm:$0xff]
    %v2407 = vld [vmem:[#allocation4 + $0x1ed0] sm:$0xff]
    %v2408 = vld [vmem:[#allocation4 + $0x1ed8] sm:$0xff]
    %v2409 = vld [vmem:[#allocation4 + $0x1ee0] sm:$0xff]
    %v2410 = vld [vmem:[#allocation4 + $0x1ee8] sm:$0xff]
    %v2411 = vld [vmem:[#allocation4 + $0x1ef0] sm:$0xff]
    %v2412 = vld [vmem:[#allocation4 + $0x1ef8] sm:$0xff]
    %v2413 = vld [vmem:[#allocation4 + $0x1f00] sm:$0xff]
    %v2414 = vld [vmem:[#allocation4 + $0x1f08] sm:$0xff]
    %v2415 = vld [vmem:[#allocation4 + $0x1f10] sm:$0xff]
    %v2416 = vld [vmem:[#allocation4 + $0x1f18] sm:$0xff]
    %v2417 = vld [vmem:[#allocation4 + $0x1f20] sm:$0xff]
    %v2418 = vld [vmem:[#allocation4 + $0x1f28] sm:$0xff]
    %v2419 = vld [vmem:[#allocation4 + $0x1f30] sm:$0xff]
    %v2420 = vld [vmem:[#allocation4 + $0x1f38] sm:$0xff]
    %v2421 = vld [vmem:[#allocation4 + $0x1f40] sm:$0xff]
    %v2422 = vld [vmem:[#allocation4 + $0x1f48] sm:$0xff]
    %v2423 = vld [vmem:[#allocation4 + $0x1f50] sm:$0xff]
    %v2424 = vld [vmem:[#allocation4 + $0x1f58] sm:$0xff]
    %v2425 = vld [vmem:[#allocation4 + $0x1f60] sm:$0xff]
    %v2426 = vld [vmem:[#allocation4 + $0x1f68] sm:$0xff]
    %v2427 = vld [vmem:[#allocation4 + $0x1f70] sm:$0xff]
    %v2428 = vld [vmem:[#allocation4 + $0x1f78] sm:$0xff]
    %v2429 = vld [vmem:[#allocation4 + $0x1f80] sm:$0xff]
    %v2430 = vld [vmem:[#allocation4 + $0x1f88] sm:$0xff]
    %v2431 = vld [vmem:[#allocation4 + $0x1f90] sm:$0xff]
    %v2432 = vld [vmem:[#allocation4 + $0x1f98] sm:$0xff]
    %v2433 = vld [vmem:[#allocation4 + $0x1fa0] sm:$0xff]
    %v2434 = vld [vmem:[#allocation4 + $0x1fa8] sm:$0xff]
    %v2435 = vld [vmem:[#allocation4 + $0x1fb0] sm:$0xff]
    %v2436 = vld [vmem:[#allocation4 + $0x1fb8] sm:$0xff]
    %v2437 = vld [vmem:[#allocation4 + $0x1fc0] sm:$0xff]
    %v2438 = vld [vmem:[#allocation4 + $0x1fc8] sm:$0xff]
    %v2439 = vld [vmem:[#allocation4 + $0x1fd0] sm:$0xff]
    %v2440 = vld [vmem:[#allocation4 + $0x1fd8] sm:$0xff]
    %v2441 = vld [vmem:[#allocation4 + $0x1fe0] sm:$0xff]
    %v2442 = vld [vmem:[#allocation4 + $0x1fe8] sm:$0xff]
    %v2443 = vld [vmem:[#allocation4 + $0x1ff0] sm:$0xff]
    %v2444 = vld [vmem:[#allocation4 + $0x1ff8] sm:$0xff]
    %2445 = vmatprep.subr.bf16.mxu0 %v1422
    %2446 = vmatpush1.bf16.msra.mxu0 %v1421
    %2447 = vmatprep.subr.bf16.mxu0 %v1438
    %2448 = vmatpush1.bf16.msra.mxu0 %v1437
    %2449 = vmatprep.subr.bf16.mxu0 %v1454
    %2450 = vmatpush1.bf16.msra.mxu0 %v1453
    %2451 = vmatprep.subr.bf16.mxu0 %v1470
    %2452 = vmatpush1.bf16.msra.mxu0 %v1469
    %2453 = vmatprep.subr.bf16.mxu0 %v1486
    %2454 = vmatpush1.bf16.msra.mxu0 %v1485
    %2455 = vmatprep.subr.bf16.mxu0 %v1502
    %2456 = vmatpush1.bf16.msra.mxu0 %v1501
    %2457 = vmatprep.subr.bf16.mxu0 %v1518
    %2458 = vmatpush1.bf16.msra.mxu0 %v1517
    %2459 = vmatprep.subr.bf16.mxu0 %v1534
    %2460 = vmatpush1.bf16.msra.mxu0 %v1533
    %2461 = vmatprep.subr.bf16.mxu0 %v1550
    %2462 = vmatpush1.bf16.msra.mxu0 %v1549
    %2463 = vmatprep.subr.bf16.mxu0 %v1566
    %2464 = vmatpush1.bf16.msra.mxu0 %v1565
    %2465 = vmatprep.subr.bf16.mxu0 %v1582
    %2466 = vmatpush1.bf16.msra.mxu0 %v1581
    %2467 = vmatprep.subr.bf16.mxu0 %v1598
    %2468 = vmatpush1.bf16.msra.mxu0 %v1597
    %2469 = vmatprep.subr.bf16.mxu0 %v1614
    %2470 = vmatpush1.bf16.msra.mxu0 %v1613
    %2471 = vmatprep.subr.bf16.mxu0 %v1630
    %2472 = vmatpush1.bf16.msra.mxu0 %v1629
    %2473 = vmatprep.subr.bf16.mxu0 %v1646
    %2474 = vmatpush1.bf16.msra.mxu0 %v1645
    %2475 = vmatprep.subr.bf16.mxu0 %v1662
    %2476 = vmatpush1.bf16.msra.mxu0 %v1661
    %2477 = vmatprep.mubr.bf16.mxu0 %v1414
    %2478 = vmatmul.mubr.bf16.gmra.mrb[0].mxu0 %v1413
    %v2479 = vpop.f32.mrb[0].mxu0
    %v2480 = vadd.f32 0.0, %v2479
    %v2481 = vpop.f32.mrb[0].mxu0
    %v2482 = vadd.f32 0.0, %v2481
    %v2483 = vpop.f32.mrb[0].mxu0
    %v2484 = vpop.f32.mrb[0].mxu0
    %2485 = vdwg.mxu0
    %2486 = vmatprep.subr.bf16.mxu0 %v1678
    %2487 = vmatpush1.bf16.msra.mxu0 %v1677
    %2488 = vmatprep.subr.bf16.mxu0 %v1694
    %2489 = vmatpush1.bf16.msra.mxu0 %v1693
    %2490 = vmatprep.subr.bf16.mxu0 %v1710
    %2491 = vmatpush1.bf16.msra.mxu0 %v1709
    %2492 = vmatprep.subr.bf16.mxu0 %v1726
    %2493 = vmatpush1.bf16.msra.mxu0 %v1725
    %2494 = vmatprep.subr.bf16.mxu0 %v1742
    %2495 = vmatpush1.bf16.msra.mxu0 %v1741
    %2496 = vmatprep.subr.bf16.mxu0 %v1758
    %2497 = vmatpush1.bf16.msra.mxu0 %v1757
    %2498 = vmatprep.subr.bf16.mxu0 %v1774
    %2499 = vmatpush1.bf16.msra.mxu0 %v1773
    %2500 = vmatprep.subr.bf16.mxu0 %v1790
    %2501 = vmatpush1.bf16.msra.mxu0 %v1789
    %2502 = vmatprep.subr.bf16.mxu0 %v1806
    %2503 = vmatpush1.bf16.msra.mxu0 %v1805
    %2504 = vmatprep.subr.bf16.mxu0 %v1822
    %2505 = vmatpush1.bf16.msra.mxu0 %v1821
    %2506 = vmatprep.subr.bf16.mxu0 %v1838
    %2507 = vmatpush1.bf16.msra.mxu0 %v1837
    %2508 = vmatprep.subr.bf16.mxu0 %v1854
    %2509 = vmatpush1.bf16.msra.mxu0 %v1853
    %2510 = vmatprep.subr.bf16.mxu0 %v1870
    %2511 = vmatpush1.bf16.msra.mxu0 %v1869
    %2512 = vmatprep.subr.bf16.mxu0 %v1886
    %2513 = vmatpush1.bf16.msra.mxu0 %v1885
    %2514 = vmatprep.subr.bf16.mxu0 %v1902
    %2515 = vmatpush1.bf16.msra.mxu0 %v1901
    %2516 = vmatprep.subr.bf16.mxu0 %v1918
    %2517 = vmatpush1.bf16.msra.mxu0 %v1917
    %2518 = vmatprep.mubr.bf16.mxu0 %v1416
    %2519 = vmatmul.mubr.bf16.gmra.mrb[0].mxu0 %v1415
    %v2520 = vpop.f32.mrb[0].mxu0
    %v2521 = vadd.f32 %v2480, %v2520
    %v2522 = vpop.f32.mrb[0].mxu0
    %v2523 = vadd.f32 %v2482, %v2522
    %v2524 = vpop.f32.mrb[0].mxu0
    %v2525 = vpop.f32.mrb[0].mxu0
    %2526 = vdwg.mxu0
    %2527 = vmatprep.subr.bf16.mxu0 %v1934
    %2528 = vmatpush1.bf16.msra.mxu0 %v1933
    %2529 = vmatprep.subr.bf16.mxu0 %v1950
    %2530 = vmatpush1.bf16.msra.mxu0 %v1949
    %2531 = vmatprep.subr.bf16.mxu0 %v1966
    %2532 = vmatpush1.bf16.msra.mxu0 %v1965
    %2533 = vmatprep.subr.bf16.mxu0 %v1982
    %2534 = vmatpush1.bf16.msra.mxu0 %v1981
    %2535 = vmatprep.subr.bf16.mxu0 %v1998
    %2536 = vmatpush1.bf16.msra.mxu0 %v1997
    %2537 = vmatprep.subr.bf16.mxu0 %v2014
    %2538 = vmatpush1.bf16.msra.mxu0 %v2013
    %2539 = vmatprep.subr.bf16.mxu0 %v2030
    %2540 = vmatpush1.bf16.msra.mxu0 %v2029
    %2541 = vmatprep.subr.bf16.mxu0 %v2046
    %2542 = vmatpush1.bf16.msra.mxu0 %v2045
    %2543 = vmatprep.subr.bf16.mxu0 %v2062
    %2544 = vmatpush1.bf16.msra.mxu0 %v2061
    %2545 = vmatprep.subr.bf16.mxu0 %v2078
    %2546 = vmatpush1.bf16.msra.mxu0 %v2077
    %2547 = vmatprep.subr.bf16.mxu0 %v2094
    %2548 = vmatpush1.bf16.msra.mxu0 %v2093
    %2549 = vmatprep.subr.bf16.mxu0 %v2110
    %2550 = vmatpush1.bf16.msra.mxu0 %v2109
    %2551 = vmatprep.subr.bf16.mxu0 %v2126
    %2552 = vmatpush1.bf16.msra.mxu0 %v2125
    %2553 = vmatprep.subr.bf16.mxu0 %v2142
    %2554 = vmatpush1.bf16.msra.mxu0 %v2141
    %2555 = vmatprep.subr.bf16.mxu0 %v2158
    %2556 = vmatpush1.bf16.msra.mxu0 %v2157
    %2557 = vmatprep.subr.bf16.mxu0 %v2174
    %2558 = vmatpush1.bf16.msra.mxu0 %v2173
    %2559 = vmatprep.mubr.bf16.mxu0 %v1418
    %2560 = vmatmul.mubr.bf16.gmra.mrb[0].mxu0 %v1417
    %v2561 = vpop.f32.mrb[0].mxu0
    %v2562 = vadd.f32 %v2521, %v2561
    %v2563 = vpop.f32.mrb[0].mxu0
    %v2564 = vadd.f32 %v2523, %v2563
    %v2565 = vpop.f32.mrb[0].mxu0
    %v2566 = vpop.f32.mrb[0].mxu0
    %2567 = vdwg.mxu0
    %2568 = vmatprep.subr.bf16.mxu0 %v2190
    %2569 = vmatpush1.bf16.msra.mxu0 %v2189
    %2570 = vmatprep.subr.bf16.mxu0 %v2206
    %2571 = vmatpush1.bf16.msra.mxu0 %v2205
    %2572 = vmatprep.subr.bf16.mxu0 %v2222
    %2573 = vmatpush1.bf16.msra.mxu0 %v2221
    %2574 = vmatprep.subr.bf16.mxu0 %v2238
    %2575 = vmatpush1.bf16.msra.mxu0 %v2237
    %2576 = vmatprep.subr.bf16.mxu0 %v2254
    %2577 = vmatpush1.bf16.msra.mxu0 %v2253
    %2578 = vmatprep.subr.bf16.mxu0 %v2270
    %2579 = vmatpush1.bf16.msra.mxu0 %v2269
    %2580 = vmatprep.subr.bf16.mxu0 %v2286
    %2581 = vmatpush1.bf16.msra.mxu0 %v2285
    %2582 = vmatprep.subr.bf16.mxu0 %v2302
    %2583 = vmatpush1.bf16.msra.mxu0 %v2301
    %2584 = vmatprep.subr.bf16.mxu0 %v2318
    %2585 = vmatpush1.bf16.msra.mxu0 %v2317
    %2586 = vmatprep.subr.bf16.mxu0 %v2334
    %2587 = vmatpush1.bf16.msra.mxu0 %v2333
    %2588 = vmatprep.subr.bf16.mxu0 %v2350
    %2589 = vmatpush1.bf16.msra.mxu0 %v2349
    %2590 = vmatprep.subr.bf16.mxu0 %v2366
    %2591 = vmatpush1.bf16.msra.mxu0 %v2365
    %2592 = vmatprep.subr.bf16.mxu0 %v2382
    %2593 = vmatpush1.bf16.msra.mxu0 %v2381
    %2594 = vmatprep.subr.bf16.mxu0 %v2398
    %2595 = vmatpush1.bf16.msra.mxu0 %v2397
    %2596 = vmatprep.subr.bf16.mxu0 %v2414
    %2597 = vmatpush1.bf16.msra.mxu0 %v2413
    %2598 = vmatprep.subr.bf16.mxu0 %v2430
    %2599 = vmatpush1.bf16.msra.mxu0 %v2429
    %2600 = vmatprep.mubr.bf16.mxu0 %v1420
    %2601 = vmatmul.mubr.bf16.gmra.mrb[0].mxu0 %v1419
    %v2602 = vpop.f32.mrb[0].mxu0
    %v2603 = vadd.f32 %v2562, %v2602
    %v2604 = vpop.f32.mrb[0].mxu0
    %v2605 = vadd.f32 %v2564, %v2604
    %v2606 = vpop.f32.mrb[0].mxu0
    %v2607 = vpop.f32.mrb[0].mxu0
    %2608 = vdwg.mxu0
    %2609 = vmatprep.subr.bf16.mxu0 %v1424
    %2610 = vmatpush1.bf16.msra.mxu0 %v1423
    %2611 = vmatprep.subr.bf16.mxu0 %v1440
    %2612 = vmatpush1.bf16.msra.mxu0 %v1439
    %2613 = vmatprep.subr.bf16.mxu0 %v1456
    %2614 = vmatpush1.bf16.msra.mxu0 %v1455
    %2615 = vmatprep.subr.bf16.mxu0 %v1472
    %2616 = vmatpush1.bf16.msra.mxu0 %v1471
    %2617 = vmatprep.subr.bf16.mxu0 %v1488
    %2618 = vmatpush1.bf16.msra.mxu0 %v1487
    %2619 = vmatprep.subr.bf16.mxu0 %v1504
    %2620 = vmatpush1.bf16.msra.mxu0 %v1503
    %2621 = vmatprep.subr.bf16.mxu0 %v1520
    %2622 = vmatpush1.bf16.msra.mxu0 %v1519
    %2623 = vmatprep.subr.bf16.mxu0 %v1536
    %2624 = vmatpush1.bf16.msra.mxu0 %v1535
    %2625 = vmatprep.subr.bf16.mxu0 %v1552
    %2626 = vmatpush1.bf16.msra.mxu0 %v1551
    %2627 = vmatprep.subr.bf16.mxu0 %v1568
    %2628 = vmatpush1.bf16.msra.mxu0 %v1567
    %2629 = vmatprep.subr.bf16.mxu0 %v1584
    %2630 = vmatpush1.bf16.msra.mxu0 %v1583
    %2631 = vmatprep.subr.bf16.mxu0 %v1600
    %2632 = vmatpush1.bf16.msra.mxu0 %v1599
    %2633 = vmatprep.subr.bf16.mxu0 %v1616
    %2634 = vmatpush1.bf16.msra.mxu0 %v1615
    %2635 = vmatprep.subr.bf16.mxu0 %v1632
    %2636 = vmatpush1.bf16.msra.mxu0 %v1631
    %2637 = vmatprep.subr.bf16.mxu0 %v1648
    %2638 = vmatpush1.bf16.msra.mxu0 %v1647
    %2639 = vmatprep.subr.bf16.mxu0 %v1664
    %2640 = vmatpush1.bf16.msra.mxu0 %v1663
    %2641 = vmatprep.mubr.bf16.mxu0 %v1414
    %2642 = vmatmul.mubr.bf16.gmra.mrb[0].mxu0 %v1413
    %v2643 = vpop.f32.mrb[0].mxu0
    %v2644 = vadd.f32 0.0, %v2643
    %v2645 = vpop.f32.mrb[0].mxu0
    %v2646 = vadd.f32 0.0, %v2645
    %v2647 = vpop.f32.mrb[0].mxu0
    %v2648 = vpop.f32.mrb[0].mxu0
    %2649 = vdwg.mxu0
    %2650 = vmatprep.subr.bf16.mxu0 %v1680
    %2651 = vmatpush1.bf16.msra.mxu0 %v1679
    %2652 = vmatprep.subr.bf16.mxu0 %v1696
    %2653 = vmatpush1.bf16.msra.mxu0 %v1695
    %2654 = vmatprep.subr.bf16.mxu0 %v1712
    %2655 = vmatpush1.bf16.msra.mxu0 %v1711
    %2656 = vmatprep.subr.bf16.mxu0 %v1728
    %2657 = vmatpush1.bf16.msra.mxu0 %v1727
    %2658 = vmatprep.subr.bf16.mxu0 %v1744
    %2659 = vmatpush1.bf16.msra.mxu0 %v1743
    %2660 = vmatprep.subr.bf16.mxu0 %v1760
    %2661 = vmatpush1.bf16.msra.mxu0 %v1759
    %2662 = vmatprep.subr.bf16.mxu0 %v1776
    %2663 = vmatpush1.bf16.msra.mxu0 %v1775
    %2664 = vmatprep.subr.bf16.mxu0 %v1792
    %2665 = vmatpush1.bf16.msra.mxu0 %v1791
    %2666 = vmatprep.subr.bf16.mxu0 %v1808
    %2667 = vmatpush1.bf16.msra.mxu0 %v1807
    %2668 = vmatprep.subr.bf16.mxu0 %v1824
    %2669 = vmatpush1.bf16.msra.mxu0 %v1823
    %2670 = vmatprep.subr.bf16.mxu0 %v1840
    %2671 = vmatpush1.bf16.msra.mxu0 %v1839
    %2672 = vmatprep.subr.bf16.mxu0 %v1856
    %2673 = vmatpush1.bf16.msra.mxu0 %v1855
    %2674 = vmatprep.subr.bf16.mxu0 %v1872
    %2675 = vmatpush1.bf16.msra.mxu0 %v1871
    %2676 = vmatprep.subr.bf16.mxu0 %v1888
    %2677 = vmatpush1.bf16.msra.mxu0 %v1887
    %2678 = vmatprep.subr.bf16.mxu0 %v1904
    %2679 = vmatpush1.bf16.msra.mxu0 %v1903
    %2680 = vmatprep.subr.bf16.mxu0 %v1920
    %2681 = vmatpush1.bf16.msra.mxu0 %v1919
    %2682 = vmatprep.mubr.bf16.mxu0 %v1416
    %2683 = vmatmul.mubr.bf16.gmra.mrb[0].mxu0 %v1415
    %v2684 = vpop.f32.mrb[0].mxu0
    %v2685 = vadd.f32 %v2644, %v2684
    %v2686 = vpop.f32.mrb[0].mxu0
    %v2687 = vadd.f32 %v2646, %v2686
    %v2688 = vpop.f32.mrb[0].mxu0
    %v2689 = vpop.f32.mrb[0].mxu0
    %2690 = vdwg.mxu0
    %2691 = vmatprep.subr.bf16.mxu0 %v1936
    %2692 = vmatpush1.bf16.msra.mxu0 %v1935
    %2693 = vmatprep.subr.bf16.mxu0 %v1952
    %2694 = vmatpush1.bf16.msra.mxu0 %v1951
    %2695 = vmatprep.subr.bf16.mxu0 %v1968
    %2696 = vmatpush1.bf16.msra.mxu0 %v1967
    %2697 = vmatprep.subr.bf16.mxu0 %v1984
    %2698 = vmatpush1.bf16.msra.mxu0 %v1983
    %2699 = vmatprep.subr.bf16.mxu0 %v2000
    %2700 = vmatpush1.bf16.msra.mxu0 %v1999
    %2701 = vmatprep.subr.bf16.mxu0 %v2016
    %2702 = vmatpush1.bf16.msra.mxu0 %v2015
    %2703 = vmatprep.subr.bf16.mxu0 %v2032
    %2704 = vmatpush1.bf16.msra.mxu0 %v2031
    %2705 = vmatprep.subr.bf16.mxu0 %v2048
    %2706 = vmatpush1.bf16.msra.mxu0 %v2047
    %2707 = vmatprep.subr.bf16.mxu0 %v2064
    %2708 = vmatpush1.bf16.msra.mxu0 %v2063
    %2709 = vmatprep.subr.bf16.mxu0 %v2080
    %2710 = vmatpush1.bf16.msra.mxu0 %v2079
    %2711 = vmatprep.subr.bf16.mxu0 %v2096
    %2712 = vmatpush1.bf16.msra.mxu0 %v2095
    %2713 = vmatprep.subr.bf16.mxu0 %v2112
    %2714 = vmatpush1.bf16.msra.mxu0 %v2111
    %2715 = vmatprep.subr.bf16.mxu0 %v2128
    %2716 = vmatpush1.bf16.msra.mxu0 %v2127
    %2717 = vmatprep.subr.bf16.mxu0 %v2144
    %2718 = vmatpush1.bf16.msra.mxu0 %v2143
    %2719 = vmatprep.subr.bf16.mxu0 %v2160
    %2720 = vmatpush1.bf16.msra.mxu0 %v2159
    %2721 = vmatprep.subr.bf16.mxu0 %v2176
    %2722 = vmatpush1.bf16.msra.mxu0 %v2175
    %2723 = vmatprep.mubr.bf16.mxu0 %v1418
    %2724 = vmatmul.mubr.bf16.gmra.mrb[0].mxu0 %v1417
    %v2725 = vpop.f32.mrb[0].mxu0
    %v2726 = vadd.f32 %v2685, %v2725
    %v2727 = vpop.f32.mrb[0].mxu0
    %v2728 = vadd.f32 %v2687, %v2727
    %v2729 = vpop.f32.mrb[0].mxu0
    %v2730 = vpop.f32.mrb[0].mxu0
    %2731 = vdwg.mxu0
    %2732 = vmatprep.subr.bf16.mxu0 %v2192
    %2733 = vmatpush1.bf16.msra.mxu0 %v2191
    %2734 = vmatprep.subr.bf16.mxu0 %v2208
    %2735 = vmatpush1.bf16.msra.mxu0 %v2207
    %2736 = vmatprep.subr.bf16.mxu0 %v2224
    %2737 = vmatpush1.bf16.msra.mxu0 %v2223
    %2738 = vmatprep.subr.bf16.mxu0 %v2240
    %2739 = vmatpush1.bf16.msra.mxu0 %v2239
    %2740 = vmatprep.subr.bf16.mxu0 %v2256
    %2741 = vmatpush1.bf16.msra.mxu0 %v2255
    %2742 = vmatprep.subr.bf16.mxu0 %v2272
    %2743 = vmatpush1.bf16.msra.mxu0 %v2271
    %2744 = vmatprep.subr.bf16.mxu0 %v2288
    %2745 = vmatpush1.bf16.msra.mxu0 %v2287
    %2746 = vmatprep.subr.bf16.mxu0 %v2304
    %2747 = vmatpush1.bf16.msra.mxu0 %v2303
    %2748 = vmatprep.subr.bf16.mxu0 %v2320
    %2749 = vmatpush1.bf16.msra.mxu0 %v2319
    %2750 = vmatprep.subr.bf16.mxu0 %v2336
    %2751 = vmatpush1.bf16.msra.mxu0 %v2335
    %2752 = vmatprep.subr.bf16.mxu0 %v2352
    %2753 = vmatpush1.bf16.msra.mxu0 %v2351
    %2754 = vmatprep.subr.bf16.mxu0 %v2368
    %2755 = vmatpush1.bf16.msra.mxu0 %v2367
    %2756 = vmatprep.subr.bf16.mxu0 %v2384
    %2757 = vmatpush1.bf16.msra.mxu0 %v2383
    %2758 = vmatprep.subr.bf16.mxu0 %v2400
    %2759 = vmatpush1.bf16.msra.mxu0 %v2399
    %2760 = vmatprep.subr.bf16.mxu0 %v2416
    %2761 = vmatpush1.bf16.msra.mxu0 %v2415
    %2762 = vmatprep.subr.bf16.mxu0 %v2432
    %2763 = vmatpush1.bf16.msra.mxu0 %v2431
    %2764 = vmatprep.mubr.bf16.mxu0 %v1420
    %2765 = vmatmul.mubr.bf16.gmra.mrb[0].mxu0 %v1419
    %v2766 = vpop.f32.mrb[0].mxu0
    %v2767 = vadd.f32 %v2726, %v2766
    %v2768 = vpop.f32.mrb[0].mxu0
    %v2769 = vadd.f32 %v2728, %v2768
    %v2770 = vpop.f32.mrb[0].mxu0
    %v2771 = vpop.f32.mrb[0].mxu0
    %2772 = vdwg.mxu0
    %2773 = vmatprep.subr.bf16.mxu0 %v1426
    %2774 = vmatpush1.bf16.msra.mxu0 %v1425
    %2775 = vmatprep.subr.bf16.mxu0 %v1442
    %2776 = vmatpush1.bf16.msra.mxu0 %v1441
    %2777 = vmatprep.subr.bf16.mxu0 %v1458
    %2778 = vmatpush1.bf16.msra.mxu0 %v1457
    %2779 = vmatprep.subr.bf16.mxu0 %v1474
    %2780 = vmatpush1.bf16.msra.mxu0 %v1473
    %2781 = vmatprep.subr.bf16.mxu0 %v1490
    %2782 = vmatpush1.bf16.msra.mxu0 %v1489
    %2783 = vmatprep.subr.bf16.mxu0 %v1506
    %2784 = vmatpush1.bf16.msra.mxu0 %v1505
    %2785 = vmatprep.subr.bf16.mxu0 %v1522
    %2786 = vmatpush1.bf16.msra.mxu0 %v1521
    %2787 = vmatprep.subr.bf16.mxu0 %v1538
    %2788 = vmatpush1.bf16.msra.mxu0 %v1537
    %2789 = vmatprep.subr.bf16.mxu0 %v1554
    %2790 = vmatpush1.bf16.msra.mxu0 %v1553
    %2791 = vmatprep.subr.bf16.mxu0 %v1570
    %2792 = vmatpush1.bf16.msra.mxu0 %v1569
    %2793 = vmatprep.subr.bf16.mxu0 %v1586
    %2794 = vmatpush1.bf16.msra.mxu0 %v1585
    %2795 = vmatprep.subr.bf16.mxu0 %v1602
    %2796 = vmatpush1.bf16.msra.mxu0 %v1601
    %2797 = vmatprep.subr.bf16.mxu0 %v1618
    %2798 = vmatpush1.bf16.msra.mxu0 %v1617
    %2799 = vmatprep.subr.bf16.mxu0 %v1634
    %2800 = vmatpush1.bf16.msra.mxu0 %v1633
    %2801 = vmatprep.subr.bf16.mxu0 %v1650
    %2802 = vmatpush1.bf16.msra.mxu0 %v1649
    %2803 = vmatprep.subr.bf16.mxu0 %v1666
    %2804 = vmatpush1.bf16.msra.mxu0 %v1665
    %2805 = vmatprep.mubr.bf16.mxu0 %v1414
    %2806 = vmatmul.mubr.bf16.gmra.mrb[0].mxu0 %v1413
    %v2807 = vpop.f32.mrb[0].mxu0
    %v2808 = vadd.f32 0.0, %v2807
    %v2809 = vpop.f32.mrb[0].mxu0
    %v2810 = vadd.f32 0.0, %v2809
    %v2811 = vpop.f32.mrb[0].mxu0
    %v2812 = vpop.f32.mrb[0].mxu0
    %2813 = vdwg.mxu0
    %2814 = vmatprep.subr.bf16.mxu0 %v1682
    %2815 = vmatpush1.bf16.msra.mxu0 %v1681
    %2816 = vmatprep.subr.bf16.mxu0 %v1698
    %2817 = vmatpush1.bf16.msra.mxu0 %v1697
    %2818 = vmatprep.subr.bf16.mxu0 %v1714
    %2819 = vmatpush1.bf16.msra.mxu0 %v1713
    %2820 = vmatprep.subr.bf16.mxu0 %v1730
    %2821 = vmatpush1.bf16.msra.mxu0 %v1729
    %2822 = vmatprep.subr.bf16.mxu0 %v1746
    %2823 = vmatpush1.bf16.msra.mxu0 %v1745
    %2824 = vmatprep.subr.bf16.mxu0 %v1762
    %2825 = vmatpush1.bf16.msra.mxu0 %v1761
    %2826 = vmatprep.subr.bf16.mxu0 %v1778
    %2827 = vmatpush1.bf16.msra.mxu0 %v1777
    %2828 = vmatprep.subr.bf16.mxu0 %v1794
    %2829 = vmatpush1.bf16.msra.mxu0 %v1793
    %2830 = vmatprep.subr.bf16.mxu0 %v1810
    %2831 = vmatpush1.bf16.msra.mxu0 %v1809
    %2832 = vmatprep.subr.bf16.mxu0 %v1826
    %2833 = vmatpush1.bf16.msra.mxu0 %v1825
    %2834 = vmatprep.subr.bf16.mxu0 %v1842
    %2835 = vmatpush1.bf16.msra.mxu0 %v1841
    %2836 = vmatprep.subr.bf16.mxu0 %v1858
    %2837 = vmatpush1.bf16.msra.mxu0 %v1857
    %2838 = vmatprep.subr.bf16.mxu0 %v1874
    %2839 = vmatpush1.bf16.msra.mxu0 %v1873
    %2840 = vmatprep.subr.bf16.mxu0 %v1890
    %2841 = vmatpush1.bf16.msra.mxu0 %v1889
    %2842 = vmatprep.subr.bf16.mxu0 %v1906
    %2843 = vmatpush1.bf16.msra.mxu0 %v1905
    %2844 = vmatprep.subr.bf16.mxu0 %v1922
    %2845 = vmatpush1.bf16.msra.mxu0 %v1921
    %2846 = vmatprep.mubr.bf16.mxu0 %v1416
    %2847 = vmatmul.mubr.bf16.gmra.mrb[0].mxu0 %v1415
    %v2848 = vpop.f32.mrb[0].mxu0
    %v2849 = vadd.f32 %v2808, %v2848
    %v2850 = vpop.f32.mrb[0].mxu0
    %v2851 = vadd.f32 %v2810, %v2850
    %v2852 = vpop.f32.mrb[0].mxu0
    %v2853 = vpop.f32.mrb[0].mxu0
    %2854 = vdwg.mxu0
    %2855 = vmatprep.subr.bf16.mxu0 %v1938
    %2856 = vmatpush1.bf16.msra.mxu0 %v1937
    %2857 = vmatprep.subr.bf16.mxu0 %v1954
    %2858 = vmatpush1.bf16.msra.mxu0 %v1953
    %2859 = vmatprep.subr.bf16.mxu0 %v1970
    %2860 = vmatpush1.bf16.msra.mxu0 %v1969
    %2861 = vmatprep.subr.bf16.mxu0 %v1986
    %2862 = vmatpush1.bf16.msra.mxu0 %v1985
    %2863 = vmatprep.subr.bf16.mxu0 %v2002
    %2864 = vmatpush1.bf16.msra.mxu0 %v2001
    %2865 = vmatprep.subr.bf16.mxu0 %v2018
    %2866 = vmatpush1.bf16.msra.mxu0 %v2017
    %2867 = vmatprep.subr.bf16.mxu0 %v2034
    %2868 = vmatpush1.bf16.msra.mxu0 %v2033
    %2869 = vmatprep.subr.bf16.mxu0 %v2050
    %2870 = vmatpush1.bf16.msra.mxu0 %v2049
    %2871 = vmatprep.subr.bf16.mxu0 %v2066
    %2872 = vmatpush1.bf16.msra.mxu0 %v2065
    %2873 = vmatprep.subr.bf16.mxu0 %v2082
    %2874 = vmatpush1.bf16.msra.mxu0 %v2081
    %2875 = vmatprep.subr.bf16.mxu0 %v2098
    %2876 = vmatpush1.bf16.msra.mxu0 %v2097
    %2877 = vmatprep.subr.bf16.mxu0 %v2114
    %2878 = vmatpush1.bf16.msra.mxu0 %v2113
    %2879 = vmatprep.subr.bf16.mxu0 %v2130
    %2880 = vmatpush1.bf16.msra.mxu0 %v2129
    %2881 = vmatprep.subr.bf16.mxu0 %v2146
    %2882 = vmatpush1.bf16.msra.mxu0 %v2145
    %2883 = vmatprep.subr.bf16.mxu0 %v2162
    %2884 = vmatpush1.bf16.msra.mxu0 %v2161
    %2885 = vmatprep.subr.bf16.mxu0 %v2178
    %2886 = vmatpush1.bf16.msra.mxu0 %v2177
    %2887 = vmatprep.mubr.bf16.mxu0 %v1418
    %2888 = vmatmul.mubr.bf16.gmra.mrb[0].mxu0 %v1417
    %v2889 = vpop.f32.mrb[0].mxu0
    %v2890 = vadd.f32 %v2849, %v2889
    %v2891 = vpop.f32.mrb[0].mxu0
    %v2892 = vadd.f32 %v2851, %v2891
    %v2893 = vpop.f32.mrb[0].mxu0
    %v2894 = vpop.f32.mrb[0].mxu0
    %2895 = vdwg.mxu0
    %2896 = vmatprep.subr.bf16.mxu0 %v2194
    %2897 = vmatpush1.bf16.msra.mxu0 %v2193
    %2898 = vmatprep.subr.bf16.mxu0 %v2210
    %2899 = vmatpush1.bf16.msra.mxu0 %v2209
    %2900 = vmatprep.subr.bf16.mxu0 %v2226
    %2901 = vmatpush1.bf16.msra.mxu0 %v2225
    %2902 = vmatprep.subr.bf16.mxu0 %v2242
    %2903 = vmatpush1.bf16.msra.mxu0 %v2241
    %2904 = vmatprep.subr.bf16.mxu0 %v2258
    %2905 = vmatpush1.bf16.msra.mxu0 %v2257
    %2906 = vmatprep.subr.bf16.mxu0 %v2274
    %2907 = vmatpush1.bf16.msra.mxu0 %v2273
    %2908 = vmatprep.subr.bf16.mxu0 %v2290
    %2909 = vmatpush1.bf16.msra.mxu0 %v2289
    %2910 = vmatprep.subr.bf16.mxu0 %v2306
    %2911 = vmatpush1.bf16.msra.mxu0 %v2305
    %2912 = vmatprep.subr.bf16.mxu0 %v2322
    %2913 = vmatpush1.bf16.msra.mxu0 %v2321
    %2914 = vmatprep.subr.bf16.mxu0 %v2338
    %2915 = vmatpush1.bf16.msra.mxu0 %v2337
    %2916 = vmatprep.subr.bf16.mxu0 %v2354
    %2917 = vmatpush1.bf16.msra.mxu0 %v2353
    %2918 = vmatprep.subr.bf16.mxu0 %v2370
    %2919 = vmatpush1.bf16.msra.mxu0 %v2369
    %2920 = vmatprep.subr.bf16.mxu0 %v2386
    %2921 = vmatpush1.bf16.msra.mxu0 %v2385
    %2922 = vmatprep.subr.bf16.mxu0 %v2402
    %2923 = vmatpush1.bf16.msra.mxu0 %v2401
    %2924 = vmatprep.subr.bf16.mxu0 %v2418
    %2925 = vmatpush1.bf16.msra.mxu0 %v2417
    %2926 = vmatprep.subr.bf16.mxu0 %v2434
    %2927 = vmatpush1.bf16.msra.mxu0 %v2433
    %2928 = vmatprep.mubr.bf16.mxu0 %v1420
    %2929 = vmatmul.mubr.bf16.gmra.mrb[0].mxu0 %v1419
    %v2930 = vpop.f32.mrb[0].mxu0
    %v2931 = vadd.f32 %v2890, %v2930
    %v2932 = vpop.f32.mrb[0].mxu0
    %v2933 = vadd.f32 %v2892, %v2932
    %v2934 = vpop.f32.mrb[0].mxu0
    %v2935 = vpop.f32.mrb[0].mxu0
    %2936 = vdwg.mxu0
    %2937 = vmatprep.subr.bf16.mxu0 %v1428
    %2938 = vmatpush1.bf16.msra.mxu0 %v1427
    %2939 = vmatprep.subr.bf16.mxu0 %v1444
    %2940 = vmatpush1.bf16.msra.mxu0 %v1443
    %2941 = vmatprep.subr.bf16.mxu0 %v1460
    %2942 = vmatpush1.bf16.msra.mxu0 %v1459
    %2943 = vmatprep.subr.bf16.mxu0 %v1476
    %2944 = vmatpush1.bf16.msra.mxu0 %v1475
    %2945 = vmatprep.subr.bf16.mxu0 %v1492
    %2946 = vmatpush1.bf16.msra.mxu0 %v1491
    %2947 = vmatprep.subr.bf16.mxu0 %v1508
    %2948 = vmatpush1.bf16.msra.mxu0 %v1507
    %2949 = vmatprep.subr.bf16.mxu0 %v1524
    %2950 = vmatpush1.bf16.msra.mxu0 %v1523
    %2951 = vmatprep.subr.bf16.mxu0 %v1540
    %2952 = vmatpush1.bf16.msra.mxu0 %v1539
    %2953 = vmatprep.subr.bf16.mxu0 %v1556
    %2954 = vmatpush1.bf16.msra.mxu0 %v1555
    %2955 = vmatprep.subr.bf16.mxu0 %v1572
    %2956 = vmatpush1.bf16.msra.mxu0 %v1571
    %2957 = vmatprep.subr.bf16.mxu0 %v1588
    %2958 = vmatpush1.bf16.msra.mxu0 %v1587
    %2959 = vmatprep.subr.bf16.mxu0 %v1604
    %2960 = vmatpush1.bf16.msra.mxu0 %v1603
    %2961 = vmatprep.subr.bf16.mxu0 %v1620
    %2962 = vmatpush1.bf16.msra.mxu0 %v1619
    %2963 = vmatprep.subr.bf16.mxu0 %v1636
    %2964 = vmatpush1.bf16.msra.mxu0 %v1635
    %2965 = vmatprep.subr.bf16.mxu0 %v1652
    %2966 = vmatpush1.bf16.msra.mxu0 %v1651
    %2967 = vmatprep.subr.bf16.mxu0 %v1668
    %2968 = vmatpush1.bf16.msra.mxu0 %v1667
    %2969 = vmatprep.mubr.bf16.mxu0 %v1414
    %2970 = vmatmul.mubr.bf16.gmra.mrb[0].mxu0 %v1413
    %v2971 = vpop.f32.mrb[0].mxu0
    %v2972 = vadd.f32 0.0, %v2971
    %v2973 = vpop.f32.mrb[0].mxu0
    %v2974 = vadd.f32 0.0, %v2973
    %v2975 = vpop.f32.mrb[0].mxu0
    %v2976 = vpop.f32.mrb[0].mxu0
    %2977 = vdwg.mxu0
    %2978 = vmatprep.subr.bf16.mxu0 %v1684
    %2979 = vmatpush1.bf16.msra.mxu0 %v1683
    %2980 = vmatprep.subr.bf16.mxu0 %v1700
    %2981 = vmatpush1.bf16.msra.mxu0 %v1699
    %2982 = vmatprep.subr.bf16.mxu0 %v1716
    %2983 = vmatpush1.bf16.msra.mxu0 %v1715
    %2984 = vmatprep.subr.bf16.mxu0 %v1732
    %2985 = vmatpush1.bf16.msra.mxu0 %v1731
    %2986 = vmatprep.subr.bf16.mxu0 %v1748
    %2987 = vmatpush1.bf16.msra.mxu0 %v1747
    %2988 = vmatprep.subr.bf16.mxu0 %v1764
    %2989 = vmatpush1.bf16.msra.mxu0 %v1763
    %2990 = vmatprep.subr.bf16.mxu0 %v1780
    %2991 = vmatpush1.bf16.msra.mxu0 %v1779
    %2992 = vmatprep.subr.bf16.mxu0 %v1796
    %2993 = vmatpush1.bf16.msra.mxu0 %v1795
    %2994 = vmatprep.subr.bf16.mxu0 %v1812
    %2995 = vmatpush1.bf16.msra.mxu0 %v1811
    %2996 = vmatprep.subr.bf16.mxu0 %v1828
    %2997 = vmatpush1.bf16.msra.mxu0 %v1827
    %2998 = vmatprep.subr.bf16.mxu0 %v1844
    %2999 = vmatpush1.bf16.msra.mxu0 %v1843
    %3000 = vmatprep.subr.bf16.mxu0 %v1860
    %3001 = vmatpush1.bf16.msra.mxu0 %v1859
    %3002 = vmatprep.subr.bf16.mxu0 %v1876
    %3003 = vmatpush1.bf16.msra.mxu0 %v1875
    %3004 = vmatprep.subr.bf16.mxu0 %v1892
    %3005 = vmatpush1.bf16.msra.mxu0 %v1891
    %3006 = vmatprep.subr.bf16.mxu0 %v1908
    %3007 = vmatpush1.bf16.msra.mxu0 %v1907
    %3008 = vmatprep.subr.bf16.mxu0 %v1924
    %3009 = vmatpush1.bf16.msra.mxu0 %v1923
    %3010 = vmatprep.mubr.bf16.mxu0 %v1416
    %3011 = vmatmul.mubr.bf16.gmra.mrb[0].mxu0 %v1415
    %v3012 = vpop.f32.mrb[0].mxu0
    %v3013 = vadd.f32 %v2972, %v3012
    %v3014 = vpop.f32.mrb[0].mxu0
    %v3015 = vadd.f32 %v2974, %v3014
    %v3016 = vpop.f32.mrb[0].mxu0
    %v3017 = vpop.f32.mrb[0].mxu0
    %3018 = vdwg.mxu0
    %3019 = vmatprep.subr.bf16.mxu0 %v1940
    %3020 = vmatpush1.bf16.msra.mxu0 %v1939
    %3021 = vmatprep.subr.bf16.mxu0 %v1956
    %3022 = vmatpush1.bf16.msra.mxu0 %v1955
    %3023 = vmatprep.subr.bf16.mxu0 %v1972
    %3024 = vmatpush1.bf16.msra.mxu0 %v1971
    %3025 = vmatprep.subr.bf16.mxu0 %v1988
    %3026 = vmatpush1.bf16.msra.mxu0 %v1987
    %3027 = vmatprep.subr.bf16.mxu0 %v2004
    %3028 = vmatpush1.bf16.msra.mxu0 %v2003
    %3029 = vmatprep.subr.bf16.mxu0 %v2020
    %3030 = vmatpush1.bf16.msra.mxu0 %v2019
    %3031 = vmatprep.subr.bf16.mxu0 %v2036
    %3032 = vmatpush1.bf16.msra.mxu0 %v2035
    %3033 = vmatprep.subr.bf16.mxu0 %v2052
    %3034 = vmatpush1.bf16.msra.mxu0 %v2051
    %3035 = vmatprep.subr.bf16.mxu0 %v2068
    %3036 = vmatpush1.bf16.msra.mxu0 %v2067
    %3037 = vmatprep.subr.bf16.mxu0 %v2084
    %3038 = vmatpush1.bf16.msra.mxu0 %v2083
    %3039 = vmatprep.subr.bf16.mxu0 %v2100
    %3040 = vmatpush1.bf16.msra.mxu0 %v2099
    %3041 = vmatprep.subr.bf16.mxu0 %v2116
    %3042 = vmatpush1.bf16.msra.mxu0 %v2115
    %3043 = vmatprep.subr.bf16.mxu0 %v2132
    %3044 = vmatpush1.bf16.msra.mxu0 %v2131
    %3045 = vmatprep.subr.bf16.mxu0 %v2148
    %3046 = vmatpush1.bf16.msra.mxu0 %v2147
    %3047 = vmatprep.subr.bf16.mxu0 %v2164
    %3048 = vmatpush1.bf16.msra.mxu0 %v2163
    %3049 = vmatprep.subr.bf16.mxu0 %v2180
    %3050 = vmatpush1.bf16.msra.mxu0 %v2179
    %3051 = vmatprep.mubr.bf16.mxu0 %v1418
    %3052 = vmatmul.mubr.bf16.gmra.mrb[0].mxu0 %v1417
    %v3053 = vpop.f32.mrb[0].mxu0
    %v3054 = vadd.f32 %v3013, %v3053
    %v3055 = vpop.f32.mrb[0].mxu0
    %v3056 = vadd.f32 %v3015, %v3055
    %v3057 = vpop.f32.mrb[0].mxu0
    %v3058 = vpop.f32.mrb[0].mxu0
    %3059 = vdwg.mxu0
    %3060 = vmatprep.subr.bf16.mxu0 %v2196
    %3061 = vmatpush1.bf16.msra.mxu0 %v2195
    %3062 = vmatprep.subr.bf16.mxu0 %v2212
    %3063 = vmatpush1.bf16.msra.mxu0 %v2211
    %3064 = vmatprep.subr.bf16.mxu0 %v2228
    %3065 = vmatpush1.bf16.msra.mxu0 %v2227
    %3066 = vmatprep.subr.bf16.mxu0 %v2244
    %3067 = vmatpush1.bf16.msra.mxu0 %v2243
    %3068 = vmatprep.subr.bf16.mxu0 %v2260
    %3069 = vmatpush1.bf16.msra.mxu0 %v2259
    %3070 = vmatprep.subr.bf16.mxu0 %v2276
    %3071 = vmatpush1.bf16.msra.mxu0 %v2275
    %3072 = vmatprep.subr.bf16.mxu0 %v2292
    %3073 = vmatpush1.bf16.msra.mxu0 %v2291
    %3074 = vmatprep.subr.bf16.mxu0 %v2308
    %3075 = vmatpush1.bf16.msra.mxu0 %v2307
    %3076 = vmatprep.subr.bf16.mxu0 %v2324
    %3077 = vmatpush1.bf16.msra.mxu0 %v2323
    %3078 = vmatprep.subr.bf16.mxu0 %v2340
    %3079 = vmatpush1.bf16.msra.mxu0 %v2339
    %3080 = vmatprep.subr.bf16.mxu0 %v2356
    %3081 = vmatpush1.bf16.msra.mxu0 %v2355
    %3082 = vmatprep.subr.bf16.mxu0 %v2372
    %3083 = vmatpush1.bf16.msra.mxu0 %v2371
    %3084 = vmatprep.subr.bf16.mxu0 %v2388
    %3085 = vmatpush1.bf16.msra.mxu0 %v2387
    %3086 = vmatprep.subr.bf16.mxu0 %v2404
    %3087 = vmatpush1.bf16.msra.mxu0 %v2403
    %3088 = vmatprep.subr.bf16.mxu0 %v2420
    %3089 = vmatpush1.bf16.msra.mxu0 %v2419
    %3090 = vmatprep.subr.bf16.mxu0 %v2436
    %3091 = vmatpush1.bf16.msra.mxu0 %v2435
    %3092 = vmatprep.mubr.bf16.mxu0 %v1420
    %3093 = vmatmul.mubr.bf16.gmra.mrb[0].mxu0 %v1419
    %v3094 = vpop.f32.mrb[0].mxu0
    %v3095 = vadd.f32 %v3054, %v3094
    %v3096 = vpop.f32.mrb[0].mxu0
    %v3097 = vadd.f32 %v3056, %v3096
    %v3098 = vpop.f32.mrb[0].mxu0
    %v3099 = vpop.f32.mrb[0].mxu0
    %3100 = vdwg.mxu0
    %3101 = vmatprep.subr.bf16.mxu0 %v1430
    %3102 = vmatpush1.bf16.msra.mxu0 %v1429
    %3103 = vmatprep.subr.bf16.mxu0 %v1446
    %3104 = vmatpush1.bf16.msra.mxu0 %v1445
    %3105 = vmatprep.subr.bf16.mxu0 %v1462
    %3106 = vmatpush1.bf16.msra.mxu0 %v1461
    %3107 = vmatprep.subr.bf16.mxu0 %v1478
    %3108 = vmatpush1.bf16.msra.mxu0 %v1477
    %3109 = vmatprep.subr.bf16.mxu0 %v1494
    %3110 = vmatpush1.bf16.msra.mxu0 %v1493
    %3111 = vmatprep.subr.bf16.mxu0 %v1510
    %3112 = vmatpush1.bf16.msra.mxu0 %v1509
    %3113 = vmatprep.subr.bf16.mxu0 %v1526
    %3114 = vmatpush1.bf16.msra.mxu0 %v1525
    %3115 = vmatprep.subr.bf16.mxu0 %v1542
    %3116 = vmatpush1.bf16.msra.mxu0 %v1541
    %3117 = vmatprep.subr.bf16.mxu0 %v1558
    %3118 = vmatpush1.bf16.msra.mxu0 %v1557
    %3119 = vmatprep.subr.bf16.mxu0 %v1574
    %3120 = vmatpush1.bf16.msra.mxu0 %v1573
    %3121 = vmatprep.subr.bf16.mxu0 %v1590
    %3122 = vmatpush1.bf16.msra.mxu0 %v1589
    %3123 = vmatprep.subr.bf16.mxu0 %v1606
    %3124 = vmatpush1.bf16.msra.mxu0 %v1605
    %3125 = vmatprep.subr.bf16.mxu0 %v1622
    %3126 = vmatpush1.bf16.msra.mxu0 %v1621
    %3127 = vmatprep.subr.bf16.mxu0 %v1638
    %3128 = vmatpush1.bf16.msra.mxu0 %v1637
    %3129 = vmatprep.subr.bf16.mxu0 %v1654
    %3130 = vmatpush1.bf16.msra.mxu0 %v1653
    %3131 = vmatprep.subr.bf16.mxu0 %v1670
    %3132 = vmatpush1.bf16.msra.mxu0 %v1669
    %3133 = vmatprep.mubr.bf16.mxu0 %v1414
    %3134 = vmatmul.mubr.bf16.gmra.mrb[0].mxu0 %v1413
    %v3135 = vpop.f32.mrb[0].mxu0
    %v3136 = vadd.f32 0.0, %v3135
    %v3137 = vpop.f32.mrb[0].mxu0
    %v3138 = vadd.f32 0.0, %v3137
    %v3139 = vpop.f32.mrb[0].mxu0
    %v3140 = vpop.f32.mrb[0].mxu0
    %3141 = vdwg.mxu0
    %3142 = vmatprep.subr.bf16.mxu0 %v1686
    %3143 = vmatpush1.bf16.msra.mxu0 %v1685
    %3144 = vmatprep.subr.bf16.mxu0 %v1702
    %3145 = vmatpush1.bf16.msra.mxu0 %v1701
    %3146 = vmatprep.subr.bf16.mxu0 %v1718
    %3147 = vmatpush1.bf16.msra.mxu0 %v1717
    %3148 = vmatprep.subr.bf16.mxu0 %v1734
    %3149 = vmatpush1.bf16.msra.mxu0 %v1733
    %3150 = vmatprep.subr.bf16.mxu0 %v1750
    %3151 = vmatpush1.bf16.msra.mxu0 %v1749
    %3152 = vmatprep.subr.bf16.mxu0 %v1766
    %3153 = vmatpush1.bf16.msra.mxu0 %v1765
    %3154 = vmatprep.subr.bf16.mxu0 %v1782
    %3155 = vmatpush1.bf16.msra.mxu0 %v1781
    %3156 = vmatprep.subr.bf16.mxu0 %v1798
    %3157 = vmatpush1.bf16.msra.mxu0 %v1797
    %3158 = vmatprep.subr.bf16.mxu0 %v1814
    %3159 = vmatpush1.bf16.msra.mxu0 %v1813
    %3160 = vmatprep.subr.bf16.mxu0 %v1830
    %3161 = vmatpush1.bf16.msra.mxu0 %v1829
    %3162 = vmatprep.subr.bf16.mxu0 %v1846
    %3163 = vmatpush1.bf16.msra.mxu0 %v1845
    %3164 = vmatprep.subr.bf16.mxu0 %v1862
    %3165 = vmatpush1.bf16.msra.mxu0 %v1861
    %3166 = vmatprep.subr.bf16.mxu0 %v1878
    %3167 = vmatpush1.bf16.msra.mxu0 %v1877
    %3168 = vmatprep.subr.bf16.mxu0 %v1894
    %3169 = vmatpush1.bf16.msra.mxu0 %v1893
    %3170 = vmatprep.subr.bf16.mxu0 %v1910
    %3171 = vmatpush1.bf16.msra.mxu0 %v1909
    %3172 = vmatprep.subr.bf16.mxu0 %v1926
    %3173 = vmatpush1.bf16.msra.mxu0 %v1925
    %3174 = vmatprep.mubr.bf16.mxu0 %v1416
    %3175 = vmatmul.mubr.bf16.gmra.mrb[0].mxu0 %v1415
    %v3176 = vpop.f32.mrb[0].mxu0
    %v3177 = vadd.f32 %v3136, %v3176
    %v3178 = vpop.f32.mrb[0].mxu0
    %v3179 = vadd.f32 %v3138, %v3178
    %v3180 = vpop.f32.mrb[0].mxu0
    %v3181 = vpop.f32.mrb[0].mxu0
    %3182 = vdwg.mxu0
    %3183 = vmatprep.subr.bf16.mxu0 %v1942
    %3184 = vmatpush1.bf16.msra.mxu0 %v1941
    %3185 = vmatprep.subr.bf16.mxu0 %v1958
    %3186 = vmatpush1.bf16.msra.mxu0 %v1957
    %3187 = vmatprep.subr.bf16.mxu0 %v1974
    %3188 = vmatpush1.bf16.msra.mxu0 %v1973
    %3189 = vmatprep.subr.bf16.mxu0 %v1990
    %3190 = vmatpush1.bf16.msra.mxu0 %v1989
    %3191 = vmatprep.subr.bf16.mxu0 %v2006
    %3192 = vmatpush1.bf16.msra.mxu0 %v2005
    %3193 = vmatprep.subr.bf16.mxu0 %v2022
    %3194 = vmatpush1.bf16.msra.mxu0 %v2021
    %3195 = vmatprep.subr.bf16.mxu0 %v2038
    %3196 = vmatpush1.bf16.msra.mxu0 %v2037
    %3197 = vmatprep.subr.bf16.mxu0 %v2054
    %3198 = vmatpush1.bf16.msra.mxu0 %v2053
    %3199 = vmatprep.subr.bf16.mxu0 %v2070
    %3200 = vmatpush1.bf16.msra.mxu0 %v2069
    %3201 = vmatprep.subr.bf16.mxu0 %v2086
    %3202 = vmatpush1.bf16.msra.mxu0 %v2085
    %3203 = vmatprep.subr.bf16.mxu0 %v2102
    %3204 = vmatpush1.bf16.msra.mxu0 %v2101
    %3205 = vmatprep.subr.bf16.mxu0 %v2118
    %3206 = vmatpush1.bf16.msra.mxu0 %v2117
    %3207 = vmatprep.subr.bf16.mxu0 %v2134
    %3208 = vmatpush1.bf16.msra.mxu0 %v2133
    %3209 = vmatprep.subr.bf16.mxu0 %v2150
    %3210 = vmatpush1.bf16.msra.mxu0 %v2149
    %3211 = vmatprep.subr.bf16.mxu0 %v2166
    %3212 = vmatpush1.bf16.msra.mxu0 %v2165
    %3213 = vmatprep.subr.bf16.mxu0 %v2182
    %3214 = vmatpush1.bf16.msra.mxu0 %v2181
    %3215 = vmatprep.mubr.bf16.mxu0 %v1418
    %3216 = vmatmul.mubr.bf16.gmra.mrb[0].mxu0 %v1417
    %v3217 = vpop.f32.mrb[0].mxu0
    %v3218 = vadd.f32 %v3177, %v3217
    %v3219 = vpop.f32.mrb[0].mxu0
    %v3220 = vadd.f32 %v3179, %v3219
    %v3221 = vpop.f32.mrb[0].mxu0
    %v3222 = vpop.f32.mrb[0].mxu0
    %3223 = vdwg.mxu0
    %3224 = vmatprep.subr.bf16.mxu0 %v2198
    %3225 = vmatpush1.bf16.msra.mxu0 %v2197
    %3226 = vmatprep.subr.bf16.mxu0 %v2214
    %3227 = vmatpush1.bf16.msra.mxu0 %v2213
    %3228 = vmatprep.subr.bf16.mxu0 %v2230
    %3229 = vmatpush1.bf16.msra.mxu0 %v2229
    %3230 = vmatprep.subr.bf16.mxu0 %v2246
    %3231 = vmatpush1.bf16.msra.mxu0 %v2245
    %3232 = vmatprep.subr.bf16.mxu0 %v2262
    %3233 = vmatpush1.bf16.msra.mxu0 %v2261
    %3234 = vmatprep.subr.bf16.mxu0 %v2278
    %3235 = vmatpush1.bf16.msra.mxu0 %v2277
    %3236 = vmatprep.subr.bf16.mxu0 %v2294
    %3237 = vmatpush1.bf16.msra.mxu0 %v2293
    %3238 = vmatprep.subr.bf16.mxu0 %v2310
    %3239 = vmatpush1.bf16.msra.mxu0 %v2309
    %3240 = vmatprep.subr.bf16.mxu0 %v2326
    %3241 = vmatpush1.bf16.msra.mxu0 %v2325
    %3242 = vmatprep.subr.bf16.mxu0 %v2342
    %3243 = vmatpush1.bf16.msra.mxu0 %v2341
    %3244 = vmatprep.subr.bf16.mxu0 %v2358
    %3245 = vmatpush1.bf16.msra.mxu0 %v2357
    %3246 = vmatprep.subr.bf16.mxu0 %v2374
    %3247 = vmatpush1.bf16.msra.mxu0 %v2373
    %3248 = vmatprep.subr.bf16.mxu0 %v2390
    %3249 = vmatpush1.bf16.msra.mxu0 %v2389
    %3250 = vmatprep.subr.bf16.mxu0 %v2406
    %3251 = vmatpush1.bf16.msra.mxu0 %v2405
    %3252 = vmatprep.subr.bf16.mxu0 %v2422
    %3253 = vmatpush1.bf16.msra.mxu0 %v2421
    %3254 = vmatprep.subr.bf16.mxu0 %v2438
    %3255 = vmatpush1.bf16.msra.mxu0 %v2437
    %3256 = vmatprep.mubr.bf16.mxu0 %v1420
    %3257 = vmatmul.mubr.bf16.gmra.mrb[0].mxu0 %v1419
    %v3258 = vpop.f32.mrb[0].mxu0
    %v3259 = vadd.f32 %v3218, %v3258
    %v3260 = vpop.f32.mrb[0].mxu0
    %v3261 = vadd.f32 %v3220, %v3260
    %v3262 = vpop.f32.mrb[0].mxu0
    %v3263 = vpop.f32.mrb[0].mxu0
    %3264 = vdwg.mxu0
    %3265 = vmatprep.subr.bf16.mxu0 %v1432
    %3266 = vmatpush1.bf16.msra.mxu0 %v1431
    %3267 = vmatprep.subr.bf16.mxu0 %v1448
    %3268 = vmatpush1.bf16.msra.mxu0 %v1447
    %3269 = vmatprep.subr.bf16.mxu0 %v1464
    %3270 = vmatpush1.bf16.msra.mxu0 %v1463
    %3271 = vmatprep.subr.bf16.mxu0 %v1480
    %3272 = vmatpush1.bf16.msra.mxu0 %v1479
    %3273 = vmatprep.subr.bf16.mxu0 %v1496
    %3274 = vmatpush1.bf16.msra.mxu0 %v1495
    %3275 = vmatprep.subr.bf16.mxu0 %v1512
    %3276 = vmatpush1.bf16.msra.mxu0 %v1511
    %3277 = vmatprep.subr.bf16.mxu0 %v1528
    %3278 = vmatpush1.bf16.msra.mxu0 %v1527
    %3279 = vmatprep.subr.bf16.mxu0 %v1544
    %3280 = vmatpush1.bf16.msra.mxu0 %v1543
    %3281 = vmatprep.subr.bf16.mxu0 %v1560
    %3282 = vmatpush1.bf16.msra.mxu0 %v1559
    %3283 = vmatprep.subr.bf16.mxu0 %v1576
    %3284 = vmatpush1.bf16.msra.mxu0 %v1575
    %3285 = vmatprep.subr.bf16.mxu0 %v1592
    %3286 = vmatpush1.bf16.msra.mxu0 %v1591
    %3287 = vmatprep.subr.bf16.mxu0 %v1608
    %3288 = vmatpush1.bf16.msra.mxu0 %v1607
    %3289 = vmatprep.subr.bf16.mxu0 %v1624
    %3290 = vmatpush1.bf16.msra.mxu0 %v1623
    %3291 = vmatprep.subr.bf16.mxu0 %v1640
    %3292 = vmatpush1.bf16.msra.mxu0 %v1639
    %3293 = vmatprep.subr.bf16.mxu0 %v1656
    %3294 = vmatpush1.bf16.msra.mxu0 %v1655
    %3295 = vmatprep.subr.bf16.mxu0 %v1672
    %3296 = vmatpush1.bf16.msra.mxu0 %v1671
    %3297 = vmatprep.mubr.bf16.mxu0 %v1414
    %3298 = vmatmul.mubr.bf16.gmra.mrb[0].mxu0 %v1413
    %v3299 = vpop.f32.mrb[0].mxu0
    %v3300 = vadd.f32 0.0, %v3299
    %v3301 = vpop.f32.mrb[0].mxu0
    %v3302 = vadd.f32 0.0, %v3301
    %v3303 = vpop.f32.mrb[0].mxu0
    %v3304 = vpop.f32.mrb[0].mxu0
    %3305 = vdwg.mxu0
    %3306 = vmatprep.subr.bf16.mxu0 %v1688
    %3307 = vmatpush1.bf16.msra.mxu0 %v1687
    %3308 = vmatprep.subr.bf16.mxu0 %v1704
    %3309 = vmatpush1.bf16.msra.mxu0 %v1703
    %3310 = vmatprep.subr.bf16.mxu0 %v1720
    %3311 = vmatpush1.bf16.msra.mxu0 %v1719
    %3312 = vmatprep.subr.bf16.mxu0 %v1736
    %3313 = vmatpush1.bf16.msra.mxu0 %v1735
    %3314 = vmatprep.subr.bf16.mxu0 %v1752
    %3315 = vmatpush1.bf16.msra.mxu0 %v1751
    %3316 = vmatprep.subr.bf16.mxu0 %v1768
    %3317 = vmatpush1.bf16.msra.mxu0 %v1767
    %3318 = vmatprep.subr.bf16.mxu0 %v1784
    %3319 = vmatpush1.bf16.msra.mxu0 %v1783
    %3320 = vmatprep.subr.bf16.mxu0 %v1800
    %3321 = vmatpush1.bf16.msra.mxu0 %v1799
    %3322 = vmatprep.subr.bf16.mxu0 %v1816
    %3323 = vmatpush1.bf16.msra.mxu0 %v1815
    %3324 = vmatprep.subr.bf16.mxu0 %v1832
    %3325 = vmatpush1.bf16.msra.mxu0 %v1831
    %3326 = vmatprep.subr.bf16.mxu0 %v1848
    %3327 = vmatpush1.bf16.msra.mxu0 %v1847
    %3328 = vmatprep.subr.bf16.mxu0 %v1864
    %3329 = vmatpush1.bf16.msra.mxu0 %v1863
    %3330 = vmatprep.subr.bf16.mxu0 %v1880
    %3331 = vmatpush1.bf16.msra.mxu0 %v1879
    %3332 = vmatprep.subr.bf16.mxu0 %v1896
    %3333 = vmatpush1.bf16.msra.mxu0 %v1895
    %3334 = vmatprep.subr.bf16.mxu0 %v1912
    %3335 = vmatpush1.bf16.msra.mxu0 %v1911
    %3336 = vmatprep.subr.bf16.mxu0 %v1928
    %3337 = vmatpush1.bf16.msra.mxu0 %v1927
    %3338 = vmatprep.mubr.bf16.mxu0 %v1416
    %3339 = vmatmul.mubr.bf16.gmra.mrb[0].mxu0 %v1415
    %v3340 = vpop.f32.mrb[0].mxu0
    %v3341 = vadd.f32 %v3300, %v3340
    %v3342 = vpop.f32.mrb[0].mxu0
    %v3343 = vadd.f32 %v3302, %v3342
    %v3344 = vpop.f32.mrb[0].mxu0
    %v3345 = vpop.f32.mrb[0].mxu0
    %3346 = vdwg.mxu0
    %3347 = vmatprep.subr.bf16.mxu0 %v1944
    %3348 = vmatpush1.bf16.msra.mxu0 %v1943
    %3349 = vmatprep.subr.bf16.mxu0 %v1960
    %3350 = vmatpush1.bf16.msra.mxu0 %v1959
    %3351 = vmatprep.subr.bf16.mxu0 %v1976
    %3352 = vmatpush1.bf16.msra.mxu0 %v1975
    %3353 = vmatprep.subr.bf16.mxu0 %v1992
    %3354 = vmatpush1.bf16.msra.mxu0 %v1991
    %3355 = vmatprep.subr.bf16.mxu0 %v2008
    %3356 = vmatpush1.bf16.msra.mxu0 %v2007
    %3357 = vmatprep.subr.bf16.mxu0 %v2024
    %3358 = vmatpush1.bf16.msra.mxu0 %v2023
    %3359 = vmatprep.subr.bf16.mxu0 %v2040
    %3360 = vmatpush1.bf16.msra.mxu0 %v2039
    %3361 = vmatprep.subr.bf16.mxu0 %v2056
    %3362 = vmatpush1.bf16.msra.mxu0 %v2055
    %3363 = vmatprep.subr.bf16.mxu0 %v2072
    %3364 = vmatpush1.bf16.msra.mxu0 %v2071
    %3365 = vmatprep.subr.bf16.mxu0 %v2088
    %3366 = vmatpush1.bf16.msra.mxu0 %v2087
    %3367 = vmatprep.subr.bf16.mxu0 %v2104
    %3368 = vmatpush1.bf16.msra.mxu0 %v2103
    %3369 = vmatprep.subr.bf16.mxu0 %v2120
    %3370 = vmatpush1.bf16.msra.mxu0 %v2119
    %3371 = vmatprep.subr.bf16.mxu0 %v2136
    %3372 = vmatpush1.bf16.msra.mxu0 %v2135
    %3373 = vmatprep.subr.bf16.mxu0 %v2152
    %3374 = vmatpush1.bf16.msra.mxu0 %v2151
    %3375 = vmatprep.subr.bf16.mxu0 %v2168
    %3376 = vmatpush1.bf16.msra.mxu0 %v2167
    %3377 = vmatprep.subr.bf16.mxu0 %v2184
    %3378 = vmatpush1.bf16.msra.mxu0 %v2183
    %3379 = vmatprep.mubr.bf16.mxu0 %v1418
    %3380 = vmatmul.mubr.bf16.gmra.mrb[0].mxu0 %v1417
    %v3381 = vpop.f32.mrb[0].mxu0
    %v3382 = vadd.f32 %v3341, %v3381
    %v3383 = vpop.f32.mrb[0].mxu0
    %v3384 = vadd.f32 %v3343, %v3383
    %v3385 = vpop.f32.mrb[0].mxu0
    %v3386 = vpop.f32.mrb[0].mxu0
    %3387 = vdwg.mxu0
    %3388 = vmatprep.subr.bf16.mxu0 %v2200
    %3389 = vmatpush1.bf16.msra.mxu0 %v2199
    %3390 = vmatprep.subr.bf16.mxu0 %v2216
    %3391 = vmatpush1.bf16.msra.mxu0 %v2215
    %3392 = vmatprep.subr.bf16.mxu0 %v2232
    %3393 = vmatpush1.bf16.msra.mxu0 %v2231
    %3394 = vmatprep.subr.bf16.mxu0 %v2248
    %3395 = vmatpush1.bf16.msra.mxu0 %v2247
    %3396 = vmatprep.subr.bf16.mxu0 %v2264
    %3397 = vmatpush1.bf16.msra.mxu0 %v2263
    %3398 = vmatprep.subr.bf16.mxu0 %v2280
    %3399 = vmatpush1.bf16.msra.mxu0 %v2279
    %3400 = vmatprep.subr.bf16.mxu0 %v2296
    %3401 = vmatpush1.bf16.msra.mxu0 %v2295
    %3402 = vmatprep.subr.bf16.mxu0 %v2312
    %3403 = vmatpush1.bf16.msra.mxu0 %v2311
    %3404 = vmatprep.subr.bf16.mxu0 %v2328
    %3405 = vmatpush1.bf16.msra.mxu0 %v2327
    %3406 = vmatprep.subr.bf16.mxu0 %v2344
    %3407 = vmatpush1.bf16.msra.mxu0 %v2343
    %3408 = vmatprep.subr.bf16.mxu0 %v2360
    %3409 = vmatpush1.bf16.msra.mxu0 %v2359
    %3410 = vmatprep.subr.bf16.mxu0 %v2376
    %3411 = vmatpush1.bf16.msra.mxu0 %v2375
    %3412 = vmatprep.subr.bf16.mxu0 %v2392
    %3413 = vmatpush1.bf16.msra.mxu0 %v2391
    %3414 = vmatprep.subr.bf16.mxu0 %v2408
    %3415 = vmatpush1.bf16.msra.mxu0 %v2407
    %3416 = vmatprep.subr.bf16.mxu0 %v2424
    %3417 = vmatpush1.bf16.msra.mxu0 %v2423
    %3418 = vmatprep.subr.bf16.mxu0 %v2440
    %3419 = vmatpush1.bf16.msra.mxu0 %v2439
    %3420 = vmatprep.mubr.bf16.mxu0 %v1420
    %3421 = vmatmul.mubr.bf16.gmra.mrb[0].mxu0 %v1419
    %v3422 = vpop.f32.mrb[0].mxu0
    %v3423 = vadd.f32 %v3382, %v3422
    %v3424 = vpop.f32.mrb[0].mxu0
    %v3425 = vadd.f32 %v3384, %v3424
    %v3426 = vpop.f32.mrb[0].mxu0
    %v3427 = vpop.f32.mrb[0].mxu0
    %3428 = vdwg.mxu0
    %3429 = vmatprep.subr.bf16.mxu0 %v1434
    %3430 = vmatpush1.bf16.msra.mxu0 %v1433
    %3431 = vmatprep.subr.bf16.mxu0 %v1450
    %3432 = vmatpush1.bf16.msra.mxu0 %v1449
    %3433 = vmatprep.subr.bf16.mxu0 %v1466
    %3434 = vmatpush1.bf16.msra.mxu0 %v1465
    %3435 = vmatprep.subr.bf16.mxu0 %v1482
    %3436 = vmatpush1.bf16.msra.mxu0 %v1481
    %3437 = vmatprep.subr.bf16.mxu0 %v1498
    %3438 = vmatpush1.bf16.msra.mxu0 %v1497
    %3439 = vmatprep.subr.bf16.mxu0 %v1514
    %3440 = vmatpush1.bf16.msra.mxu0 %v1513
    %3441 = vmatprep.subr.bf16.mxu0 %v1530
    %3442 = vmatpush1.bf16.msra.mxu0 %v1529
    %3443 = vmatprep.subr.bf16.mxu0 %v1546
    %3444 = vmatpush1.bf16.msra.mxu0 %v1545
    %3445 = vmatprep.subr.bf16.mxu0 %v1562
    %3446 = vmatpush1.bf16.msra.mxu0 %v1561
    %3447 = vmatprep.subr.bf16.mxu0 %v1578
    %3448 = vmatpush1.bf16.msra.mxu0 %v1577
    %3449 = vmatprep.subr.bf16.mxu0 %v1594
    %3450 = vmatpush1.bf16.msra.mxu0 %v1593
    %3451 = vmatprep.subr.bf16.mxu0 %v1610
    %3452 = vmatpush1.bf16.msra.mxu0 %v1609
    %3453 = vmatprep.subr.bf16.mxu0 %v1626
    %3454 = vmatpush1.bf16.msra.mxu0 %v1625
    %3455 = vmatprep.subr.bf16.mxu0 %v1642
    %3456 = vmatpush1.bf16.msra.mxu0 %v1641
    %3457 = vmatprep.subr.bf16.mxu0 %v1658
    %3458 = vmatpush1.bf16.msra.mxu0 %v1657
    %3459 = vmatprep.subr.bf16.mxu0 %v1674
    %3460 = vmatpush1.bf16.msra.mxu0 %v1673
    %3461 = vmatprep.mubr.bf16.mxu0 %v1414
    %3462 = vmatmul.mubr.bf16.gmra.mrb[0].mxu0 %v1413
    %v3463 = vpop.f32.mrb[0].mxu0
    %v3464 = vadd.f32 0.0, %v3463
    %v3465 = vpop.f32.mrb[0].mxu0
    %v3466 = vadd.f32 0.0, %v3465
    %v3467 = vpop.f32.mrb[0].mxu0
    %v3468 = vpop.f32.mrb[0].mxu0
    %3469 = vdwg.mxu0
    %3470 = vmatprep.subr.bf16.mxu0 %v1690
    %3471 = vmatpush1.bf16.msra.mxu0 %v1689
    %3472 = vmatprep.subr.bf16.mxu0 %v1706
    %3473 = vmatpush1.bf16.msra.mxu0 %v1705
    %3474 = vmatprep.subr.bf16.mxu0 %v1722
    %3475 = vmatpush1.bf16.msra.mxu0 %v1721
    %3476 = vmatprep.subr.bf16.mxu0 %v1738
    %3477 = vmatpush1.bf16.msra.mxu0 %v1737
    %3478 = vmatprep.subr.bf16.mxu0 %v1754
    %3479 = vmatpush1.bf16.msra.mxu0 %v1753
    %3480 = vmatprep.subr.bf16.mxu0 %v1770
    %3481 = vmatpush1.bf16.msra.mxu0 %v1769
    %3482 = vmatprep.subr.bf16.mxu0 %v1786
    %3483 = vmatpush1.bf16.msra.mxu0 %v1785
    %3484 = vmatprep.subr.bf16.mxu0 %v1802
    %3485 = vmatpush1.bf16.msra.mxu0 %v1801
    %3486 = vmatprep.subr.bf16.mxu0 %v1818
    %3487 = vmatpush1.bf16.msra.mxu0 %v1817
    %3488 = vmatprep.subr.bf16.mxu0 %v1834
    %3489 = vmatpush1.bf16.msra.mxu0 %v1833
    %3490 = vmatprep.subr.bf16.mxu0 %v1850
    %3491 = vmatpush1.bf16.msra.mxu0 %v1849
    %3492 = vmatprep.subr.bf16.mxu0 %v1866
    %3493 = vmatpush1.bf16.msra.mxu0 %v1865
    %3494 = vmatprep.subr.bf16.mxu0 %v1882
    %3495 = vmatpush1.bf16.msra.mxu0 %v1881
    %3496 = vmatprep.subr.bf16.mxu0 %v1898
    %3497 = vmatpush1.bf16.msra.mxu0 %v1897
    %3498 = vmatprep.subr.bf16.mxu0 %v1914
    %3499 = vmatpush1.bf16.msra.mxu0 %v1913
    %3500 = vmatprep.subr.bf16.mxu0 %v1930
    %3501 = vmatpush1.bf16.msra.mxu0 %v1929
    %3502 = vmatprep.mubr.bf16.mxu0 %v1416
    %3503 = vmatmul.mubr.bf16.gmra.mrb[0].mxu0 %v1415
    %v3504 = vpop.f32.mrb[0].mxu0
    %v3505 = vadd.f32 %v3464, %v3504
    %v3506 = vpop.f32.mrb[0].mxu0
    %v3507 = vadd.f32 %v3466, %v3506
    %v3508 = vpop.f32.mrb[0].mxu0
    %v3509 = vpop.f32.mrb[0].mxu0
    %3510 = vdwg.mxu0
    %3511 = vmatprep.subr.bf16.mxu0 %v1946
    %3512 = vmatpush1.bf16.msra.mxu0 %v1945
    %3513 = vmatprep.subr.bf16.mxu0 %v1962
    %3514 = vmatpush1.bf16.msra.mxu0 %v1961
    %3515 = vmatprep.subr.bf16.mxu0 %v1978
    %3516 = vmatpush1.bf16.msra.mxu0 %v1977
    %3517 = vmatprep.subr.bf16.mxu0 %v1994
    %3518 = vmatpush1.bf16.msra.mxu0 %v1993
    %3519 = vmatprep.subr.bf16.mxu0 %v2010
    %3520 = vmatpush1.bf16.msra.mxu0 %v2009
    %3521 = vmatprep.subr.bf16.mxu0 %v2026
    %3522 = vmatpush1.bf16.msra.mxu0 %v2025
    %3523 = vmatprep.subr.bf16.mxu0 %v2042
    %3524 = vmatpush1.bf16.msra.mxu0 %v2041
    %3525 = vmatprep.subr.bf16.mxu0 %v2058
    %3526 = vmatpush1.bf16.msra.mxu0 %v2057
    %3527 = vmatprep.subr.bf16.mxu0 %v2074
    %3528 = vmatpush1.bf16.msra.mxu0 %v2073
    %3529 = vmatprep.subr.bf16.mxu0 %v2090
    %3530 = vmatpush1.bf16.msra.mxu0 %v2089
    %3531 = vmatprep.subr.bf16.mxu0 %v2106
    %3532 = vmatpush1.bf16.msra.mxu0 %v2105
    %3533 = vmatprep.subr.bf16.mxu0 %v2122
    %3534 = vmatpush1.bf16.msra.mxu0 %v2121
    %3535 = vmatprep.subr.bf16.mxu0 %v2138
    %3536 = vmatpush1.bf16.msra.mxu0 %v2137
    %3537 = vmatprep.subr.bf16.mxu0 %v2154
    %3538 = vmatpush1.bf16.msra.mxu0 %v2153
    %3539 = vmatprep.subr.bf16.mxu0 %v2170
    %3540 = vmatpush1.bf16.msra.mxu0 %v2169
    %3541 = vmatprep.subr.bf16.mxu0 %v2186
    %3542 = vmatpush1.bf16.msra.mxu0 %v2185
    %3543 = vmatprep.mubr.bf16.mxu0 %v1418
    %3544 = vmatmul.mubr.bf16.gmra.mrb[0].mxu0 %v1417
    %v3545 = vpop.f32.mrb[0].mxu0
    %v3546 = vadd.f32 %v3505, %v3545
    %v3547 = vpop.f32.mrb[0].mxu0
    %v3548 = vadd.f32 %v3507, %v3547
    %v3549 = vpop.f32.mrb[0].mxu0
    %v3550 = vpop.f32.mrb[0].mxu0
    %3551 = vdwg.mxu0
    %3552 = vmatprep.subr.bf16.mxu0 %v2202
    %3553 = vmatpush1.bf16.msra.mxu0 %v2201
    %3554 = vmatprep.subr.bf16.mxu0 %v2218
    %3555 = vmatpush1.bf16.msra.mxu0 %v2217
    %3556 = vmatprep.subr.bf16.mxu0 %v2234
    %3557 = vmatpush1.bf16.msra.mxu0 %v2233
    %3558 = vmatprep.subr.bf16.mxu0 %v2250
    %3559 = vmatpush1.bf16.msra.mxu0 %v2249
    %3560 = vmatprep.subr.bf16.mxu0 %v2266
    %3561 = vmatpush1.bf16.msra.mxu0 %v2265
    %3562 = vmatprep.subr.bf16.mxu0 %v2282
    %3563 = vmatpush1.bf16.msra.mxu0 %v2281
    %3564 = vmatprep.subr.bf16.mxu0 %v2298
    %3565 = vmatpush1.bf16.msra.mxu0 %v2297
    %3566 = vmatprep.subr.bf16.mxu0 %v2314
    %3567 = vmatpush1.bf16.msra.mxu0 %v2313
    %3568 = vmatprep.subr.bf16.mxu0 %v2330
    %3569 = vmatpush1.bf16.msra.mxu0 %v2329
    %3570 = vmatprep.subr.bf16.mxu0 %v2346
    %3571 = vmatpush1.bf16.msra.mxu0 %v2345
    %3572 = vmatprep.subr.bf16.mxu0 %v2362
    %3573 = vmatpush1.bf16.msra.mxu0 %v2361
    %3574 = vmatprep.subr.bf16.mxu0 %v2378
    %3575 = vmatpush1.bf16.msra.mxu0 %v2377
    %3576 = vmatprep.subr.bf16.mxu0 %v2394
    %3577 = vmatpush1.bf16.msra.mxu0 %v2393
    %3578 = vmatprep.subr.bf16.mxu0 %v2410
    %3579 = vmatpush1.bf16.msra.mxu0 %v2409
    %3580 = vmatprep.subr.bf16.mxu0 %v2426
    %3581 = vmatpush1.bf16.msra.mxu0 %v2425
    %3582 = vmatprep.subr.bf16.mxu0 %v2442
    %3583 = vmatpush1.bf16.msra.mxu0 %v2441
    %3584 = vmatprep.mubr.bf16.mxu0 %v1420
    %3585 = vmatmul.mubr.bf16.gmra.mrb[0].mxu0 %v1419
    %v3586 = vpop.f32.mrb[0].mxu0
    %v3587 = vadd.f32 %v3546, %v3586
    %v3588 = vpop.f32.mrb[0].mxu0
    %v3589 = vadd.f32 %v3548, %v3588
    %v3590 = vpop.f32.mrb[0].mxu0
    %v3591 = vpop.f32.mrb[0].mxu0
    %3592 = vdwg.mxu0
    %3593 = vmatprep.subr.bf16.mxu0 %v1436
    %3594 = vmatpush1.bf16.msra.mxu0 %v1435
    %3595 = vmatprep.subr.bf16.mxu0 %v1452
    %3596 = vmatpush1.bf16.msra.mxu0 %v1451
    %3597 = vmatprep.subr.bf16.mxu0 %v1468
    %3598 = vmatpush1.bf16.msra.mxu0 %v1467
    %3599 = vmatprep.subr.bf16.mxu0 %v1484
    %3600 = vmatpush1.bf16.msra.mxu0 %v1483
    %3601 = vmatprep.subr.bf16.mxu0 %v1500
    %3602 = vmatpush1.bf16.msra.mxu0 %v1499
    %3603 = vmatprep.subr.bf16.mxu0 %v1516
    %3604 = vmatpush1.bf16.msra.mxu0 %v1515
    %3605 = vmatprep.subr.bf16.mxu0 %v1532
    %3606 = vmatpush1.bf16.msra.mxu0 %v1531
    %3607 = vmatprep.subr.bf16.mxu0 %v1548
    %3608 = vmatpush1.bf16.msra.mxu0 %v1547
    %3609 = vmatprep.subr.bf16.mxu0 %v1564
    %3610 = vmatpush1.bf16.msra.mxu0 %v1563
    %3611 = vmatprep.subr.bf16.mxu0 %v1580
    %3612 = vmatpush1.bf16.msra.mxu0 %v1579
    %3613 = vmatprep.subr.bf16.mxu0 %v1596
    %3614 = vmatpush1.bf16.msra.mxu0 %v1595
    %3615 = vmatprep.subr.bf16.mxu0 %v1612
    %3616 = vmatpush1.bf16.msra.mxu0 %v1611
    %3617 = vmatprep.subr.bf16.mxu0 %v1628
    %3618 = vmatpush1.bf16.msra.mxu0 %v1627
    %3619 = vmatprep.subr.bf16.mxu0 %v1644
    %3620 = vmatpush1.bf16.msra.mxu0 %v1643
    %3621 = vmatprep.subr.bf16.mxu0 %v1660
    %3622 = vmatpush1.bf16.msra.mxu0 %v1659
    %3623 = vmatprep.subr.bf16.mxu0 %v1676
    %3624 = vmatpush1.bf16.msra.mxu0 %v1675
    %3625 = vmatprep.mubr.bf16.mxu0 %v1414
    %3626 = vmatmul.mubr.bf16.gmra.mrb[0].mxu0 %v1413
    %v3627 = vpop.f32.mrb[0].mxu0
    %v3628 = vadd.f32 0.0, %v3627
    %v3629 = vpop.f32.mrb[0].mxu0
    %v3630 = vadd.f32 0.0, %v3629
    %v3631 = vpop.f32.mrb[0].mxu0
    %v3632 = vpop.f32.mrb[0].mxu0
    %3633 = vdwg.mxu0
    %3634 = vmatprep.subr.bf16.mxu0 %v1692
    %3635 = vmatpush1.bf16.msra.mxu0 %v1691
    %3636 = vmatprep.subr.bf16.mxu0 %v1708
    %3637 = vmatpush1.bf16.msra.mxu0 %v1707
    %3638 = vmatprep.subr.bf16.mxu0 %v1724
    %3639 = vmatpush1.bf16.msra.mxu0 %v1723
    %3640 = vmatprep.subr.bf16.mxu0 %v1740
    %3641 = vmatpush1.bf16.msra.mxu0 %v1739
    %3642 = vmatprep.subr.bf16.mxu0 %v1756
    %3643 = vmatpush1.bf16.msra.mxu0 %v1755
    %3644 = vmatprep.subr.bf16.mxu0 %v1772
    %3645 = vmatpush1.bf16.msra.mxu0 %v1771
    %3646 = vmatprep.subr.bf16.mxu0 %v1788
    %3647 = vmatpush1.bf16.msra.mxu0 %v1787
    %3648 = vmatprep.subr.bf16.mxu0 %v1804
    %3649 = vmatpush1.bf16.msra.mxu0 %v1803
    %3650 = vmatprep.subr.bf16.mxu0 %v1820
    %3651 = vmatpush1.bf16.msra.mxu0 %v1819
    %3652 = vmatprep.subr.bf16.mxu0 %v1836
    %3653 = vmatpush1.bf16.msra.mxu0 %v1835
    %3654 = vmatprep.subr.bf16.mxu0 %v1852
    %3655 = vmatpush1.bf16.msra.mxu0 %v1851
    %3656 = vmatprep.subr.bf16.mxu0 %v1868
    %3657 = vmatpush1.bf16.msra.mxu0 %v1867
    %3658 = vmatprep.subr.bf16.mxu0 %v1884
    %3659 = vmatpush1.bf16.msra.mxu0 %v1883
    %3660 = vmatprep.subr.bf16.mxu0 %v1900
    %3661 = vmatpush1.bf16.msra.mxu0 %v1899
    %3662 = vmatprep.subr.bf16.mxu0 %v1916
    %3663 = vmatpush1.bf16.msra.mxu0 %v1915
    %3664 = vmatprep.subr.bf16.mxu0 %v1932
    %3665 = vmatpush1.bf16.msra.mxu0 %v1931
    %3666 = vmatprep.mubr.bf16.mxu0 %v1416
    %3667 = vmatmul.mubr.bf16.gmra.mrb[0].mxu0 %v1415
    %v3668 = vpop.f32.mrb[0].mxu0
    %v3669 = vadd.f32 %v3628, %v3668
    %v3670 = vpop.f32.mrb[0].mxu0
    %v3671 = vadd.f32 %v3630, %v3670
    %v3672 = vpop.f32.mrb[0].mxu0
    %v3673 = vpop.f32.mrb[0].mxu0
    %3674 = vdwg.mxu0
    %3675 = vmatprep.subr.bf16.mxu0 %v1948
    %3676 = vmatpush1.bf16.msra.mxu0 %v1947
    %3677 = vmatprep.subr.bf16.mxu0 %v1964
    %3678 = vmatpush1.bf16.msra.mxu0 %v1963
    %3679 = vmatprep.subr.bf16.mxu0 %v1980
    %3680 = vmatpush1.bf16.msra.mxu0 %v1979
    %3681 = vmatprep.subr.bf16.mxu0 %v1996
    %3682 = vmatpush1.bf16.msra.mxu0 %v1995
    %3683 = vmatprep.subr.bf16.mxu0 %v2012
    %3684 = vmatpush1.bf16.msra.mxu0 %v2011
    %3685 = vmatprep.subr.bf16.mxu0 %v2028
    %3686 = vmatpush1.bf16.msra.mxu0 %v2027
    %3687 = vmatprep.subr.bf16.mxu0 %v2044
    %3688 = vmatpush1.bf16.msra.mxu0 %v2043
    %3689 = vmatprep.subr.bf16.mxu0 %v2060
    %3690 = vmatpush1.bf16.msra.mxu0 %v2059
    %3691 = vmatprep.subr.bf16.mxu0 %v2076
    %3692 = vmatpush1.bf16.msra.mxu0 %v2075
    %3693 = vmatprep.subr.bf16.mxu0 %v2092
    %3694 = vmatpush1.bf16.msra.mxu0 %v2091
    %3695 = vmatprep.subr.bf16.mxu0 %v2108
    %3696 = vmatpush1.bf16.msra.mxu0 %v2107
    %3697 = vmatprep.subr.bf16.mxu0 %v2124
    %3698 = vmatpush1.bf16.msra.mxu0 %v2123
    %3699 = vmatprep.subr.bf16.mxu0 %v2140
    %3700 = vmatpush1.bf16.msra.mxu0 %v2139
    %3701 = vmatprep.subr.bf16.mxu0 %v2156
    %3702 = vmatpush1.bf16.msra.mxu0 %v2155
    %3703 = vmatprep.subr.bf16.mxu0 %v2172
    %3704 = vmatpush1.bf16.msra.mxu0 %v2171
    %3705 = vmatprep.subr.bf16.mxu0 %v2188
    %3706 = vmatpush1.bf16.msra.mxu0 %v2187
    %3707 = vmatprep.mubr.bf16.mxu0 %v1418
    %3708 = vmatmul.mubr.bf16.gmra.mrb[0].mxu0 %v1417
    %v3709 = vpop.f32.mrb[0].mxu0
    %v3710 = vadd.f32 %v3669, %v3709
    %v3711 = vpop.f32.mrb[0].mxu0
    %v3712 = vadd.f32 %v3671, %v3711
    %v3713 = vpop.f32.mrb[0].mxu0
    %v3714 = vpop.f32.mrb[0].mxu0
    %3715 = vdwg.mxu0
    %3716 = vmatprep.subr.bf16.mxu0 %v2204
    %3717 = vmatpush1.bf16.msra.mxu0 %v2203
    %3718 = vmatprep.subr.bf16.mxu0 %v2220
    %3719 = vmatpush1.bf16.msra.mxu0 %v2219
    %3720 = vmatprep.subr.bf16.mxu0 %v2236
    %3721 = vmatpush1.bf16.msra.mxu0 %v2235
    %3722 = vmatprep.subr.bf16.mxu0 %v2252
    %3723 = vmatpush1.bf16.msra.mxu0 %v2251
    %3724 = vmatprep.subr.bf16.mxu0 %v2268
    %3725 = vmatpush1.bf16.msra.mxu0 %v2267
    %3726 = vmatprep.subr.bf16.mxu0 %v2284
    %3727 = vmatpush1.bf16.msra.mxu0 %v2283
    %3728 = vmatprep.subr.bf16.mxu0 %v2300
    %3729 = vmatpush1.bf16.msra.mxu0 %v2299
    %3730 = vmatprep.subr.bf16.mxu0 %v2316
    %3731 = vmatpush1.bf16.msra.mxu0 %v2315
    %3732 = vmatprep.subr.bf16.mxu0 %v2332
    %3733 = vmatpush1.bf16.msra.mxu0 %v2331
    %3734 = vmatprep.subr.bf16.mxu0 %v2348
    %3735 = vmatpush1.bf16.msra.mxu0 %v2347
    %3736 = vmatprep.subr.bf16.mxu0 %v2364
    %3737 = vmatpush1.bf16.msra.mxu0 %v2363
    %3738 = vmatprep.subr.bf16.mxu0 %v2380
    %3739 = vmatpush1.bf16.msra.mxu0 %v2379
    %3740 = vmatprep.subr.bf16.mxu0 %v2396
    %3741 = vmatpush1.bf16.msra.mxu0 %v2395
    %3742 = vmatprep.subr.bf16.mxu0 %v2412
    %3743 = vmatpush1.bf16.msra.mxu0 %v2411
    %3744 = vmatprep.subr.bf16.mxu0 %v2428
    %3745 = vmatpush1.bf16.msra.mxu0 %v2427
    %3746 = vmatprep.subr.bf16.mxu0 %v2444
    %3747 = vmatpush1.bf16.msra.mxu0 %v2443
    %3748 = vmatprep.mubr.bf16.mxu0 %v1420
    %3749 = vmatmul.mubr.bf16.gmra.mrb[0].mxu0 %v1419
    %v3750 = vpop.f32.mrb[0].mxu0
    %v3751 = vadd.f32 %v3710, %v3750
    %v3752 = vpop.f32.mrb[0].mxu0
    %v3753 = vadd.f32 %v3712, %v3752
    %v3754 = vpop.f32.mrb[0].mxu0
    %v3755 = vpop.f32.mrb[0].mxu0
    %3756 = vdwg.mxu0
    %v3757 = vrot.slane %v2603, 4
    %v3758 = vadd.f32 %v2603, %v3757
    %v3759 = vrot.slane %v3758, 2
    %v3760 = vadd.f32 %v3758, %v3759
    %v3761 = vrot.slane %v3760, 1
    %v3762 = vadd.f32 %v3760, %v3761
    %v3763 = vrot.slane %v2605, 4
    %v3764 = vadd.f32 %v2605, %v3763
    %v3765 = vrot.slane %v3764, 2
    %v3766 = vadd.f32 %v3764, %v3765
    %v3767 = vrot.slane %v3766, 1
    %v3768 = vadd.f32 %v3766, %v3767
    %v3769 = vrot.slane %v2767, 4
    %v3770 = vadd.f32 %v2767, %v3769
    %v3771 = vrot.slane %v3770, 2
    %v3772 = vadd.f32 %v3770, %v3771
    %v3773 = vrot.slane %v3772, 1
    %v3774 = vadd.f32 %v3772, %v3773
    %v3775 = vrot.slane %v2769, 4
    %v3776 = vadd.f32 %v2769, %v3775
    %v3777 = vrot.slane %v3776, 2
    %v3778 = vadd.f32 %v3776, %v3777
    %v3779 = vrot.slane %v3778, 1
    %v3780 = vadd.f32 %v3778, %v3779
    %v3781 = vrot.slane %v2931, 4
    %v3782 = vadd.f32 %v2931, %v3781
    %v3783 = vrot.slane %v3782, 2
    %v3784 = vadd.f32 %v3782, %v3783
    %v3785 = vrot.slane %v3784, 1
    %v3786 = vadd.f32 %v3784, %v3785
    %v3787 = vrot.slane %v2933, 4
    %v3788 = vadd.f32 %v2933, %v3787
    %v3789 = vrot.slane %v3788, 2
    %v3790 = vadd.f32 %v3788, %v3789
    %v3791 = vrot.slane %v3790, 1
    %v3792 = vadd.f32 %v3790, %v3791
    %v3793 = vrot.slane %v3095, 4
    %v3794 = vadd.f32 %v3095, %v3793
    %v3795 = vrot.slane %v3794, 2
    %v3796 = vadd.f32 %v3794, %v3795
    %v3797 = vrot.slane %v3796, 1
    %v3798 = vadd.f32 %v3796, %v3797
    %v3799 = vrot.slane %v3097, 4
    %v3800 = vadd.f32 %v3097, %v3799
    %v3801 = vrot.slane %v3800, 2
    %v3802 = vadd.f32 %v3800, %v3801
    %v3803 = vrot.slane %v3802, 1
    %v3804 = vadd.f32 %v3802, %v3803
    %v3805 = vrot.slane %v3259, 4
    %v3806 = vadd.f32 %v3259, %v3805
    %v3807 = vrot.slane %v3806, 2
    %v3808 = vadd.f32 %v3806, %v3807
    %v3809 = vrot.slane %v3808, 1
    %v3810 = vadd.f32 %v3808, %v3809
    %v3811 = vrot.slane %v3261, 4
    %v3812 = vadd.f32 %v3261, %v3811
    %v3813 = vrot.slane %v3812, 2
    %v3814 = vadd.f32 %v3812, %v3813
    %v3815 = vrot.slane %v3814, 1
    %v3816 = vadd.f32 %v3814, %v3815
    %v3817 = vrot.slane %v3423, 4
    %v3818 = vadd.f32 %v3423, %v3817
    %v3819 = vrot.slane %v3818, 2
    %v3820 = vadd.f32 %v3818, %v3819
    %v3821 = vrot.slane %v3820, 1
    %v3822 = vadd.f32 %v3820, %v3821
    %v3823 = vrot.slane %v3425, 4
    %v3824 = vadd.f32 %v3425, %v3823
    %v3825 = vrot.slane %v3824, 2
    %v3826 = vadd.f32 %v3824, %v3825
    %v3827 = vrot.slane %v3826, 1
    %v3828 = vadd.f32 %v3826, %v3827
    %v3829 = vrot.slane %v3587, 4
    %v3830 = vadd.f32 %v3587, %v3829
    %v3831 = vrot.slane %v3830, 2
    %v3832 = vadd.f32 %v3830, %v3831
    %v3833 = vrot.slane %v3832, 1
    %v3834 = vadd.f32 %v3832, %v3833
    %v3835 = vrot.slane %v3589, 4
    %v3836 = vadd.f32 %v3589, %v3835
    %v3837 = vrot.slane %v3836, 2
    %v3838 = vadd.f32 %v3836, %v3837
    %v3839 = vrot.slane %v3838, 1
    %v3840 = vadd.f32 %v3838, %v3839
    %v3841 = vrot.slane %v3751, 4
    %v3842 = vadd.f32 %v3751, %v3841
    %v3843 = vrot.slane %v3842, 2
    %v3844 = vadd.f32 %v3842, %v3843
    %v3845 = vrot.slane %v3844, 1
    %v3846 = vadd.f32 %v3844, %v3845
    %v3847 = vrot.slane %v3753, 4
    %v3848 = vadd.f32 %v3753, %v3847
    %v3849 = vrot.slane %v3848, 2
    %v3850 = vadd.f32 %v3848, %v3849
    %v3851 = vrot.slane %v3850, 1
    %v3852 = vadd.f32 %v3850, %v3851
    %v3853 = vmul.f32 %v3762, %v446
    %v3854 = vmul.f32 %v3768, %v446
    %v3855 = vmul.f32 %v3774, %v446
    %v3856 = vmul.f32 %v3780, %v446
    %v3857 = vmul.f32 %v3786, %v446
    %v3858 = vmul.f32 %v3792, %v446
    %v3859 = vmul.f32 %v3798, %v446
    %v3860 = vmul.f32 %v3804, %v446
    %v3861 = vmul.f32 %v3810, %v446
    %v3862 = vmul.f32 %v3816, %v446
    %v3863 = vmul.f32 %v3822, %v446
    %v3864 = vmul.f32 %v3828, %v446
    %v3865 = vmul.f32 %v3834, %v446
    %v3866 = vmul.f32 %v3840, %v446
    %v3867 = vmul.f32 %v3846, %v446
    %v3868 = vmul.f32 %v3852, %v446
    %v3869 = vsub.f32 %v2603, %v3853
    %v3870 = vsub.f32 %v2605, %v3854
    %v3871 = vsub.f32 %v2767, %v3855
    %v3872 = vsub.f32 %v2769, %v3856
    %v3873 = vsub.f32 %v2931, %v3857
    %v3874 = vsub.f32 %v2933, %v3858
    %v3875 = vsub.f32 %v3095, %v3859
    %v3876 = vsub.f32 %v3097, %v3860
    %v3877 = vsub.f32 %v3259, %v3861
    %v3878 = vsub.f32 %v3261, %v3862
    %v3879 = vsub.f32 %v3423, %v3863
    %v3880 = vsub.f32 %v3425, %v3864
    %v3881 = vsub.f32 %v3587, %v3865
    %v3882 = vsub.f32 %v3589, %v3866
    %v3883 = vsub.f32 %v3751, %v3867
    %v3884 = vsub.f32 %v3753, %v3868
    %v3885 = vmul.f32 %v3869, %v3869
    %v3886 = vmul.f32 %v3870, %v3870
    %v3887 = vmul.f32 %v3871, %v3871
    %v3888 = vmul.f32 %v3872, %v3872
    %v3889 = vmul.f32 %v3873, %v3873
    %v3890 = vmul.f32 %v3874, %v3874
    %v3891 = vmul.f32 %v3875, %v3875
    %v3892 = vmul.f32 %v3876, %v3876
    %v3893 = vmul.f32 %v3877, %v3877
    %v3894 = vmul.f32 %v3878, %v3878
    %v3895 = vmul.f32 %v3879, %v3879
    %v3896 = vmul.f32 %v3880, %v3880
    %v3897 = vmul.f32 %v3881, %v3881
    %v3898 = vmul.f32 %v3882, %v3882
    %v3899 = vmul.f32 %v3883, %v3883
    %v3900 = vmul.f32 %v3884, %v3884
    %v3901 = vrot.slane %v3885, 4
    %v3902 = vadd.f32 %v3885, %v3901
    %v3903 = vrot.slane %v3902, 2
    %v3904 = vadd.f32 %v3902, %v3903
    %v3905 = vrot.slane %v3904, 1
    %v3906 = vadd.f32 %v3904, %v3905
    %v3907 = vrot.slane %v3886, 4
    %v3908 = vadd.f32 %v3886, %v3907
    %v3909 = vrot.slane %v3908, 2
    %v3910 = vadd.f32 %v3908, %v3909
    %v3911 = vrot.slane %v3910, 1
    %v3912 = vadd.f32 %v3910, %v3911
    %v3913 = vrot.slane %v3887, 4
    %v3914 = vadd.f32 %v3887, %v3913
    %v3915 = vrot.slane %v3914, 2
    %v3916 = vadd.f32 %v3914, %v3915
    %v3917 = vrot.slane %v3916, 1
    %v3918 = vadd.f32 %v3916, %v3917
    %v3919 = vrot.slane %v3888, 4
    %v3920 = vadd.f32 %v3888, %v3919
    %v3921 = vrot.slane %v3920, 2
    %v3922 = vadd.f32 %v3920, %v3921
    %v3923 = vrot.slane %v3922, 1
    %v3924 = vadd.f32 %v3922, %v3923
    %v3925 = vrot.slane %v3889, 4
    %v3926 = vadd.f32 %v3889, %v3925
    %v3927 = vrot.slane %v3926, 2
    %v3928 = vadd.f32 %v3926, %v3927
    %v3929 = vrot.slane %v3928, 1
    %v3930 = vadd.f32 %v3928, %v3929
    %v3931 = vrot.slane %v3890, 4
    %v3932 = vadd.f32 %v3890, %v3931
    %v3933 = vrot.slane %v3932, 2
    %v3934 = vadd.f32 %v3932, %v3933
    %v3935 = vrot.slane %v3934, 1
    %v3936 = vadd.f32 %v3934, %v3935
    %v3937 = vrot.slane %v3891, 4
    %v3938 = vadd.f32 %v3891, %v3937
    %v3939 = vrot.slane %v3938, 2
    %v3940 = vadd.f32 %v3938, %v3939
    %v3941 = vrot.slane %v3940, 1
    %v3942 = vadd.f32 %v3940, %v3941
    %v3943 = vrot.slane %v3892, 4
    %v3944 = vadd.f32 %v3892, %v3943
    %v3945 = vrot.slane %v3944, 2
    %v3946 = vadd.f32 %v3944, %v3945
    %v3947 = vrot.slane %v3946, 1
    %v3948 = vadd.f32 %v3946, %v3947
    %v3949 = vrot.slane %v3893, 4
    %v3950 = vadd.f32 %v3893, %v3949
    %v3951 = vrot.slane %v3950, 2
    %v3952 = vadd.f32 %v3950, %v3951
    %v3953 = vrot.slane %v3952, 1
    %v3954 = vadd.f32 %v3952, %v3953
    %v3955 = vrot.slane %v3894, 4
    %v3956 = vadd.f32 %v3894, %v3955
    %v3957 = vrot.slane %v3956, 2
    %v3958 = vadd.f32 %v3956, %v3957
    %v3959 = vrot.slane %v3958, 1
    %v3960 = vadd.f32 %v3958, %v3959
    %v3961 = vrot.slane %v3895, 4
    %v3962 = vadd.f32 %v3895, %v3961
    %v3963 = vrot.slane %v3962, 2
    %v3964 = vadd.f32 %v3962, %v3963
    %v3965 = vrot.slane %v3964, 1
    %v3966 = vadd.f32 %v3964, %v3965
    %v3967 = vrot.slane %v3896, 4
    %v3968 = vadd.f32 %v3896, %v3967
    %v3969 = vrot.slane %v3968, 2
    %v3970 = vadd.f32 %v3968, %v3969
    %v3971 = vrot.slane %v3970, 1
    %v3972 = vadd.f32 %v3970, %v3971
    %v3973 = vrot.slane %v3897, 4
    %v3974 = vadd.f32 %v3897, %v3973
    %v3975 = vrot.slane %v3974, 2
    %v3976 = vadd.f32 %v3974, %v3975
    %v3977 = vrot.slane %v3976, 1
    %v3978 = vadd.f32 %v3976, %v3977
    %v3979 = vrot.slane %v3898, 4
    %v3980 = vadd.f32 %v3898, %v3979
    %v3981 = vrot.slane %v3980, 2
    %v3982 = vadd.f32 %v3980, %v3981
    %v3983 = vrot.slane %v3982, 1
    %v3984 = vadd.f32 %v3982, %v3983
    %v3985 = vrot.slane %v3899, 4
    %v3986 = vadd.f32 %v3899, %v3985
    %v3987 = vrot.slane %v3986, 2
    %v3988 = vadd.f32 %v3986, %v3987
    %v3989 = vrot.slane %v3988, 1
    %v3990 = vadd.f32 %v3988, %v3989
    %v3991 = vrot.slane %v3900, 4
    %v3992 = vadd.f32 %v3900, %v3991
    %v3993 = vrot.slane %v3992, 2
    %v3994 = vadd.f32 %v3992, %v3993
    %v3995 = vrot.slane %v3994, 1
    %v3996 = vadd.f32 %v3994, %v3995
    %v3997 = vmul.f32 %v3906, %v446
    %v3998 = vmul.f32 %v3912, %v446
    %v3999 = vmul.f32 %v3918, %v446
    %v4000 = vmul.f32 %v3924, %v446
    %v4001 = vmul.f32 %v3930, %v446
    %v4002 = vmul.f32 %v3936, %v446
    %v4003 = vmul.f32 %v3942, %v446
    %v4004 = vmul.f32 %v3948, %v446
    %v4005 = vmul.f32 %v3954, %v446
    %v4006 = vmul.f32 %v3960, %v446
    %v4007 = vmul.f32 %v3966, %v446
    %v4008 = vmul.f32 %v3972, %v446
    %v4009 = vmul.f32 %v3978, %v446
    %v4010 = vmul.f32 %v3984, %v446
    %v4011 = vmul.f32 %v3990, %v446
    %v4012 = vmul.f32 %v3996, %v446
    %v4013 = vld [vmem:[#allocation15] ss:$2 sm:$0xff]
    %s4014 = scalar_lea.vmem [#allocation15], 16
    %v4015 = vld [vmem:[%s4014] ss:$2 sm:$0xff]
    %v4018 = vlaneseq
    %v4019 = vshrl.u32 %v4018, 7
    %v4020 = vsub.s32 0, %v4019
    %v4021 = vrot.slane %v4013, %v4020
    %v4022 = vlaneseq
    %v4023 = vshrl.u32 %v4022, 7
    %v4024 = vsub.s32 1, %v4023
    %v4025 = vrot.slane %v4013, %v4024
    %v4026 = vlaneseq
    %v4027 = vshrl.u32 %v4026, 7
    %v4028 = vsub.s32 2, %v4027
    %v4029 = vrot.slane %v4013, %v4028
    %v4030 = vlaneseq
    %v4031 = vshrl.u32 %v4030, 7
    %v4032 = vsub.s32 3, %v4031
    %v4033 = vrot.slane %v4013, %v4032
    %v4034 = vlaneseq
    %v4035 = vshrl.u32 %v4034, 7
    %v4036 = vsub.s32 4, %v4035
    %v4037 = vrot.slane %v4013, %v4036
    %v4038 = vlaneseq
    %v4039 = vshrl.u32 %v4038, 7
    %v4040 = vsub.s32 5, %v4039
    %v4041 = vrot.slane %v4013, %v4040
    %v4042 = vlaneseq
    %v4043 = vshrl.u32 %v4042, 7
    %v4044 = vsub.s32 6, %v4043
    %v4045 = vrot.slane %v4013, %v4044
    %v4046 = vlaneseq
    %v4047 = vshrl.u32 %v4046, 7
    %v4048 = vsub.s32 7, %v4047
    %v4049 = vrot.slane %v4013, %v4048
    %v4050 = vlaneseq
    %v4051 = vshrl.u32 %v4050, 7
    %v4052 = vsub.s32 0, %v4051
    %v4053 = vrot.slane %v4015, %v4052
    %v4054 = vlaneseq
    %v4055 = vshrl.u32 %v4054, 7
    %v4056 = vsub.s32 1, %v4055
    %v4057 = vrot.slane %v4015, %v4056
    %v4058 = vlaneseq
    %v4059 = vshrl.u32 %v4058, 7
    %v4060 = vsub.s32 2, %v4059
    %v4061 = vrot.slane %v4015, %v4060
    %v4062 = vlaneseq
    %v4063 = vshrl.u32 %v4062, 7
    %v4064 = vsub.s32 3, %v4063
    %v4065 = vrot.slane %v4015, %v4064
    %v4066 = vlaneseq
    %v4067 = vshrl.u32 %v4066, 7
    %v4068 = vsub.s32 4, %v4067
    %v4069 = vrot.slane %v4015, %v4068
    %v4070 = vlaneseq
    %v4071 = vshrl.u32 %v4070, 7
    %v4072 = vsub.s32 5, %v4071
    %v4073 = vrot.slane %v4015, %v4072
    %v4074 = vlaneseq
    %v4075 = vshrl.u32 %v4074, 7
    %v4076 = vsub.s32 6, %v4075
    %v4077 = vrot.slane %v4015, %v4076
    %v4078 = vlaneseq
    %v4079 = vshrl.u32 %v4078, 7
    %v4080 = vsub.s32 7, %v4079
    %v4081 = vrot.slane %v4015, %v4080
    %v4098 = vmul.f32 %v4021, %v3869
    %v4099 = vmul.f32 %v4025, %v3870
    %v4100 = vmul.f32 %v4029, %v3871
    %v4101 = vmul.f32 %v4033, %v3872
    %v4102 = vmul.f32 %v4037, %v3873
    %v4103 = vmul.f32 %v4041, %v3874
    %v4104 = vmul.f32 %v4045, %v3875
    %v4105 = vmul.f32 %v4049, %v3876
    %v4106 = vmul.f32 %v4053, %v3877
    %v4107 = vmul.f32 %v4057, %v3878
    %v4108 = vmul.f32 %v4061, %v3879
    %v4109 = vmul.f32 %v4065, %v3880
    %v4110 = vmul.f32 %v4069, %v3881
    %v4111 = vmul.f32 %v4073, %v3882
    %v4112 = vmul.f32 %v4077, %v3883
    %v4113 = vmul.f32 %v4081, %v3884
    %v4114 = vadd.f32 %v3997, 1e-05
    %v4115 = vadd.f32 %v3998, 1e-05
    %v4116 = vadd.f32 %v3999, 1e-05
    %v4117 = vadd.f32 %v4000, 1e-05
    %v4118 = vadd.f32 %v4001, 1e-05
    %v4119 = vadd.f32 %v4002, 1e-05
    %v4120 = vadd.f32 %v4003, 1e-05
    %v4121 = vadd.f32 %v4004, 1e-05
    %v4122 = vadd.f32 %v4005, 1e-05
    %v4123 = vadd.f32 %v4006, 1e-05
    %v4124 = vadd.f32 %v4007, 1e-05
    %v4125 = vadd.f32 %v4008, 1e-05
    %v4126 = vadd.f32 %v4009, 1e-05
    %v4127 = vadd.f32 %v4010, 1e-05
    %v4128 = vadd.f32 %v4011, 1e-05
    %v4129 = vadd.f32 %v4012, 1e-05
    %v4130 = vrsqrt.pop %v4114
    %v4131 = vrsqrt.pop %v4115
    %v4132 = vrsqrt.pop %v4116
    %v4133 = vrsqrt.pop %v4117
    %v4134 = vrsqrt.pop %v4118
    %v4135 = vrsqrt.pop %v4119
    %v4136 = vrsqrt.pop %v4120
    %v4137 = vrsqrt.pop %v4121
    %v4138 = vrsqrt.pop %v4122
    %v4139 = vrsqrt.pop %v4123
    %v4140 = vrsqrt.pop %v4124
    %v4141 = vrsqrt.pop %v4125
    %v4142 = vrsqrt.pop %v4126
    %v4143 = vrsqrt.pop %v4127
    %v4144 = vrsqrt.pop %v4128
    %v4145 = vrsqrt.pop %v4129
    %v4146 = vmul.f32 %v4098, %v4130
    %v4147 = vmul.f32 %v4099, %v4131
    %v4148 = vmul.f32 %v4100, %v4132
    %v4149 = vmul.f32 %v4101, %v4133
    %v4150 = vmul.f32 %v4102, %v4134
    %v4151 = vmul.f32 %v4103, %v4135
    %v4152 = vmul.f32 %v4104, %v4136
    %v4153 = vmul.f32 %v4105, %v4137
    %v4154 = vmul.f32 %v4106, %v4138
    %v4155 = vmul.f32 %v4107, %v4139
    %v4156 = vmul.f32 %v4108, %v4140
    %v4157 = vmul.f32 %v4109, %v4141
    %v4158 = vmul.f32 %v4110, %v4142
    %v4159 = vmul.f32 %v4111, %v4143
    %v4160 = vmul.f32 %v4112, %v4144
    %v4161 = vmul.f32 %v4113, %v4145
    %s4162 = scalar_lea.vmem [#allocation15], 1
    %v4163 = vld [vmem:[%s4162] ss:$2 sm:$0xff]
    %s4164 = scalar_lea.vmem [#allocation15], 17
    %v4165 = vld [vmem:[%s4164] ss:$2 sm:$0xff]
    %v4168 = vlaneseq
    %v4169 = vshrl.u32 %v4168, 7
    %v4170 = vsub.s32 0, %v4169
    %v4171 = vrot.slane %v4163, %v4170
    %v4172 = vlaneseq
    %v4173 = vshrl.u32 %v4172, 7
    %v4174 = vsub.s32 1, %v4173
    %v4175 = vrot.slane %v4163, %v4174
    %v4176 = vlaneseq
    %v4177 = vshrl.u32 %v4176, 7
    %v4178 = vsub.s32 2, %v4177
    %v4179 = vrot.slane %v4163, %v4178
    %v4180 = vlaneseq
    %v4181 = vshrl.u32 %v4180, 7
    %v4182 = vsub.s32 3, %v4181
    %v4183 = vrot.slane %v4163, %v4182
    %v4184 = vlaneseq
    %v4185 = vshrl.u32 %v4184, 7
    %v4186 = vsub.s32 4, %v4185
    %v4187 = vrot.slane %v4163, %v4186
    %v4188 = vlaneseq
    %v4189 = vshrl.u32 %v4188, 7
    %v4190 = vsub.s32 5, %v4189
    %v4191 = vrot.slane %v4163, %v4190
    %v4192 = vlaneseq
    %v4193 = vshrl.u32 %v4192, 7
    %v4194 = vsub.s32 6, %v4193
    %v4195 = vrot.slane %v4163, %v4194
    %v4196 = vlaneseq
    %v4197 = vshrl.u32 %v4196, 7
    %v4198 = vsub.s32 7, %v4197
    %v4199 = vrot.slane %v4163, %v4198
    %v4200 = vlaneseq
    %v4201 = vshrl.u32 %v4200, 7
    %v4202 = vsub.s32 0, %v4201
    %v4203 = vrot.slane %v4165, %v4202
    %v4204 = vlaneseq
    %v4205 = vshrl.u32 %v4204, 7
    %v4206 = vsub.s32 1, %v4205
    %v4207 = vrot.slane %v4165, %v4206
    %v4208 = vlaneseq
    %v4209 = vshrl.u32 %v4208, 7
    %v4210 = vsub.s32 2, %v4209
    %v4211 = vrot.slane %v4165, %v4210
    %v4212 = vlaneseq
    %v4213 = vshrl.u32 %v4212, 7
    %v4214 = vsub.s32 3, %v4213
    %v4215 = vrot.slane %v4165, %v4214
    %v4216 = vlaneseq
    %v4217 = vshrl.u32 %v4216, 7
    %v4218 = vsub.s32 4, %v4217
    %v4219 = vrot.slane %v4165, %v4218
    %v4220 = vlaneseq
    %v4221 = vshrl.u32 %v4220, 7
    %v4222 = vsub.s32 5, %v4221
    %v4223 = vrot.slane %v4165, %v4222
    %v4224 = vlaneseq
    %v4225 = vshrl.u32 %v4224, 7
    %v4226 = vsub.s32 6, %v4225
    %v4227 = vrot.slane %v4165, %v4226
    %v4228 = vlaneseq
    %v4229 = vshrl.u32 %v4228, 7
    %v4230 = vsub.s32 7, %v4229
    %v4231 = vrot.slane %v4165, %v4230
    %v4248 = vadd.f32 %v4146, %v4171
    %v4249 = vadd.f32 %v4147, %v4175
    %v4250 = vadd.f32 %v4148, %v4179
    %v4251 = vadd.f32 %v4149, %v4183
    %v4252 = vadd.f32 %v4150, %v4187
    %v4253 = vadd.f32 %v4151, %v4191
    %v4254 = vadd.f32 %v4152, %v4195
    %v4255 = vadd.f32 %v4153, %v4199
    %v4256 = vadd.f32 %v4154, %v4203
    %v4257 = vadd.f32 %v4155, %v4207
    %v4258 = vadd.f32 %v4156, %v4211
    %v4259 = vadd.f32 %v4157, %v4215
    %v4260 = vadd.f32 %v4158, %v4219
    %v4261 = vadd.f32 %v4159, %v4223
    %v4262 = vadd.f32 %v4160, %v4227
    %v4263 = vadd.f32 %v4161, %v4231
    %v4264 = vmax.f32 %v4248, 0.0
    %v4265 = vmax.f32 %v4249, 0.0
    %v4266 = vmax.f32 %v4250, 0.0
    %v4267 = vmax.f32 %v4251, 0.0
    %v4268 = vmax.f32 %v4252, 0.0
    %v4269 = vmax.f32 %v4253, 0.0
    %v4270 = vmax.f32 %v4254, 0.0
    %v4271 = vmax.f32 %v4255, 0.0
    %v4272 = vmax.f32 %v4256, 0.0
    %v4273 = vmax.f32 %v4257, 0.0
    %v4274 = vmax.f32 %v4258, 0.0
    %v4275 = vmax.f32 %v4259, 0.0
    %v4276 = vmax.f32 %v4260, 0.0
    %v4277 = vmax.f32 %v4261, 0.0
    %v4278 = vmax.f32 %v4262, 0.0
    %v4279 = vmax.f32 %v4263, 0.0
    %s4280 = smul.u32 4, 256
    %s4281 = smul.u32 %s4280, 8
    %s4282 = sshll.u32 %s4281, 4
    %4283 = dma.done %s220, %s4282
    %v4284 = vpack.c.bf16 %v4264, %v4264
    %v4285 = vpack.c.bf16 %v4265, %v4265
    %v4286 = vpack.c.bf16 %v4266, %v4266
    %v4287 = vpack.c.bf16 %v4267, %v4267
    %v4288 = vpack.c.bf16 %v4268, %v4268
    %v4289 = vpack.c.bf16 %v4269, %v4269
    %v4290 = vpack.c.bf16 %v4270, %v4270
    %v4291 = vpack.c.bf16 %v4271, %v4271
    %v4292 = vpack.c.bf16 %v4272, %v4272
    %v4293 = vpack.c.bf16 %v4273, %v4273
    %v4294 = vpack.c.bf16 %v4274, %v4274
    %v4295 = vpack.c.bf16 %v4275, %v4275
    %v4296 = vpack.c.bf16 %v4276, %v4276
    %v4297 = vpack.c.bf16 %v4277, %v4277
    %v4298 = vpack.c.bf16 %v4278, %v4278
    %v4299 = vpack.c.bf16 %v4279, %v4279
    %v4300 = vld [vmem:[#allocation5] sm:$0xff]
    %v4301 = vld [vmem:[#allocation5 + $0x8] sm:$0xff]
    %v4302 = vld [vmem:[#allocation5 + $0x10] sm:$0xff]
    %v4303 = vld [vmem:[#allocation5 + $0x18] sm:$0xff]
    %v4304 = vld [vmem:[#allocation5 + $0x20] sm:$0xff]
    %v4305 = vld [vmem:[#allocation5 + $0x28] sm:$0xff]
    %v4306 = vld [vmem:[#allocation5 + $0x30] sm:$0xff]
    %v4307 = vld [vmem:[#allocation5 + $0x38] sm:$0xff]
    %v4308 = vld [vmem:[#allocation5 + $0x40] sm:$0xff]
    %v4309 = vld [vmem:[#allocation5 + $0x48] sm:$0xff]
    %v4310 = vld [vmem:[#allocation5 + $0x50] sm:$0xff]
    %v4311 = vld [vmem:[#allocation5 + $0x58] sm:$0xff]
    %v4312 = vld [vmem:[#allocation5 + $0x60] sm:$0xff]
    %v4313 = vld [vmem:[#allocation5 + $0x68] sm:$0xff]
    %v4314 = vld [vmem:[#allocation5 + $0x70] sm:$0xff]
    %v4315 = vld [vmem:[#allocation5 + $0x78] sm:$0xff]
    %v4316 = vld [vmem:[#allocation5 + $0x80] sm:$0xff]
    %v4317 = vld [vmem:[#allocation5 + $0x88] sm:$0xff]
    %v4318 = vld [vmem:[#allocation5 + $0x90] sm:$0xff]
    %v4319 = vld [vmem:[#allocation5 + $0x98] sm:$0xff]
    %v4320 = vld [vmem:[#allocation5 + $0xa0] sm:$0xff]
    %v4321 = vld [vmem:[#allocation5 + $0xa8] sm:$0xff]
    %v4322 = vld [vmem:[#allocation5 + $0xb0] sm:$0xff]
    %v4323 = vld [vmem:[#allocation5 + $0xb8] sm:$0xff]
    %v4324 = vld [vmem:[#allocation5 + $0xc0] sm:$0xff]
    %v4325 = vld [vmem:[#allocation5 + $0xc8] sm:$0xff]
    %v4326 = vld [vmem:[#allocation5 + $0xd0] sm:$0xff]
    %v4327 = vld [vmem:[#allocation5 + $0xd8] sm:$0xff]
    %v4328 = vld [vmem:[#allocation5 + $0xe0] sm:$0xff]
    %v4329 = vld [vmem:[#allocation5 + $0xe8] sm:$0xff]
    %v4330 = vld [vmem:[#allocation5 + $0xf0] sm:$0xff]
    %v4331 = vld [vmem:[#allocation5 + $0xf8] sm:$0xff]
    %v4332 = vld [vmem:[#allocation5 + $0x100] sm:$0xff]
    %v4333 = vld [vmem:[#allocation5 + $0x108] sm:$0xff]
    %v4334 = vld [vmem:[#allocation5 + $0x110] sm:$0xff]
    %v4335 = vld [vmem:[#allocation5 + $0x118] sm:$0xff]
    %v4336 = vld [vmem:[#allocation5 + $0x120] sm:$0xff]
    %v4337 = vld [vmem:[#allocation5 + $0x128] sm:$0xff]
    %v4338 = vld [vmem:[#allocation5 + $0x130] sm:$0xff]
    %v4339 = vld [vmem:[#allocation5 + $0x138] sm:$0xff]
    %v4340 = vld [vmem:[#allocation5 + $0x140] sm:$0xff]
    %v4341 = vld [vmem:[#allocation5 + $0x148] sm:$0xff]
    %v4342 = vld [vmem:[#allocation5 + $0x150] sm:$0xff]
    %v4343 = vld [vmem:[#allocation5 + $0x158] sm:$0xff]
    %v4344 = vld [vmem:[#allocation5 + $0x160] sm:$0xff]
    %v4345 = vld [vmem:[#allocation5 + $0x168] sm:$0xff]
    %v4346 = vld [vmem:[#allocation5 + $0x170] sm:$0xff]
    %v4347 = vld [vmem:[#allocation5 + $0x178] sm:$0xff]
    %v4348 = vld [vmem:[#allocation5 + $0x180] sm:$0xff]
    %v4349 = vld [vmem:[#allocation5 + $0x188] sm:$0xff]
    %v4350 = vld [vmem:[#allocation5 + $0x190] sm:$0xff]
    %v4351 = vld [vmem:[#allocation5 + $0x198] sm:$0xff]
    %v4352 = vld [vmem:[#allocation5 + $0x1a0] sm:$0xff]
    %v4353 = vld [vmem:[#allocation5 + $0x1a8] sm:$0xff]
    %v4354 = vld [vmem:[#allocation5 + $0x1b0] sm:$0xff]
    %v4355 = vld [vmem:[#allocation5 + $0x1b8] sm:$0xff]
    %v4356 = vld [vmem:[#allocation5 + $0x1c0] sm:$0xff]
    %v4357 = vld [vmem:[#allocation5 + $0x1c8] sm:$0xff]
    %v4358 = vld [vmem:[#allocation5 + $0x1d0] sm:$0xff]
    %v4359 = vld [vmem:[#allocation5 + $0x1d8] sm:$0xff]
    %v4360 = vld [vmem:[#allocation5 + $0x1e0] sm:$0xff]
    %v4361 = vld [vmem:[#allocation5 + $0x1e8] sm:$0xff]
    %v4362 = vld [vmem:[#allocation5 + $0x1f0] sm:$0xff]
    %v4363 = vld [vmem:[#allocation5 + $0x1f8] sm:$0xff]
    %v4364 = vld [vmem:[#allocation5 + $0x200] sm:$0xff]
    %v4365 = vld [vmem:[#allocation5 + $0x208] sm:$0xff]
    %v4366 = vld [vmem:[#allocation5 + $0x210] sm:$0xff]
    %v4367 = vld [vmem:[#allocation5 + $0x218] sm:$0xff]
    %v4368 = vld [vmem:[#allocation5 + $0x220] sm:$0xff]
    %v4369 = vld [vmem:[#allocation5 + $0x228] sm:$0xff]
    %v4370 = vld [vmem:[#allocation5 + $0x230] sm:$0xff]
    %v4371 = vld [vmem:[#allocation5 + $0x238] sm:$0xff]
    %v4372 = vld [vmem:[#allocation5 + $0x240] sm:$0xff]
    %v4373 = vld [vmem:[#allocation5 + $0x248] sm:$0xff]
    %v4374 = vld [vmem:[#allocation5 + $0x250] sm:$0xff]
    %v4375 = vld [vmem:[#allocation5 + $0x258] sm:$0xff]
    %v4376 = vld [vmem:[#allocation5 + $0x260] sm:$0xff]
    %v4377 = vld [vmem:[#allocation5 + $0x268] sm:$0xff]
    %v4378 = vld [vmem:[#allocation5 + $0x270] sm:$0xff]
    %v4379 = vld [vmem:[#allocation5 + $0x278] sm:$0xff]
    %v4380 = vld [vmem:[#allocation5 + $0x280] sm:$0xff]
    %v4381 = vld [vmem:[#allocation5 + $0x288] sm:$0xff]
    %v4382 = vld [vmem:[#allocation5 + $0x290] sm:$0xff]
    %v4383 = vld [vmem:[#allocation5 + $0x298] sm:$0xff]
    %v4384 = vld [vmem:[#allocation5 + $0x2a0] sm:$0xff]
    %v4385 = vld [vmem:[#allocation5 + $0x2a8] sm:$0xff]
    %v4386 = vld [vmem:[#allocation5 + $0x2b0] sm:$0xff]
    %v4387 = vld [vmem:[#allocation5 + $0x2b8] sm:$0xff]
    %v4388 = vld [vmem:[#allocation5 + $0x2c0] sm:$0xff]
    %v4389 = vld [vmem:[#allocation5 + $0x2c8] sm:$0xff]
    %v4390 = vld [vmem:[#allocation5 + $0x2d0] sm:$0xff]
    %v4391 = vld [vmem:[#allocation5 + $0x2d8] sm:$0xff]
    %v4392 = vld [vmem:[#allocation5 + $0x2e0] sm:$0xff]
    %v4393 = vld [vmem:[#allocation5 + $0x2e8] sm:$0xff]
    %v4394 = vld [vmem:[#allocation5 + $0x2f0] sm:$0xff]
    %v4395 = vld [vmem:[#allocation5 + $0x2f8] sm:$0xff]
    %v4396 = vld [vmem:[#allocation5 + $0x300] sm:$0xff]
    %v4397 = vld [vmem:[#allocation5 + $0x308] sm:$0xff]
    %v4398 = vld [vmem:[#allocation5 + $0x310] sm:$0xff]
    %v4399 = vld [vmem:[#allocation5 + $0x318] sm:$0xff]
    %v4400 = vld [vmem:[#allocation5 + $0x320] sm:$0xff]
    %v4401 = vld [vmem:[#allocation5 + $0x328] sm:$0xff]
    %v4402 = vld [vmem:[#allocation5 + $0x330] sm:$0xff]
    %v4403 = vld [vmem:[#allocation5 + $0x338] sm:$0xff]
    %v4404 = vld [vmem:[#allocation5 + $0x340] sm:$0xff]
    %v4405 = vld [vmem:[#allocation5 + $0x348] sm:$0xff]
    %v4406 = vld [vmem:[#allocation5 + $0x350] sm:$0xff]
    %v4407 = vld [vmem:[#allocation5 + $0x358] sm:$0xff]
    %v4408 = vld [vmem:[#allocation5 + $0x360] sm:$0xff]
    %v4409 = vld [vmem:[#allocation5 + $0x368] sm:$0xff]
    %v4410 = vld [vmem:[#allocation5 + $0x370] sm:$0xff]
    %v4411 = vld [vmem:[#allocation5 + $0x378] sm:$0xff]
    %v4412 = vld [vmem:[#allocation5 + $0x380] sm:$0xff]
    %v4413 = vld [vmem:[#allocation5 + $0x388] sm:$0xff]
    %v4414 = vld [vmem:[#allocation5 + $0x390] sm:$0xff]
    %v4415 = vld [vmem:[#allocation5 + $0x398] sm:$0xff]
    %v4416 = vld [vmem:[#allocation5 + $0x3a0] sm:$0xff]
    %v4417 = vld [vmem:[#allocation5 + $0x3a8] sm:$0xff]
    %v4418 = vld [vmem:[#allocation5 + $0x3b0] sm:$0xff]
    %v4419 = vld [vmem:[#allocation5 + $0x3b8] sm:$0xff]
    %v4420 = vld [vmem:[#allocation5 + $0x3c0] sm:$0xff]
    %v4421 = vld [vmem:[#allocation5 + $0x3c8] sm:$0xff]
    %v4422 = vld [vmem:[#allocation5 + $0x3d0] sm:$0xff]
    %v4423 = vld [vmem:[#allocation5 + $0x3d8] sm:$0xff]
    %v4424 = vld [vmem:[#allocation5 + $0x3e0] sm:$0xff]
    %v4425 = vld [vmem:[#allocation5 + $0x3e8] sm:$0xff]
    %v4426 = vld [vmem:[#allocation5 + $0x3f0] sm:$0xff]
    %v4427 = vld [vmem:[#allocation5 + $0x3f8] sm:$0xff]
    %v4428 = vld [vmem:[#allocation5 + $0x400] sm:$0xff]
    %v4429 = vld [vmem:[#allocation5 + $0x408] sm:$0xff]
    %v4430 = vld [vmem:[#allocation5 + $0x410] sm:$0xff]
    %v4431 = vld [vmem:[#allocation5 + $0x418] sm:$0xff]
    %v4432 = vld [vmem:[#allocation5 + $0x420] sm:$0xff]
    %v4433 = vld [vmem:[#allocation5 + $0x428] sm:$0xff]
    %v4434 = vld [vmem:[#allocation5 + $0x430] sm:$0xff]
    %v4435 = vld [vmem:[#allocation5 + $0x438] sm:$0xff]
    %v4436 = vld [vmem:[#allocation5 + $0x440] sm:$0xff]
    %v4437 = vld [vmem:[#allocation5 + $0x448] sm:$0xff]
    %v4438 = vld [vmem:[#allocation5 + $0x450] sm:$0xff]
    %v4439 = vld [vmem:[#allocation5 + $0x458] sm:$0xff]
    %v4440 = vld [vmem:[#allocation5 + $0x460] sm:$0xff]
    %v4441 = vld [vmem:[#allocation5 + $0x468] sm:$0xff]
    %v4442 = vld [vmem:[#allocation5 + $0x470] sm:$0xff]
    %v4443 = vld [vmem:[#allocation5 + $0x478] sm:$0xff]
    %v4444 = vld [vmem:[#allocation5 + $0x480] sm:$0xff]
    %v4445 = vld [vmem:[#allocation5 + $0x488] sm:$0xff]
    %v4446 = vld [vmem:[#allocation5 + $0x490] sm:$0xff]
    %v4447 = vld [vmem:[#allocation5 + $0x498] sm:$0xff]
    %v4448 = vld [vmem:[#allocation5 + $0x4a0] sm:$0xff]
    %v4449 = vld [vmem:[#allocation5 + $0x4a8] sm:$0xff]
    %v4450 = vld [vmem:[#allocation5 + $0x4b0] sm:$0xff]
    %v4451 = vld [vmem:[#allocation5 + $0x4b8] sm:$0xff]
    %v4452 = vld [vmem:[#allocation5 + $0x4c0] sm:$0xff]
    %v4453 = vld [vmem:[#allocation5 + $0x4c8] sm:$0xff]
    %v4454 = vld [vmem:[#allocation5 + $0x4d0] sm:$0xff]
    %v4455 = vld [vmem:[#allocation5 + $0x4d8] sm:$0xff]
    %v4456 = vld [vmem:[#allocation5 + $0x4e0] sm:$0xff]
    %v4457 = vld [vmem:[#allocation5 + $0x4e8] sm:$0xff]
    %v4458 = vld [vmem:[#allocation5 + $0x4f0] sm:$0xff]
    %v4459 = vld [vmem:[#allocation5 + $0x4f8] sm:$0xff]
    %v4460 = vld [vmem:[#allocation5 + $0x500] sm:$0xff]
    %v4461 = vld [vmem:[#allocation5 + $0x508] sm:$0xff]
    %v4462 = vld [vmem:[#allocation5 + $0x510] sm:$0xff]
    %v4463 = vld [vmem:[#allocation5 + $0x518] sm:$0xff]
    %v4464 = vld [vmem:[#allocation5 + $0x520] sm:$0xff]
    %v4465 = vld [vmem:[#allocation5 + $0x528] sm:$0xff]
    %v4466 = vld [vmem:[#allocation5 + $0x530] sm:$0xff]
    %v4467 = vld [vmem:[#allocation5 + $0x538] sm:$0xff]
    %v4468 = vld [vmem:[#allocation5 + $0x540] sm:$0xff]
    %v4469 = vld [vmem:[#allocation5 + $0x548] sm:$0xff]
    %v4470 = vld [vmem:[#allocation5 + $0x550] sm:$0xff]
    %v4471 = vld [vmem:[#allocation5 + $0x558] sm:$0xff]
    %v4472 = vld [vmem:[#allocation5 + $0x560] sm:$0xff]
    %v4473 = vld [vmem:[#allocation5 + $0x568] sm:$0xff]
    %v4474 = vld [vmem:[#allocation5 + $0x570] sm:$0xff]
    %v4475 = vld [vmem:[#allocation5 + $0x578] sm:$0xff]
    %v4476 = vld [vmem:[#allocation5 + $0x580] sm:$0xff]
    %v4477 = vld [vmem:[#allocation5 + $0x588] sm:$0xff]
    %v4478 = vld [vmem:[#allocation5 + $0x590] sm:$0xff]
    %v4479 = vld [vmem:[#allocation5 + $0x598] sm:$0xff]
    %v4480 = vld [vmem:[#allocation5 + $0x5a0] sm:$0xff]
    %v4481 = vld [vmem:[#allocation5 + $0x5a8] sm:$0xff]
    %v4482 = vld [vmem:[#allocation5 + $0x5b0] sm:$0xff]
    %v4483 = vld [vmem:[#allocation5 + $0x5b8] sm:$0xff]
    %v4484 = vld [vmem:[#allocation5 + $0x5c0] sm:$0xff]
    %v4485 = vld [vmem:[#allocation5 + $0x5c8] sm:$0xff]
    %v4486 = vld [vmem:[#allocation5 + $0x5d0] sm:$0xff]
    %v4487 = vld [vmem:[#allocation5 + $0x5d8] sm:$0xff]
    %v4488 = vld [vmem:[#allocation5 + $0x5e0] sm:$0xff]
    %v4489 = vld [vmem:[#allocation5 + $0x5e8] sm:$0xff]
    %v4490 = vld [vmem:[#allocation5 + $0x5f0] sm:$0xff]
    %v4491 = vld [vmem:[#allocation5 + $0x5f8] sm:$0xff]
    %v4492 = vld [vmem:[#allocation5 + $0x600] sm:$0xff]
    %v4493 = vld [vmem:[#allocation5 + $0x608] sm:$0xff]
    %v4494 = vld [vmem:[#allocation5 + $0x610] sm:$0xff]
    %v4495 = vld [vmem:[#allocation5 + $0x618] sm:$0xff]
    %v4496 = vld [vmem:[#allocation5 + $0x620] sm:$0xff]
    %v4497 = vld [vmem:[#allocation5 + $0x628] sm:$0xff]
    %v4498 = vld [vmem:[#allocation5 + $0x630] sm:$0xff]
    %v4499 = vld [vmem:[#allocation5 + $0x638] sm:$0xff]
    %v4500 = vld [vmem:[#allocation5 + $0x640] sm:$0xff]
    %v4501 = vld [vmem:[#allocation5 + $0x648] sm:$0xff]
    %v4502 = vld [vmem:[#allocation5 + $0x650] sm:$0xff]
    %v4503 = vld [vmem:[#allocation5 + $0x658] sm:$0xff]
    %v4504 = vld [vmem:[#allocation5 + $0x660] sm:$0xff]
    %v4505 = vld [vmem:[#allocation5 + $0x668] sm:$0xff]
    %v4506 = vld [vmem:[#allocation5 + $0x670] sm:$0xff]
    %v4507 = vld [vmem:[#allocation5 + $0x678] sm:$0xff]
    %v4508 = vld [vmem:[#allocation5 + $0x680] sm:$0xff]
    %v4509 = vld [vmem:[#allocation5 + $0x688] sm:$0xff]
    %v4510 = vld [vmem:[#allocation5 + $0x690] sm:$0xff]
    %v4511 = vld [vmem:[#allocation5 + $0x698] sm:$0xff]
    %v4512 = vld [vmem:[#allocation5 + $0x6a0] sm:$0xff]
    %v4513 = vld [vmem:[#allocation5 + $0x6a8] sm:$0xff]
    %v4514 = vld [vmem:[#allocation5 + $0x6b0] sm:$0xff]
    %v4515 = vld [vmem:[#allocation5 + $0x6b8] sm:$0xff]
    %v4516 = vld [vmem:[#allocation5 + $0x6c0] sm:$0xff]
    %v4517 = vld [vmem:[#allocation5 + $0x6c8] sm:$0xff]
    %v4518 = vld [vmem:[#allocation5 + $0x6d0] sm:$0xff]
    %v4519 = vld [vmem:[#allocation5 + $0x6d8] sm:$0xff]
    %v4520 = vld [vmem:[#allocation5 + $0x6e0] sm:$0xff]
    %v4521 = vld [vmem:[#allocation5 + $0x6e8] sm:$0xff]
    %v4522 = vld [vmem:[#allocation5 + $0x6f0] sm:$0xff]
    %v4523 = vld [vmem:[#allocation5 + $0x6f8] sm:$0xff]
    %v4524 = vld [vmem:[#allocation5 + $0x700] sm:$0xff]
    %v4525 = vld [vmem:[#allocation5 + $0x708] sm:$0xff]
    %v4526 = vld [vmem:[#allocation5 + $0x710] sm:$0xff]
    %v4527 = vld [vmem:[#allocation5 + $0x718] sm:$0xff]
    %v4528 = vld [vmem:[#allocation5 + $0x720] sm:$0xff]
    %v4529 = vld [vmem:[#allocation5 + $0x728] sm:$0xff]
    %v4530 = vld [vmem:[#allocation5 + $0x730] sm:$0xff]
    %v4531 = vld [vmem:[#allocation5 + $0x738] sm:$0xff]
    %v4532 = vld [vmem:[#allocation5 + $0x740] sm:$0xff]
    %v4533 = vld [vmem:[#allocation5 + $0x748] sm:$0xff]
    %v4534 = vld [vmem:[#allocation5 + $0x750] sm:$0xff]
    %v4535 = vld [vmem:[#allocation5 + $0x758] sm:$0xff]
    %v4536 = vld [vmem:[#allocation5 + $0x760] sm:$0xff]
    %v4537 = vld [vmem:[#allocation5 + $0x768] sm:$0xff]
    %v4538 = vld [vmem:[#allocation5 + $0x770] sm:$0xff]
    %v4539 = vld [vmem:[#allocation5 + $0x778] sm:$0xff]
    %v4540 = vld [vmem:[#allocation5 + $0x780] sm:$0xff]
    %v4541 = vld [vmem:[#allocation5 + $0x788] sm:$0xff]
    %v4542 = vld [vmem:[#allocation5 + $0x790] sm:$0xff]
    %v4543 = vld [vmem:[#allocation5 + $0x798] sm:$0xff]
    %v4544 = vld [vmem:[#allocation5 + $0x7a0] sm:$0xff]
    %v4545 = vld [vmem:[#allocation5 + $0x7a8] sm:$0xff]
    %v4546 = vld [vmem:[#allocation5 + $0x7b0] sm:$0xff]
    %v4547 = vld [vmem:[#allocation5 + $0x7b8] sm:$0xff]
    %v4548 = vld [vmem:[#allocation5 + $0x7c0] sm:$0xff]
    %v4549 = vld [vmem:[#allocation5 + $0x7c8] sm:$0xff]
    %v4550 = vld [vmem:[#allocation5 + $0x7d0] sm:$0xff]
    %v4551 = vld [vmem:[#allocation5 + $0x7d8] sm:$0xff]
    %v4552 = vld [vmem:[#allocation5 + $0x7e0] sm:$0xff]
    %v4553 = vld [vmem:[#allocation5 + $0x7e8] sm:$0xff]
    %v4554 = vld [vmem:[#allocation5 + $0x7f0] sm:$0xff]
    %v4555 = vld [vmem:[#allocation5 + $0x7f8] sm:$0xff]
    %v4556 = vld [vmem:[#allocation5 + $0x800] sm:$0xff]
    %v4557 = vld [vmem:[#allocation5 + $0x808] sm:$0xff]
    %v4558 = vld [vmem:[#allocation5 + $0x810] sm:$0xff]
    %v4559 = vld [vmem:[#allocation5 + $0x818] sm:$0xff]
    %v4560 = vld [vmem:[#allocation5 + $0x820] sm:$0xff]
    %v4561 = vld [vmem:[#allocation5 + $0x828] sm:$0xff]
    %v4562 = vld [vmem:[#allocation5 + $0x830] sm:$0xff]
    %v4563 = vld [vmem:[#allocation5 + $0x838] sm:$0xff]
    %v4564 = vld [vmem:[#allocation5 + $0x840] sm:$0xff]
    %v4565 = vld [vmem:[#allocation5 + $0x848] sm:$0xff]
    %v4566 = vld [vmem:[#allocation5 + $0x850] sm:$0xff]
    %v4567 = vld [vmem:[#allocation5 + $0x858] sm:$0xff]
    %v4568 = vld [vmem:[#allocation5 + $0x860] sm:$0xff]
    %v4569 = vld [vmem:[#allocation5 + $0x868] sm:$0xff]
    %v4570 = vld [vmem:[#allocation5 + $0x870] sm:$0xff]
    %v4571 = vld [vmem:[#allocation5 + $0x878] sm:$0xff]
    %v4572 = vld [vmem:[#allocation5 + $0x880] sm:$0xff]
    %v4573 = vld [vmem:[#allocation5 + $0x888] sm:$0xff]
    %v4574 = vld [vmem:[#allocation5 + $0x890] sm:$0xff]
    %v4575 = vld [vmem:[#allocation5 + $0x898] sm:$0xff]
    %v4576 = vld [vmem:[#allocation5 + $0x8a0] sm:$0xff]
    %v4577 = vld [vmem:[#allocation5 + $0x8a8] sm:$0xff]
    %v4578 = vld [vmem:[#allocation5 + $0x8b0] sm:$0xff]
    %v4579 = vld [vmem:[#allocation5 + $0x8b8] sm:$0xff]
    %v4580 = vld [vmem:[#allocation5 + $0x8c0] sm:$0xff]
    %v4581 = vld [vmem:[#allocation5 + $0x8c8] sm:$0xff]
    %v4582 = vld [vmem:[#allocation5 + $0x8d0] sm:$0xff]
    %v4583 = vld [vmem:[#allocation5 + $0x8d8] sm:$0xff]
    %v4584 = vld [vmem:[#allocation5 + $0x8e0] sm:$0xff]
    %v4585 = vld [vmem:[#allocation5 + $0x8e8] sm:$0xff]
    %v4586 = vld [vmem:[#allocation5 + $0x8f0] sm:$0xff]
    %v4587 = vld [vmem:[#allocation5 + $0x8f8] sm:$0xff]
    %v4588 = vld [vmem:[#allocation5 + $0x900] sm:$0xff]
    %v4589 = vld [vmem:[#allocation5 + $0x908] sm:$0xff]
    %v4590 = vld [vmem:[#allocation5 + $0x910] sm:$0xff]
    %v4591 = vld [vmem:[#allocation5 + $0x918] sm:$0xff]
    %v4592 = vld [vmem:[#allocation5 + $0x920] sm:$0xff]
    %v4593 = vld [vmem:[#allocation5 + $0x928] sm:$0xff]
    %v4594 = vld [vmem:[#allocation5 + $0x930] sm:$0xff]
    %v4595 = vld [vmem:[#allocation5 + $0x938] sm:$0xff]
    %v4596 = vld [vmem:[#allocation5 + $0x940] sm:$0xff]
    %v4597 = vld [vmem:[#allocation5 + $0x948] sm:$0xff]
    %v4598 = vld [vmem:[#allocation5 + $0x950] sm:$0xff]
    %v4599 = vld [vmem:[#allocation5 + $0x958] sm:$0xff]
    %v4600 = vld [vmem:[#allocation5 + $0x960] sm:$0xff]
    %v4601 = vld [vmem:[#allocation5 + $0x968] sm:$0xff]
    %v4602 = vld [vmem:[#allocation5 + $0x970] sm:$0xff]
    %v4603 = vld [vmem:[#allocation5 + $0x978] sm:$0xff]
    %v4604 = vld [vmem:[#allocation5 + $0x980] sm:$0xff]
    %v4605 = vld [vmem:[#allocation5 + $0x988] sm:$0xff]
    %v4606 = vld [vmem:[#allocation5 + $0x990] sm:$0xff]
    %v4607 = vld [vmem:[#allocation5 + $0x998] sm:$0xff]
    %v4608 = vld [vmem:[#allocation5 + $0x9a0] sm:$0xff]
    %v4609 = vld [vmem:[#allocation5 + $0x9a8] sm:$0xff]
    %v4610 = vld [vmem:[#allocation5 + $0x9b0] sm:$0xff]
    %v4611 = vld [vmem:[#allocation5 + $0x9b8] sm:$0xff]
    %v4612 = vld [vmem:[#allocation5 + $0x9c0] sm:$0xff]
    %v4613 = vld [vmem:[#allocation5 + $0x9c8] sm:$0xff]
    %v4614 = vld [vmem:[#allocation5 + $0x9d0] sm:$0xff]
    %v4615 = vld [vmem:[#allocation5 + $0x9d8] sm:$0xff]
    %v4616 = vld [vmem:[#allocation5 + $0x9e0] sm:$0xff]
    %v4617 = vld [vmem:[#allocation5 + $0x9e8] sm:$0xff]
    %v4618 = vld [vmem:[#allocation5 + $0x9f0] sm:$0xff]
    %v4619 = vld [vmem:[#allocation5 + $0x9f8] sm:$0xff]
    %v4620 = vld [vmem:[#allocation5 + $0xa00] sm:$0xff]
    %v4621 = vld [vmem:[#allocation5 + $0xa08] sm:$0xff]
    %v4622 = vld [vmem:[#allocation5 + $0xa10] sm:$0xff]
    %v4623 = vld [vmem:[#allocation5 + $0xa18] sm:$0xff]
    %v4624 = vld [vmem:[#allocation5 + $0xa20] sm:$0xff]
    %v4625 = vld [vmem:[#allocation5 + $0xa28] sm:$0xff]
    %v4626 = vld [vmem:[#allocation5 + $0xa30] sm:$0xff]
    %v4627 = vld [vmem:[#allocation5 + $0xa38] sm:$0xff]
    %v4628 = vld [vmem:[#allocation5 + $0xa40] sm:$0xff]
    %v4629 = vld [vmem:[#allocation5 + $0xa48] sm:$0xff]
    %v4630 = vld [vmem:[#allocation5 + $0xa50] sm:$0xff]
    %v4631 = vld [vmem:[#allocation5 + $0xa58] sm:$0xff]
    %v4632 = vld [vmem:[#allocation5 + $0xa60] sm:$0xff]
    %v4633 = vld [vmem:[#allocation5 + $0xa68] sm:$0xff]
    %v4634 = vld [vmem:[#allocation5 + $0xa70] sm:$0xff]
    %v4635 = vld [vmem:[#allocation5 + $0xa78] sm:$0xff]
    %v4636 = vld [vmem:[#allocation5 + $0xa80] sm:$0xff]
    %v4637 = vld [vmem:[#allocation5 + $0xa88] sm:$0xff]
    %v4638 = vld [vmem:[#allocation5 + $0xa90] sm:$0xff]
    %v4639 = vld [vmem:[#allocation5 + $0xa98] sm:$0xff]
    %v4640 = vld [vmem:[#allocation5 + $0xaa0] sm:$0xff]
    %v4641 = vld [vmem:[#allocation5 + $0xaa8] sm:$0xff]
    %v4642 = vld [vmem:[#allocation5 + $0xab0] sm:$0xff]
    %v4643 = vld [vmem:[#allocation5 + $0xab8] sm:$0xff]
    %v4644 = vld [vmem:[#allocation5 + $0xac0] sm:$0xff]
    %v4645 = vld [vmem:[#allocation5 + $0xac8] sm:$0xff]
    %v4646 = vld [vmem:[#allocation5 + $0xad0] sm:$0xff]
    %v4647 = vld [vmem:[#allocation5 + $0xad8] sm:$0xff]
    %v4648 = vld [vmem:[#allocation5 + $0xae0] sm:$0xff]
    %v4649 = vld [vmem:[#allocation5 + $0xae8] sm:$0xff]
    %v4650 = vld [vmem:[#allocation5 + $0xaf0] sm:$0xff]
    %v4651 = vld [vmem:[#allocation5 + $0xaf8] sm:$0xff]
    %v4652 = vld [vmem:[#allocation5 + $0xb00] sm:$0xff]
    %v4653 = vld [vmem:[#allocation5 + $0xb08] sm:$0xff]
    %v4654 = vld [vmem:[#allocation5 + $0xb10] sm:$0xff]
    %v4655 = vld [vmem:[#allocation5 + $0xb18] sm:$0xff]
    %v4656 = vld [vmem:[#allocation5 + $0xb20] sm:$0xff]
    %v4657 = vld [vmem:[#allocation5 + $0xb28] sm:$0xff]
    %v4658 = vld [vmem:[#allocation5 + $0xb30] sm:$0xff]
    %v4659 = vld [vmem:[#allocation5 + $0xb38] sm:$0xff]
    %v4660 = vld [vmem:[#allocation5 + $0xb40] sm:$0xff]
    %v4661 = vld [vmem:[#allocation5 + $0xb48] sm:$0xff]
    %v4662 = vld [vmem:[#allocation5 + $0xb50] sm:$0xff]
    %v4663 = vld [vmem:[#allocation5 + $0xb58] sm:$0xff]
    %v4664 = vld [vmem:[#allocation5 + $0xb60] sm:$0xff]
    %v4665 = vld [vmem:[#allocation5 + $0xb68] sm:$0xff]
    %v4666 = vld [vmem:[#allocation5 + $0xb70] sm:$0xff]
    %v4667 = vld [vmem:[#allocation5 + $0xb78] sm:$0xff]
    %v4668 = vld [vmem:[#allocation5 + $0xb80] sm:$0xff]
    %v4669 = vld [vmem:[#allocation5 + $0xb88] sm:$0xff]
    %v4670 = vld [vmem:[#allocation5 + $0xb90] sm:$0xff]
    %v4671 = vld [vmem:[#allocation5 + $0xb98] sm:$0xff]
    %v4672 = vld [vmem:[#allocation5 + $0xba0] sm:$0xff]
    %v4673 = vld [vmem:[#allocation5 + $0xba8] sm:$0xff]
    %v4674 = vld [vmem:[#allocation5 + $0xbb0] sm:$0xff]
    %v4675 = vld [vmem:[#allocation5 + $0xbb8] sm:$0xff]
    %v4676 = vld [vmem:[#allocation5 + $0xbc0] sm:$0xff]
    %v4677 = vld [vmem:[#allocation5 + $0xbc8] sm:$0xff]
    %v4678 = vld [vmem:[#allocation5 + $0xbd0] sm:$0xff]
    %v4679 = vld [vmem:[#allocation5 + $0xbd8] sm:$0xff]
    %v4680 = vld [vmem:[#allocation5 + $0xbe0] sm:$0xff]
    %v4681 = vld [vmem:[#allocation5 + $0xbe8] sm:$0xff]
    %v4682 = vld [vmem:[#allocation5 + $0xbf0] sm:$0xff]
    %v4683 = vld [vmem:[#allocation5 + $0xbf8] sm:$0xff]
    %v4684 = vld [vmem:[#allocation5 + $0xc00] sm:$0xff]
    %v4685 = vld [vmem:[#allocation5 + $0xc08] sm:$0xff]
    %v4686 = vld [vmem:[#allocation5 + $0xc10] sm:$0xff]
    %v4687 = vld [vmem:[#allocation5 + $0xc18] sm:$0xff]
    %v4688 = vld [vmem:[#allocation5 + $0xc20] sm:$0xff]
    %v4689 = vld [vmem:[#allocation5 + $0xc28] sm:$0xff]
    %v4690 = vld [vmem:[#allocation5 + $0xc30] sm:$0xff]
    %v4691 = vld [vmem:[#allocation5 + $0xc38] sm:$0xff]
    %v4692 = vld [vmem:[#allocation5 + $0xc40] sm:$0xff]
    %v4693 = vld [vmem:[#allocation5 + $0xc48] sm:$0xff]
    %v4694 = vld [vmem:[#allocation5 + $0xc50] sm:$0xff]
    %v4695 = vld [vmem:[#allocation5 + $0xc58] sm:$0xff]
    %v4696 = vld [vmem:[#allocation5 + $0xc60] sm:$0xff]
    %v4697 = vld [vmem:[#allocation5 + $0xc68] sm:$0xff]
    %v4698 = vld [vmem:[#allocation5 + $0xc70] sm:$0xff]
    %v4699 = vld [vmem:[#allocation5 + $0xc78] sm:$0xff]
    %v4700 = vld [vmem:[#allocation5 + $0xc80] sm:$0xff]
    %v4701 = vld [vmem:[#allocation5 + $0xc88] sm:$0xff]
    %v4702 = vld [vmem:[#allocation5 + $0xc90] sm:$0xff]
    %v4703 = vld [vmem:[#allocation5 + $0xc98] sm:$0xff]
    %v4704 = vld [vmem:[#allocation5 + $0xca0] sm:$0xff]
    %v4705 = vld [vmem:[#allocation5 + $0xca8] sm:$0xff]
    %v4706 = vld [vmem:[#allocation5 + $0xcb0] sm:$0xff]
    %v4707 = vld [vmem:[#allocation5 + $0xcb8] sm:$0xff]
    %v4708 = vld [vmem:[#allocation5 + $0xcc0] sm:$0xff]
    %v4709 = vld [vmem:[#allocation5 + $0xcc8] sm:$0xff]
    %v4710 = vld [vmem:[#allocation5 + $0xcd0] sm:$0xff]
    %v4711 = vld [vmem:[#allocation5 + $0xcd8] sm:$0xff]
    %v4712 = vld [vmem:[#allocation5 + $0xce0] sm:$0xff]
    %v4713 = vld [vmem:[#allocation5 + $0xce8] sm:$0xff]
    %v4714 = vld [vmem:[#allocation5 + $0xcf0] sm:$0xff]
    %v4715 = vld [vmem:[#allocation5 + $0xcf8] sm:$0xff]
    %v4716 = vld [vmem:[#allocation5 + $0xd00] sm:$0xff]
    %v4717 = vld [vmem:[#allocation5 + $0xd08] sm:$0xff]
    %v4718 = vld [vmem:[#allocation5 + $0xd10] sm:$0xff]
    %v4719 = vld [vmem:[#allocation5 + $0xd18] sm:$0xff]
    %v4720 = vld [vmem:[#allocation5 + $0xd20] sm:$0xff]
    %v4721 = vld [vmem:[#allocation5 + $0xd28] sm:$0xff]
    %v4722 = vld [vmem:[#allocation5 + $0xd30] sm:$0xff]
    %v4723 = vld [vmem:[#allocation5 + $0xd38] sm:$0xff]
    %v4724 = vld [vmem:[#allocation5 + $0xd40] sm:$0xff]
    %v4725 = vld [vmem:[#allocation5 + $0xd48] sm:$0xff]
    %v4726 = vld [vmem:[#allocation5 + $0xd50] sm:$0xff]
    %v4727 = vld [vmem:[#allocation5 + $0xd58] sm:$0xff]
    %v4728 = vld [vmem:[#allocation5 + $0xd60] sm:$0xff]
    %v4729 = vld [vmem:[#allocation5 + $0xd68] sm:$0xff]
    %v4730 = vld [vmem:[#allocation5 + $0xd70] sm:$0xff]
    %v4731 = vld [vmem:[#allocation5 + $0xd78] sm:$0xff]
    %v4732 = vld [vmem:[#allocation5 + $0xd80] sm:$0xff]
    %v4733 = vld [vmem:[#allocation5 + $0xd88] sm:$0xff]
    %v4734 = vld [vmem:[#allocation5 + $0xd90] sm:$0xff]
    %v4735 = vld [vmem:[#allocation5 + $0xd98] sm:$0xff]
    %v4736 = vld [vmem:[#allocation5 + $0xda0] sm:$0xff]
    %v4737 = vld [vmem:[#allocation5 + $0xda8] sm:$0xff]
    %v4738 = vld [vmem:[#allocation5 + $0xdb0] sm:$0xff]
    %v4739 = vld [vmem:[#allocation5 + $0xdb8] sm:$0xff]
    %v4740 = vld [vmem:[#allocation5 + $0xdc0] sm:$0xff]
    %v4741 = vld [vmem:[#allocation5 + $0xdc8] sm:$0xff]
    %v4742 = vld [vmem:[#allocation5 + $0xdd0] sm:$0xff]
    %v4743 = vld [vmem:[#allocation5 + $0xdd8] sm:$0xff]
    %v4744 = vld [vmem:[#allocation5 + $0xde0] sm:$0xff]
    %v4745 = vld [vmem:[#allocation5 + $0xde8] sm:$0xff]
    %v4746 = vld [vmem:[#allocation5 + $0xdf0] sm:$0xff]
    %v4747 = vld [vmem:[#allocation5 + $0xdf8] sm:$0xff]
    %v4748 = vld [vmem:[#allocation5 + $0xe00] sm:$0xff]
    %v4749 = vld [vmem:[#allocation5 + $0xe08] sm:$0xff]
    %v4750 = vld [vmem:[#allocation5 + $0xe10] sm:$0xff]
    %v4751 = vld [vmem:[#allocation5 + $0xe18] sm:$0xff]
    %v4752 = vld [vmem:[#allocation5 + $0xe20] sm:$0xff]
    %v4753 = vld [vmem:[#allocation5 + $0xe28] sm:$0xff]
    %v4754 = vld [vmem:[#allocation5 + $0xe30] sm:$0xff]
    %v4755 = vld [vmem:[#allocation5 + $0xe38] sm:$0xff]
    %v4756 = vld [vmem:[#allocation5 + $0xe40] sm:$0xff]
    %v4757 = vld [vmem:[#allocation5 + $0xe48] sm:$0xff]
    %v4758 = vld [vmem:[#allocation5 + $0xe50] sm:$0xff]
    %v4759 = vld [vmem:[#allocation5 + $0xe58] sm:$0xff]
    %v4760 = vld [vmem:[#allocation5 + $0xe60] sm:$0xff]
    %v4761 = vld [vmem:[#allocation5 + $0xe68] sm:$0xff]
    %v4762 = vld [vmem:[#allocation5 + $0xe70] sm:$0xff]
    %v4763 = vld [vmem:[#allocation5 + $0xe78] sm:$0xff]
    %v4764 = vld [vmem:[#allocation5 + $0xe80] sm:$0xff]
    %v4765 = vld [vmem:[#allocation5 + $0xe88] sm:$0xff]
    %v4766 = vld [vmem:[#allocation5 + $0xe90] sm:$0xff]
    %v4767 = vld [vmem:[#allocation5 + $0xe98] sm:$0xff]
    %v4768 = vld [vmem:[#allocation5 + $0xea0] sm:$0xff]
    %v4769 = vld [vmem:[#allocation5 + $0xea8] sm:$0xff]
    %v4770 = vld [vmem:[#allocation5 + $0xeb0] sm:$0xff]
    %v4771 = vld [vmem:[#allocation5 + $0xeb8] sm:$0xff]
    %v4772 = vld [vmem:[#allocation5 + $0xec0] sm:$0xff]
    %v4773 = vld [vmem:[#allocation5 + $0xec8] sm:$0xff]
    %v4774 = vld [vmem:[#allocation5 + $0xed0] sm:$0xff]
    %v4775 = vld [vmem:[#allocation5 + $0xed8] sm:$0xff]
    %v4776 = vld [vmem:[#allocation5 + $0xee0] sm:$0xff]
    %v4777 = vld [vmem:[#allocation5 + $0xee8] sm:$0xff]
    %v4778 = vld [vmem:[#allocation5 + $0xef0] sm:$0xff]
    %v4779 = vld [vmem:[#allocation5 + $0xef8] sm:$0xff]
    %v4780 = vld [vmem:[#allocation5 + $0xf00] sm:$0xff]
    %v4781 = vld [vmem:[#allocation5 + $0xf08] sm:$0xff]
    %v4782 = vld [vmem:[#allocation5 + $0xf10] sm:$0xff]
    %v4783 = vld [vmem:[#allocation5 + $0xf18] sm:$0xff]
    %v4784 = vld [vmem:[#allocation5 + $0xf20] sm:$0xff]
    %v4785 = vld [vmem:[#allocation5 + $0xf28] sm:$0xff]
    %v4786 = vld [vmem:[#allocation5 + $0xf30] sm:$0xff]
    %v4787 = vld [vmem:[#allocation5 + $0xf38] sm:$0xff]
    %v4788 = vld [vmem:[#allocation5 + $0xf40] sm:$0xff]
    %v4789 = vld [vmem:[#allocation5 + $0xf48] sm:$0xff]
    %v4790 = vld [vmem:[#allocation5 + $0xf50] sm:$0xff]
    %v4791 = vld [vmem:[#allocation5 + $0xf58] sm:$0xff]
    %v4792 = vld [vmem:[#allocation5 + $0xf60] sm:$0xff]
    %v4793 = vld [vmem:[#allocation5 + $0xf68] sm:$0xff]
    %v4794 = vld [vmem:[#allocation5 + $0xf70] sm:$0xff]
    %v4795 = vld [vmem:[#allocation5 + $0xf78] sm:$0xff]
    %v4796 = vld [vmem:[#allocation5 + $0xf80] sm:$0xff]
    %v4797 = vld [vmem:[#allocation5 + $0xf88] sm:$0xff]
    %v4798 = vld [vmem:[#allocation5 + $0xf90] sm:$0xff]
    %v4799 = vld [vmem:[#allocation5 + $0xf98] sm:$0xff]
    %v4800 = vld [vmem:[#allocation5 + $0xfa0] sm:$0xff]
    %v4801 = vld [vmem:[#allocation5 + $0xfa8] sm:$0xff]
    %v4802 = vld [vmem:[#allocation5 + $0xfb0] sm:$0xff]
    %v4803 = vld [vmem:[#allocation5 + $0xfb8] sm:$0xff]
    %v4804 = vld [vmem:[#allocation5 + $0xfc0] sm:$0xff]
    %v4805 = vld [vmem:[#allocation5 + $0xfc8] sm:$0xff]
    %v4806 = vld [vmem:[#allocation5 + $0xfd0] sm:$0xff]
    %v4807 = vld [vmem:[#allocation5 + $0xfd8] sm:$0xff]
    %v4808 = vld [vmem:[#allocation5 + $0xfe0] sm:$0xff]
    %v4809 = vld [vmem:[#allocation5 + $0xfe8] sm:$0xff]
    %v4810 = vld [vmem:[#allocation5 + $0xff0] sm:$0xff]
    %v4811 = vld [vmem:[#allocation5 + $0xff8] sm:$0xff]
    %v4812 = vld [vmem:[#allocation5 + $0x1000] sm:$0xff]
    %v4813 = vld [vmem:[#allocation5 + $0x1008] sm:$0xff]
    %v4814 = vld [vmem:[#allocation5 + $0x1010] sm:$0xff]
    %v4815 = vld [vmem:[#allocation5 + $0x1018] sm:$0xff]
    %v4816 = vld [vmem:[#allocation5 + $0x1020] sm:$0xff]
    %v4817 = vld [vmem:[#allocation5 + $0x1028] sm:$0xff]
    %v4818 = vld [vmem:[#allocation5 + $0x1030] sm:$0xff]
    %v4819 = vld [vmem:[#allocation5 + $0x1038] sm:$0xff]
    %v4820 = vld [vmem:[#allocation5 + $0x1040] sm:$0xff]
    %v4821 = vld [vmem:[#allocation5 + $0x1048] sm:$0xff]
    %v4822 = vld [vmem:[#allocation5 + $0x1050] sm:$0xff]
    %v4823 = vld [vmem:[#allocation5 + $0x1058] sm:$0xff]
    %v4824 = vld [vmem:[#allocation5 + $0x1060] sm:$0xff]
    %v4825 = vld [vmem:[#allocation5 + $0x1068] sm:$0xff]
    %v4826 = vld [vmem:[#allocation5 + $0x1070] sm:$0xff]
    %v4827 = vld [vmem:[#allocation5 + $0x1078] sm:$0xff]
    %v4828 = vld [vmem:[#allocation5 + $0x1080] sm:$0xff]
    %v4829 = vld [vmem:[#allocation5 + $0x1088] sm:$0xff]
    %v4830 = vld [vmem:[#allocation5 + $0x1090] sm:$0xff]
    %v4831 = vld [vmem:[#allocation5 + $0x1098] sm:$0xff]
    %v4832 = vld [vmem:[#allocation5 + $0x10a0] sm:$0xff]
    %v4833 = vld [vmem:[#allocation5 + $0x10a8] sm:$0xff]
    %v4834 = vld [vmem:[#allocation5 + $0x10b0] sm:$0xff]
    %v4835 = vld [vmem:[#allocation5 + $0x10b8] sm:$0xff]
    %v4836 = vld [vmem:[#allocation5 + $0x10c0] sm:$0xff]
    %v4837 = vld [vmem:[#allocation5 + $0x10c8] sm:$0xff]
    %v4838 = vld [vmem:[#allocation5 + $0x10d0] sm:$0xff]
    %v4839 = vld [vmem:[#allocation5 + $0x10d8] sm:$0xff]
    %v4840 = vld [vmem:[#allocation5 + $0x10e0] sm:$0xff]
    %v4841 = vld [vmem:[#allocation5 + $0x10e8] sm:$0xff]
    %v4842 = vld [vmem:[#allocation5 + $0x10f0] sm:$0xff]
    %v4843 = vld [vmem:[#allocation5 + $0x10f8] sm:$0xff]
    %v4844 = vld [vmem:[#allocation5 + $0x1100] sm:$0xff]
    %v4845 = vld [vmem:[#allocation5 + $0x1108] sm:$0xff]
    %v4846 = vld [vmem:[#allocation5 + $0x1110] sm:$0xff]
    %v4847 = vld [vmem:[#allocation5 + $0x1118] sm:$0xff]
    %v4848 = vld [vmem:[#allocation5 + $0x1120] sm:$0xff]
    %v4849 = vld [vmem:[#allocation5 + $0x1128] sm:$0xff]
    %v4850 = vld [vmem:[#allocation5 + $0x1130] sm:$0xff]
    %v4851 = vld [vmem:[#allocation5 + $0x1138] sm:$0xff]
    %v4852 = vld [vmem:[#allocation5 + $0x1140] sm:$0xff]
    %v4853 = vld [vmem:[#allocation5 + $0x1148] sm:$0xff]
    %v4854 = vld [vmem:[#allocation5 + $0x1150] sm:$0xff]
    %v4855 = vld [vmem:[#allocation5 + $0x1158] sm:$0xff]
    %v4856 = vld [vmem:[#allocation5 + $0x1160] sm:$0xff]
    %v4857 = vld [vmem:[#allocation5 + $0x1168] sm:$0xff]
    %v4858 = vld [vmem:[#allocation5 + $0x1170] sm:$0xff]
    %v4859 = vld [vmem:[#allocation5 + $0x1178] sm:$0xff]
    %v4860 = vld [vmem:[#allocation5 + $0x1180] sm:$0xff]
    %v4861 = vld [vmem:[#allocation5 + $0x1188] sm:$0xff]
    %v4862 = vld [vmem:[#allocation5 + $0x1190] sm:$0xff]
    %v4863 = vld [vmem:[#allocation5 + $0x1198] sm:$0xff]
    %v4864 = vld [vmem:[#allocation5 + $0x11a0] sm:$0xff]
    %v4865 = vld [vmem:[#allocation5 + $0x11a8] sm:$0xff]
    %v4866 = vld [vmem:[#allocation5 + $0x11b0] sm:$0xff]
    %v4867 = vld [vmem:[#allocation5 + $0x11b8] sm:$0xff]
    %v4868 = vld [vmem:[#allocation5 + $0x11c0] sm:$0xff]
    %v4869 = vld [vmem:[#allocation5 + $0x11c8] sm:$0xff]
    %v4870 = vld [vmem:[#allocation5 + $0x11d0] sm:$0xff]
    %v4871 = vld [vmem:[#allocation5 + $0x11d8] sm:$0xff]
    %v4872 = vld [vmem:[#allocation5 + $0x11e0] sm:$0xff]
    %v4873 = vld [vmem:[#allocation5 + $0x11e8] sm:$0xff]
    %v4874 = vld [vmem:[#allocation5 + $0x11f0] sm:$0xff]
    %v4875 = vld [vmem:[#allocation5 + $0x11f8] sm:$0xff]
    %v4876 = vld [vmem:[#allocation5 + $0x1200] sm:$0xff]
    %v4877 = vld [vmem:[#allocation5 + $0x1208] sm:$0xff]
    %v4878 = vld [vmem:[#allocation5 + $0x1210] sm:$0xff]
    %v4879 = vld [vmem:[#allocation5 + $0x1218] sm:$0xff]
    %v4880 = vld [vmem:[#allocation5 + $0x1220] sm:$0xff]
    %v4881 = vld [vmem:[#allocation5 + $0x1228] sm:$0xff]
    %v4882 = vld [vmem:[#allocation5 + $0x1230] sm:$0xff]
    %v4883 = vld [vmem:[#allocation5 + $0x1238] sm:$0xff]
    %v4884 = vld [vmem:[#allocation5 + $0x1240] sm:$0xff]
    %v4885 = vld [vmem:[#allocation5 + $0x1248] sm:$0xff]
    %v4886 = vld [vmem:[#allocation5 + $0x1250] sm:$0xff]
    %v4887 = vld [vmem:[#allocation5 + $0x1258] sm:$0xff]
    %v4888 = vld [vmem:[#allocation5 + $0x1260] sm:$0xff]
    %v4889 = vld [vmem:[#allocation5 + $0x1268] sm:$0xff]
    %v4890 = vld [vmem:[#allocation5 + $0x1270] sm:$0xff]
    %v4891 = vld [vmem:[#allocation5 + $0x1278] sm:$0xff]
    %v4892 = vld [vmem:[#allocation5 + $0x1280] sm:$0xff]
    %v4893 = vld [vmem:[#allocation5 + $0x1288] sm:$0xff]
    %v4894 = vld [vmem:[#allocation5 + $0x1290] sm:$0xff]
    %v4895 = vld [vmem:[#allocation5 + $0x1298] sm:$0xff]
    %v4896 = vld [vmem:[#allocation5 + $0x12a0] sm:$0xff]
    %v4897 = vld [vmem:[#allocation5 + $0x12a8] sm:$0xff]
    %v4898 = vld [vmem:[#allocation5 + $0x12b0] sm:$0xff]
    %v4899 = vld [vmem:[#allocation5 + $0x12b8] sm:$0xff]
    %v4900 = vld [vmem:[#allocation5 + $0x12c0] sm:$0xff]
    %v4901 = vld [vmem:[#allocation5 + $0x12c8] sm:$0xff]
    %v4902 = vld [vmem:[#allocation5 + $0x12d0] sm:$0xff]
    %v4903 = vld [vmem:[#allocation5 + $0x12d8] sm:$0xff]
    %v4904 = vld [vmem:[#allocation5 + $0x12e0] sm:$0xff]
    %v4905 = vld [vmem:[#allocation5 + $0x12e8] sm:$0xff]
    %v4906 = vld [vmem:[#allocation5 + $0x12f0] sm:$0xff]
    %v4907 = vld [vmem:[#allocation5 + $0x12f8] sm:$0xff]
    %v4908 = vld [vmem:[#allocation5 + $0x1300] sm:$0xff]
    %v4909 = vld [vmem:[#allocation5 + $0x1308] sm:$0xff]
    %v4910 = vld [vmem:[#allocation5 + $0x1310] sm:$0xff]
    %v4911 = vld [vmem:[#allocation5 + $0x1318] sm:$0xff]
    %v4912 = vld [vmem:[#allocation5 + $0x1320] sm:$0xff]
    %v4913 = vld [vmem:[#allocation5 + $0x1328] sm:$0xff]
    %v4914 = vld [vmem:[#allocation5 + $0x1330] sm:$0xff]
    %v4915 = vld [vmem:[#allocation5 + $0x1338] sm:$0xff]
    %v4916 = vld [vmem:[#allocation5 + $0x1340] sm:$0xff]
    %v4917 = vld [vmem:[#allocation5 + $0x1348] sm:$0xff]
    %v4918 = vld [vmem:[#allocation5 + $0x1350] sm:$0xff]
    %v4919 = vld [vmem:[#allocation5 + $0x1358] sm:$0xff]
    %v4920 = vld [vmem:[#allocation5 + $0x1360] sm:$0xff]
    %v4921 = vld [vmem:[#allocation5 + $0x1368] sm:$0xff]
    %v4922 = vld [vmem:[#allocation5 + $0x1370] sm:$0xff]
    %v4923 = vld [vmem:[#allocation5 + $0x1378] sm:$0xff]
    %v4924 = vld [vmem:[#allocation5 + $0x1380] sm:$0xff]
    %v4925 = vld [vmem:[#allocation5 + $0x1388] sm:$0xff]
    %v4926 = vld [vmem:[#allocation5 + $0x1390] sm:$0xff]
    %v4927 = vld [vmem:[#allocation5 + $0x1398] sm:$0xff]
    %v4928 = vld [vmem:[#allocation5 + $0x13a0] sm:$0xff]
    %v4929 = vld [vmem:[#allocation5 + $0x13a8] sm:$0xff]
    %v4930 = vld [vmem:[#allocation5 + $0x13b0] sm:$0xff]
    %v4931 = vld [vmem:[#allocation5 + $0x13b8] sm:$0xff]
    %v4932 = vld [vmem:[#allocation5 + $0x13c0] sm:$0xff]
    %v4933 = vld [vmem:[#allocation5 + $0x13c8] sm:$0xff]
    %v4934 = vld [vmem:[#allocation5 + $0x13d0] sm:$0xff]
    %v4935 = vld [vmem:[#allocation5 + $0x13d8] sm:$0xff]
    %v4936 = vld [vmem:[#allocation5 + $0x13e0] sm:$0xff]
    %v4937 = vld [vmem:[#allocation5 + $0x13e8] sm:$0xff]
    %v4938 = vld [vmem:[#allocation5 + $0x13f0] sm:$0xff]
    %v4939 = vld [vmem:[#allocation5 + $0x13f8] sm:$0xff]
    %v4940 = vld [vmem:[#allocation5 + $0x1400] sm:$0xff]
    %v4941 = vld [vmem:[#allocation5 + $0x1408] sm:$0xff]
    %v4942 = vld [vmem:[#allocation5 + $0x1410] sm:$0xff]
    %v4943 = vld [vmem:[#allocation5 + $0x1418] sm:$0xff]
    %v4944 = vld [vmem:[#allocation5 + $0x1420] sm:$0xff]
    %v4945 = vld [vmem:[#allocation5 + $0x1428] sm:$0xff]
    %v4946 = vld [vmem:[#allocation5 + $0x1430] sm:$0xff]
    %v4947 = vld [vmem:[#allocation5 + $0x1438] sm:$0xff]
    %v4948 = vld [vmem:[#allocation5 + $0x1440] sm:$0xff]
    %v4949 = vld [vmem:[#allocation5 + $0x1448] sm:$0xff]
    %v4950 = vld [vmem:[#allocation5 + $0x1450] sm:$0xff]
    %v4951 = vld [vmem:[#allocation5 + $0x1458] sm:$0xff]
    %v4952 = vld [vmem:[#allocation5 + $0x1460] sm:$0xff]
    %v4953 = vld [vmem:[#allocation5 + $0x1468] sm:$0xff]
    %v4954 = vld [vmem:[#allocation5 + $0x1470] sm:$0xff]
    %v4955 = vld [vmem:[#allocation5 + $0x1478] sm:$0xff]
    %v4956 = vld [vmem:[#allocation5 + $0x1480] sm:$0xff]
    %v4957 = vld [vmem:[#allocation5 + $0x1488] sm:$0xff]
    %v4958 = vld [vmem:[#allocation5 + $0x1490] sm:$0xff]
    %v4959 = vld [vmem:[#allocation5 + $0x1498] sm:$0xff]
    %v4960 = vld [vmem:[#allocation5 + $0x14a0] sm:$0xff]
    %v4961 = vld [vmem:[#allocation5 + $0x14a8] sm:$0xff]
    %v4962 = vld [vmem:[#allocation5 + $0x14b0] sm:$0xff]
    %v4963 = vld [vmem:[#allocation5 + $0x14b8] sm:$0xff]
    %v4964 = vld [vmem:[#allocation5 + $0x14c0] sm:$0xff]
    %v4965 = vld [vmem:[#allocation5 + $0x14c8] sm:$0xff]
    %v4966 = vld [vmem:[#allocation5 + $0x14d0] sm:$0xff]
    %v4967 = vld [vmem:[#allocation5 + $0x14d8] sm:$0xff]
    %v4968 = vld [vmem:[#allocation5 + $0x14e0] sm:$0xff]
    %v4969 = vld [vmem:[#allocation5 + $0x14e8] sm:$0xff]
    %v4970 = vld [vmem:[#allocation5 + $0x14f0] sm:$0xff]
    %v4971 = vld [vmem:[#allocation5 + $0x14f8] sm:$0xff]
    %v4972 = vld [vmem:[#allocation5 + $0x1500] sm:$0xff]
    %v4973 = vld [vmem:[#allocation5 + $0x1508] sm:$0xff]
    %v4974 = vld [vmem:[#allocation5 + $0x1510] sm:$0xff]
    %v4975 = vld [vmem:[#allocation5 + $0x1518] sm:$0xff]
    %v4976 = vld [vmem:[#allocation5 + $0x1520] sm:$0xff]
    %v4977 = vld [vmem:[#allocation5 + $0x1528] sm:$0xff]
    %v4978 = vld [vmem:[#allocation5 + $0x1530] sm:$0xff]
    %v4979 = vld [vmem:[#allocation5 + $0x1538] sm:$0xff]
    %v4980 = vld [vmem:[#allocation5 + $0x1540] sm:$0xff]
    %v4981 = vld [vmem:[#allocation5 + $0x1548] sm:$0xff]
    %v4982 = vld [vmem:[#allocation5 + $0x1550] sm:$0xff]
    %v4983 = vld [vmem:[#allocation5 + $0x1558] sm:$0xff]
    %v4984 = vld [vmem:[#allocation5 + $0x1560] sm:$0xff]
    %v4985 = vld [vmem:[#allocation5 + $0x1568] sm:$0xff]
    %v4986 = vld [vmem:[#allocation5 + $0x1570] sm:$0xff]
    %v4987 = vld [vmem:[#allocation5 + $0x1578] sm:$0xff]
    %v4988 = vld [vmem:[#allocation5 + $0x1580] sm:$0xff]
    %v4989 = vld [vmem:[#allocation5 + $0x1588] sm:$0xff]
    %v4990 = vld [vmem:[#allocation5 + $0x1590] sm:$0xff]
    %v4991 = vld [vmem:[#allocation5 + $0x1598] sm:$0xff]
    %v4992 = vld [vmem:[#allocation5 + $0x15a0] sm:$0xff]
    %v4993 = vld [vmem:[#allocation5 + $0x15a8] sm:$0xff]
    %v4994 = vld [vmem:[#allocation5 + $0x15b0] sm:$0xff]
    %v4995 = vld [vmem:[#allocation5 + $0x15b8] sm:$0xff]
    %v4996 = vld [vmem:[#allocation5 + $0x15c0] sm:$0xff]
    %v4997 = vld [vmem:[#allocation5 + $0x15c8] sm:$0xff]
    %v4998 = vld [vmem:[#allocation5 + $0x15d0] sm:$0xff]
    %v4999 = vld [vmem:[#allocation5 + $0x15d8] sm:$0xff]
    %v5000 = vld [vmem:[#allocation5 + $0x15e0] sm:$0xff]
    %v5001 = vld [vmem:[#allocation5 + $0x15e8] sm:$0xff]
    %v5002 = vld [vmem:[#allocation5 + $0x15f0] sm:$0xff]
    %v5003 = vld [vmem:[#allocation5 + $0x15f8] sm:$0xff]
    %v5004 = vld [vmem:[#allocation5 + $0x1600] sm:$0xff]
    %v5005 = vld [vmem:[#allocation5 + $0x1608] sm:$0xff]
    %v5006 = vld [vmem:[#allocation5 + $0x1610] sm:$0xff]
    %v5007 = vld [vmem:[#allocation5 + $0x1618] sm:$0xff]
    %v5008 = vld [vmem:[#allocation5 + $0x1620] sm:$0xff]
    %v5009 = vld [vmem:[#allocation5 + $0x1628] sm:$0xff]
    %v5010 = vld [vmem:[#allocation5 + $0x1630] sm:$0xff]
    %v5011 = vld [vmem:[#allocation5 + $0x1638] sm:$0xff]
    %v5012 = vld [vmem:[#allocation5 + $0x1640] sm:$0xff]
    %v5013 = vld [vmem:[#allocation5 + $0x1648] sm:$0xff]
    %v5014 = vld [vmem:[#allocation5 + $0x1650] sm:$0xff]
    %v5015 = vld [vmem:[#allocation5 + $0x1658] sm:$0xff]
    %v5016 = vld [vmem:[#allocation5 + $0x1660] sm:$0xff]
    %v5017 = vld [vmem:[#allocation5 + $0x1668] sm:$0xff]
    %v5018 = vld [vmem:[#allocation5 + $0x1670] sm:$0xff]
    %v5019 = vld [vmem:[#allocation5 + $0x1678] sm:$0xff]
    %v5020 = vld [vmem:[#allocation5 + $0x1680] sm:$0xff]
    %v5021 = vld [vmem:[#allocation5 + $0x1688] sm:$0xff]
    %v5022 = vld [vmem:[#allocation5 + $0x1690] sm:$0xff]
    %v5023 = vld [vmem:[#allocation5 + $0x1698] sm:$0xff]
    %v5024 = vld [vmem:[#allocation5 + $0x16a0] sm:$0xff]
    %v5025 = vld [vmem:[#allocation5 + $0x16a8] sm:$0xff]
    %v5026 = vld [vmem:[#allocation5 + $0x16b0] sm:$0xff]
    %v5027 = vld [vmem:[#allocation5 + $0x16b8] sm:$0xff]
    %v5028 = vld [vmem:[#allocation5 + $0x16c0] sm:$0xff]
    %v5029 = vld [vmem:[#allocation5 + $0x16c8] sm:$0xff]
    %v5030 = vld [vmem:[#allocation5 + $0x16d0] sm:$0xff]
    %v5031 = vld [vmem:[#allocation5 + $0x16d8] sm:$0xff]
    %v5032 = vld [vmem:[#allocation5 + $0x16e0] sm:$0xff]
    %v5033 = vld [vmem:[#allocation5 + $0x16e8] sm:$0xff]
    %v5034 = vld [vmem:[#allocation5 + $0x16f0] sm:$0xff]
    %v5035 = vld [vmem:[#allocation5 + $0x16f8] sm:$0xff]
    %v5036 = vld [vmem:[#allocation5 + $0x1700] sm:$0xff]
    %v5037 = vld [vmem:[#allocation5 + $0x1708] sm:$0xff]
    %v5038 = vld [vmem:[#allocation5 + $0x1710] sm:$0xff]
    %v5039 = vld [vmem:[#allocation5 + $0x1718] sm:$0xff]
    %v5040 = vld [vmem:[#allocation5 + $0x1720] sm:$0xff]
    %v5041 = vld [vmem:[#allocation5 + $0x1728] sm:$0xff]
    %v5042 = vld [vmem:[#allocation5 + $0x1730] sm:$0xff]
    %v5043 = vld [vmem:[#allocation5 + $0x1738] sm:$0xff]
    %v5044 = vld [vmem:[#allocation5 + $0x1740] sm:$0xff]
    %v5045 = vld [vmem:[#allocation5 + $0x1748] sm:$0xff]
    %v5046 = vld [vmem:[#allocation5 + $0x1750] sm:$0xff]
    %v5047 = vld [vmem:[#allocation5 + $0x1758] sm:$0xff]
    %v5048 = vld [vmem:[#allocation5 + $0x1760] sm:$0xff]
    %v5049 = vld [vmem:[#allocation5 + $0x1768] sm:$0xff]
    %v5050 = vld [vmem:[#allocation5 + $0x1770] sm:$0xff]
    %v5051 = vld [vmem:[#allocation5 + $0x1778] sm:$0xff]
    %v5052 = vld [vmem:[#allocation5 + $0x1780] sm:$0xff]
    %v5053 = vld [vmem:[#allocation5 + $0x1788] sm:$0xff]
    %v5054 = vld [vmem:[#allocation5 + $0x1790] sm:$0xff]
    %v5055 = vld [vmem:[#allocation5 + $0x1798] sm:$0xff]
    %v5056 = vld [vmem:[#allocation5 + $0x17a0] sm:$0xff]
    %v5057 = vld [vmem:[#allocation5 + $0x17a8] sm:$0xff]
    %v5058 = vld [vmem:[#allocation5 + $0x17b0] sm:$0xff]
    %v5059 = vld [vmem:[#allocation5 + $0x17b8] sm:$0xff]
    %v5060 = vld [vmem:[#allocation5 + $0x17c0] sm:$0xff]
    %v5061 = vld [vmem:[#allocation5 + $0x17c8] sm:$0xff]
    %v5062 = vld [vmem:[#allocation5 + $0x17d0] sm:$0xff]
    %v5063 = vld [vmem:[#allocation5 + $0x17d8] sm:$0xff]
    %v5064 = vld [vmem:[#allocation5 + $0x17e0] sm:$0xff]
    %v5065 = vld [vmem:[#allocation5 + $0x17e8] sm:$0xff]
    %v5066 = vld [vmem:[#allocation5 + $0x17f0] sm:$0xff]
    %v5067 = vld [vmem:[#allocation5 + $0x17f8] sm:$0xff]
    %v5068 = vld [vmem:[#allocation5 + $0x1800] sm:$0xff]
    %v5069 = vld [vmem:[#allocation5 + $0x1808] sm:$0xff]
    %v5070 = vld [vmem:[#allocation5 + $0x1810] sm:$0xff]
    %v5071 = vld [vmem:[#allocation5 + $0x1818] sm:$0xff]
    %v5072 = vld [vmem:[#allocation5 + $0x1820] sm:$0xff]
    %v5073 = vld [vmem:[#allocation5 + $0x1828] sm:$0xff]
    %v5074 = vld [vmem:[#allocation5 + $0x1830] sm:$0xff]
    %v5075 = vld [vmem:[#allocation5 + $0x1838] sm:$0xff]
    %v5076 = vld [vmem:[#allocation5 + $0x1840] sm:$0xff]
    %v5077 = vld [vmem:[#allocation5 + $0x1848] sm:$0xff]
    %v5078 = vld [vmem:[#allocation5 + $0x1850] sm:$0xff]
    %v5079 = vld [vmem:[#allocation5 + $0x1858] sm:$0xff]
    %v5080 = vld [vmem:[#allocation5 + $0x1860] sm:$0xff]
    %v5081 = vld [vmem:[#allocation5 + $0x1868] sm:$0xff]
    %v5082 = vld [vmem:[#allocation5 + $0x1870] sm:$0xff]
    %v5083 = vld [vmem:[#allocation5 + $0x1878] sm:$0xff]
    %v5084 = vld [vmem:[#allocation5 + $0x1880] sm:$0xff]
    %v5085 = vld [vmem:[#allocation5 + $0x1888] sm:$0xff]
    %v5086 = vld [vmem:[#allocation5 + $0x1890] sm:$0xff]
    %v5087 = vld [vmem:[#allocation5 + $0x1898] sm:$0xff]
    %v5088 = vld [vmem:[#allocation5 + $0x18a0] sm:$0xff]
    %v5089 = vld [vmem:[#allocation5 + $0x18a8] sm:$0xff]
    %v5090 = vld [vmem:[#allocation5 + $0x18b0] sm:$0xff]
    %v5091 = vld [vmem:[#allocation5 + $0x18b8] sm:$0xff]
    %v5092 = vld [vmem:[#allocation5 + $0x18c0] sm:$0xff]
    %v5093 = vld [vmem:[#allocation5 + $0x18c8] sm:$0xff]
    %v5094 = vld [vmem:[#allocation5 + $0x18d0] sm:$0xff]
    %v5095 = vld [vmem:[#allocation5 + $0x18d8] sm:$0xff]
    %v5096 = vld [vmem:[#allocation5 + $0x18e0] sm:$0xff]
    %v5097 = vld [vmem:[#allocation5 + $0x18e8] sm:$0xff]
    %v5098 = vld [vmem:[#allocation5 + $0x18f0] sm:$0xff]
    %v5099 = vld [vmem:[#allocation5 + $0x18f8] sm:$0xff]
    %v5100 = vld [vmem:[#allocation5 + $0x1900] sm:$0xff]
    %v5101 = vld [vmem:[#allocation5 + $0x1908] sm:$0xff]
    %v5102 = vld [vmem:[#allocation5 + $0x1910] sm:$0xff]
    %v5103 = vld [vmem:[#allocation5 + $0x1918] sm:$0xff]
    %v5104 = vld [vmem:[#allocation5 + $0x1920] sm:$0xff]
    %v5105 = vld [vmem:[#allocation5 + $0x1928] sm:$0xff]
    %v5106 = vld [vmem:[#allocation5 + $0x1930] sm:$0xff]
    %v5107 = vld [vmem:[#allocation5 + $0x1938] sm:$0xff]
    %v5108 = vld [vmem:[#allocation5 + $0x1940] sm:$0xff]
    %v5109 = vld [vmem:[#allocation5 + $0x1948] sm:$0xff]
    %v5110 = vld [vmem:[#allocation5 + $0x1950] sm:$0xff]
    %v5111 = vld [vmem:[#allocation5 + $0x1958] sm:$0xff]
    %v5112 = vld [vmem:[#allocation5 + $0x1960] sm:$0xff]
    %v5113 = vld [vmem:[#allocation5 + $0x1968] sm:$0xff]
    %v5114 = vld [vmem:[#allocation5 + $0x1970] sm:$0xff]
    %v5115 = vld [vmem:[#allocation5 + $0x1978] sm:$0xff]
    %v5116 = vld [vmem:[#allocation5 + $0x1980] sm:$0xff]
    %v5117 = vld [vmem:[#allocation5 + $0x1988] sm:$0xff]
    %v5118 = vld [vmem:[#allocation5 + $0x1990] sm:$0xff]
    %v5119 = vld [vmem:[#allocation5 + $0x1998] sm:$0xff]
    %v5120 = vld [vmem:[#allocation5 + $0x19a0] sm:$0xff]
    %v5121 = vld [vmem:[#allocation5 + $0x19a8] sm:$0xff]
    %v5122 = vld [vmem:[#allocation5 + $0x19b0] sm:$0xff]
    %v5123 = vld [vmem:[#allocation5 + $0x19b8] sm:$0xff]
    %v5124 = vld [vmem:[#allocation5 + $0x19c0] sm:$0xff]
    %v5125 = vld [vmem:[#allocation5 + $0x19c8] sm:$0xff]
    %v5126 = vld [vmem:[#allocation5 + $0x19d0] sm:$0xff]
    %v5127 = vld [vmem:[#allocation5 + $0x19d8] sm:$0xff]
    %v5128 = vld [vmem:[#allocation5 + $0x19e0] sm:$0xff]
    %v5129 = vld [vmem:[#allocation5 + $0x19e8] sm:$0xff]
    %v5130 = vld [vmem:[#allocation5 + $0x19f0] sm:$0xff]
    %v5131 = vld [vmem:[#allocation5 + $0x19f8] sm:$0xff]
    %v5132 = vld [vmem:[#allocation5 + $0x1a00] sm:$0xff]
    %v5133 = vld [vmem:[#allocation5 + $0x1a08] sm:$0xff]
    %v5134 = vld [vmem:[#allocation5 + $0x1a10] sm:$0xff]
    %v5135 = vld [vmem:[#allocation5 + $0x1a18] sm:$0xff]
    %v5136 = vld [vmem:[#allocation5 + $0x1a20] sm:$0xff]
    %v5137 = vld [vmem:[#allocation5 + $0x1a28] sm:$0xff]
    %v5138 = vld [vmem:[#allocation5 + $0x1a30] sm:$0xff]
    %v5139 = vld [vmem:[#allocation5 + $0x1a38] sm:$0xff]
    %v5140 = vld [vmem:[#allocation5 + $0x1a40] sm:$0xff]
    %v5141 = vld [vmem:[#allocation5 + $0x1a48] sm:$0xff]
    %v5142 = vld [vmem:[#allocation5 + $0x1a50] sm:$0xff]
    %v5143 = vld [vmem:[#allocation5 + $0x1a58] sm:$0xff]
    %v5144 = vld [vmem:[#allocation5 + $0x1a60] sm:$0xff]
    %v5145 = vld [vmem:[#allocation5 + $0x1a68] sm:$0xff]
    %v5146 = vld [vmem:[#allocation5 + $0x1a70] sm:$0xff]
    %v5147 = vld [vmem:[#allocation5 + $0x1a78] sm:$0xff]
    %v5148 = vld [vmem:[#allocation5 + $0x1a80] sm:$0xff]
    %v5149 = vld [vmem:[#allocation5 + $0x1a88] sm:$0xff]
    %v5150 = vld [vmem:[#allocation5 + $0x1a90] sm:$0xff]
    %v5151 = vld [vmem:[#allocation5 + $0x1a98] sm:$0xff]
    %v5152 = vld [vmem:[#allocation5 + $0x1aa0] sm:$0xff]
    %v5153 = vld [vmem:[#allocation5 + $0x1aa8] sm:$0xff]
    %v5154 = vld [vmem:[#allocation5 + $0x1ab0] sm:$0xff]
    %v5155 = vld [vmem:[#allocation5 + $0x1ab8] sm:$0xff]
    %v5156 = vld [vmem:[#allocation5 + $0x1ac0] sm:$0xff]
    %v5157 = vld [vmem:[#allocation5 + $0x1ac8] sm:$0xff]
    %v5158 = vld [vmem:[#allocation5 + $0x1ad0] sm:$0xff]
    %v5159 = vld [vmem:[#allocation5 + $0x1ad8] sm:$0xff]
    %v5160 = vld [vmem:[#allocation5 + $0x1ae0] sm:$0xff]
    %v5161 = vld [vmem:[#allocation5 + $0x1ae8] sm:$0xff]
    %v5162 = vld [vmem:[#allocation5 + $0x1af0] sm:$0xff]
    %v5163 = vld [vmem:[#allocation5 + $0x1af8] sm:$0xff]
    %v5164 = vld [vmem:[#allocation5 + $0x1b00] sm:$0xff]
    %v5165 = vld [vmem:[#allocation5 + $0x1b08] sm:$0xff]
    %v5166 = vld [vmem:[#allocation5 + $0x1b10] sm:$0xff]
    %v5167 = vld [vmem:[#allocation5 + $0x1b18] sm:$0xff]
    %v5168 = vld [vmem:[#allocation5 + $0x1b20] sm:$0xff]
    %v5169 = vld [vmem:[#allocation5 + $0x1b28] sm:$0xff]
    %v5170 = vld [vmem:[#allocation5 + $0x1b30] sm:$0xff]
    %v5171 = vld [vmem:[#allocation5 + $0x1b38] sm:$0xff]
    %v5172 = vld [vmem:[#allocation5 + $0x1b40] sm:$0xff]
    %v5173 = vld [vmem:[#allocation5 + $0x1b48] sm:$0xff]
    %v5174 = vld [vmem:[#allocation5 + $0x1b50] sm:$0xff]
    %v5175 = vld [vmem:[#allocation5 + $0x1b58] sm:$0xff]
    %v5176 = vld [vmem:[#allocation5 + $0x1b60] sm:$0xff]
    %v5177 = vld [vmem:[#allocation5 + $0x1b68] sm:$0xff]
    %v5178 = vld [vmem:[#allocation5 + $0x1b70] sm:$0xff]
    %v5179 = vld [vmem:[#allocation5 + $0x1b78] sm:$0xff]
    %v5180 = vld [vmem:[#allocation5 + $0x1b80] sm:$0xff]
    %v5181 = vld [vmem:[#allocation5 + $0x1b88] sm:$0xff]
    %v5182 = vld [vmem:[#allocation5 + $0x1b90] sm:$0xff]
    %v5183 = vld [vmem:[#allocation5 + $0x1b98] sm:$0xff]
    %v5184 = vld [vmem:[#allocation5 + $0x1ba0] sm:$0xff]
    %v5185 = vld [vmem:[#allocation5 + $0x1ba8] sm:$0xff]
    %v5186 = vld [vmem:[#allocation5 + $0x1bb0] sm:$0xff]
    %v5187 = vld [vmem:[#allocation5 + $0x1bb8] sm:$0xff]
    %v5188 = vld [vmem:[#allocation5 + $0x1bc0] sm:$0xff]
    %v5189 = vld [vmem:[#allocation5 + $0x1bc8] sm:$0xff]
    %v5190 = vld [vmem:[#allocation5 + $0x1bd0] sm:$0xff]
    %v5191 = vld [vmem:[#allocation5 + $0x1bd8] sm:$0xff]
    %v5192 = vld [vmem:[#allocation5 + $0x1be0] sm:$0xff]
    %v5193 = vld [vmem:[#allocation5 + $0x1be8] sm:$0xff]
    %v5194 = vld [vmem:[#allocation5 + $0x1bf0] sm:$0xff]
    %v5195 = vld [vmem:[#allocation5 + $0x1bf8] sm:$0xff]
    %v5196 = vld [vmem:[#allocation5 + $0x1c00] sm:$0xff]
    %v5197 = vld [vmem:[#allocation5 + $0x1c08] sm:$0xff]
    %v5198 = vld [vmem:[#allocation5 + $0x1c10] sm:$0xff]
    %v5199 = vld [vmem:[#allocation5 + $0x1c18] sm:$0xff]
    %v5200 = vld [vmem:[#allocation5 + $0x1c20] sm:$0xff]
    %v5201 = vld [vmem:[#allocation5 + $0x1c28] sm:$0xff]
    %v5202 = vld [vmem:[#allocation5 + $0x1c30] sm:$0xff]
    %v5203 = vld [vmem:[#allocation5 + $0x1c38] sm:$0xff]
    %v5204 = vld [vmem:[#allocation5 + $0x1c40] sm:$0xff]
    %v5205 = vld [vmem:[#allocation5 + $0x1c48] sm:$0xff]
    %v5206 = vld [vmem:[#allocation5 + $0x1c50] sm:$0xff]
    %v5207 = vld [vmem:[#allocation5 + $0x1c58] sm:$0xff]
    %v5208 = vld [vmem:[#allocation5 + $0x1c60] sm:$0xff]
    %v5209 = vld [vmem:[#allocation5 + $0x1c68] sm:$0xff]
    %v5210 = vld [vmem:[#allocation5 + $0x1c70] sm:$0xff]
    %v5211 = vld [vmem:[#allocation5 + $0x1c78] sm:$0xff]
    %v5212 = vld [vmem:[#allocation5 + $0x1c80] sm:$0xff]
    %v5213 = vld [vmem:[#allocation5 + $0x1c88] sm:$0xff]
    %v5214 = vld [vmem:[#allocation5 + $0x1c90] sm:$0xff]
    %v5215 = vld [vmem:[#allocation5 + $0x1c98] sm:$0xff]
    %v5216 = vld [vmem:[#allocation5 + $0x1ca0] sm:$0xff]
    %v5217 = vld [vmem:[#allocation5 + $0x1ca8] sm:$0xff]
    %v5218 = vld [vmem:[#allocation5 + $0x1cb0] sm:$0xff]
    %v5219 = vld [vmem:[#allocation5 + $0x1cb8] sm:$0xff]
    %v5220 = vld [vmem:[#allocation5 + $0x1cc0] sm:$0xff]
    %v5221 = vld [vmem:[#allocation5 + $0x1cc8] sm:$0xff]
    %v5222 = vld [vmem:[#allocation5 + $0x1cd0] sm:$0xff]
    %v5223 = vld [vmem:[#allocation5 + $0x1cd8] sm:$0xff]
    %v5224 = vld [vmem:[#allocation5 + $0x1ce0] sm:$0xff]
    %v5225 = vld [vmem:[#allocation5 + $0x1ce8] sm:$0xff]
    %v5226 = vld [vmem:[#allocation5 + $0x1cf0] sm:$0xff]
    %v5227 = vld [vmem:[#allocation5 + $0x1cf8] sm:$0xff]
    %v5228 = vld [vmem:[#allocation5 + $0x1d00] sm:$0xff]
    %v5229 = vld [vmem:[#allocation5 + $0x1d08] sm:$0xff]
    %v5230 = vld [vmem:[#allocation5 + $0x1d10] sm:$0xff]
    %v5231 = vld [vmem:[#allocation5 + $0x1d18] sm:$0xff]
    %v5232 = vld [vmem:[#allocation5 + $0x1d20] sm:$0xff]
    %v5233 = vld [vmem:[#allocation5 + $0x1d28] sm:$0xff]
    %v5234 = vld [vmem:[#allocation5 + $0x1d30] sm:$0xff]
    %v5235 = vld [vmem:[#allocation5 + $0x1d38] sm:$0xff]
    %v5236 = vld [vmem:[#allocation5 + $0x1d40] sm:$0xff]
    %v5237 = vld [vmem:[#allocation5 + $0x1d48] sm:$0xff]
    %v5238 = vld [vmem:[#allocation5 + $0x1d50] sm:$0xff]
    %v5239 = vld [vmem:[#allocation5 + $0x1d58] sm:$0xff]
    %v5240 = vld [vmem:[#allocation5 + $0x1d60] sm:$0xff]
    %v5241 = vld [vmem:[#allocation5 + $0x1d68] sm:$0xff]
    %v5242 = vld [vmem:[#allocation5 + $0x1d70] sm:$0xff]
    %v5243 = vld [vmem:[#allocation5 + $0x1d78] sm:$0xff]
    %v5244 = vld [vmem:[#allocation5 + $0x1d80] sm:$0xff]
    %v5245 = vld [vmem:[#allocation5 + $0x1d88] sm:$0xff]
    %v5246 = vld [vmem:[#allocation5 + $0x1d90] sm:$0xff]
    %v5247 = vld [vmem:[#allocation5 + $0x1d98] sm:$0xff]
    %v5248 = vld [vmem:[#allocation5 + $0x1da0] sm:$0xff]
    %v5249 = vld [vmem:[#allocation5 + $0x1da8] sm:$0xff]
    %v5250 = vld [vmem:[#allocation5 + $0x1db0] sm:$0xff]
    %v5251 = vld [vmem:[#allocation5 + $0x1db8] sm:$0xff]
    %v5252 = vld [vmem:[#allocation5 + $0x1dc0] sm:$0xff]
    %v5253 = vld [vmem:[#allocation5 + $0x1dc8] sm:$0xff]
    %v5254 = vld [vmem:[#allocation5 + $0x1dd0] sm:$0xff]
    %v5255 = vld [vmem:[#allocation5 + $0x1dd8] sm:$0xff]
    %v5256 = vld [vmem:[#allocation5 + $0x1de0] sm:$0xff]
    %v5257 = vld [vmem:[#allocation5 + $0x1de8] sm:$0xff]
    %v5258 = vld [vmem:[#allocation5 + $0x1df0] sm:$0xff]
    %v5259 = vld [vmem:[#allocation5 + $0x1df8] sm:$0xff]
    %v5260 = vld [vmem:[#allocation5 + $0x1e00] sm:$0xff]
    %v5261 = vld [vmem:[#allocation5 + $0x1e08] sm:$0xff]
    %v5262 = vld [vmem:[#allocation5 + $0x1e10] sm:$0xff]
    %v5263 = vld [vmem:[#allocation5 + $0x1e18] sm:$0xff]
    %v5264 = vld [vmem:[#allocation5 + $0x1e20] sm:$0xff]
    %v5265 = vld [vmem:[#allocation5 + $0x1e28] sm:$0xff]
    %v5266 = vld [vmem:[#allocation5 + $0x1e30] sm:$0xff]
    %v5267 = vld [vmem:[#allocation5 + $0x1e38] sm:$0xff]
    %v5268 = vld [vmem:[#allocation5 + $0x1e40] sm:$0xff]
    %v5269 = vld [vmem:[#allocation5 + $0x1e48] sm:$0xff]
    %v5270 = vld [vmem:[#allocation5 + $0x1e50] sm:$0xff]
    %v5271 = vld [vmem:[#allocation5 + $0x1e58] sm:$0xff]
    %v5272 = vld [vmem:[#allocation5 + $0x1e60] sm:$0xff]
    %v5273 = vld [vmem:[#allocation5 + $0x1e68] sm:$0xff]
    %v5274 = vld [vmem:[#allocation5 + $0x1e70] sm:$0xff]
    %v5275 = vld [vmem:[#allocation5 + $0x1e78] sm:$0xff]
    %v5276 = vld [vmem:[#allocation5 + $0x1e80] sm:$0xff]
    %v5277 = vld [vmem:[#allocation5 + $0x1e88] sm:$0xff]
    %v5278 = vld [vmem:[#allocation5 + $0x1e90] sm:$0xff]
    %v5279 = vld [vmem:[#allocation5 + $0x1e98] sm:$0xff]
    %v5280 = vld [vmem:[#allocation5 + $0x1ea0] sm:$0xff]
    %v5281 = vld [vmem:[#allocation5 + $0x1ea8] sm:$0xff]
    %v5282 = vld [vmem:[#allocation5 + $0x1eb0] sm:$0xff]
    %v5283 = vld [vmem:[#allocation5 + $0x1eb8] sm:$0xff]
    %v5284 = vld [vmem:[#allocation5 + $0x1ec0] sm:$0xff]
    %v5285 = vld [vmem:[#allocation5 + $0x1ec8] sm:$0xff]
    %v5286 = vld [vmem:[#allocation5 + $0x1ed0] sm:$0xff]
    %v5287 = vld [vmem:[#allocation5 + $0x1ed8] sm:$0xff]
    %v5288 = vld [vmem:[#allocation5 + $0x1ee0] sm:$0xff]
    %v5289 = vld [vmem:[#allocation5 + $0x1ee8] sm:$0xff]
    %v5290 = vld [vmem:[#allocation5 + $0x1ef0] sm:$0xff]
    %v5291 = vld [vmem:[#allocation5 + $0x1ef8] sm:$0xff]
    %v5292 = vld [vmem:[#allocation5 + $0x1f00] sm:$0xff]
    %v5293 = vld [vmem:[#allocation5 + $0x1f08] sm:$0xff]
    %v5294 = vld [vmem:[#allocation5 + $0x1f10] sm:$0xff]
    %v5295 = vld [vmem:[#allocation5 + $0x1f18] sm:$0xff]
    %v5296 = vld [vmem:[#allocation5 + $0x1f20] sm:$0xff]
    %v5297 = vld [vmem:[#allocation5 + $0x1f28] sm:$0xff]
    %v5298 = vld [vmem:[#allocation5 + $0x1f30] sm:$0xff]
    %v5299 = vld [vmem:[#allocation5 + $0x1f38] sm:$0xff]
    %v5300 = vld [vmem:[#allocation5 + $0x1f40] sm:$0xff]
    %v5301 = vld [vmem:[#allocation5 + $0x1f48] sm:$0xff]
    %v5302 = vld [vmem:[#allocation5 + $0x1f50] sm:$0xff]
    %v5303 = vld [vmem:[#allocation5 + $0x1f58] sm:$0xff]
    %v5304 = vld [vmem:[#allocation5 + $0x1f60] sm:$0xff]
    %v5305 = vld [vmem:[#allocation5 + $0x1f68] sm:$0xff]
    %v5306 = vld [vmem:[#allocation5 + $0x1f70] sm:$0xff]
    %v5307 = vld [vmem:[#allocation5 + $0x1f78] sm:$0xff]
    %v5308 = vld [vmem:[#allocation5 + $0x1f80] sm:$0xff]
    %v5309 = vld [vmem:[#allocation5 + $0x1f88] sm:$0xff]
    %v5310 = vld [vmem:[#allocation5 + $0x1f90] sm:$0xff]
    %v5311 = vld [vmem:[#allocation5 + $0x1f98] sm:$0xff]
    %v5312 = vld [vmem:[#allocation5 + $0x1fa0] sm:$0xff]
    %v5313 = vld [vmem:[#allocation5 + $0x1fa8] sm:$0xff]
    %v5314 = vld [vmem:[#allocation5 + $0x1fb0] sm:$0xff]
    %v5315 = vld [vmem:[#allocation5 + $0x1fb8] sm:$0xff]
    %v5316 = vld [vmem:[#allocation5 + $0x1fc0] sm:$0xff]
    %v5317 = vld [vmem:[#allocation5 + $0x1fc8] sm:$0xff]
    %v5318 = vld [vmem:[#allocation5 + $0x1fd0] sm:$0xff]
    %v5319 = vld [vmem:[#allocation5 + $0x1fd8] sm:$0xff]
    %v5320 = vld [vmem:[#allocation5 + $0x1fe0] sm:$0xff]
    %v5321 = vld [vmem:[#allocation5 + $0x1fe8] sm:$0xff]
    %v5322 = vld [vmem:[#allocation5 + $0x1ff0] sm:$0xff]
    %v5323 = vld [vmem:[#allocation5 + $0x1ff8] sm:$0xff]
    %5324 = vmatprep.subr.bf16.mxu0 %v4301
    %5325 = vmatpush1.bf16.msra.mxu0 %v4300
    %5326 = vmatprep.subr.bf16.mxu0 %v4309
    %5327 = vmatpush1.bf16.msra.mxu0 %v4308
    %5328 = vmatprep.subr.bf16.mxu0 %v4317
    %5329 = vmatpush1.bf16.msra.mxu0 %v4316
    %5330 = vmatprep.subr.bf16.mxu0 %v4325
    %5331 = vmatpush1.bf16.msra.mxu0 %v4324
    %5332 = vmatprep.subr.bf16.mxu0 %v4333
    %5333 = vmatpush1.bf16.msra.mxu0 %v4332
    %5334 = vmatprep.subr.bf16.mxu0 %v4341
    %5335 = vmatpush1.bf16.msra.mxu0 %v4340
    %5336 = vmatprep.subr.bf16.mxu0 %v4349
    %5337 = vmatpush1.bf16.msra.mxu0 %v4348
    %5338 = vmatprep.subr.bf16.mxu0 %v4357
    %5339 = vmatpush1.bf16.msra.mxu0 %v4356
    %5340 = vmatprep.subr.bf16.mxu0 %v4365
    %5341 = vmatpush1.bf16.msra.mxu0 %v4364
    %5342 = vmatprep.subr.bf16.mxu0 %v4373
    %5343 = vmatpush1.bf16.msra.mxu0 %v4372
    %5344 = vmatprep.subr.bf16.mxu0 %v4381
    %5345 = vmatpush1.bf16.msra.mxu0 %v4380
    %5346 = vmatprep.subr.bf16.mxu0 %v4389
    %5347 = vmatpush1.bf16.msra.mxu0 %v4388
    %5348 = vmatprep.subr.bf16.mxu0 %v4397
    %5349 = vmatpush1.bf16.msra.mxu0 %v4396
    %5350 = vmatprep.subr.bf16.mxu0 %v4405
    %5351 = vmatpush1.bf16.msra.mxu0 %v4404
    %5352 = vmatprep.subr.bf16.mxu0 %v4413
    %5353 = vmatpush1.bf16.msra.mxu0 %v4412
    %5354 = vmatprep.subr.bf16.mxu0 %v4421
    %5355 = vmatpush1.bf16.msra.mxu0 %v4420
    %5356 = vmatprep.mubr.bf16.mxu0 %v4285
    %5357 = vmatmul.mubr.bf16.gmra.mrb[0].mxu0 %v4284
    %v5358 = vpop.f32.mrb[0].mxu0
    %v5359 = vadd.f32 0.0, %v5358
    %v5360 = vpop.f32.mrb[0].mxu0
    %v5361 = vadd.f32 0.0, %v5360
    %v5362 = vpop.f32.mrb[0].mxu0
    %v5363 = vpop.f32.mrb[0].mxu0
    %5364 = vdwg.mxu0
    %5365 = vmatprep.subr.bf16.mxu0 %v4429
    %5366 = vmatpush1.bf16.msra.mxu0 %v4428
    %5367 = vmatprep.subr.bf16.mxu0 %v4437
    %5368 = vmatpush1.bf16.msra.mxu0 %v4436
    %5369 = vmatprep.subr.bf16.mxu0 %v4445
    %5370 = vmatpush1.bf16.msra.mxu0 %v4444
    %5371 = vmatprep.subr.bf16.mxu0 %v4453
    %5372 = vmatpush1.bf16.msra.mxu0 %v4452
    %5373 = vmatprep.subr.bf16.mxu0 %v4461
    %5374 = vmatpush1.bf16.msra.mxu0 %v4460
    %5375 = vmatprep.subr.bf16.mxu0 %v4469
    %5376 = vmatpush1.bf16.msra.mxu0 %v4468
    %5377 = vmatprep.subr.bf16.mxu0 %v4477
    %5378 = vmatpush1.bf16.msra.mxu0 %v4476
    %5379 = vmatprep.subr.bf16.mxu0 %v4485
    %5380 = vmatpush1.bf16.msra.mxu0 %v4484
    %5381 = vmatprep.subr.bf16.mxu0 %v4493
    %5382 = vmatpush1.bf16.msra.mxu0 %v4492
    %5383 = vmatprep.subr.bf16.mxu0 %v4501
    %5384 = vmatpush1.bf16.msra.mxu0 %v4500
    %5385 = vmatprep.subr.bf16.mxu0 %v4509
    %5386 = vmatpush1.bf16.msra.mxu0 %v4508
    %5387 = vmatprep.subr.bf16.mxu0 %v4517
    %5388 = vmatpush1.bf16.msra.mxu0 %v4516
    %5389 = vmatprep.subr.bf16.mxu0 %v4525
    %5390 = vmatpush1.bf16.msra.mxu0 %v4524
    %5391 = vmatprep.subr.bf16.mxu0 %v4533
    %5392 = vmatpush1.bf16.msra.mxu0 %v4532
    %5393 = vmatprep.subr.bf16.mxu0 %v4541
    %5394 = vmatpush1.bf16.msra.mxu0 %v4540
    %5395 = vmatprep.subr.bf16.mxu0 %v4549
    %5396 = vmatpush1.bf16.msra.mxu0 %v4548
    %5397 = vmatprep.mubr.bf16.mxu0 %v4287
    %5398 = vmatmul.mubr.bf16.gmra.mrb[0].mxu0 %v4286
    %v5399 = vpop.f32.mrb[0].mxu0
    %v5400 = vadd.f32 %v5359, %v5399
    %v5401 = vpop.f32.mrb[0].mxu0
    %v5402 = vadd.f32 %v5361, %v5401
    %v5403 = vpop.f32.mrb[0].mxu0
    %v5404 = vpop.f32.mrb[0].mxu0
    %5405 = vdwg.mxu0
    %5406 = vmatprep.subr.bf16.mxu0 %v4557
    %5407 = vmatpush1.bf16.msra.mxu0 %v4556
    %5408 = vmatprep.subr.bf16.mxu0 %v4565
    %5409 = vmatpush1.bf16.msra.mxu0 %v4564
    %5410 = vmatprep.subr.bf16.mxu0 %v4573
    %5411 = vmatpush1.bf16.msra.mxu0 %v4572
    %5412 = vmatprep.subr.bf16.mxu0 %v4581
    %5413 = vmatpush1.bf16.msra.mxu0 %v4580
    %5414 = vmatprep.subr.bf16.mxu0 %v4589
    %5415 = vmatpush1.bf16.msra.mxu0 %v4588
    %5416 = vmatprep.subr.bf16.mxu0 %v4597
    %5417 = vmatpush1.bf16.msra.mxu0 %v4596
    %5418 = vmatprep.subr.bf16.mxu0 %v4605
    %5419 = vmatpush1.bf16.msra.mxu0 %v4604
    %5420 = vmatprep.subr.bf16.mxu0 %v4613
    %5421 = vmatpush1.bf16.msra.mxu0 %v4612
    %5422 = vmatprep.subr.bf16.mxu0 %v4621
    %5423 = vmatpush1.bf16.msra.mxu0 %v4620
    %5424 = vmatprep.subr.bf16.mxu0 %v4629
    %5425 = vmatpush1.bf16.msra.mxu0 %v4628
    %5426 = vmatprep.subr.bf16.mxu0 %v4637
    %5427 = vmatpush1.bf16.msra.mxu0 %v4636
    %5428 = vmatprep.subr.bf16.mxu0 %v4645
    %5429 = vmatpush1.bf16.msra.mxu0 %v4644
    %5430 = vmatprep.subr.bf16.mxu0 %v4653
    %5431 = vmatpush1.bf16.msra.mxu0 %v4652
    %5432 = vmatprep.subr.bf16.mxu0 %v4661
    %5433 = vmatpush1.bf16.msra.mxu0 %v4660
    %5434 = vmatprep.subr.bf16.mxu0 %v4669
    %5435 = vmatpush1.bf16.msra.mxu0 %v4668
    %5436 = vmatprep.subr.bf16.mxu0 %v4677
    %5437 = vmatpush1.bf16.msra.mxu0 %v4676
    %5438 = vmatprep.mubr.bf16.mxu0 %v4289
    %5439 = vmatmul.mubr.bf16.gmra.mrb[0].mxu0 %v4288
    %v5440 = vpop.f32.mrb[0].mxu0
    %v5441 = vadd.f32 %v5400, %v5440
    %v5442 = vpop.f32.mrb[0].mxu0
    %v5443 = vadd.f32 %v5402, %v5442
    %v5444 = vpop.f32.mrb[0].mxu0
    %v5445 = vpop.f32.mrb[0].mxu0
    %5446 = vdwg.mxu0
    %5447 = vmatprep.subr.bf16.mxu0 %v4685
    %5448 = vmatpush1.bf16.msra.mxu0 %v4684
    %5449 = vmatprep.subr.bf16.mxu0 %v4693
    %5450 = vmatpush1.bf16.msra.mxu0 %v4692
    %5451 = vmatprep.subr.bf16.mxu0 %v4701
    %5452 = vmatpush1.bf16.msra.mxu0 %v4700
    %5453 = vmatprep.subr.bf16.mxu0 %v4709
    %5454 = vmatpush1.bf16.msra.mxu0 %v4708
    %5455 = vmatprep.subr.bf16.mxu0 %v4717
    %5456 = vmatpush1.bf16.msra.mxu0 %v4716
    %5457 = vmatprep.subr.bf16.mxu0 %v4725
    %5458 = vmatpush1.bf16.msra.mxu0 %v4724
    %5459 = vmatprep.subr.bf16.mxu0 %v4733
    %5460 = vmatpush1.bf16.msra.mxu0 %v4732
    %5461 = vmatprep.subr.bf16.mxu0 %v4741
    %5462 = vmatpush1.bf16.msra.mxu0 %v4740
    %5463 = vmatprep.subr.bf16.mxu0 %v4749
    %5464 = vmatpush1.bf16.msra.mxu0 %v4748
    %5465 = vmatprep.subr.bf16.mxu0 %v4757
    %5466 = vmatpush1.bf16.msra.mxu0 %v4756
    %5467 = vmatprep.subr.bf16.mxu0 %v4765
    %5468 = vmatpush1.bf16.msra.mxu0 %v4764
    %5469 = vmatprep.subr.bf16.mxu0 %v4773
    %5470 = vmatpush1.bf16.msra.mxu0 %v4772
    %5471 = vmatprep.subr.bf16.mxu0 %v4781
    %5472 = vmatpush1.bf16.msra.mxu0 %v4780
    %5473 = vmatprep.subr.bf16.mxu0 %v4789
    %5474 = vmatpush1.bf16.msra.mxu0 %v4788
    %5475 = vmatprep.subr.bf16.mxu0 %v4797
    %5476 = vmatpush1.bf16.msra.mxu0 %v4796
    %5477 = vmatprep.subr.bf16.mxu0 %v4805
    %5478 = vmatpush1.bf16.msra.mxu0 %v4804
    %5479 = vmatprep.mubr.bf16.mxu0 %v4291
    %5480 = vmatmul.mubr.bf16.gmra.mrb[0].mxu0 %v4290
    %v5481 = vpop.f32.mrb[0].mxu0
    %v5482 = vadd.f32 %v5441, %v5481
    %v5483 = vpop.f32.mrb[0].mxu0
    %v5484 = vadd.f32 %v5443, %v5483
    %v5485 = vpop.f32.mrb[0].mxu0
    %v5486 = vpop.f32.mrb[0].mxu0
    %5487 = vdwg.mxu0
    %5488 = vmatprep.subr.bf16.mxu0 %v4813
    %5489 = vmatpush1.bf16.msra.mxu0 %v4812
    %5490 = vmatprep.subr.bf16.mxu0 %v4821
    %5491 = vmatpush1.bf16.msra.mxu0 %v4820
    %5492 = vmatprep.subr.bf16.mxu0 %v4829
    %5493 = vmatpush1.bf16.msra.mxu0 %v4828
    %5494 = vmatprep.subr.bf16.mxu0 %v4837
    %5495 = vmatpush1.bf16.msra.mxu0 %v4836
    %5496 = vmatprep.subr.bf16.mxu0 %v4845
    %5497 = vmatpush1.bf16.msra.mxu0 %v4844
    %5498 = vmatprep.subr.bf16.mxu0 %v4853
    %5499 = vmatpush1.bf16.msra.mxu0 %v4852
    %5500 = vmatprep.subr.bf16.mxu0 %v4861
    %5501 = vmatpush1.bf16.msra.mxu0 %v4860
    %5502 = vmatprep.subr.bf16.mxu0 %v4869
    %5503 = vmatpush1.bf16.msra.mxu0 %v4868
    %5504 = vmatprep.subr.bf16.mxu0 %v4877
    %5505 = vmatpush1.bf16.msra.mxu0 %v4876
    %5506 = vmatprep.subr.bf16.mxu0 %v4885
    %5507 = vmatpush1.bf16.msra.mxu0 %v4884
    %5508 = vmatprep.subr.bf16.mxu0 %v4893
    %5509 = vmatpush1.bf16.msra.mxu0 %v4892
    %5510 = vmatprep.subr.bf16.mxu0 %v4901
    %5511 = vmatpush1.bf16.msra.mxu0 %v4900
    %5512 = vmatprep.subr.bf16.mxu0 %v4909
    %5513 = vmatpush1.bf16.msra.mxu0 %v4908
    %5514 = vmatprep.subr.bf16.mxu0 %v4917
    %5515 = vmatpush1.bf16.msra.mxu0 %v4916
    %5516 = vmatprep.subr.bf16.mxu0 %v4925
    %5517 = vmatpush1.bf16.msra.mxu0 %v4924
    %5518 = vmatprep.subr.bf16.mxu0 %v4933
    %5519 = vmatpush1.bf16.msra.mxu0 %v4932
    %5520 = vmatprep.mubr.bf16.mxu0 %v4293
    %5521 = vmatmul.mubr.bf16.gmra.mrb[0].mxu0 %v4292
    %v5522 = vpop.f32.mrb[0].mxu0
    %v5523 = vadd.f32 %v5482, %v5522
    %v5524 = vpop.f32.mrb[0].mxu0
    %v5525 = vadd.f32 %v5484, %v5524
    %v5526 = vpop.f32.mrb[0].mxu0
    %v5527 = vpop.f32.mrb[0].mxu0
    %5528 = vdwg.mxu0
    %5529 = vmatprep.subr.bf16.mxu0 %v4941
    %5530 = vmatpush1.bf16.msra.mxu0 %v4940
    %5531 = vmatprep.subr.bf16.mxu0 %v4949
    %5532 = vmatpush1.bf16.msra.mxu0 %v4948
    %5533 = vmatprep.subr.bf16.mxu0 %v4957
    %5534 = vmatpush1.bf16.msra.mxu0 %v4956
    %5535 = vmatprep.subr.bf16.mxu0 %v4965
    %5536 = vmatpush1.bf16.msra.mxu0 %v4964
    %5537 = vmatprep.subr.bf16.mxu0 %v4973
    %5538 = vmatpush1.bf16.msra.mxu0 %v4972
    %5539 = vmatprep.subr.bf16.mxu0 %v4981
    %5540 = vmatpush1.bf16.msra.mxu0 %v4980
    %5541 = vmatprep.subr.bf16.mxu0 %v4989
    %5542 = vmatpush1.bf16.msra.mxu0 %v4988
    %5543 = vmatprep.subr.bf16.mxu0 %v4997
    %5544 = vmatpush1.bf16.msra.mxu0 %v4996
    %5545 = vmatprep.subr.bf16.mxu0 %v5005
    %5546 = vmatpush1.bf16.msra.mxu0 %v5004
    %5547 = vmatprep.subr.bf16.mxu0 %v5013
    %5548 = vmatpush1.bf16.msra.mxu0 %v5012
    %5549 = vmatprep.subr.bf16.mxu0 %v5021
    %5550 = vmatpush1.bf16.msra.mxu0 %v5020
    %5551 = vmatprep.subr.bf16.mxu0 %v5029
    %5552 = vmatpush1.bf16.msra.mxu0 %v5028
    %5553 = vmatprep.subr.bf16.mxu0 %v5037
    %5554 = vmatpush1.bf16.msra.mxu0 %v5036
    %5555 = vmatprep.subr.bf16.mxu0 %v5045
    %5556 = vmatpush1.bf16.msra.mxu0 %v5044
    %5557 = vmatprep.subr.bf16.mxu0 %v5053
    %5558 = vmatpush1.bf16.msra.mxu0 %v5052
    %5559 = vmatprep.subr.bf16.mxu0 %v5061
    %5560 = vmatpush1.bf16.msra.mxu0 %v5060
    %5561 = vmatprep.mubr.bf16.mxu0 %v4295
    %5562 = vmatmul.mubr.bf16.gmra.mrb[0].mxu0 %v4294
    %v5563 = vpop.f32.mrb[0].mxu0
    %v5564 = vadd.f32 %v5523, %v5563
    %v5565 = vpop.f32.mrb[0].mxu0
    %v5566 = vadd.f32 %v5525, %v5565
    %v5567 = vpop.f32.mrb[0].mxu0
    %v5568 = vpop.f32.mrb[0].mxu0
    %5569 = vdwg.mxu0
    %5570 = vmatprep.subr.bf16.mxu0 %v5069
    %5571 = vmatpush1.bf16.msra.mxu0 %v5068
    %5572 = vmatprep.subr.bf16.mxu0 %v5077
    %5573 = vmatpush1.bf16.msra.mxu0 %v5076
    %5574 = vmatprep.subr.bf16.mxu0 %v5085
    %5575 = vmatpush1.bf16.msra.mxu0 %v5084
    %5576 = vmatprep.subr.bf16.mxu0 %v5093
    %5577 = vmatpush1.bf16.msra.mxu0 %v5092
    %5578 = vmatprep.subr.bf16.mxu0 %v5101
    %5579 = vmatpush1.bf16.msra.mxu0 %v5100
    %5580 = vmatprep.subr.bf16.mxu0 %v5109
    %5581 = vmatpush1.bf16.msra.mxu0 %v5108
    %5582 = vmatprep.subr.bf16.mxu0 %v5117
    %5583 = vmatpush1.bf16.msra.mxu0 %v5116
    %5584 = vmatprep.subr.bf16.mxu0 %v5125
    %5585 = vmatpush1.bf16.msra.mxu0 %v5124
    %5586 = vmatprep.subr.bf16.mxu0 %v5133
    %5587 = vmatpush1.bf16.msra.mxu0 %v5132
    %5588 = vmatprep.subr.bf16.mxu0 %v5141
    %5589 = vmatpush1.bf16.msra.mxu0 %v5140
    %5590 = vmatprep.subr.bf16.mxu0 %v5149
    %5591 = vmatpush1.bf16.msra.mxu0 %v5148
    %5592 = vmatprep.subr.bf16.mxu0 %v5157
    %5593 = vmatpush1.bf16.msra.mxu0 %v5156
    %5594 = vmatprep.subr.bf16.mxu0 %v5165
    %5595 = vmatpush1.bf16.msra.mxu0 %v5164
    %5596 = vmatprep.subr.bf16.mxu0 %v5173
    %5597 = vmatpush1.bf16.msra.mxu0 %v5172
    %5598 = vmatprep.subr.bf16.mxu0 %v5181
    %5599 = vmatpush1.bf16.msra.mxu0 %v5180
    %5600 = vmatprep.subr.bf16.mxu0 %v5189
    %5601 = vmatpush1.bf16.msra.mxu0 %v5188
    %5602 = vmatprep.mubr.bf16.mxu0 %v4297
    %5603 = vmatmul.mubr.bf16.gmra.mrb[0].mxu0 %v4296
    %v5604 = vpop.f32.mrb[0].mxu0
    %v5605 = vadd.f32 %v5564, %v5604
    %v5606 = vpop.f32.mrb[0].mxu0
    %v5607 = vadd.f32 %v5566, %v5606
    %v5608 = vpop.f32.mrb[0].mxu0
    %v5609 = vpop.f32.mrb[0].mxu0
    %5610 = vdwg.mxu0
    %5611 = vmatprep.subr.bf16.mxu0 %v5197
    %5612 = vmatpush1.bf16.msra.mxu0 %v5196
    %5613 = vmatprep.subr.bf16.mxu0 %v5205
    %5614 = vmatpush1.bf16.msra.mxu0 %v5204
    %5615 = vmatprep.subr.bf16.mxu0 %v5213
    %5616 = vmatpush1.bf16.msra.mxu0 %v5212
    %5617 = vmatprep.subr.bf16.mxu0 %v5221
    %5618 = vmatpush1.bf16.msra.mxu0 %v5220
    %5619 = vmatprep.subr.bf16.mxu0 %v5229
    %5620 = vmatpush1.bf16.msra.mxu0 %v5228
    %5621 = vmatprep.subr.bf16.mxu0 %v5237
    %5622 = vmatpush1.bf16.msra.mxu0 %v5236
    %5623 = vmatprep.subr.bf16.mxu0 %v5245
    %5624 = vmatpush1.bf16.msra.mxu0 %v5244
    %5625 = vmatprep.subr.bf16.mxu0 %v5253
    %5626 = vmatpush1.bf16.msra.mxu0 %v5252
    %5627 = vmatprep.subr.bf16.mxu0 %v5261
    %5628 = vmatpush1.bf16.msra.mxu0 %v5260
    %5629 = vmatprep.subr.bf16.mxu0 %v5269
    %5630 = vmatpush1.bf16.msra.mxu0 %v5268
    %5631 = vmatprep.subr.bf16.mxu0 %v5277
    %5632 = vmatpush1.bf16.msra.mxu0 %v5276
    %5633 = vmatprep.subr.bf16.mxu0 %v5285
    %5634 = vmatpush1.bf16.msra.mxu0 %v5284
    %5635 = vmatprep.subr.bf16.mxu0 %v5293
    %5636 = vmatpush1.bf16.msra.mxu0 %v5292
    %5637 = vmatprep.subr.bf16.mxu0 %v5301
    %5638 = vmatpush1.bf16.msra.mxu0 %v5300
    %5639 = vmatprep.subr.bf16.mxu0 %v5309
    %5640 = vmatpush1.bf16.msra.mxu0 %v5308
    %5641 = vmatprep.subr.bf16.mxu0 %v5317
    %5642 = vmatpush1.bf16.msra.mxu0 %v5316
    %5643 = vmatprep.mubr.bf16.mxu0 %v4299
    %5644 = vmatmul.mubr.bf16.gmra.mrb[0].mxu0 %v4298
    %v5645 = vpop.f32.mrb[0].mxu0
    %v5646 = vadd.f32 %v5605, %v5645
    %v5647 = vpop.f32.mrb[0].mxu0
    %v5648 = vadd.f32 %v5607, %v5647
    %v5649 = vpop.f32.mrb[0].mxu0
    %v5650 = vpop.f32.mrb[0].mxu0
    %5651 = vdwg.mxu0
    %5652 = vmatprep.subr.bf16.mxu0 %v4303
    %5653 = vmatpush1.bf16.msra.mxu0 %v4302
    %5654 = vmatprep.subr.bf16.mxu0 %v4311
    %5655 = vmatpush1.bf16.msra.mxu0 %v4310
    %5656 = vmatprep.subr.bf16.mxu0 %v4319
    %5657 = vmatpush1.bf16.msra.mxu0 %v4318
    %5658 = vmatprep.subr.bf16.mxu0 %v4327
    %5659 = vmatpush1.bf16.msra.mxu0 %v4326
    %5660 = vmatprep.subr.bf16.mxu0 %v4335
    %5661 = vmatpush1.bf16.msra.mxu0 %v4334
    %5662 = vmatprep.subr.bf16.mxu0 %v4343
    %5663 = vmatpush1.bf16.msra.mxu0 %v4342
    %5664 = vmatprep.subr.bf16.mxu0 %v4351
    %5665 = vmatpush1.bf16.msra.mxu0 %v4350
    %5666 = vmatprep.subr.bf16.mxu0 %v4359
    %5667 = vmatpush1.bf16.msra.mxu0 %v4358
    %5668 = vmatprep.subr.bf16.mxu0 %v4367
    %5669 = vmatpush1.bf16.msra.mxu0 %v4366
    %5670 = vmatprep.subr.bf16.mxu0 %v4375
    %5671 = vmatpush1.bf16.msra.mxu0 %v4374
    %5672 = vmatprep.subr.bf16.mxu0 %v4383
    %5673 = vmatpush1.bf16.msra.mxu0 %v4382
    %5674 = vmatprep.subr.bf16.mxu0 %v4391
    %5675 = vmatpush1.bf16.msra.mxu0 %v4390
    %5676 = vmatprep.subr.bf16.mxu0 %v4399
    %5677 = vmatpush1.bf16.msra.mxu0 %v4398
    %5678 = vmatprep.subr.bf16.mxu0 %v4407
    %5679 = vmatpush1.bf16.msra.mxu0 %v4406
    %5680 = vmatprep.subr.bf16.mxu0 %v4415
    %5681 = vmatpush1.bf16.msra.mxu0 %v4414
    %5682 = vmatprep.subr.bf16.mxu0 %v4423
    %5683 = vmatpush1.bf16.msra.mxu0 %v4422
    %5684 = vmatprep.mubr.bf16.mxu0 %v4285
    %5685 = vmatmul.mubr.bf16.gmra.mrb[0].mxu0 %v4284
    %v5686 = vpop.f32.mrb[0].mxu0
    %v5687 = vadd.f32 0.0, %v5686
    %v5688 = vpop.f32.mrb[0].mxu0
    %v5689 = vadd.f32 0.0, %v5688
    %v5690 = vpop.f32.mrb[0].mxu0
    %v5691 = vpop.f32.mrb[0].mxu0
    %5692 = vdwg.mxu0
    %5693 = vmatprep.subr.bf16.mxu0 %v4431
    %5694 = vmatpush1.bf16.msra.mxu0 %v4430
    %5695 = vmatprep.subr.bf16.mxu0 %v4439
    %5696 = vmatpush1.bf16.msra.mxu0 %v4438
    %5697 = vmatprep.subr.bf16.mxu0 %v4447
    %5698 = vmatpush1.bf16.msra.mxu0 %v4446
    %5699 = vmatprep.subr.bf16.mxu0 %v4455
    %5700 = vmatpush1.bf16.msra.mxu0 %v4454
    %5701 = vmatprep.subr.bf16.mxu0 %v4463
    %5702 = vmatpush1.bf16.msra.mxu0 %v4462
    %5703 = vmatprep.subr.bf16.mxu0 %v4471
    %5704 = vmatpush1.bf16.msra.mxu0 %v4470
    %5705 = vmatprep.subr.bf16.mxu0 %v4479
    %5706 = vmatpush1.bf16.msra.mxu0 %v4478
    %5707 = vmatprep.subr.bf16.mxu0 %v4487
    %5708 = vmatpush1.bf16.msra.mxu0 %v4486
    %5709 = vmatprep.subr.bf16.mxu0 %v4495
    %5710 = vmatpush1.bf16.msra.mxu0 %v4494
    %5711 = vmatprep.subr.bf16.mxu0 %v4503
    %5712 = vmatpush1.bf16.msra.mxu0 %v4502
    %5713 = vmatprep.subr.bf16.mxu0 %v4511
    %5714 = vmatpush1.bf16.msra.mxu0 %v4510
    %5715 = vmatprep.subr.bf16.mxu0 %v4519
    %5716 = vmatpush1.bf16.msra.mxu0 %v4518
    %5717 = vmatprep.subr.bf16.mxu0 %v4527
    %5718 = vmatpush1.bf16.msra.mxu0 %v4526
    %5719 = vmatprep.subr.bf16.mxu0 %v4535
    %5720 = vmatpush1.bf16.msra.mxu0 %v4534
    %5721 = vmatprep.subr.bf16.mxu0 %v4543
    %5722 = vmatpush1.bf16.msra.mxu0 %v4542
    %5723 = vmatprep.subr.bf16.mxu0 %v4551
    %5724 = vmatpush1.bf16.msra.mxu0 %v4550
    %5725 = vmatprep.mubr.bf16.mxu0 %v4287
    %5726 = vmatmul.mubr.bf16.gmra.mrb[0].mxu0 %v4286
    %v5727 = vpop.f32.mrb[0].mxu0
    %v5728 = vadd.f32 %v5687, %v5727
    %v5729 = vpop.f32.mrb[0].mxu0
    %v5730 = vadd.f32 %v5689, %v5729
    %v5731 = vpop.f32.mrb[0].mxu0
    %v5732 = vpop.f32.mrb[0].mxu0
    %5733 = vdwg.mxu0
    %5734 = vmatprep.subr.bf16.mxu0 %v4559
    %5735 = vmatpush1.bf16.msra.mxu0 %v4558
    %5736 = vmatprep.subr.bf16.mxu0 %v4567
    %5737 = vmatpush1.bf16.msra.mxu0 %v4566
    %5738 = vmatprep.subr.bf16.mxu0 %v4575
    %5739 = vmatpush1.bf16.msra.mxu0 %v4574
    %5740 = vmatprep.subr.bf16.mxu0 %v4583
    %5741 = vmatpush1.bf16.msra.mxu0 %v4582
    %5742 = vmatprep.subr.bf16.mxu0 %v4591
    %5743 = vmatpush1.bf16.msra.mxu0 %v4590
    %5744 = vmatprep.subr.bf16.mxu0 %v4599
    %5745 = vmatpush1.bf16.msra.mxu0 %v4598
    %5746 = vmatprep.subr.bf16.mxu0 %v4607
    %5747 = vmatpush1.bf16.msra.mxu0 %v4606
    %5748 = vmatprep.subr.bf16.mxu0 %v4615
    %5749 = vmatpush1.bf16.msra.mxu0 %v4614
    %5750 = vmatprep.subr.bf16.mxu0 %v4623
    %5751 = vmatpush1.bf16.msra.mxu0 %v4622
    %5752 = vmatprep.subr.bf16.mxu0 %v4631
    %5753 = vmatpush1.bf16.msra.mxu0 %v4630
    %5754 = vmatprep.subr.bf16.mxu0 %v4639
    %5755 = vmatpush1.bf16.msra.mxu0 %v4638
    %5756 = vmatprep.subr.bf16.mxu0 %v4647
    %5757 = vmatpush1.bf16.msra.mxu0 %v4646
    %5758 = vmatprep.subr.bf16.mxu0 %v4655
    %5759 = vmatpush1.bf16.msra.mxu0 %v4654
    %5760 = vmatprep.subr.bf16.mxu0 %v4663
    %5761 = vmatpush1.bf16.msra.mxu0 %v4662
    %5762 = vmatprep.subr.bf16.mxu0 %v4671
    %5763 = vmatpush1.bf16.msra.mxu0 %v4670
    %5764 = vmatprep.subr.bf16.mxu0 %v4679
    %5765 = vmatpush1.bf16.msra.mxu0 %v4678
    %5766 = vmatprep.mubr.bf16.mxu0 %v4289
    %5767 = vmatmul.mubr.bf16.gmra.mrb[0].mxu0 %v4288
    %v5768 = vpop.f32.mrb[0].mxu0
    %v5769 = vadd.f32 %v5728, %v5768
    %v5770 = vpop.f32.mrb[0].mxu0
    %v5771 = vadd.f32 %v5730, %v5770
    %v5772 = vpop.f32.mrb[0].mxu0
    %v5773 = vpop.f32.mrb[0].mxu0
    %5774 = vdwg.mxu0
    %5775 = vmatprep.subr.bf16.mxu0 %v4687
    %5776 = vmatpush1.bf16.msra.mxu0 %v4686
    %5777 = vmatprep.subr.bf16.mxu0 %v4695
    %5778 = vmatpush1.bf16.msra.mxu0 %v4694
    %5779 = vmatprep.subr.bf16.mxu0 %v4703
    %5780 = vmatpush1.bf16.msra.mxu0 %v4702
    %5781 = vmatprep.subr.bf16.mxu0 %v4711
    %5782 = vmatpush1.bf16.msra.mxu0 %v4710
    %5783 = vmatprep.subr.bf16.mxu0 %v4719
    %5784 = vmatpush1.bf16.msra.mxu0 %v4718
    %5785 = vmatprep.subr.bf16.mxu0 %v4727
    %5786 = vmatpush1.bf16.msra.mxu0 %v4726
    %5787 = vmatprep.subr.bf16.mxu0 %v4735
    %5788 = vmatpush1.bf16.msra.mxu0 %v4734
    %5789 = vmatprep.subr.bf16.mxu0 %v4743
    %5790 = vmatpush1.bf16.msra.mxu0 %v4742
    %5791 = vmatprep.subr.bf16.mxu0 %v4751
    %5792 = vmatpush1.bf16.msra.mxu0 %v4750
    %5793 = vmatprep.subr.bf16.mxu0 %v4759
    %5794 = vmatpush1.bf16.msra.mxu0 %v4758
    %5795 = vmatprep.subr.bf16.mxu0 %v4767
    %5796 = vmatpush1.bf16.msra.mxu0 %v4766
    %5797 = vmatprep.subr.bf16.mxu0 %v4775
    %5798 = vmatpush1.bf16.msra.mxu0 %v4774
    %5799 = vmatprep.subr.bf16.mxu0 %v4783
    %5800 = vmatpush1.bf16.msra.mxu0 %v4782
    %5801 = vmatprep.subr.bf16.mxu0 %v4791
    %5802 = vmatpush1.bf16.msra.mxu0 %v4790
    %5803 = vmatprep.subr.bf16.mxu0 %v4799
    %5804 = vmatpush1.bf16.msra.mxu0 %v4798
    %5805 = vmatprep.subr.bf16.mxu0 %v4807
    %5806 = vmatpush1.bf16.msra.mxu0 %v4806
    %5807 = vmatprep.mubr.bf16.mxu0 %v4291
    %5808 = vmatmul.mubr.bf16.gmra.mrb[0].mxu0 %v4290
    %v5809 = vpop.f32.mrb[0].mxu0
    %v5810 = vadd.f32 %v5769, %v5809
    %v5811 = vpop.f32.mrb[0].mxu0
    %v5812 = vadd.f32 %v5771, %v5811
    %v5813 = vpop.f32.mrb[0].mxu0
    %v5814 = vpop.f32.mrb[0].mxu0
    %5815 = vdwg.mxu0
    %5816 = vmatprep.subr.bf16.mxu0 %v4815
    %5817 = vmatpush1.bf16.msra.mxu0 %v4814
    %5818 = vmatprep.subr.bf16.mxu0 %v4823
    %5819 = vmatpush1.bf16.msra.mxu0 %v4822
    %5820 = vmatprep.subr.bf16.mxu0 %v4831
    %5821 = vmatpush1.bf16.msra.mxu0 %v4830
    %5822 = vmatprep.subr.bf16.mxu0 %v4839
    %5823 = vmatpush1.bf16.msra.mxu0 %v4838
    %5824 = vmatprep.subr.bf16.mxu0 %v4847
    %5825 = vmatpush1.bf16.msra.mxu0 %v4846
    %5826 = vmatprep.subr.bf16.mxu0 %v4855
    %5827 = vmatpush1.bf16.msra.mxu0 %v4854
    %5828 = vmatprep.subr.bf16.mxu0 %v4863
    %5829 = vmatpush1.bf16.msra.mxu0 %v4862
    %5830 = vmatprep.subr.bf16.mxu0 %v4871
    %5831 = vmatpush1.bf16.msra.mxu0 %v4870
    %5832 = vmatprep.subr.bf16.mxu0 %v4879
    %5833 = vmatpush1.bf16.msra.mxu0 %v4878
    %5834 = vmatprep.subr.bf16.mxu0 %v4887
    %5835 = vmatpush1.bf16.msra.mxu0 %v4886
    %5836 = vmatprep.subr.bf16.mxu0 %v4895
    %5837 = vmatpush1.bf16.msra.mxu0 %v4894
    %5838 = vmatprep.subr.bf16.mxu0 %v4903
    %5839 = vmatpush1.bf16.msra.mxu0 %v4902
    %5840 = vmatprep.subr.bf16.mxu0 %v4911
    %5841 = vmatpush1.bf16.msra.mxu0 %v4910
    %5842 = vmatprep.subr.bf16.mxu0 %v4919
    %5843 = vmatpush1.bf16.msra.mxu0 %v4918
    %5844 = vmatprep.subr.bf16.mxu0 %v4927
    %5845 = vmatpush1.bf16.msra.mxu0 %v4926
    %5846 = vmatprep.subr.bf16.mxu0 %v4935
    %5847 = vmatpush1.bf16.msra.mxu0 %v4934
    %5848 = vmatprep.mubr.bf16.mxu0 %v4293
    %5849 = vmatmul.mubr.bf16.gmra.mrb[0].mxu0 %v4292
    %v5850 = vpop.f32.mrb[0].mxu0
    %v5851 = vadd.f32 %v5810, %v5850
    %v5852 = vpop.f32.mrb[0].mxu0
    %v5853 = vadd.f32 %v5812, %v5852
    %v5854 = vpop.f32.mrb[0].mxu0
    %v5855 = vpop.f32.mrb[0].mxu0
    %5856 = vdwg.mxu0
    %5857 = vmatprep.subr.bf16.mxu0 %v4943
    %5858 = vmatpush1.bf16.msra.mxu0 %v4942
    %5859 = vmatprep.subr.bf16.mxu0 %v4951
    %5860 = vmatpush1.bf16.msra.mxu0 %v4950
    %5861 = vmatprep.subr.bf16.mxu0 %v4959
    %5862 = vmatpush1.bf16.msra.mxu0 %v4958
    %5863 = vmatprep.subr.bf16.mxu0 %v4967
    %5864 = vmatpush1.bf16.msra.mxu0 %v4966
    %5865 = vmatprep.subr.bf16.mxu0 %v4975
    %5866 = vmatpush1.bf16.msra.mxu0 %v4974
    %5867 = vmatprep.subr.bf16.mxu0 %v4983
    %5868 = vmatpush1.bf16.msra.mxu0 %v4982
    %5869 = vmatprep.subr.bf16.mxu0 %v4991
    %5870 = vmatpush1.bf16.msra.mxu0 %v4990
    %5871 = vmatprep.subr.bf16.mxu0 %v4999
    %5872 = vmatpush1.bf16.msra.mxu0 %v4998
    %5873 = vmatprep.subr.bf16.mxu0 %v5007
    %5874 = vmatpush1.bf16.msra.mxu0 %v5006
    %5875 = vmatprep.subr.bf16.mxu0 %v5015
    %5876 = vmatpush1.bf16.msra.mxu0 %v5014
    %5877 = vmatprep.subr.bf16.mxu0 %v5023
    %5878 = vmatpush1.bf16.msra.mxu0 %v5022
    %5879 = vmatprep.subr.bf16.mxu0 %v5031
    %5880 = vmatpush1.bf16.msra.mxu0 %v5030
    %5881 = vmatprep.subr.bf16.mxu0 %v5039
    %5882 = vmatpush1.bf16.msra.mxu0 %v5038
    %5883 = vmatprep.subr.bf16.mxu0 %v5047
    %5884 = vmatpush1.bf16.msra.mxu0 %v5046
    %5885 = vmatprep.subr.bf16.mxu0 %v5055
    %5886 = vmatpush1.bf16.msra.mxu0 %v5054
    %5887 = vmatprep.subr.bf16.mxu0 %v5063
    %5888 = vmatpush1.bf16.msra.mxu0 %v5062
    %5889 = vmatprep.mubr.bf16.mxu0 %v4295
    %5890 = vmatmul.mubr.bf16.gmra.mrb[0].mxu0 %v4294
    %v5891 = vpop.f32.mrb[0].mxu0
    %v5892 = vadd.f32 %v5851, %v5891
    %v5893 = vpop.f32.mrb[0].mxu0
    %v5894 = vadd.f32 %v5853, %v5893
    %v5895 = vpop.f32.mrb[0].mxu0
    %v5896 = vpop.f32.mrb[0].mxu0
    %5897 = vdwg.mxu0
    %5898 = vmatprep.subr.bf16.mxu0 %v5071
    %5899 = vmatpush1.bf16.msra.mxu0 %v5070
    %5900 = vmatprep.subr.bf16.mxu0 %v5079
    %5901 = vmatpush1.bf16.msra.mxu0 %v5078
    %5902 = vmatprep.subr.bf16.mxu0 %v5087
    %5903 = vmatpush1.bf16.msra.mxu0 %v5086
    %5904 = vmatprep.subr.bf16.mxu0 %v5095
    %5905 = vmatpush1.bf16.msra.mxu0 %v5094
    %5906 = vmatprep.subr.bf16.mxu0 %v5103
    %5907 = vmatpush1.bf16.msra.mxu0 %v5102
    %5908 = vmatprep.subr.bf16.mxu0 %v5111
    %5909 = vmatpush1.bf16.msra.mxu0 %v5110
    %5910 = vmatprep.subr.bf16.mxu0 %v5119
    %5911 = vmatpush1.bf16.msra.mxu0 %v5118
    %5912 = vmatprep.subr.bf16.mxu0 %v5127
    %5913 = vmatpush1.bf16.msra.mxu0 %v5126
    %5914 = vmatprep.subr.bf16.mxu0 %v5135
    %5915 = vmatpush1.bf16.msra.mxu0 %v5134
    %5916 = vmatprep.subr.bf16.mxu0 %v5143
    %5917 = vmatpush1.bf16.msra.mxu0 %v5142
    %5918 = vmatprep.subr.bf16.mxu0 %v5151
    %5919 = vmatpush1.bf16.msra.mxu0 %v5150
    %5920 = vmatprep.subr.bf16.mxu0 %v5159
    %5921 = vmatpush1.bf16.msra.mxu0 %v5158
    %5922 = vmatprep.subr.bf16.mxu0 %v5167
    %5923 = vmatpush1.bf16.msra.mxu0 %v5166
    %5924 = vmatprep.subr.bf16.mxu0 %v5175
    %5925 = vmatpush1.bf16.msra.mxu0 %v5174
    %5926 = vmatprep.subr.bf16.mxu0 %v5183
    %5927 = vmatpush1.bf16.msra.mxu0 %v5182
    %5928 = vmatprep.subr.bf16.mxu0 %v5191
    %5929 = vmatpush1.bf16.msra.mxu0 %v5190
    %5930 = vmatprep.mubr.bf16.mxu0 %v4297
    %5931 = vmatmul.mubr.bf16.gmra.mrb[0].mxu0 %v4296
    %v5932 = vpop.f32.mrb[0].mxu0
    %v5933 = vadd.f32 %v5892, %v5932
    %v5934 = vpop.f32.mrb[0].mxu0
    %v5935 = vadd.f32 %v5894, %v5934
    %v5936 = vpop.f32.mrb[0].mxu0
    %v5937 = vpop.f32.mrb[0].mxu0
    %5938 = vdwg.mxu0
    %5939 = vmatprep.subr.bf16.mxu0 %v5199
    %5940 = vmatpush1.bf16.msra.mxu0 %v5198
    %5941 = vmatprep.subr.bf16.mxu0 %v5207
    %5942 = vmatpush1.bf16.msra.mxu0 %v5206
    %5943 = vmatprep.subr.bf16.mxu0 %v5215
    %5944 = vmatpush1.bf16.msra.mxu0 %v5214
    %5945 = vmatprep.subr.bf16.mxu0 %v5223
    %5946 = vmatpush1.bf16.msra.mxu0 %v5222
    %5947 = vmatprep.subr.bf16.mxu0 %v5231
    %5948 = vmatpush1.bf16.msra.mxu0 %v5230
    %5949 = vmatprep.subr.bf16.mxu0 %v5239
    %5950 = vmatpush1.bf16.msra.mxu0 %v5238
    %5951 = vmatprep.subr.bf16.mxu0 %v5247
    %5952 = vmatpush1.bf16.msra.mxu0 %v5246
    %5953 = vmatprep.subr.bf16.mxu0 %v5255
    %5954 = vmatpush1.bf16.msra.mxu0 %v5254
    %5955 = vmatprep.subr.bf16.mxu0 %v5263
    %5956 = vmatpush1.bf16.msra.mxu0 %v5262
    %5957 = vmatprep.subr.bf16.mxu0 %v5271
    %5958 = vmatpush1.bf16.msra.mxu0 %v5270
    %5959 = vmatprep.subr.bf16.mxu0 %v5279
    %5960 = vmatpush1.bf16.msra.mxu0 %v5278
    %5961 = vmatprep.subr.bf16.mxu0 %v5287
    %5962 = vmatpush1.bf16.msra.mxu0 %v5286
    %5963 = vmatprep.subr.bf16.mxu0 %v5295
    %5964 = vmatpush1.bf16.msra.mxu0 %v5294
    %5965 = vmatprep.subr.bf16.mxu0 %v5303
    %5966 = vmatpush1.bf16.msra.mxu0 %v5302
    %5967 = vmatprep.subr.bf16.mxu0 %v5311
    %5968 = vmatpush1.bf16.msra.mxu0 %v5310
    %5969 = vmatprep.subr.bf16.mxu0 %v5319
    %5970 = vmatpush1.bf16.msra.mxu0 %v5318
    %5971 = vmatprep.mubr.bf16.mxu0 %v4299
    %5972 = vmatmul.mubr.bf16.gmra.mrb[0].mxu0 %v4298
    %v5973 = vpop.f32.mrb[0].mxu0
    %v5974 = vadd.f32 %v5933, %v5973
    %v5975 = vpop.f32.mrb[0].mxu0
    %v5976 = vadd.f32 %v5935, %v5975
    %v5977 = vpop.f32.mrb[0].mxu0
    %v5978 = vpop.f32.mrb[0].mxu0
    %5979 = vdwg.mxu0
    %5980 = vmatprep.subr.bf16.mxu0 %v4305
    %5981 = vmatpush1.bf16.msra.mxu0 %v4304
    %5982 = vmatprep.subr.bf16.mxu0 %v4313
    %5983 = vmatpush1.bf16.msra.mxu0 %v4312
    %5984 = vmatprep.subr.bf16.mxu0 %v4321
    %5985 = vmatpush1.bf16.msra.mxu0 %v4320
    %5986 = vmatprep.subr.bf16.mxu0 %v4329
    %5987 = vmatpush1.bf16.msra.mxu0 %v4328
    %5988 = vmatprep.subr.bf16.mxu0 %v4337
    %5989 = vmatpush1.bf16.msra.mxu0 %v4336
    %5990 = vmatprep.subr.bf16.mxu0 %v4345
    %5991 = vmatpush1.bf16.msra.mxu0 %v4344
    %5992 = vmatprep.subr.bf16.mxu0 %v4353
    %5993 = vmatpush1.bf16.msra.mxu0 %v4352
    %5994 = vmatprep.subr.bf16.mxu0 %v4361
    %5995 = vmatpush1.bf16.msra.mxu0 %v4360
    %5996 = vmatprep.subr.bf16.mxu0 %v4369
    %5997 = vmatpush1.bf16.msra.mxu0 %v4368
    %5998 = vmatprep.subr.bf16.mxu0 %v4377
    %5999 = vmatpush1.bf16.msra.mxu0 %v4376
    %6000 = vmatprep.subr.bf16.mxu0 %v4385
    %6001 = vmatpush1.bf16.msra.mxu0 %v4384
    %6002 = vmatprep.subr.bf16.mxu0 %v4393
    %6003 = vmatpush1.bf16.msra.mxu0 %v4392
    %6004 = vmatprep.subr.bf16.mxu0 %v4401
    %6005 = vmatpush1.bf16.msra.mxu0 %v4400
    %6006 = vmatprep.subr.bf16.mxu0 %v4409
    %6007 = vmatpush1.bf16.msra.mxu0 %v4408
    %6008 = vmatprep.subr.bf16.mxu0 %v4417
    %6009 = vmatpush1.bf16.msra.mxu0 %v4416
    %6010 = vmatprep.subr.bf16.mxu0 %v4425
    %6011 = vmatpush1.bf16.msra.mxu0 %v4424
    %6012 = vmatprep.mubr.bf16.mxu0 %v4285
    %6013 = vmatmul.mubr.bf16.gmra.mrb[0].mxu0 %v4284
    %v6014 = vpop.f32.mrb[0].mxu0
    %v6015 = vadd.f32 0.0, %v6014
    %v6016 = vpop.f32.mrb[0].mxu0
    %v6017 = vadd.f32 0.0, %v6016
    %v6018 = vpop.f32.mrb[0].mxu0
    %v6019 = vpop.f32.mrb[0].mxu0
    %6020 = vdwg.mxu0
    %6021 = vmatprep.subr.bf16.mxu0 %v4433
    %6022 = vmatpush1.bf16.msra.mxu0 %v4432
    %6023 = vmatprep.subr.bf16.mxu0 %v4441
    %6024 = vmatpush1.bf16.msra.mxu0 %v4440
    %6025 = vmatprep.subr.bf16.mxu0 %v4449
    %6026 = vmatpush1.bf16.msra.mxu0 %v4448
    %6027 = vmatprep.subr.bf16.mxu0 %v4457
    %6028 = vmatpush1.bf16.msra.mxu0 %v4456
    %6029 = vmatprep.subr.bf16.mxu0 %v4465
    %6030 = vmatpush1.bf16.msra.mxu0 %v4464
    %6031 = vmatprep.subr.bf16.mxu0 %v4473
    %6032 = vmatpush1.bf16.msra.mxu0 %v4472
    %6033 = vmatprep.subr.bf16.mxu0 %v4481
    %6034 = vmatpush1.bf16.msra.mxu0 %v4480
    %6035 = vmatprep.subr.bf16.mxu0 %v4489
    %6036 = vmatpush1.bf16.msra.mxu0 %v4488
    %6037 = vmatprep.subr.bf16.mxu0 %v4497
    %6038 = vmatpush1.bf16.msra.mxu0 %v4496
    %6039 = vmatprep.subr.bf16.mxu0 %v4505
    %6040 = vmatpush1.bf16.msra.mxu0 %v4504
    %6041 = vmatprep.subr.bf16.mxu0 %v4513
    %6042 = vmatpush1.bf16.msra.mxu0 %v4512
    %6043 = vmatprep.subr.bf16.mxu0 %v4521
    %6044 = vmatpush1.bf16.msra.mxu0 %v4520
    %6045 = vmatprep.subr.bf16.mxu0 %v4529
    %6046 = vmatpush1.bf16.msra.mxu0 %v4528
    %6047 = vmatprep.subr.bf16.mxu0 %v4537
    %6048 = vmatpush1.bf16.msra.mxu0 %v4536
    %6049 = vmatprep.subr.bf16.mxu0 %v4545
    %6050 = vmatpush1.bf16.msra.mxu0 %v4544
    %6051 = vmatprep.subr.bf16.mxu0 %v4553
    %6052 = vmatpush1.bf16.msra.mxu0 %v4552
    %6053 = vmatprep.mubr.bf16.mxu0 %v4287
    %6054 = vmatmul.mubr.bf16.gmra.mrb[0].mxu0 %v4286
    %v6055 = vpop.f32.mrb[0].mxu0
    %v6056 = vadd.f32 %v6015, %v6055
    %v6057 = vpop.f32.mrb[0].mxu0
    %v6058 = vadd.f32 %v6017, %v6057
    %v6059 = vpop.f32.mrb[0].mxu0
    %v6060 = vpop.f32.mrb[0].mxu0
    %6061 = vdwg.mxu0
    %6062 = vmatprep.subr.bf16.mxu0 %v4561
    %6063 = vmatpush1.bf16.msra.mxu0 %v4560
    %6064 = vmatprep.subr.bf16.mxu0 %v4569
    %6065 = vmatpush1.bf16.msra.mxu0 %v4568
    %6066 = vmatprep.subr.bf16.mxu0 %v4577
    %6067 = vmatpush1.bf16.msra.mxu0 %v4576
    %6068 = vmatprep.subr.bf16.mxu0 %v4585
    %6069 = vmatpush1.bf16.msra.mxu0 %v4584
    %6070 = vmatprep.subr.bf16.mxu0 %v4593
    %6071 = vmatpush1.bf16.msra.mxu0 %v4592
    %6072 = vmatprep.subr.bf16.mxu0 %v4601
    %6073 = vmatpush1.bf16.msra.mxu0 %v4600
    %6074 = vmatprep.subr.bf16.mxu0 %v4609
    %6075 = vmatpush1.bf16.msra.mxu0 %v4608
    %6076 = vmatprep.subr.bf16.mxu0 %v4617
    %6077 = vmatpush1.bf16.msra.mxu0 %v4616
    %6078 = vmatprep.subr.bf16.mxu0 %v4625
    %6079 = vmatpush1.bf16.msra.mxu0 %v4624
    %6080 = vmatprep.subr.bf16.mxu0 %v4633
    %6081 = vmatpush1.bf16.msra.mxu0 %v4632
    %6082 = vmatprep.subr.bf16.mxu0 %v4641
    %6083 = vmatpush1.bf16.msra.mxu0 %v4640
    %6084 = vmatprep.subr.bf16.mxu0 %v4649
    %6085 = vmatpush1.bf16.msra.mxu0 %v4648
    %6086 = vmatprep.subr.bf16.mxu0 %v4657
    %6087 = vmatpush1.bf16.msra.mxu0 %v4656
    %6088 = vmatprep.subr.bf16.mxu0 %v4665
    %6089 = vmatpush1.bf16.msra.mxu0 %v4664
    %6090 = vmatprep.subr.bf16.mxu0 %v4673
    %6091 = vmatpush1.bf16.msra.mxu0 %v4672
    %6092 = vmatprep.subr.bf16.mxu0 %v4681
    %6093 = vmatpush1.bf16.msra.mxu0 %v4680
    %6094 = vmatprep.mubr.bf16.mxu0 %v4289
    %6095 = vmatmul.mubr.bf16.gmra.mrb[0].mxu0 %v4288
    %v6096 = vpop.f32.mrb[0].mxu0
    %v6097 = vadd.f32 %v6056, %v6096
    %v6098 = vpop.f32.mrb[0].mxu0
    %v6099 = vadd.f32 %v6058, %v6098
    %v6100 = vpop.f32.mrb[0].mxu0
    %v6101 = vpop.f32.mrb[0].mxu0
    %6102 = vdwg.mxu0
    %6103 = vmatprep.subr.bf16.mxu0 %v4689
    %6104 = vmatpush1.bf16.msra.mxu0 %v4688
    %6105 = vmatprep.subr.bf16.mxu0 %v4697
    %6106 = vmatpush1.bf16.msra.mxu0 %v4696
    %6107 = vmatprep.subr.bf16.mxu0 %v4705
    %6108 = vmatpush1.bf16.msra.mxu0 %v4704
    %6109 = vmatprep.subr.bf16.mxu0 %v4713
    %6110 = vmatpush1.bf16.msra.mxu0 %v4712
    %6111 = vmatprep.subr.bf16.mxu0 %v4721
    %6112 = vmatpush1.bf16.msra.mxu0 %v4720
    %6113 = vmatprep.subr.bf16.mxu0 %v4729
    %6114 = vmatpush1.bf16.msra.mxu0 %v4728
    %6115 = vmatprep.subr.bf16.mxu0 %v4737
    %6116 = vmatpush1.bf16.msra.mxu0 %v4736
    %6117 = vmatprep.subr.bf16.mxu0 %v4745
    %6118 = vmatpush1.bf16.msra.mxu0 %v4744
    %6119 = vmatprep.subr.bf16.mxu0 %v4753
    %6120 = vmatpush1.bf16.msra.mxu0 %v4752
    %6121 = vmatprep.subr.bf16.mxu0 %v4761
    %6122 = vmatpush1.bf16.msra.mxu0 %v4760
    %6123 = vmatprep.subr.bf16.mxu0 %v4769
    %6124 = vmatpush1.bf16.msra.mxu0 %v4768
    %6125 = vmatprep.subr.bf16.mxu0 %v4777
    %6126 = vmatpush1.bf16.msra.mxu0 %v4776
    %6127 = vmatprep.subr.bf16.mxu0 %v4785
    %6128 = vmatpush1.bf16.msra.mxu0 %v4784
    %6129 = vmatprep.subr.bf16.mxu0 %v4793
    %6130 = vmatpush1.bf16.msra.mxu0 %v4792
    %6131 = vmatprep.subr.bf16.mxu0 %v4801
    %6132 = vmatpush1.bf16.msra.mxu0 %v4800
    %6133 = vmatprep.subr.bf16.mxu0 %v4809
    %6134 = vmatpush1.bf16.msra.mxu0 %v4808
    %6135 = vmatprep.mubr.bf16.mxu0 %v4291
    %6136 = vmatmul.mubr.bf16.gmra.mrb[0].mxu0 %v4290
    %v6137 = vpop.f32.mrb[0].mxu0
    %v6138 = vadd.f32 %v6097, %v6137
    %v6139 = vpop.f32.mrb[0].mxu0
    %v6140 = vadd.f32 %v6099, %v6139
    %v6141 = vpop.f32.mrb[0].mxu0
    %v6142 = vpop.f32.mrb[0].mxu0
    %6143 = vdwg.mxu0
    %6144 = vmatprep.subr.bf16.mxu0 %v4817
    %6145 = vmatpush1.bf16.msra.mxu0 %v4816
    %6146 = vmatprep.subr.bf16.mxu0 %v4825
    %6147 = vmatpush1.bf16.msra.mxu0 %v4824
    %6148 = vmatprep.subr.bf16.mxu0 %v4833
    %6149 = vmatpush1.bf16.msra.mxu0 %v4832
    %6150 = vmatprep.subr.bf16.mxu0 %v4841
    %6151 = vmatpush1.bf16.msra.mxu0 %v4840
    %6152 = vmatprep.subr.bf16.mxu0 %v4849
    %6153 = vmatpush1.bf16.msra.mxu0 %v4848
    %6154 = vmatprep.subr.bf16.mxu0 %v4857
    %6155 = vmatpush1.bf16.msra.mxu0 %v4856
    %6156 = vmatprep.subr.bf16.mxu0 %v4865
    %6157 = vmatpush1.bf16.msra.mxu0 %v4864
    %6158 = vmatprep.subr.bf16.mxu0 %v4873
    %6159 = vmatpush1.bf16.msra.mxu0 %v4872
    %6160 = vmatprep.subr.bf16.mxu0 %v4881
    %6161 = vmatpush1.bf16.msra.mxu0 %v4880
    %6162 = vmatprep.subr.bf16.mxu0 %v4889
    %6163 = vmatpush1.bf16.msra.mxu0 %v4888
    %6164 = vmatprep.subr.bf16.mxu0 %v4897
    %6165 = vmatpush1.bf16.msra.mxu0 %v4896
    %6166 = vmatprep.subr.bf16.mxu0 %v4905
    %6167 = vmatpush1.bf16.msra.mxu0 %v4904
    %6168 = vmatprep.subr.bf16.mxu0 %v4913
    %6169 = vmatpush1.bf16.msra.mxu0 %v4912
    %6170 = vmatprep.subr.bf16.mxu0 %v4921
    %6171 = vmatpush1.bf16.msra.mxu0 %v4920
    %6172 = vmatprep.subr.bf16.mxu0 %v4929
    %6173 = vmatpush1.bf16.msra.mxu0 %v4928
    %6174 = vmatprep.subr.bf16.mxu0 %v4937
    %6175 = vmatpush1.bf16.msra.mxu0 %v4936
    %6176 = vmatprep.mubr.bf16.mxu0 %v4293
    %6177 = vmatmul.mubr.bf16.gmra.mrb[0].mxu0 %v4292
    %v6178 = vpop.f32.mrb[0].mxu0
    %v6179 = vadd.f32 %v6138, %v6178
    %v6180 = vpop.f32.mrb[0].mxu0
    %v6181 = vadd.f32 %v6140, %v6180
    %v6182 = vpop.f32.mrb[0].mxu0
    %v6183 = vpop.f32.mrb[0].mxu0
    %6184 = vdwg.mxu0
    %6185 = vmatprep.subr.bf16.mxu0 %v4945
    %6186 = vmatpush1.bf16.msra.mxu0 %v4944
    %6187 = vmatprep.subr.bf16.mxu0 %v4953
    %6188 = vmatpush1.bf16.msra.mxu0 %v4952
    %6189 = vmatprep.subr.bf16.mxu0 %v4961
    %6190 = vmatpush1.bf16.msra.mxu0 %v4960
    %6191 = vmatprep.subr.bf16.mxu0 %v4969
    %6192 = vmatpush1.bf16.msra.mxu0 %v4968
    %6193 = vmatprep.subr.bf16.mxu0 %v4977
    %6194 = vmatpush1.bf16.msra.mxu0 %v4976
    %6195 = vmatprep.subr.bf16.mxu0 %v4985
    %6196 = vmatpush1.bf16.msra.mxu0 %v4984
    %6197 = vmatprep.subr.bf16.mxu0 %v4993
    %6198 = vmatpush1.bf16.msra.mxu0 %v4992
    %6199 = vmatprep.subr.bf16.mxu0 %v5001
    %6200 = vmatpush1.bf16.msra.mxu0 %v5000
    %6201 = vmatprep.subr.bf16.mxu0 %v5009
    %6202 = vmatpush1.bf16.msra.mxu0 %v5008
    %6203 = vmatprep.subr.bf16.mxu0 %v5017
    %6204 = vmatpush1.bf16.msra.mxu0 %v5016
    %6205 = vmatprep.subr.bf16.mxu0 %v5025
    %6206 = vmatpush1.bf16.msra.mxu0 %v5024
    %6207 = vmatprep.subr.bf16.mxu0 %v5033
    %6208 = vmatpush1.bf16.msra.mxu0 %v5032
    %6209 = vmatprep.subr.bf16.mxu0 %v5041
    %6210 = vmatpush1.bf16.msra.mxu0 %v5040
    %6211 = vmatprep.subr.bf16.mxu0 %v5049
    %6212 = vmatpush1.bf16.msra.mxu0 %v5048
    %6213 = vmatprep.subr.bf16.mxu0 %v5057
    %6214 = vmatpush1.bf16.msra.mxu0 %v5056
    %6215 = vmatprep.subr.bf16.mxu0 %v5065
    %6216 = vmatpush1.bf16.msra.mxu0 %v5064
    %6217 = vmatprep.mubr.bf16.mxu0 %v4295
    %6218 = vmatmul.mubr.bf16.gmra.mrb[0].mxu0 %v4294
    %v6219 = vpop.f32.mrb[0].mxu0
    %v6220 = vadd.f32 %v6179, %v6219
    %v6221 = vpop.f32.mrb[0].mxu0
    %v6222 = vadd.f32 %v6181, %v6221
    %v6223 = vpop.f32.mrb[0].mxu0
    %v6224 = vpop.f32.mrb[0].mxu0
    %6225 = vdwg.mxu0
    %6226 = vmatprep.subr.bf16.mxu0 %v5073
    %6227 = vmatpush1.bf16.msra.mxu0 %v5072
    %6228 = vmatprep.subr.bf16.mxu0 %v5081
    %6229 = vmatpush1.bf16.msra.mxu0 %v5080
    %6230 = vmatprep.subr.bf16.mxu0 %v5089
    %6231 = vmatpush1.bf16.msra.mxu0 %v5088
    %6232 = vmatprep.subr.bf16.mxu0 %v5097
    %6233 = vmatpush1.bf16.msra.mxu0 %v5096
    %6234 = vmatprep.subr.bf16.mxu0 %v5105
    %6235 = vmatpush1.bf16.msra.mxu0 %v5104
    %6236 = vmatprep.subr.bf16.mxu0 %v5113
    %6237 = vmatpush1.bf16.msra.mxu0 %v5112
    %6238 = vmatprep.subr.bf16.mxu0 %v5121
    %6239 = vmatpush1.bf16.msra.mxu0 %v5120
    %6240 = vmatprep.subr.bf16.mxu0 %v5129
    %6241 = vmatpush1.bf16.msra.mxu0 %v5128
    %6242 = vmatprep.subr.bf16.mxu0 %v5137
    %6243 = vmatpush1.bf16.msra.mxu0 %v5136
    %6244 = vmatprep.subr.bf16.mxu0 %v5145
    %6245 = vmatpush1.bf16.msra.mxu0 %v5144
    %6246 = vmatprep.subr.bf16.mxu0 %v5153
    %6247 = vmatpush1.bf16.msra.mxu0 %v5152
    %6248 = vmatprep.subr.bf16.mxu0 %v5161
    %6249 = vmatpush1.bf16.msra.mxu0 %v5160
    %6250 = vmatprep.subr.bf16.mxu0 %v5169
    %6251 = vmatpush1.bf16.msra.mxu0 %v5168
    %6252 = vmatprep.subr.bf16.mxu0 %v5177
    %6253 = vmatpush1.bf16.msra.mxu0 %v5176
    %6254 = vmatprep.subr.bf16.mxu0 %v5185
    %6255 = vmatpush1.bf16.msra.mxu0 %v5184
    %6256 = vmatprep.subr.bf16.mxu0 %v5193
    %6257 = vmatpush1.bf16.msra.mxu0 %v5192
    %6258 = vmatprep.mubr.bf16.mxu0 %v4297
    %6259 = vmatmul.mubr.bf16.gmra.mrb[0].mxu0 %v4296
    %v6260 = vpop.f32.mrb[0].mxu0
    %v6261 = vadd.f32 %v6220, %v6260
    %v6262 = vpop.f32.mrb[0].mxu0
    %v6263 = vadd.f32 %v6222, %v6262
    %v6264 = vpop.f32.mrb[0].mxu0
    %v6265 = vpop.f32.mrb[0].mxu0
    %6266 = vdwg.mxu0
    %6267 = vmatprep.subr.bf16.mxu0 %v5201
    %6268 = vmatpush1.bf16.msra.mxu0 %v5200
    %6269 = vmatprep.subr.bf16.mxu0 %v5209
    %6270 = vmatpush1.bf16.msra.mxu0 %v5208
    %6271 = vmatprep.subr.bf16.mxu0 %v5217
    %6272 = vmatpush1.bf16.msra.mxu0 %v5216
    %6273 = vmatprep.subr.bf16.mxu0 %v5225
    %6274 = vmatpush1.bf16.msra.mxu0 %v5224
    %6275 = vmatprep.subr.bf16.mxu0 %v5233
    %6276 = vmatpush1.bf16.msra.mxu0 %v5232
    %6277 = vmatprep.subr.bf16.mxu0 %v5241
    %6278 = vmatpush1.bf16.msra.mxu0 %v5240
    %6279 = vmatprep.subr.bf16.mxu0 %v5249
    %6280 = vmatpush1.bf16.msra.mxu0 %v5248
    %6281 = vmatprep.subr.bf16.mxu0 %v5257
    %6282 = vmatpush1.bf16.msra.mxu0 %v5256
    %6283 = vmatprep.subr.bf16.mxu0 %v5265
    %6284 = vmatpush1.bf16.msra.mxu0 %v5264
    %6285 = vmatprep.subr.bf16.mxu0 %v5273
    %6286 = vmatpush1.bf16.msra.mxu0 %v5272
    %6287 = vmatprep.subr.bf16.mxu0 %v5281
    %6288 = vmatpush1.bf16.msra.mxu0 %v5280
    %6289 = vmatprep.subr.bf16.mxu0 %v5289
    %6290 = vmatpush1.bf16.msra.mxu0 %v5288
    %6291 = vmatprep.subr.bf16.mxu0 %v5297
    %6292 = vmatpush1.bf16.msra.mxu0 %v5296
    %6293 = vmatprep.subr.bf16.mxu0 %v5305
    %6294 = vmatpush1.bf16.msra.mxu0 %v5304
    %6295 = vmatprep.subr.bf16.mxu0 %v5313
    %6296 = vmatpush1.bf16.msra.mxu0 %v5312
    %6297 = vmatprep.subr.bf16.mxu0 %v5321
    %6298 = vmatpush1.bf16.msra.mxu0 %v5320
    %6299 = vmatprep.mubr.bf16.mxu0 %v4299
    %6300 = vmatmul.mubr.bf16.gmra.mrb[0].mxu0 %v4298
    %v6301 = vpop.f32.mrb[0].mxu0
    %v6302 = vadd.f32 %v6261, %v6301
    %v6303 = vpop.f32.mrb[0].mxu0
    %v6304 = vadd.f32 %v6263, %v6303
    %v6305 = vpop.f32.mrb[0].mxu0
    %v6306 = vpop.f32.mrb[0].mxu0
    %6307 = vdwg.mxu0
    %6308 = vmatprep.subr.bf16.mxu0 %v4307
    %6309 = vmatpush1.bf16.msra.mxu0 %v4306
    %6310 = vmatprep.subr.bf16.mxu0 %v4315
    %6311 = vmatpush1.bf16.msra.mxu0 %v4314
    %6312 = vmatprep.subr.bf16.mxu0 %v4323
    %6313 = vmatpush1.bf16.msra.mxu0 %v4322
    %6314 = vmatprep.subr.bf16.mxu0 %v4331
    %6315 = vmatpush1.bf16.msra.mxu0 %v4330
    %6316 = vmatprep.subr.bf16.mxu0 %v4339
    %6317 = vmatpush1.bf16.msra.mxu0 %v4338
    %6318 = vmatprep.subr.bf16.mxu0 %v4347
    %6319 = vmatpush1.bf16.msra.mxu0 %v4346
    %6320 = vmatprep.subr.bf16.mxu0 %v4355
    %6321 = vmatpush1.bf16.msra.mxu0 %v4354
    %6322 = vmatprep.subr.bf16.mxu0 %v4363
    %6323 = vmatpush1.bf16.msra.mxu0 %v4362
    %6324 = vmatprep.subr.bf16.mxu0 %v4371
    %6325 = vmatpush1.bf16.msra.mxu0 %v4370
    %6326 = vmatprep.subr.bf16.mxu0 %v4379
    %6327 = vmatpush1.bf16.msra.mxu0 %v4378
    %6328 = vmatprep.subr.bf16.mxu0 %v4387
    %6329 = vmatpush1.bf16.msra.mxu0 %v4386
    %6330 = vmatprep.subr.bf16.mxu0 %v4395
    %6331 = vmatpush1.bf16.msra.mxu0 %v4394
    %6332 = vmatprep.subr.bf16.mxu0 %v4403
    %6333 = vmatpush1.bf16.msra.mxu0 %v4402
    %6334 = vmatprep.subr.bf16.mxu0 %v4411
    %6335 = vmatpush1.bf16.msra.mxu0 %v4410
    %6336 = vmatprep.subr.bf16.mxu0 %v4419
    %6337 = vmatpush1.bf16.msra.mxu0 %v4418
    %6338 = vmatprep.subr.bf16.mxu0 %v4427
    %6339 = vmatpush1.bf16.msra.mxu0 %v4426
    %6340 = vmatprep.mubr.bf16.mxu0 %v4285
    %6341 = vmatmul.mubr.bf16.gmra.mrb[0].mxu0 %v4284
    %v6342 = vpop.f32.mrb[0].mxu0
    %v6343 = vadd.f32 0.0, %v6342
    %v6344 = vpop.f32.mrb[0].mxu0
    %v6345 = vadd.f32 0.0, %v6344
    %v6346 = vpop.f32.mrb[0].mxu0
    %v6347 = vpop.f32.mrb[0].mxu0
    %6348 = vdwg.mxu0
    %6349 = vmatprep.subr.bf16.mxu0 %v4435
    %6350 = vmatpush1.bf16.msra.mxu0 %v4434
    %6351 = vmatprep.subr.bf16.mxu0 %v4443
    %6352 = vmatpush1.bf16.msra.mxu0 %v4442
    %6353 = vmatprep.subr.bf16.mxu0 %v4451
    %6354 = vmatpush1.bf16.msra.mxu0 %v4450
    %6355 = vmatprep.subr.bf16.mxu0 %v4459
    %6356 = vmatpush1.bf16.msra.mxu0 %v4458
    %6357 = vmatprep.subr.bf16.mxu0 %v4467
    %6358 = vmatpush1.bf16.msra.mxu0 %v4466
    %6359 = vmatprep.subr.bf16.mxu0 %v4475
    %6360 = vmatpush1.bf16.msra.mxu0 %v4474
    %6361 = vmatprep.subr.bf16.mxu0 %v4483
    %6362 = vmatpush1.bf16.msra.mxu0 %v4482
    %6363 = vmatprep.subr.bf16.mxu0 %v4491
    %6364 = vmatpush1.bf16.msra.mxu0 %v4490
    %6365 = vmatprep.subr.bf16.mxu0 %v4499
    %6366 = vmatpush1.bf16.msra.mxu0 %v4498
    %6367 = vmatprep.subr.bf16.mxu0 %v4507
    %6368 = vmatpush1.bf16.msra.mxu0 %v4506
    %6369 = vmatprep.subr.bf16.mxu0 %v4515
    %6370 = vmatpush1.bf16.msra.mxu0 %v4514
    %6371 = vmatprep.subr.bf16.mxu0 %v4523
    %6372 = vmatpush1.bf16.msra.mxu0 %v4522
    %6373 = vmatprep.subr.bf16.mxu0 %v4531
    %6374 = vmatpush1.bf16.msra.mxu0 %v4530
    %6375 = vmatprep.subr.bf16.mxu0 %v4539
    %6376 = vmatpush1.bf16.msra.mxu0 %v4538
    %6377 = vmatprep.subr.bf16.mxu0 %v4547
    %6378 = vmatpush1.bf16.msra.mxu0 %v4546
    %6379 = vmatprep.subr.bf16.mxu0 %v4555
    %6380 = vmatpush1.bf16.msra.mxu0 %v4554
    %6381 = vmatprep.mubr.bf16.mxu0 %v4287
    %6382 = vmatmul.mubr.bf16.gmra.mrb[0].mxu0 %v4286
    %v6383 = vpop.f32.mrb[0].mxu0
    %v6384 = vadd.f32 %v6343, %v6383
    %v6385 = vpop.f32.mrb[0].mxu0
    %v6386 = vadd.f32 %v6345, %v6385
    %v6387 = vpop.f32.mrb[0].mxu0
    %v6388 = vpop.f32.mrb[0].mxu0
    %6389 = vdwg.mxu0
    %6390 = vmatprep.subr.bf16.mxu0 %v4563
    %6391 = vmatpush1.bf16.msra.mxu0 %v4562
    %6392 = vmatprep.subr.bf16.mxu0 %v4571
    %6393 = vmatpush1.bf16.msra.mxu0 %v4570
    %6394 = vmatprep.subr.bf16.mxu0 %v4579
    %6395 = vmatpush1.bf16.msra.mxu0 %v4578
    %6396 = vmatprep.subr.bf16.mxu0 %v4587
    %6397 = vmatpush1.bf16.msra.mxu0 %v4586
    %6398 = vmatprep.subr.bf16.mxu0 %v4595
    %6399 = vmatpush1.bf16.msra.mxu0 %v4594
    %6400 = vmatprep.subr.bf16.mxu0 %v4603
    %6401 = vmatpush1.bf16.msra.mxu0 %v4602
    %6402 = vmatprep.subr.bf16.mxu0 %v4611
    %6403 = vmatpush1.bf16.msra.mxu0 %v4610
    %6404 = vmatprep.subr.bf16.mxu0 %v4619
    %6405 = vmatpush1.bf16.msra.mxu0 %v4618
    %6406 = vmatprep.subr.bf16.mxu0 %v4627
    %6407 = vmatpush1.bf16.msra.mxu0 %v4626
    %6408 = vmatprep.subr.bf16.mxu0 %v4635
    %6409 = vmatpush1.bf16.msra.mxu0 %v4634
    %6410 = vmatprep.subr.bf16.mxu0 %v4643
    %6411 = vmatpush1.bf16.msra.mxu0 %v4642
    %6412 = vmatprep.subr.bf16.mxu0 %v4651
    %6413 = vmatpush1.bf16.msra.mxu0 %v4650
    %6414 = vmatprep.subr.bf16.mxu0 %v4659
    %6415 = vmatpush1.bf16.msra.mxu0 %v4658
    %6416 = vmatprep.subr.bf16.mxu0 %v4667
    %6417 = vmatpush1.bf16.msra.mxu0 %v4666
    %6418 = vmatprep.subr.bf16.mxu0 %v4675
    %6419 = vmatpush1.bf16.msra.mxu0 %v4674
    %6420 = vmatprep.subr.bf16.mxu0 %v4683
    %6421 = vmatpush1.bf16.msra.mxu0 %v4682
    %6422 = vmatprep.mubr.bf16.mxu0 %v4289
    %6423 = vmatmul.mubr.bf16.gmra.mrb[0].mxu0 %v4288
    %v6424 = vpop.f32.mrb[0].mxu0
    %v6425 = vadd.f32 %v6384, %v6424
    %v6426 = vpop.f32.mrb[0].mxu0
    %v6427 = vadd.f32 %v6386, %v6426
    %v6428 = vpop.f32.mrb[0].mxu0
    %v6429 = vpop.f32.mrb[0].mxu0
    %6430 = vdwg.mxu0
    %6431 = vmatprep.subr.bf16.mxu0 %v4691
    %6432 = vmatpush1.bf16.msra.mxu0 %v4690
    %6433 = vmatprep.subr.bf16.mxu0 %v4699
    %6434 = vmatpush1.bf16.msra.mxu0 %v4698
    %6435 = vmatprep.subr.bf16.mxu0 %v4707
    %6436 = vmatpush1.bf16.msra.mxu0 %v4706
    %6437 = vmatprep.subr.bf16.mxu0 %v4715
    %6438 = vmatpush1.bf16.msra.mxu0 %v4714
    %6439 = vmatprep.subr.bf16.mxu0 %v4723
    %6440 = vmatpush1.bf16.msra.mxu0 %v4722
    %6441 = vmatprep.subr.bf16.mxu0 %v4731
    %6442 = vmatpush1.bf16.msra.mxu0 %v4730
    %6443 = vmatprep.subr.bf16.mxu0 %v4739
    %6444 = vmatpush1.bf16.msra.mxu0 %v4738
    %6445 = vmatprep.subr.bf16.mxu0 %v4747
    %6446 = vmatpush1.bf16.msra.mxu0 %v4746
    %6447 = vmatprep.subr.bf16.mxu0 %v4755
    %6448 = vmatpush1.bf16.msra.mxu0 %v4754
    %6449 = vmatprep.subr.bf16.mxu0 %v4763
    %6450 = vmatpush1.bf16.msra.mxu0 %v4762
    %6451 = vmatprep.subr.bf16.mxu0 %v4771
    %6452 = vmatpush1.bf16.msra.mxu0 %v4770
    %6453 = vmatprep.subr.bf16.mxu0 %v4779
    %6454 = vmatpush1.bf16.msra.mxu0 %v4778
    %6455 = vmatprep.subr.bf16.mxu0 %v4787
    %6456 = vmatpush1.bf16.msra.mxu0 %v4786
    %6457 = vmatprep.subr.bf16.mxu0 %v4795
    %6458 = vmatpush1.bf16.msra.mxu0 %v4794
    %6459 = vmatprep.subr.bf16.mxu0 %v4803
    %6460 = vmatpush1.bf16.msra.mxu0 %v4802
    %6461 = vmatprep.subr.bf16.mxu0 %v4811
    %6462 = vmatpush1.bf16.msra.mxu0 %v4810
    %6463 = vmatprep.mubr.bf16.mxu0 %v4291
    %6464 = vmatmul.mubr.bf16.gmra.mrb[0].mxu0 %v4290
    %v6465 = vpop.f32.mrb[0].mxu0
    %v6466 = vadd.f32 %v6425, %v6465
    %v6467 = vpop.f32.mrb[0].mxu0
    %v6468 = vadd.f32 %v6427, %v6467
    %v6469 = vpop.f32.mrb[0].mxu0
    %v6470 = vpop.f32.mrb[0].mxu0
    %6471 = vdwg.mxu0
    %6472 = vmatprep.subr.bf16.mxu0 %v4819
    %6473 = vmatpush1.bf16.msra.mxu0 %v4818
    %6474 = vmatprep.subr.bf16.mxu0 %v4827
    %6475 = vmatpush1.bf16.msra.mxu0 %v4826
    %6476 = vmatprep.subr.bf16.mxu0 %v4835
    %6477 = vmatpush1.bf16.msra.mxu0 %v4834
    %6478 = vmatprep.subr.bf16.mxu0 %v4843
    %6479 = vmatpush1.bf16.msra.mxu0 %v4842
    %6480 = vmatprep.subr.bf16.mxu0 %v4851
    %6481 = vmatpush1.bf16.msra.mxu0 %v4850
    %6482 = vmatprep.subr.bf16.mxu0 %v4859
    %6483 = vmatpush1.bf16.msra.mxu0 %v4858
    %6484 = vmatprep.subr.bf16.mxu0 %v4867
    %6485 = vmatpush1.bf16.msra.mxu0 %v4866
    %6486 = vmatprep.subr.bf16.mxu0 %v4875
    %6487 = vmatpush1.bf16.msra.mxu0 %v4874
    %6488 = vmatprep.subr.bf16.mxu0 %v4883
    %6489 = vmatpush1.bf16.msra.mxu0 %v4882
    %6490 = vmatprep.subr.bf16.mxu0 %v4891
    %6491 = vmatpush1.bf16.msra.mxu0 %v4890
    %6492 = vmatprep.subr.bf16.mxu0 %v4899
    %6493 = vmatpush1.bf16.msra.mxu0 %v4898
    %6494 = vmatprep.subr.bf16.mxu0 %v4907
    %6495 = vmatpush1.bf16.msra.mxu0 %v4906
    %6496 = vmatprep.subr.bf16.mxu0 %v4915
    %6497 = vmatpush1.bf16.msra.mxu0 %v4914
    %6498 = vmatprep.subr.bf16.mxu0 %v4923
    %6499 = vmatpush1.bf16.msra.mxu0 %v4922
    %6500 = vmatprep.subr.bf16.mxu0 %v4931
    %6501 = vmatpush1.bf16.msra.mxu0 %v4930
    %6502 = vmatprep.subr.bf16.mxu0 %v4939
    %6503 = vmatpush1.bf16.msra.mxu0 %v4938
    %6504 = vmatprep.mubr.bf16.mxu0 %v4293
    %6505 = vmatmul.mubr.bf16.gmra.mrb[0].mxu0 %v4292
    %v6506 = vpop.f32.mrb[0].mxu0
    %v6507 = vadd.f32 %v6466, %v6506
    %v6508 = vpop.f32.mrb[0].mxu0
    %v6509 = vadd.f32 %v6468, %v6508
    %v6510 = vpop.f32.mrb[0].mxu0
    %v6511 = vpop.f32.mrb[0].mxu0
    %6512 = vdwg.mxu0
    %6513 = vmatprep.subr.bf16.mxu0 %v4947
    %6514 = vmatpush1.bf16.msra.mxu0 %v4946
    %6515 = vmatprep.subr.bf16.mxu0 %v4955
    %6516 = vmatpush1.bf16.msra.mxu0 %v4954
    %6517 = vmatprep.subr.bf16.mxu0 %v4963
    %6518 = vmatpush1.bf16.msra.mxu0 %v4962
    %6519 = vmatprep.subr.bf16.mxu0 %v4971
    %6520 = vmatpush1.bf16.msra.mxu0 %v4970
    %6521 = vmatprep.subr.bf16.mxu0 %v4979
    %6522 = vmatpush1.bf16.msra.mxu0 %v4978
    %6523 = vmatprep.subr.bf16.mxu0 %v4987
    %6524 = vmatpush1.bf16.msra.mxu0 %v4986
    %6525 = vmatprep.subr.bf16.mxu0 %v4995
    %6526 = vmatpush1.bf16.msra.mxu0 %v4994
    %6527 = vmatprep.subr.bf16.mxu0 %v5003
    %6528 = vmatpush1.bf16.msra.mxu0 %v5002
    %6529 = vmatprep.subr.bf16.mxu0 %v5011
    %6530 = vmatpush1.bf16.msra.mxu0 %v5010
    %6531 = vmatprep.subr.bf16.mxu0 %v5019
    %6532 = vmatpush1.bf16.msra.mxu0 %v5018
    %6533 = vmatprep.subr.bf16.mxu0 %v5027
    %6534 = vmatpush1.bf16.msra.mxu0 %v5026
    %6535 = vmatprep.subr.bf16.mxu0 %v5035
    %6536 = vmatpush1.bf16.msra.mxu0 %v5034
    %6537 = vmatprep.subr.bf16.mxu0 %v5043
    %6538 = vmatpush1.bf16.msra.mxu0 %v5042
    %6539 = vmatprep.subr.bf16.mxu0 %v5051
    %6540 = vmatpush1.bf16.msra.mxu0 %v5050
    %6541 = vmatprep.subr.bf16.mxu0 %v5059
    %6542 = vmatpush1.bf16.msra.mxu0 %v5058
    %6543 = vmatprep.subr.bf16.mxu0 %v5067
    %6544 = vmatpush1.bf16.msra.mxu0 %v5066
    %6545 = vmatprep.mubr.bf16.mxu0 %v4295
    %6546 = vmatmul.mubr.bf16.gmra.mrb[0].mxu0 %v4294
    %v6547 = vpop.f32.mrb[0].mxu0
    %v6548 = vadd.f32 %v6507, %v6547
    %v6549 = vpop.f32.mrb[0].mxu0
    %v6550 = vadd.f32 %v6509, %v6549
    %v6551 = vpop.f32.mrb[0].mxu0
    %v6552 = vpop.f32.mrb[0].mxu0
    %6553 = vdwg.mxu0
    %6554 = vmatprep.subr.bf16.mxu0 %v5075
    %6555 = vmatpush1.bf16.msra.mxu0 %v5074
    %6556 = vmatprep.subr.bf16.mxu0 %v5083
    %6557 = vmatpush1.bf16.msra.mxu0 %v5082
    %6558 = vmatprep.subr.bf16.mxu0 %v5091
    %6559 = vmatpush1.bf16.msra.mxu0 %v5090
    %6560 = vmatprep.subr.bf16.mxu0 %v5099
    %6561 = vmatpush1.bf16.msra.mxu0 %v5098
    %6562 = vmatprep.subr.bf16.mxu0 %v5107
    %6563 = vmatpush1.bf16.msra.mxu0 %v5106
    %6564 = vmatprep.subr.bf16.mxu0 %v5115
    %6565 = vmatpush1.bf16.msra.mxu0 %v5114
    %6566 = vmatprep.subr.bf16.mxu0 %v5123
    %6567 = vmatpush1.bf16.msra.mxu0 %v5122
    %6568 = vmatprep.subr.bf16.mxu0 %v5131
    %6569 = vmatpush1.bf16.msra.mxu0 %v5130
    %6570 = vmatprep.subr.bf16.mxu0 %v5139
    %6571 = vmatpush1.bf16.msra.mxu0 %v5138
    %6572 = vmatprep.subr.bf16.mxu0 %v5147
    %6573 = vmatpush1.bf16.msra.mxu0 %v5146
    %6574 = vmatprep.subr.bf16.mxu0 %v5155
    %6575 = vmatpush1.bf16.msra.mxu0 %v5154
    %6576 = vmatprep.subr.bf16.mxu0 %v5163
    %6577 = vmatpush1.bf16.msra.mxu0 %v5162
    %6578 = vmatprep.subr.bf16.mxu0 %v5171
    %6579 = vmatpush1.bf16.msra.mxu0 %v5170
    %6580 = vmatprep.subr.bf16.mxu0 %v5179
    %6581 = vmatpush1.bf16.msra.mxu0 %v5178
    %6582 = vmatprep.subr.bf16.mxu0 %v5187
    %6583 = vmatpush1.bf16.msra.mxu0 %v5186
    %6584 = vmatprep.subr.bf16.mxu0 %v5195
    %6585 = vmatpush1.bf16.msra.mxu0 %v5194
    %6586 = vmatprep.mubr.bf16.mxu0 %v4297
    %6587 = vmatmul.mubr.bf16.gmra.mrb[0].mxu0 %v4296
    %v6588 = vpop.f32.mrb[0].mxu0
    %v6589 = vadd.f32 %v6548, %v6588
    %v6590 = vpop.f32.mrb[0].mxu0
    %v6591 = vadd.f32 %v6550, %v6590
    %v6592 = vpop.f32.mrb[0].mxu0
    %v6593 = vpop.f32.mrb[0].mxu0
    %6594 = vdwg.mxu0
    %6595 = vmatprep.subr.bf16.mxu0 %v5203
    %6596 = vmatpush1.bf16.msra.mxu0 %v5202
    %6597 = vmatprep.subr.bf16.mxu0 %v5211
    %6598 = vmatpush1.bf16.msra.mxu0 %v5210
    %6599 = vmatprep.subr.bf16.mxu0 %v5219
    %6600 = vmatpush1.bf16.msra.mxu0 %v5218
    %6601 = vmatprep.subr.bf16.mxu0 %v5227
    %6602 = vmatpush1.bf16.msra.mxu0 %v5226
    %6603 = vmatprep.subr.bf16.mxu0 %v5235
    %6604 = vmatpush1.bf16.msra.mxu0 %v5234
    %6605 = vmatprep.subr.bf16.mxu0 %v5243
    %6606 = vmatpush1.bf16.msra.mxu0 %v5242
    %6607 = vmatprep.subr.bf16.mxu0 %v5251
    %6608 = vmatpush1.bf16.msra.mxu0 %v5250
    %6609 = vmatprep.subr.bf16.mxu0 %v5259
    %6610 = vmatpush1.bf16.msra.mxu0 %v5258
    %6611 = vmatprep.subr.bf16.mxu0 %v5267
    %6612 = vmatpush1.bf16.msra.mxu0 %v5266
    %6613 = vmatprep.subr.bf16.mxu0 %v5275
    %6614 = vmatpush1.bf16.msra.mxu0 %v5274
    %6615 = vmatprep.subr.bf16.mxu0 %v5283
    %6616 = vmatpush1.bf16.msra.mxu0 %v5282
    %6617 = vmatprep.subr.bf16.mxu0 %v5291
    %6618 = vmatpush1.bf16.msra.mxu0 %v5290
    %6619 = vmatprep.subr.bf16.mxu0 %v5299
    %6620 = vmatpush1.bf16.msra.mxu0 %v5298
    %6621 = vmatprep.subr.bf16.mxu0 %v5307
    %6622 = vmatpush1.bf16.msra.mxu0 %v5306
    %6623 = vmatprep.subr.bf16.mxu0 %v5315
    %6624 = vmatpush1.bf16.msra.mxu0 %v5314
    %6625 = vmatprep.subr.bf16.mxu0 %v5323
    %6626 = vmatpush1.bf16.msra.mxu0 %v5322
    %6627 = vmatprep.mubr.bf16.mxu0 %v4299
    %6628 = vmatmul.mubr.bf16.gmra.mrb[0].mxu0 %v4298
    %v6629 = vpop.f32.mrb[0].mxu0
    %v6630 = vadd.f32 %v6589, %v6629
    %v6631 = vpop.f32.mrb[0].mxu0
    %v6632 = vadd.f32 %v6591, %v6631
    %v6633 = vpop.f32.mrb[0].mxu0
    %v6634 = vpop.f32.mrb[0].mxu0
    %6635 = vdwg.mxu0
    %v6636 = vrot.slane %v5646, 4
    %v6637 = vadd.f32 %v5646, %v6636
    %v6638 = vrot.slane %v6637, 2
    %v6639 = vadd.f32 %v6637, %v6638
    %v6640 = vrot.slane %v6639, 1
    %v6641 = vadd.f32 %v6639, %v6640
    %v6642 = vrot.slane %v5648, 4
    %v6643 = vadd.f32 %v5648, %v6642
    %v6644 = vrot.slane %v6643, 2
    %v6645 = vadd.f32 %v6643, %v6644
    %v6646 = vrot.slane %v6645, 1
    %v6647 = vadd.f32 %v6645, %v6646
    %v6648 = vrot.slane %v5974, 4
    %v6649 = vadd.f32 %v5974, %v6648
    %v6650 = vrot.slane %v6649, 2
    %v6651 = vadd.f32 %v6649, %v6650
    %v6652 = vrot.slane %v6651, 1
    %v6653 = vadd.f32 %v6651, %v6652
    %v6654 = vrot.slane %v5976, 4
    %v6655 = vadd.f32 %v5976, %v6654
    %v6656 = vrot.slane %v6655, 2
    %v6657 = vadd.f32 %v6655, %v6656
    %v6658 = vrot.slane %v6657, 1
    %v6659 = vadd.f32 %v6657, %v6658
    %v6660 = vrot.slane %v6302, 4
    %v6661 = vadd.f32 %v6302, %v6660
    %v6662 = vrot.slane %v6661, 2
    %v6663 = vadd.f32 %v6661, %v6662
    %v6664 = vrot.slane %v6663, 1
    %v6665 = vadd.f32 %v6663, %v6664
    %v6666 = vrot.slane %v6304, 4
    %v6667 = vadd.f32 %v6304, %v6666
    %v6668 = vrot.slane %v6667, 2
    %v6669 = vadd.f32 %v6667, %v6668
    %v6670 = vrot.slane %v6669, 1
    %v6671 = vadd.f32 %v6669, %v6670
    %v6672 = vrot.slane %v6630, 4
    %v6673 = vadd.f32 %v6630, %v6672
    %v6674 = vrot.slane %v6673, 2
    %v6675 = vadd.f32 %v6673, %v6674
    %v6676 = vrot.slane %v6675, 1
    %v6677 = vadd.f32 %v6675, %v6676
    %v6678 = vrot.slane %v6632, 4
    %v6679 = vadd.f32 %v6632, %v6678
    %v6680 = vrot.slane %v6679, 2
    %v6681 = vadd.f32 %v6679, %v6680
    %v6682 = vrot.slane %v6681, 1
    %v6683 = vadd.f32 %v6681, %v6682
    %v6684 = vmul.f32 %v6641, %v446
    %v6685 = vmul.f32 %v6647, %v446
    %v6686 = vmul.f32 %v6653, %v446
    %v6687 = vmul.f32 %v6659, %v446
    %v6688 = vmul.f32 %v6665, %v446
    %v6689 = vmul.f32 %v6671, %v446
    %v6690 = vmul.f32 %v6677, %v446
    %v6691 = vmul.f32 %v6683, %v446
    %v6692 = vsub.f32 %v5646, %v6684
    %v6693 = vsub.f32 %v5648, %v6685
    %v6694 = vsub.f32 %v5974, %v6686
    %v6695 = vsub.f32 %v5976, %v6687
    %v6696 = vsub.f32 %v6302, %v6688
    %v6697 = vsub.f32 %v6304, %v6689
    %v6698 = vsub.f32 %v6630, %v6690
    %v6699 = vsub.f32 %v6632, %v6691
    %v6700 = vmul.f32 %v6692, %v6692
    %v6701 = vmul.f32 %v6693, %v6693
    %v6702 = vmul.f32 %v6694, %v6694
    %v6703 = vmul.f32 %v6695, %v6695
    %v6704 = vmul.f32 %v6696, %v6696
    %v6705 = vmul.f32 %v6697, %v6697
    %v6706 = vmul.f32 %v6698, %v6698
    %v6707 = vmul.f32 %v6699, %v6699
    %v6708 = vrot.slane %v6700, 4
    %v6709 = vadd.f32 %v6700, %v6708
    %v6710 = vrot.slane %v6709, 2
    %v6711 = vadd.f32 %v6709, %v6710
    %v6712 = vrot.slane %v6711, 1
    %v6713 = vadd.f32 %v6711, %v6712
    %v6714 = vrot.slane %v6701, 4
    %v6715 = vadd.f32 %v6701, %v6714
    %v6716 = vrot.slane %v6715, 2
    %v6717 = vadd.f32 %v6715, %v6716
    %v6718 = vrot.slane %v6717, 1
    %v6719 = vadd.f32 %v6717, %v6718
    %v6720 = vrot.slane %v6702, 4
    %v6721 = vadd.f32 %v6702, %v6720
    %v6722 = vrot.slane %v6721, 2
    %v6723 = vadd.f32 %v6721, %v6722
    %v6724 = vrot.slane %v6723, 1
    %v6725 = vadd.f32 %v6723, %v6724
    %v6726 = vrot.slane %v6703, 4
    %v6727 = vadd.f32 %v6703, %v6726
    %v6728 = vrot.slane %v6727, 2
    %v6729 = vadd.f32 %v6727, %v6728
    %v6730 = vrot.slane %v6729, 1
    %v6731 = vadd.f32 %v6729, %v6730
    %v6732 = vrot.slane %v6704, 4
    %v6733 = vadd.f32 %v6704, %v6732
    %v6734 = vrot.slane %v6733, 2
    %v6735 = vadd.f32 %v6733, %v6734
    %v6736 = vrot.slane %v6735, 1
    %v6737 = vadd.f32 %v6735, %v6736
    %v6738 = vrot.slane %v6705, 4
    %v6739 = vadd.f32 %v6705, %v6738
    %v6740 = vrot.slane %v6739, 2
    %v6741 = vadd.f32 %v6739, %v6740
    %v6742 = vrot.slane %v6741, 1
    %v6743 = vadd.f32 %v6741, %v6742
    %v6744 = vrot.slane %v6706, 4
    %v6745 = vadd.f32 %v6706, %v6744
    %v6746 = vrot.slane %v6745, 2
    %v6747 = vadd.f32 %v6745, %v6746
    %v6748 = vrot.slane %v6747, 1
    %v6749 = vadd.f32 %v6747, %v6748
    %v6750 = vrot.slane %v6707, 4
    %v6751 = vadd.f32 %v6707, %v6750
    %v6752 = vrot.slane %v6751, 2
    %v6753 = vadd.f32 %v6751, %v6752
    %v6754 = vrot.slane %v6753, 1
    %v6755 = vadd.f32 %v6753, %v6754
    %v6756 = vmul.f32 %v6713, %v446
    %v6757 = vmul.f32 %v6719, %v446
    %v6758 = vmul.f32 %v6725, %v446
    %v6759 = vmul.f32 %v6731, %v446
    %v6760 = vmul.f32 %v6737, %v446
    %v6761 = vmul.f32 %v6743, %v446
    %v6762 = vmul.f32 %v6749, %v446
    %v6763 = vmul.f32 %v6755, %v446
    %v6764 = vld [vmem:[#allocation17] ss:$2 sm:$0xff]
    %v6766 = vlaneseq
    %v6767 = vshrl.u32 %v6766, 7
    %v6768 = vsub.s32 0, %v6767
    %v6769 = vrot.slane %v6764, %v6768
    %v6770 = vlaneseq
    %v6771 = vshrl.u32 %v6770, 7
    %v6772 = vsub.s32 1, %v6771
    %v6773 = vrot.slane %v6764, %v6772
    %v6774 = vlaneseq
    %v6775 = vshrl.u32 %v6774, 7
    %v6776 = vsub.s32 2, %v6775
    %v6777 = vrot.slane %v6764, %v6776
    %v6778 = vlaneseq
    %v6779 = vshrl.u32 %v6778, 7
    %v6780 = vsub.s32 3, %v6779
    %v6781 = vrot.slane %v6764, %v6780
    %v6782 = vlaneseq
    %v6783 = vshrl.u32 %v6782, 7
    %v6784 = vsub.s32 4, %v6783
    %v6785 = vrot.slane %v6764, %v6784
    %v6786 = vlaneseq
    %v6787 = vshrl.u32 %v6786, 7
    %v6788 = vsub.s32 5, %v6787
    %v6789 = vrot.slane %v6764, %v6788
    %v6790 = vlaneseq
    %v6791 = vshrl.u32 %v6790, 7
    %v6792 = vsub.s32 6, %v6791
    %v6793 = vrot.slane %v6764, %v6792
    %v6794 = vlaneseq
    %v6795 = vshrl.u32 %v6794, 7
    %v6796 = vsub.s32 7, %v6795
    %v6797 = vrot.slane %v6764, %v6796
    %v6806 = vmul.f32 %v6769, %v6692
    %v6807 = vmul.f32 %v6773, %v6693
    %v6808 = vmul.f32 %v6777, %v6694
    %v6809 = vmul.f32 %v6781, %v6695
    %v6810 = vmul.f32 %v6785, %v6696
    %v6811 = vmul.f32 %v6789, %v6697
    %v6812 = vmul.f32 %v6793, %v6698
    %v6813 = vmul.f32 %v6797, %v6699
    %v6814 = vadd.f32 %v6756, 1e-05
    %v6815 = vadd.f32 %v6757, 1e-05
    %v6816 = vadd.f32 %v6758, 1e-05
    %v6817 = vadd.f32 %v6759, 1e-05
    %v6818 = vadd.f32 %v6760, 1e-05
    %v6819 = vadd.f32 %v6761, 1e-05
    %v6820 = vadd.f32 %v6762, 1e-05
    %v6821 = vadd.f32 %v6763, 1e-05
    %v6822 = vrsqrt.pop %v6814
    %v6823 = vrsqrt.pop %v6815
    %v6824 = vrsqrt.pop %v6816
    %v6825 = vrsqrt.pop %v6817
    %v6826 = vrsqrt.pop %v6818
    %v6827 = vrsqrt.pop %v6819
    %v6828 = vrsqrt.pop %v6820
    %v6829 = vrsqrt.pop %v6821
    %v6830 = vmul.f32 %v6806, %v6822
    %v6831 = vmul.f32 %v6807, %v6823
    %v6832 = vmul.f32 %v6808, %v6824
    %v6833 = vmul.f32 %v6809, %v6825
    %v6834 = vmul.f32 %v6810, %v6826
    %v6835 = vmul.f32 %v6811, %v6827
    %v6836 = vmul.f32 %v6812, %v6828
    %v6837 = vmul.f32 %v6813, %v6829
    %s6838 = scalar_lea.vmem [#allocation17], 1
    %v6839 = vld [vmem:[%s6838] ss:$2 sm:$0xff]
    %v6841 = vlaneseq
    %v6842 = vshrl.u32 %v6841, 7
    %v6843 = vsub.s32 0, %v6842
    %v6844 = vrot.slane %v6839, %v6843
    %v6845 = vlaneseq
    %v6846 = vshrl.u32 %v6845, 7
    %v6847 = vsub.s32 1, %v6846
    %v6848 = vrot.slane %v6839, %v6847
    %v6849 = vlaneseq
    %v6850 = vshrl.u32 %v6849, 7
    %v6851 = vsub.s32 2, %v6850
    %v6852 = vrot.slane %v6839, %v6851
    %v6853 = vlaneseq
    %v6854 = vshrl.u32 %v6853, 7
    %v6855 = vsub.s32 3, %v6854
    %v6856 = vrot.slane %v6839, %v6855
    %v6857 = vlaneseq
    %v6858 = vshrl.u32 %v6857, 7
    %v6859 = vsub.s32 4, %v6858
    %v6860 = vrot.slane %v6839, %v6859
    %v6861 = vlaneseq
    %v6862 = vshrl.u32 %v6861, 7
    %v6863 = vsub.s32 5, %v6862
    %v6864 = vrot.slane %v6839, %v6863
    %v6865 = vlaneseq
    %v6866 = vshrl.u32 %v6865, 7
    %v6867 = vsub.s32 6, %v6866
    %v6868 = vrot.slane %v6839, %v6867
    %v6869 = vlaneseq
    %v6870 = vshrl.u32 %v6869, 7
    %v6871 = vsub.s32 7, %v6870
    %v6872 = vrot.slane %v6839, %v6871
    %v6881 = vadd.f32 %v6830, %v6844
    %v6882 = vadd.f32 %v6831, %v6848
    %v6883 = vadd.f32 %v6832, %v6852
    %v6884 = vadd.f32 %v6833, %v6856
    %v6885 = vadd.f32 %v6834, %v6860
    %v6886 = vadd.f32 %v6835, %v6864
    %v6887 = vadd.f32 %v6836, %v6868
    %v6888 = vadd.f32 %v6837, %v6872
    %v6889 = vmax.f32 %v6881, 0.0
    %v6890 = vmax.f32 %v6882, 0.0
    %v6891 = vmax.f32 %v6883, 0.0
    %v6892 = vmax.f32 %v6884, 0.0
    %v6893 = vmax.f32 %v6885, 0.0
    %v6894 = vmax.f32 %v6886, 0.0
    %v6895 = vmax.f32 %v6887, 0.0
    %v6896 = vmax.f32 %v6888, 0.0
    %s6897 = smul.u32 %s1409, 4
    %s6898 = sshll.u32 %s6897, 4
    %6899 = dma.done %s255, %s6898
    %v6900 = vpack.c.bf16 %v6889, %v6889
    %v6901 = vpack.c.bf16 %v6890, %v6890
    %v6902 = vpack.c.bf16 %v6891, %v6891
    %v6903 = vpack.c.bf16 %v6892, %v6892
    %v6904 = vpack.c.bf16 %v6893, %v6893
    %v6905 = vpack.c.bf16 %v6894, %v6894
    %v6906 = vpack.c.bf16 %v6895, %v6895
    %v6907 = vpack.c.bf16 %v6896, %v6896
    %v6908 = vld [vmem:[#allocation6] sm:$0xff]
    %v6909 = vld [vmem:[#allocation6 + $0x8] sm:$0xff]
    %v6910 = vld [vmem:[#allocation6 + $0x10] sm:$0xff]
    %v6911 = vld [vmem:[#allocation6 + $0x18] sm:$0xff]
    %v6912 = vld [vmem:[#allocation6 + $0x20] sm:$0xff]
    %v6913 = vld [vmem:[#allocation6 + $0x28] sm:$0xff]
    %v6914 = vld [vmem:[#allocation6 + $0x30] sm:$0xff]
    %v6915 = vld [vmem:[#allocation6 + $0x38] sm:$0xff]
    %v6916 = vld [vmem:[#allocation6 + $0x40] sm:$0xff]
    %v6917 = vld [vmem:[#allocation6 + $0x48] sm:$0xff]
    %v6918 = vld [vmem:[#allocation6 + $0x50] sm:$0xff]
    %v6919 = vld [vmem:[#allocation6 + $0x58] sm:$0xff]
    %v6920 = vld [vmem:[#allocation6 + $0x60] sm:$0xff]
    %v6921 = vld [vmem:[#allocation6 + $0x68] sm:$0xff]
    %v6922 = vld [vmem:[#allocation6 + $0x70] sm:$0xff]
    %v6923 = vld [vmem:[#allocation6 + $0x78] sm:$0xff]
    %v6924 = vld [vmem:[#allocation6 + $0x80] sm:$0xff]
    %v6925 = vld [vmem:[#allocation6 + $0x88] sm:$0xff]
    %v6926 = vld [vmem:[#allocation6 + $0x90] sm:$0xff]
    %v6927 = vld [vmem:[#allocation6 + $0x98] sm:$0xff]
    %v6928 = vld [vmem:[#allocation6 + $0xa0] sm:$0xff]
    %v6929 = vld [vmem:[#allocation6 + $0xa8] sm:$0xff]
    %v6930 = vld [vmem:[#allocation6 + $0xb0] sm:$0xff]
    %v6931 = vld [vmem:[#allocation6 + $0xb8] sm:$0xff]
    %v6932 = vld [vmem:[#allocation6 + $0xc0] sm:$0xff]
    %v6933 = vld [vmem:[#allocation6 + $0xc8] sm:$0xff]
    %v6934 = vld [vmem:[#allocation6 + $0xd0] sm:$0xff]
    %v6935 = vld [vmem:[#allocation6 + $0xd8] sm:$0xff]
    %v6936 = vld [vmem:[#allocation6 + $0xe0] sm:$0xff]
    %v6937 = vld [vmem:[#allocation6 + $0xe8] sm:$0xff]
    %v6938 = vld [vmem:[#allocation6 + $0xf0] sm:$0xff]
    %v6939 = vld [vmem:[#allocation6 + $0xf8] sm:$0xff]
    %v6940 = vld [vmem:[#allocation6 + $0x100] sm:$0xff]
    %v6941 = vld [vmem:[#allocation6 + $0x108] sm:$0xff]
    %v6942 = vld [vmem:[#allocation6 + $0x110] sm:$0xff]
    %v6943 = vld [vmem:[#allocation6 + $0x118] sm:$0xff]
    %v6944 = vld [vmem:[#allocation6 + $0x120] sm:$0xff]
    %v6945 = vld [vmem:[#allocation6 + $0x128] sm:$0xff]
    %v6946 = vld [vmem:[#allocation6 + $0x130] sm:$0xff]
    %v6947 = vld [vmem:[#allocation6 + $0x138] sm:$0xff]
    %v6948 = vld [vmem:[#allocation6 + $0x140] sm:$0xff]
    %v6949 = vld [vmem:[#allocation6 + $0x148] sm:$0xff]
    %v6950 = vld [vmem:[#allocation6 + $0x150] sm:$0xff]
    %v6951 = vld [vmem:[#allocation6 + $0x158] sm:$0xff]
    %v6952 = vld [vmem:[#allocation6 + $0x160] sm:$0xff]
    %v6953 = vld [vmem:[#allocation6 + $0x168] sm:$0xff]
    %v6954 = vld [vmem:[#allocation6 + $0x170] sm:$0xff]
    %v6955 = vld [vmem:[#allocation6 + $0x178] sm:$0xff]
    %v6956 = vld [vmem:[#allocation6 + $0x180] sm:$0xff]
    %v6957 = vld [vmem:[#allocation6 + $0x188] sm:$0xff]
    %v6958 = vld [vmem:[#allocation6 + $0x190] sm:$0xff]
    %v6959 = vld [vmem:[#allocation6 + $0x198] sm:$0xff]
    %v6960 = vld [vmem:[#allocation6 + $0x1a0] sm:$0xff]
    %v6961 = vld [vmem:[#allocation6 + $0x1a8] sm:$0xff]
    %v6962 = vld [vmem:[#allocation6 + $0x1b0] sm:$0xff]
    %v6963 = vld [vmem:[#allocation6 + $0x1b8] sm:$0xff]
    %v6964 = vld [vmem:[#allocation6 + $0x1c0] sm:$0xff]
    %v6965 = vld [vmem:[#allocation6 + $0x1c8] sm:$0xff]
    %v6966 = vld [vmem:[#allocation6 + $0x1d0] sm:$0xff]
    %v6967 = vld [vmem:[#allocation6 + $0x1d8] sm:$0xff]
    %v6968 = vld [vmem:[#allocation6 + $0x1e0] sm:$0xff]
    %v6969 = vld [vmem:[#allocation6 + $0x1e8] sm:$0xff]
    %v6970 = vld [vmem:[#allocation6 + $0x1f0] sm:$0xff]
    %v6971 = vld [vmem:[#allocation6 + $0x1f8] sm:$0xff]
    %v6972 = vld [vmem:[#allocation6 + $0x200] sm:$0xff]
    %v6973 = vld [vmem:[#allocation6 + $0x208] sm:$0xff]
    %v6974 = vld [vmem:[#allocation6 + $0x210] sm:$0xff]
    %v6975 = vld [vmem:[#allocation6 + $0x218] sm:$0xff]
    %v6976 = vld [vmem:[#allocation6 + $0x220] sm:$0xff]
    %v6977 = vld [vmem:[#allocation6 + $0x228] sm:$0xff]
    %v6978 = vld [vmem:[#allocation6 + $0x230] sm:$0xff]
    %v6979 = vld [vmem:[#allocation6 + $0x238] sm:$0xff]
    %v6980 = vld [vmem:[#allocation6 + $0x240] sm:$0xff]
    %v6981 = vld [vmem:[#allocation6 + $0x248] sm:$0xff]
    %v6982 = vld [vmem:[#allocation6 + $0x250] sm:$0xff]
    %v6983 = vld [vmem:[#allocation6 + $0x258] sm:$0xff]
    %v6984 = vld [vmem:[#allocation6 + $0x260] sm:$0xff]
    %v6985 = vld [vmem:[#allocation6 + $0x268] sm:$0xff]
    %v6986 = vld [vmem:[#allocation6 + $0x270] sm:$0xff]
    %v6987 = vld [vmem:[#allocation6 + $0x278] sm:$0xff]
    %v6988 = vld [vmem:[#allocation6 + $0x280] sm:$0xff]
    %v6989 = vld [vmem:[#allocation6 + $0x288] sm:$0xff]
    %v6990 = vld [vmem:[#allocation6 + $0x290] sm:$0xff]
    %v6991 = vld [vmem:[#allocation6 + $0x298] sm:$0xff]
    %v6992 = vld [vmem:[#allocation6 + $0x2a0] sm:$0xff]
    %v6993 = vld [vmem:[#allocation6 + $0x2a8] sm:$0xff]
    %v6994 = vld [vmem:[#allocation6 + $0x2b0] sm:$0xff]
    %v6995 = vld [vmem:[#allocation6 + $0x2b8] sm:$0xff]
    %v6996 = vld [vmem:[#allocation6 + $0x2c0] sm:$0xff]
    %v6997 = vld [vmem:[#allocation6 + $0x2c8] sm:$0xff]
    %v6998 = vld [vmem:[#allocation6 + $0x2d0] sm:$0xff]
    %v6999 = vld [vmem:[#allocation6 + $0x2d8] sm:$0xff]
    %v7000 = vld [vmem:[#allocation6 + $0x2e0] sm:$0xff]
    %v7001 = vld [vmem:[#allocation6 + $0x2e8] sm:$0xff]
    %v7002 = vld [vmem:[#allocation6 + $0x2f0] sm:$0xff]
    %v7003 = vld [vmem:[#allocation6 + $0x2f8] sm:$0xff]
    %v7004 = vld [vmem:[#allocation6 + $0x300] sm:$0xff]
    %v7005 = vld [vmem:[#allocation6 + $0x308] sm:$0xff]
    %v7006 = vld [vmem:[#allocation6 + $0x310] sm:$0xff]
    %v7007 = vld [vmem:[#allocation6 + $0x318] sm:$0xff]
    %v7008 = vld [vmem:[#allocation6 + $0x320] sm:$0xff]
    %v7009 = vld [vmem:[#allocation6 + $0x328] sm:$0xff]
    %v7010 = vld [vmem:[#allocation6 + $0x330] sm:$0xff]
    %v7011 = vld [vmem:[#allocation6 + $0x338] sm:$0xff]
    %v7012 = vld [vmem:[#allocation6 + $0x340] sm:$0xff]
    %v7013 = vld [vmem:[#allocation6 + $0x348] sm:$0xff]
    %v7014 = vld [vmem:[#allocation6 + $0x350] sm:$0xff]
    %v7015 = vld [vmem:[#allocation6 + $0x358] sm:$0xff]
    %v7016 = vld [vmem:[#allocation6 + $0x360] sm:$0xff]
    %v7017 = vld [vmem:[#allocation6 + $0x368] sm:$0xff]
    %v7018 = vld [vmem:[#allocation6 + $0x370] sm:$0xff]
    %v7019 = vld [vmem:[#allocation6 + $0x378] sm:$0xff]
    %v7020 = vld [vmem:[#allocation6 + $0x380] sm:$0xff]
    %v7021 = vld [vmem:[#allocation6 + $0x388] sm:$0xff]
    %v7022 = vld [vmem:[#allocation6 + $0x390] sm:$0xff]
    %v7023 = vld [vmem:[#allocation6 + $0x398] sm:$0xff]
    %v7024 = vld [vmem:[#allocation6 + $0x3a0] sm:$0xff]
    %v7025 = vld [vmem:[#allocation6 + $0x3a8] sm:$0xff]
    %v7026 = vld [vmem:[#allocation6 + $0x3b0] sm:$0xff]
    %v7027 = vld [vmem:[#allocation6 + $0x3b8] sm:$0xff]
    %v7028 = vld [vmem:[#allocation6 + $0x3c0] sm:$0xff]
    %v7029 = vld [vmem:[#allocation6 + $0x3c8] sm:$0xff]
    %v7030 = vld [vmem:[#allocation6 + $0x3d0] sm:$0xff]
    %v7031 = vld [vmem:[#allocation6 + $0x3d8] sm:$0xff]
    %v7032 = vld [vmem:[#allocation6 + $0x3e0] sm:$0xff]
    %v7033 = vld [vmem:[#allocation6 + $0x3e8] sm:$0xff]
    %v7034 = vld [vmem:[#allocation6 + $0x3f0] sm:$0xff]
    %v7035 = vld [vmem:[#allocation6 + $0x3f8] sm:$0xff]
    %v7036 = vld [vmem:[#allocation6 + $0x400] sm:$0xff]
    %v7037 = vld [vmem:[#allocation6 + $0x408] sm:$0xff]
    %v7038 = vld [vmem:[#allocation6 + $0x410] sm:$0xff]
    %v7039 = vld [vmem:[#allocation6 + $0x418] sm:$0xff]
    %v7040 = vld [vmem:[#allocation6 + $0x420] sm:$0xff]
    %v7041 = vld [vmem:[#allocation6 + $0x428] sm:$0xff]
    %v7042 = vld [vmem:[#allocation6 + $0x430] sm:$0xff]
    %v7043 = vld [vmem:[#allocation6 + $0x438] sm:$0xff]
    %v7044 = vld [vmem:[#allocation6 + $0x440] sm:$0xff]
    %v7045 = vld [vmem:[#allocation6 + $0x448] sm:$0xff]
    %v7046 = vld [vmem:[#allocation6 + $0x450] sm:$0xff]
    %v7047 = vld [vmem:[#allocation6 + $0x458] sm:$0xff]
    %v7048 = vld [vmem:[#allocation6 + $0x460] sm:$0xff]
    %v7049 = vld [vmem:[#allocation6 + $0x468] sm:$0xff]
    %v7050 = vld [vmem:[#allocation6 + $0x470] sm:$0xff]
    %v7051 = vld [vmem:[#allocation6 + $0x478] sm:$0xff]
    %v7052 = vld [vmem:[#allocation6 + $0x480] sm:$0xff]
    %v7053 = vld [vmem:[#allocation6 + $0x488] sm:$0xff]
    %v7054 = vld [vmem:[#allocation6 + $0x490] sm:$0xff]
    %v7055 = vld [vmem:[#allocation6 + $0x498] sm:$0xff]
    %v7056 = vld [vmem:[#allocation6 + $0x4a0] sm:$0xff]
    %v7057 = vld [vmem:[#allocation6 + $0x4a8] sm:$0xff]
    %v7058 = vld [vmem:[#allocation6 + $0x4b0] sm:$0xff]
    %v7059 = vld [vmem:[#allocation6 + $0x4b8] sm:$0xff]
    %v7060 = vld [vmem:[#allocation6 + $0x4c0] sm:$0xff]
    %v7061 = vld [vmem:[#allocation6 + $0x4c8] sm:$0xff]
    %v7062 = vld [vmem:[#allocation6 + $0x4d0] sm:$0xff]
    %v7063 = vld [vmem:[#allocation6 + $0x4d8] sm:$0xff]
    %v7064 = vld [vmem:[#allocation6 + $0x4e0] sm:$0xff]
    %v7065 = vld [vmem:[#allocation6 + $0x4e8] sm:$0xff]
    %v7066 = vld [vmem:[#allocation6 + $0x4f0] sm:$0xff]
    %v7067 = vld [vmem:[#allocation6 + $0x4f8] sm:$0xff]
    %v7068 = vld [vmem:[#allocation6 + $0x500] sm:$0xff]
    %v7069 = vld [vmem:[#allocation6 + $0x508] sm:$0xff]
    %v7070 = vld [vmem:[#allocation6 + $0x510] sm:$0xff]
    %v7071 = vld [vmem:[#allocation6 + $0x518] sm:$0xff]
    %v7072 = vld [vmem:[#allocation6 + $0x520] sm:$0xff]
    %v7073 = vld [vmem:[#allocation6 + $0x528] sm:$0xff]
    %v7074 = vld [vmem:[#allocation6 + $0x530] sm:$0xff]
    %v7075 = vld [vmem:[#allocation6 + $0x538] sm:$0xff]
    %v7076 = vld [vmem:[#allocation6 + $0x540] sm:$0xff]
    %v7077 = vld [vmem:[#allocation6 + $0x548] sm:$0xff]
    %v7078 = vld [vmem:[#allocation6 + $0x550] sm:$0xff]
    %v7079 = vld [vmem:[#allocation6 + $0x558] sm:$0xff]
    %v7080 = vld [vmem:[#allocation6 + $0x560] sm:$0xff]
    %v7081 = vld [vmem:[#allocation6 + $0x568] sm:$0xff]
    %v7082 = vld [vmem:[#allocation6 + $0x570] sm:$0xff]
    %v7083 = vld [vmem:[#allocation6 + $0x578] sm:$0xff]
    %v7084 = vld [vmem:[#allocation6 + $0x580] sm:$0xff]
    %v7085 = vld [vmem:[#allocation6 + $0x588] sm:$0xff]
    %v7086 = vld [vmem:[#allocation6 + $0x590] sm:$0xff]
    %v7087 = vld [vmem:[#allocation6 + $0x598] sm:$0xff]
    %v7088 = vld [vmem:[#allocation6 + $0x5a0] sm:$0xff]
    %v7089 = vld [vmem:[#allocation6 + $0x5a8] sm:$0xff]
    %v7090 = vld [vmem:[#allocation6 + $0x5b0] sm:$0xff]
    %v7091 = vld [vmem:[#allocation6 + $0x5b8] sm:$0xff]
    %v7092 = vld [vmem:[#allocation6 + $0x5c0] sm:$0xff]
    %v7093 = vld [vmem:[#allocation6 + $0x5c8] sm:$0xff]
    %v7094 = vld [vmem:[#allocation6 + $0x5d0] sm:$0xff]
    %v7095 = vld [vmem:[#allocation6 + $0x5d8] sm:$0xff]
    %v7096 = vld [vmem:[#allocation6 + $0x5e0] sm:$0xff]
    %v7097 = vld [vmem:[#allocation6 + $0x5e8] sm:$0xff]
    %v7098 = vld [vmem:[#allocation6 + $0x5f0] sm:$0xff]
    %v7099 = vld [vmem:[#allocation6 + $0x5f8] sm:$0xff]
    %v7100 = vld [vmem:[#allocation6 + $0x600] sm:$0xff]
    %v7101 = vld [vmem:[#allocation6 + $0x608] sm:$0xff]
    %v7102 = vld [vmem:[#allocation6 + $0x610] sm:$0xff]
    %v7103 = vld [vmem:[#allocation6 + $0x618] sm:$0xff]
    %v7104 = vld [vmem:[#allocation6 + $0x620] sm:$0xff]
    %v7105 = vld [vmem:[#allocation6 + $0x628] sm:$0xff]
    %v7106 = vld [vmem:[#allocation6 + $0x630] sm:$0xff]
    %v7107 = vld [vmem:[#allocation6 + $0x638] sm:$0xff]
    %v7108 = vld [vmem:[#allocation6 + $0x640] sm:$0xff]
    %v7109 = vld [vmem:[#allocation6 + $0x648] sm:$0xff]
    %v7110 = vld [vmem:[#allocation6 + $0x650] sm:$0xff]
    %v7111 = vld [vmem:[#allocation6 + $0x658] sm:$0xff]
    %v7112 = vld [vmem:[#allocation6 + $0x660] sm:$0xff]
    %v7113 = vld [vmem:[#allocation6 + $0x668] sm:$0xff]
    %v7114 = vld [vmem:[#allocation6 + $0x670] sm:$0xff]
    %v7115 = vld [vmem:[#allocation6 + $0x678] sm:$0xff]
    %v7116 = vld [vmem:[#allocation6 + $0x680] sm:$0xff]
    %v7117 = vld [vmem:[#allocation6 + $0x688] sm:$0xff]
    %v7118 = vld [vmem:[#allocation6 + $0x690] sm:$0xff]
    %v7119 = vld [vmem:[#allocation6 + $0x698] sm:$0xff]
    %v7120 = vld [vmem:[#allocation6 + $0x6a0] sm:$0xff]
    %v7121 = vld [vmem:[#allocation6 + $0x6a8] sm:$0xff]
    %v7122 = vld [vmem:[#allocation6 + $0x6b0] sm:$0xff]
    %v7123 = vld [vmem:[#allocation6 + $0x6b8] sm:$0xff]
    %v7124 = vld [vmem:[#allocation6 + $0x6c0] sm:$0xff]
    %v7125 = vld [vmem:[#allocation6 + $0x6c8] sm:$0xff]
    %v7126 = vld [vmem:[#allocation6 + $0x6d0] sm:$0xff]
    %v7127 = vld [vmem:[#allocation6 + $0x6d8] sm:$0xff]
    %v7128 = vld [vmem:[#allocation6 + $0x6e0] sm:$0xff]
    %v7129 = vld [vmem:[#allocation6 + $0x6e8] sm:$0xff]
    %v7130 = vld [vmem:[#allocation6 + $0x6f0] sm:$0xff]
    %v7131 = vld [vmem:[#allocation6 + $0x6f8] sm:$0xff]
    %v7132 = vld [vmem:[#allocation6 + $0x700] sm:$0xff]
    %v7133 = vld [vmem:[#allocation6 + $0x708] sm:$0xff]
    %v7134 = vld [vmem:[#allocation6 + $0x710] sm:$0xff]
    %v7135 = vld [vmem:[#allocation6 + $0x718] sm:$0xff]
    %v7136 = vld [vmem:[#allocation6 + $0x720] sm:$0xff]
    %v7137 = vld [vmem:[#allocation6 + $0x728] sm:$0xff]
    %v7138 = vld [vmem:[#allocation6 + $0x730] sm:$0xff]
    %v7139 = vld [vmem:[#allocation6 + $0x738] sm:$0xff]
    %v7140 = vld [vmem:[#allocation6 + $0x740] sm:$0xff]
    %v7141 = vld [vmem:[#allocation6 + $0x748] sm:$0xff]
    %v7142 = vld [vmem:[#allocation6 + $0x750] sm:$0xff]
    %v7143 = vld [vmem:[#allocation6 + $0x758] sm:$0xff]
    %v7144 = vld [vmem:[#allocation6 + $0x760] sm:$0xff]
    %v7145 = vld [vmem:[#allocation6 + $0x768] sm:$0xff]
    %v7146 = vld [vmem:[#allocation6 + $0x770] sm:$0xff]
    %v7147 = vld [vmem:[#allocation6 + $0x778] sm:$0xff]
    %v7148 = vld [vmem:[#allocation6 + $0x780] sm:$0xff]
    %v7149 = vld [vmem:[#allocation6 + $0x788] sm:$0xff]
    %v7150 = vld [vmem:[#allocation6 + $0x790] sm:$0xff]
    %v7151 = vld [vmem:[#allocation6 + $0x798] sm:$0xff]
    %v7152 = vld [vmem:[#allocation6 + $0x7a0] sm:$0xff]
    %v7153 = vld [vmem:[#allocation6 + $0x7a8] sm:$0xff]
    %v7154 = vld [vmem:[#allocation6 + $0x7b0] sm:$0xff]
    %v7155 = vld [vmem:[#allocation6 + $0x7b8] sm:$0xff]
    %v7156 = vld [vmem:[#allocation6 + $0x7c0] sm:$0xff]
    %v7157 = vld [vmem:[#allocation6 + $0x7c8] sm:$0xff]
    %v7158 = vld [vmem:[#allocation6 + $0x7d0] sm:$0xff]
    %v7159 = vld [vmem:[#allocation6 + $0x7d8] sm:$0xff]
    %v7160 = vld [vmem:[#allocation6 + $0x7e0] sm:$0xff]
    %v7161 = vld [vmem:[#allocation6 + $0x7e8] sm:$0xff]
    %v7162 = vld [vmem:[#allocation6 + $0x7f0] sm:$0xff]
    %v7163 = vld [vmem:[#allocation6 + $0x7f8] sm:$0xff]
    %7164 = vmatprep.subr.bf16.mxu0 %v6909
    %7165 = vmatpush1.bf16.msra.mxu0 %v6908
    %7166 = vmatprep.subr.bf16.mxu0 %v6913
    %7167 = vmatpush1.bf16.msra.mxu0 %v6912
    %7168 = vmatprep.subr.bf16.mxu0 %v6917
    %7169 = vmatpush1.bf16.msra.mxu0 %v6916
    %7170 = vmatprep.subr.bf16.mxu0 %v6921
    %7171 = vmatpush1.bf16.msra.mxu0 %v6920
    %7172 = vmatprep.subr.bf16.mxu0 %v6925
    %7173 = vmatpush1.bf16.msra.mxu0 %v6924
    %7174 = vmatprep.subr.bf16.mxu0 %v6929
    %7175 = vmatpush1.bf16.msra.mxu0 %v6928
    %7176 = vmatprep.subr.bf16.mxu0 %v6933
    %7177 = vmatpush1.bf16.msra.mxu0 %v6932
    %7178 = vmatprep.subr.bf16.mxu0 %v6937
    %7179 = vmatpush1.bf16.msra.mxu0 %v6936
    %7180 = vmatprep.subr.bf16.mxu0 %v6941
    %7181 = vmatpush1.bf16.msra.mxu0 %v6940
    %7182 = vmatprep.subr.bf16.mxu0 %v6945
    %7183 = vmatpush1.bf16.msra.mxu0 %v6944
    %7184 = vmatprep.subr.bf16.mxu0 %v6949
    %7185 = vmatpush1.bf16.msra.mxu0 %v6948
    %7186 = vmatprep.subr.bf16.mxu0 %v6953
    %7187 = vmatpush1.bf16.msra.mxu0 %v6952
    %7188 = vmatprep.subr.bf16.mxu0 %v6957
    %7189 = vmatpush1.bf16.msra.mxu0 %v6956
    %7190 = vmatprep.subr.bf16.mxu0 %v6961
    %7191 = vmatpush1.bf16.msra.mxu0 %v6960
    %7192 = vmatprep.subr.bf16.mxu0 %v6965
    %7193 = vmatpush1.bf16.msra.mxu0 %v6964
    %7194 = vmatprep.subr.bf16.mxu0 %v6969
    %7195 = vmatpush1.bf16.msra.mxu0 %v6968
    %7196 = vmatprep.mubr.bf16.mxu0 %v6901
    %7197 = vmatmul.mubr.bf16.gmra.mrb[0].mxu0 %v6900
    %v7198 = vpop.f32.mrb[0].mxu0
    %v7199 = vadd.f32 0.0, %v7198
    %v7200 = vpop.f32.mrb[0].mxu0
    %v7201 = vadd.f32 0.0, %v7200
    %v7202 = vpop.f32.mrb[0].mxu0
    %v7203 = vpop.f32.mrb[0].mxu0
    %7204 = vdwg.mxu0
    %7205 = vmatprep.subr.bf16.mxu0 %v6973
    %7206 = vmatpush1.bf16.msra.mxu0 %v6972
    %7207 = vmatprep.subr.bf16.mxu0 %v6977
    %7208 = vmatpush1.bf16.msra.mxu0 %v6976
    %7209 = vmatprep.subr.bf16.mxu0 %v6981
    %7210 = vmatpush1.bf16.msra.mxu0 %v6980
    %7211 = vmatprep.subr.bf16.mxu0 %v6985
    %7212 = vmatpush1.bf16.msra.mxu0 %v6984
    %7213 = vmatprep.subr.bf16.mxu0 %v6989
    %7214 = vmatpush1.bf16.msra.mxu0 %v6988
    %7215 = vmatprep.subr.bf16.mxu0 %v6993
    %7216 = vmatpush1.bf16.msra.mxu0 %v6992
    %7217 = vmatprep.subr.bf16.mxu0 %v6997
    %7218 = vmatpush1.bf16.msra.mxu0 %v6996
    %7219 = vmatprep.subr.bf16.mxu0 %v7001
    %7220 = vmatpush1.bf16.msra.mxu0 %v7000
    %7221 = vmatprep.subr.bf16.mxu0 %v7005
    %7222 = vmatpush1.bf16.msra.mxu0 %v7004
    %7223 = vmatprep.subr.bf16.mxu0 %v7009
    %7224 = vmatpush1.bf16.msra.mxu0 %v7008
    %7225 = vmatprep.subr.bf16.mxu0 %v7013
    %7226 = vmatpush1.bf16.msra.mxu0 %v7012
    %7227 = vmatprep.subr.bf16.mxu0 %v7017
    %7228 = vmatpush1.bf16.msra.mxu0 %v7016
    %7229 = vmatprep.subr.bf16.mxu0 %v7021
    %7230 = vmatpush1.bf16.msra.mxu0 %v7020
    %7231 = vmatprep.subr.bf16.mxu0 %v7025
    %7232 = vmatpush1.bf16.msra.mxu0 %v7024
    %7233 = vmatprep.subr.bf16.mxu0 %v7029
    %7234 = vmatpush1.bf16.msra.mxu0 %v7028
    %7235 = vmatprep.subr.bf16.mxu0 %v7033
    %7236 = vmatpush1.bf16.msra.mxu0 %v7032
    %7237 = vmatprep.mubr.bf16.mxu0 %v6903
    %7238 = vmatmul.mubr.bf16.gmra.mrb[0].mxu0 %v6902
    %v7239 = vpop.f32.mrb[0].mxu0
    %v7240 = vadd.f32 %v7199, %v7239
    %v7241 = vpop.f32.mrb[0].mxu0
    %v7242 = vadd.f32 %v7201, %v7241
    %v7243 = vpop.f32.mrb[0].mxu0
    %v7244 = vpop.f32.mrb[0].mxu0
    %7245 = vdwg.mxu0
    %7246 = vmatprep.subr.bf16.mxu0 %v7037
    %7247 = vmatpush1.bf16.msra.mxu0 %v7036
    %7248 = vmatprep.subr.bf16.mxu0 %v7041
    %7249 = vmatpush1.bf16.msra.mxu0 %v7040
    %7250 = vmatprep.subr.bf16.mxu0 %v7045
    %7251 = vmatpush1.bf16.msra.mxu0 %v7044
    %7252 = vmatprep.subr.bf16.mxu0 %v7049
    %7253 = vmatpush1.bf16.msra.mxu0 %v7048
    %7254 = vmatprep.subr.bf16.mxu0 %v7053
    %7255 = vmatpush1.bf16.msra.mxu0 %v7052
    %7256 = vmatprep.subr.bf16.mxu0 %v7057
    %7257 = vmatpush1.bf16.msra.mxu0 %v7056
    %7258 = vmatprep.subr.bf16.mxu0 %v7061
    %7259 = vmatpush1.bf16.msra.mxu0 %v7060
    %7260 = vmatprep.subr.bf16.mxu0 %v7065
    %7261 = vmatpush1.bf16.msra.mxu0 %v7064
    %7262 = vmatprep.subr.bf16.mxu0 %v7069
    %7263 = vmatpush1.bf16.msra.mxu0 %v7068
    %7264 = vmatprep.subr.bf16.mxu0 %v7073
    %7265 = vmatpush1.bf16.msra.mxu0 %v7072
    %7266 = vmatprep.subr.bf16.mxu0 %v7077
    %7267 = vmatpush1.bf16.msra.mxu0 %v7076
    %7268 = vmatprep.subr.bf16.mxu0 %v7081
    %7269 = vmatpush1.bf16.msra.mxu0 %v7080
    %7270 = vmatprep.subr.bf16.mxu0 %v7085
    %7271 = vmatpush1.bf16.msra.mxu0 %v7084
    %7272 = vmatprep.subr.bf16.mxu0 %v7089
    %7273 = vmatpush1.bf16.msra.mxu0 %v7088
    %7274 = vmatprep.subr.bf16.mxu0 %v7093
    %7275 = vmatpush1.bf16.msra.mxu0 %v7092
    %7276 = vmatprep.subr.bf16.mxu0 %v7097
    %7277 = vmatpush1.bf16.msra.mxu0 %v7096
    %7278 = vmatprep.mubr.bf16.mxu0 %v6905
    %7279 = vmatmul.mubr.bf16.gmra.mrb[0].mxu0 %v6904
    %v7280 = vpop.f32.mrb[0].mxu0
    %v7281 = vadd.f32 %v7240, %v7280
    %v7282 = vpop.f32.mrb[0].mxu0
    %v7283 = vadd.f32 %v7242, %v7282
    %v7284 = vpop.f32.mrb[0].mxu0
    %v7285 = vpop.f32.mrb[0].mxu0
    %7286 = vdwg.mxu0
    %7287 = vmatprep.subr.bf16.mxu0 %v7101
    %7288 = vmatpush1.bf16.msra.mxu0 %v7100
    %7289 = vmatprep.subr.bf16.mxu0 %v7105
    %7290 = vmatpush1.bf16.msra.mxu0 %v7104
    %7291 = vmatprep.subr.bf16.mxu0 %v7109
    %7292 = vmatpush1.bf16.msra.mxu0 %v7108
    %7293 = vmatprep.subr.bf16.mxu0 %v7113
    %7294 = vmatpush1.bf16.msra.mxu0 %v7112
    %7295 = vmatprep.subr.bf16.mxu0 %v7117
    %7296 = vmatpush1.bf16.msra.mxu0 %v7116
    %7297 = vmatprep.subr.bf16.mxu0 %v7121
    %7298 = vmatpush1.bf16.msra.mxu0 %v7120
    %7299 = vmatprep.subr.bf16.mxu0 %v7125
    %7300 = vmatpush1.bf16.msra.mxu0 %v7124
    %7301 = vmatprep.subr.bf16.mxu0 %v7129
    %7302 = vmatpush1.bf16.msra.mxu0 %v7128
    %7303 = vmatprep.subr.bf16.mxu0 %v7133
    %7304 = vmatpush1.bf16.msra.mxu0 %v7132
    %7305 = vmatprep.subr.bf16.mxu0 %v7137
    %7306 = vmatpush1.bf16.msra.mxu0 %v7136
    %7307 = vmatprep.subr.bf16.mxu0 %v7141
    %7308 = vmatpush1.bf16.msra.mxu0 %v7140
    %7309 = vmatprep.subr.bf16.mxu0 %v7145
    %7310 = vmatpush1.bf16.msra.mxu0 %v7144
    %7311 = vmatprep.subr.bf16.mxu0 %v7149
    %7312 = vmatpush1.bf16.msra.mxu0 %v7148
    %7313 = vmatprep.subr.bf16.mxu0 %v7153
    %7314 = vmatpush1.bf16.msra.mxu0 %v7152
    %7315 = vmatprep.subr.bf16.mxu0 %v7157
    %7316 = vmatpush1.bf16.msra.mxu0 %v7156
    %7317 = vmatprep.subr.bf16.mxu0 %v7161
    %7318 = vmatpush1.bf16.msra.mxu0 %v7160
    %7319 = vmatprep.mubr.bf16.mxu0 %v6907
    %7320 = vmatmul.mubr.bf16.gmra.mrb[0].mxu0 %v6906
    %v7321 = vpop.f32.mrb[0].mxu0
    %v7322 = vadd.f32 %v7281, %v7321
    %v7323 = vpop.f32.mrb[0].mxu0
    %v7324 = vadd.f32 %v7283, %v7323
    %v7325 = vpop.f32.mrb[0].mxu0
    %v7326 = vpop.f32.mrb[0].mxu0
    %7327 = vdwg.mxu0
    %7328 = vmatprep.subr.bf16.mxu0 %v6911
    %7329 = vmatpush1.bf16.msra.mxu0 %v6910
    %7330 = vmatprep.subr.bf16.mxu0 %v6915
    %7331 = vmatpush1.bf16.msra.mxu0 %v6914
    %7332 = vmatprep.subr.bf16.mxu0 %v6919
    %7333 = vmatpush1.bf16.msra.mxu0 %v6918
    %7334 = vmatprep.subr.bf16.mxu0 %v6923
    %7335 = vmatpush1.bf16.msra.mxu0 %v6922
    %7336 = vmatprep.subr.bf16.mxu0 %v6927
    %7337 = vmatpush1.bf16.msra.mxu0 %v6926
    %7338 = vmatprep.subr.bf16.mxu0 %v6931
    %7339 = vmatpush1.bf16.msra.mxu0 %v6930
    %7340 = vmatprep.subr.bf16.mxu0 %v6935
    %7341 = vmatpush1.bf16.msra.mxu0 %v6934
    %7342 = vmatprep.subr.bf16.mxu0 %v6939
    %7343 = vmatpush1.bf16.msra.mxu0 %v6938
    %7344 = vmatprep.subr.bf16.mxu0 %v6943
    %7345 = vmatpush1.bf16.msra.mxu0 %v6942
    %7346 = vmatprep.subr.bf16.mxu0 %v6947
    %7347 = vmatpush1.bf16.msra.mxu0 %v6946
    %7348 = vmatprep.subr.bf16.mxu0 %v6951
    %7349 = vmatpush1.bf16.msra.mxu0 %v6950
    %7350 = vmatprep.subr.bf16.mxu0 %v6955
    %7351 = vmatpush1.bf16.msra.mxu0 %v6954
    %7352 = vmatprep.subr.bf16.mxu0 %v6959
    %7353 = vmatpush1.bf16.msra.mxu0 %v6958
    %7354 = vmatprep.subr.bf16.mxu0 %v6963
    %7355 = vmatpush1.bf16.msra.mxu0 %v6962
    %7356 = vmatprep.subr.bf16.mxu0 %v6967
    %7357 = vmatpush1.bf16.msra.mxu0 %v6966
    %7358 = vmatprep.subr.bf16.mxu0 %v6971
    %7359 = vmatpush1.bf16.msra.mxu0 %v6970
    %7360 = vmatprep.mubr.bf16.mxu0 %v6901
    %7361 = vmatmul.mubr.bf16.gmra.mrb[0].mxu0 %v6900
    %v7362 = vpop.f32.mrb[0].mxu0
    %v7363 = vadd.f32 0.0, %v7362
    %v7364 = vpop.f32.mrb[0].mxu0
    %v7365 = vadd.f32 0.0, %v7364
    %v7366 = vpop.f32.mrb[0].mxu0
    %v7367 = vpop.f32.mrb[0].mxu0
    %7368 = vdwg.mxu0
    %7369 = vmatprep.subr.bf16.mxu0 %v6975
    %7370 = vmatpush1.bf16.msra.mxu0 %v6974
    %7371 = vmatprep.subr.bf16.mxu0 %v6979
    %7372 = vmatpush1.bf16.msra.mxu0 %v6978
    %7373 = vmatprep.subr.bf16.mxu0 %v6983
    %7374 = vmatpush1.bf16.msra.mxu0 %v6982
    %7375 = vmatprep.subr.bf16.mxu0 %v6987
    %7376 = vmatpush1.bf16.msra.mxu0 %v6986
    %7377 = vmatprep.subr.bf16.mxu0 %v6991
    %7378 = vmatpush1.bf16.msra.mxu0 %v6990
    %7379 = vmatprep.subr.bf16.mxu0 %v6995
    %7380 = vmatpush1.bf16.msra.mxu0 %v6994
    %7381 = vmatprep.subr.bf16.mxu0 %v6999
    %7382 = vmatpush1.bf16.msra.mxu0 %v6998
    %7383 = vmatprep.subr.bf16.mxu0 %v7003
    %7384 = vmatpush1.bf16.msra.mxu0 %v7002
    %7385 = vmatprep.subr.bf16.mxu0 %v7007
    %7386 = vmatpush1.bf16.msra.mxu0 %v7006
    %7387 = vmatprep.subr.bf16.mxu0 %v7011
    %7388 = vmatpush1.bf16.msra.mxu0 %v7010
    %7389 = vmatprep.subr.bf16.mxu0 %v7015
    %7390 = vmatpush1.bf16.msra.mxu0 %v7014
    %7391 = vmatprep.subr.bf16.mxu0 %v7019
    %7392 = vmatpush1.bf16.msra.mxu0 %v7018
    %7393 = vmatprep.subr.bf16.mxu0 %v7023
    %7394 = vmatpush1.bf16.msra.mxu0 %v7022
    %7395 = vmatprep.subr.bf16.mxu0 %v7027
    %7396 = vmatpush1.bf16.msra.mxu0 %v7026
    %7397 = vmatprep.subr.bf16.mxu0 %v7031
    %7398 = vmatpush1.bf16.msra.mxu0 %v7030
    %7399 = vmatprep.subr.bf16.mxu0 %v7035
    %7400 = vmatpush1.bf16.msra.mxu0 %v7034
    %7401 = vmatprep.mubr.bf16.mxu0 %v6903
    %7402 = vmatmul.mubr.bf16.gmra.mrb[0].mxu0 %v6902
    %v7403 = vpop.f32.mrb[0].mxu0
    %v7404 = vadd.f32 %v7363, %v7403
    %v7405 = vpop.f32.mrb[0].mxu0
    %v7406 = vadd.f32 %v7365, %v7405
    %v7407 = vpop.f32.mrb[0].mxu0
    %v7408 = vpop.f32.mrb[0].mxu0
    %7409 = vdwg.mxu0
    %7410 = vmatprep.subr.bf16.mxu0 %v7039
    %7411 = vmatpush1.bf16.msra.mxu0 %v7038
    %7412 = vmatprep.subr.bf16.mxu0 %v7043
    %7413 = vmatpush1.bf16.msra.mxu0 %v7042
    %7414 = vmatprep.subr.bf16.mxu0 %v7047
    %7415 = vmatpush1.bf16.msra.mxu0 %v7046
    %7416 = vmatprep.subr.bf16.mxu0 %v7051
    %7417 = vmatpush1.bf16.msra.mxu0 %v7050
    %7418 = vmatprep.subr.bf16.mxu0 %v7055
    %7419 = vmatpush1.bf16.msra.mxu0 %v7054
    %7420 = vmatprep.subr.bf16.mxu0 %v7059
    %7421 = vmatpush1.bf16.msra.mxu0 %v7058
    %7422 = vmatprep.subr.bf16.mxu0 %v7063
    %7423 = vmatpush1.bf16.msra.mxu0 %v7062
    %7424 = vmatprep.subr.bf16.mxu0 %v7067
    %7425 = vmatpush1.bf16.msra.mxu0 %v7066
    %7426 = vmatprep.subr.bf16.mxu0 %v7071
    %7427 = vmatpush1.bf16.msra.mxu0 %v7070
    %7428 = vmatprep.subr.bf16.mxu0 %v7075
    %7429 = vmatpush1.bf16.msra.mxu0 %v7074
    %7430 = vmatprep.subr.bf16.mxu0 %v7079
    %7431 = vmatpush1.bf16.msra.mxu0 %v7078
    %7432 = vmatprep.subr.bf16.mxu0 %v7083
    %7433 = vmatpush1.bf16.msra.mxu0 %v7082
    %7434 = vmatprep.subr.bf16.mxu0 %v7087
    %7435 = vmatpush1.bf16.msra.mxu0 %v7086
    %7436 = vmatprep.subr.bf16.mxu0 %v7091
    %7437 = vmatpush1.bf16.msra.mxu0 %v7090
    %7438 = vmatprep.subr.bf16.mxu0 %v7095
    %7439 = vmatpush1.bf16.msra.mxu0 %v7094
    %7440 = vmatprep.subr.bf16.mxu0 %v7099
    %7441 = vmatpush1.bf16.msra.mxu0 %v7098
    %7442 = vmatprep.mubr.bf16.mxu0 %v6905
    %7443 = vmatmul.mubr.bf16.gmra.mrb[0].mxu0 %v6904
    %v7444 = vpop.f32.mrb[0].mxu0
    %v7445 = vadd.f32 %v7404, %v7444
    %v7446 = vpop.f32.mrb[0].mxu0
    %v7447 = vadd.f32 %v7406, %v7446
    %v7448 = vpop.f32.mrb[0].mxu0
    %v7449 = vpop.f32.mrb[0].mxu0
    %7450 = vdwg.mxu0
    %7451 = vmatprep.subr.bf16.mxu0 %v7103
    %7452 = vmatpush1.bf16.msra.mxu0 %v7102
    %7453 = vmatprep.subr.bf16.mxu0 %v7107
    %7454 = vmatpush1.bf16.msra.mxu0 %v7106
    %7455 = vmatprep.subr.bf16.mxu0 %v7111
    %7456 = vmatpush1.bf16.msra.mxu0 %v7110
    %7457 = vmatprep.subr.bf16.mxu0 %v7115
    %7458 = vmatpush1.bf16.msra.mxu0 %v7114
    %7459 = vmatprep.subr.bf16.mxu0 %v7119
    %7460 = vmatpush1.bf16.msra.mxu0 %v7118
    %7461 = vmatprep.subr.bf16.mxu0 %v7123
    %7462 = vmatpush1.bf16.msra.mxu0 %v7122
    %7463 = vmatprep.subr.bf16.mxu0 %v7127
    %7464 = vmatpush1.bf16.msra.mxu0 %v7126
    %7465 = vmatprep.subr.bf16.mxu0 %v7131
    %7466 = vmatpush1.bf16.msra.mxu0 %v7130
    %7467 = vmatprep.subr.bf16.mxu0 %v7135
    %7468 = vmatpush1.bf16.msra.mxu0 %v7134
    %7469 = vmatprep.subr.bf16.mxu0 %v7139
    %7470 = vmatpush1.bf16.msra.mxu0 %v7138
    %7471 = vmatprep.subr.bf16.mxu0 %v7143
    %7472 = vmatpush1.bf16.msra.mxu0 %v7142
    %7473 = vmatprep.subr.bf16.mxu0 %v7147
    %7474 = vmatpush1.bf16.msra.mxu0 %v7146
    %7475 = vmatprep.subr.bf16.mxu0 %v7151
    %7476 = vmatpush1.bf16.msra.mxu0 %v7150
    %7477 = vmatprep.subr.bf16.mxu0 %v7155
    %7478 = vmatpush1.bf16.msra.mxu0 %v7154
    %7479 = vmatprep.subr.bf16.mxu0 %v7159
    %7480 = vmatpush1.bf16.msra.mxu0 %v7158
    %7481 = vmatprep.subr.bf16.mxu0 %v7163
    %7482 = vmatpush1.bf16.msra.mxu0 %v7162
    %7483 = vmatprep.mubr.bf16.mxu0 %v6907
    %7484 = vmatmul.mubr.bf16.gmra.mrb[0].mxu0 %v6906
    %v7485 = vpop.f32.mrb[0].mxu0
    %v7486 = vadd.f32 %v7445, %v7485
    %v7487 = vpop.f32.mrb[0].mxu0
    %v7488 = vadd.f32 %v7447, %v7487
    %v7489 = vpop.f32.mrb[0].mxu0
    %v7490 = vpop.f32.mrb[0].mxu0
    %7491 = vdwg.mxu0
    %v7492 = vrot.slane %v7322, 4
    %v7493 = vadd.f32 %v7322, %v7492
    %v7494 = vrot.slane %v7493, 2
    %v7495 = vadd.f32 %v7493, %v7494
    %v7496 = vrot.slane %v7495, 1
    %v7497 = vadd.f32 %v7495, %v7496
    %v7498 = vrot.slane %v7324, 4
    %v7499 = vadd.f32 %v7324, %v7498
    %v7500 = vrot.slane %v7499, 2
    %v7501 = vadd.f32 %v7499, %v7500
    %v7502 = vrot.slane %v7501, 1
    %v7503 = vadd.f32 %v7501, %v7502
    %v7504 = vrot.slane %v7486, 4
    %v7505 = vadd.f32 %v7486, %v7504
    %v7506 = vrot.slane %v7505, 2
    %v7507 = vadd.f32 %v7505, %v7506
    %v7508 = vrot.slane %v7507, 1
    %v7509 = vadd.f32 %v7507, %v7508
    %v7510 = vrot.slane %v7488, 4
    %v7511 = vadd.f32 %v7488, %v7510
    %v7512 = vrot.slane %v7511, 2
    %v7513 = vadd.f32 %v7511, %v7512
    %v7514 = vrot.slane %v7513, 1
    %v7515 = vadd.f32 %v7513, %v7514
    %v7516 = vmul.f32 %v7497, %v446
    %v7517 = vmul.f32 %v7503, %v446
    %v7518 = vmul.f32 %v7509, %v446
    %v7519 = vmul.f32 %v7515, %v446
    %v7520 = vsub.f32 %v7322, %v7516
    %v7521 = vsub.f32 %v7324, %v7517
    %v7522 = vsub.f32 %v7486, %v7518
    %v7523 = vsub.f32 %v7488, %v7519
    %v7524 = vmul.f32 %v7520, %v7520
    %v7525 = vmul.f32 %v7521, %v7521
    %v7526 = vmul.f32 %v7522, %v7522
    %v7527 = vmul.f32 %v7523, %v7523
    %v7528 = vrot.slane %v7524, 4
    %v7529 = vadd.f32 %v7524, %v7528
    %v7530 = vrot.slane %v7529, 2
    %v7531 = vadd.f32 %v7529, %v7530
    %v7532 = vrot.slane %v7531, 1
    %v7533 = vadd.f32 %v7531, %v7532
    %v7534 = vrot.slane %v7525, 4
    %v7535 = vadd.f32 %v7525, %v7534
    %v7536 = vrot.slane %v7535, 2
    %v7537 = vadd.f32 %v7535, %v7536
    %v7538 = vrot.slane %v7537, 1
    %v7539 = vadd.f32 %v7537, %v7538
    %v7540 = vrot.slane %v7526, 4
    %v7541 = vadd.f32 %v7526, %v7540
    %v7542 = vrot.slane %v7541, 2
    %v7543 = vadd.f32 %v7541, %v7542
    %v7544 = vrot.slane %v7543, 1
    %v7545 = vadd.f32 %v7543, %v7544
    %v7546 = vrot.slane %v7527, 4
    %v7547 = vadd.f32 %v7527, %v7546
    %v7548 = vrot.slane %v7547, 2
    %v7549 = vadd.f32 %v7547, %v7548
    %v7550 = vrot.slane %v7549, 1
    %v7551 = vadd.f32 %v7549, %v7550
    %v7552 = vmul.f32 %v7533, %v446
    %v7553 = vmul.f32 %v7539, %v446
    %v7554 = vmul.f32 %v7545, %v446
    %v7555 = vmul.f32 %v7551, %v446
    %v7556 = vld [vmem:[#allocation18] ss:$2 sm:$0xf]
    %v7558 = vlaneseq
    %v7559 = vshrl.u32 %v7558, 7
    %v7560 = vsub.s32 0, %v7559
    %v7561 = vrot.slane %v7556, %v7560
    %v7562 = vlaneseq
    %v7563 = vshrl.u32 %v7562, 7
    %v7564 = vsub.s32 1, %v7563
    %v7565 = vrot.slane %v7556, %v7564
    %v7566 = vlaneseq
    %v7567 = vshrl.u32 %v7566, 7
    %v7568 = vsub.s32 2, %v7567
    %v7569 = vrot.slane %v7556, %v7568
    %v7570 = vlaneseq
    %v7571 = vshrl.u32 %v7570, 7
    %v7572 = vsub.s32 3, %v7571
    %v7573 = vrot.slane %v7556, %v7572
    %v7578 = vmul.f32 %v7561, %v7520
    %v7579 = vmul.f32 %v7565, %v7521
    %v7580 = vmul.f32 %v7569, %v7522
    %v7581 = vmul.f32 %v7573, %v7523
    %v7582 = vadd.f32 %v7552, 1e-05
    %v7583 = vadd.f32 %v7553, 1e-05
    %v7584 = vadd.f32 %v7554, 1e-05
    %v7585 = vadd.f32 %v7555, 1e-05
    %v7586 = vrsqrt.pop %v7582
    %v7587 = vrsqrt.pop %v7583
    %v7588 = vrsqrt.pop %v7584
    %v7589 = vrsqrt.pop %v7585
    %v7590 = vmul.f32 %v7578, %v7586
    %v7591 = vmul.f32 %v7579, %v7587
    %v7592 = vmul.f32 %v7580, %v7588
    %v7593 = vmul.f32 %v7581, %v7589
    %s7594 = scalar_lea.vmem [#allocation18], 1
    %v7595 = vld [vmem:[%s7594] ss:$2 sm:$0xf]
    %v7597 = vlaneseq
    %v7598 = vshrl.u32 %v7597, 7
    %v7599 = vsub.s32 0, %v7598
    %v7600 = vrot.slane %v7595, %v7599
    %v7601 = vlaneseq
    %v7602 = vshrl.u32 %v7601, 7
    %v7603 = vsub.s32 1, %v7602
    %v7604 = vrot.slane %v7595, %v7603
    %v7605 = vlaneseq
    %v7606 = vshrl.u32 %v7605, 7
    %v7607 = vsub.s32 2, %v7606
    %v7608 = vrot.slane %v7595, %v7607
    %v7609 = vlaneseq
    %v7610 = vshrl.u32 %v7609, 7
    %v7611 = vsub.s32 3, %v7610
    %v7612 = vrot.slane %v7595, %v7611
    %v7617 = vadd.f32 %v7590, %v7600
    %v7618 = vadd.f32 %v7591, %v7604
    %v7619 = vadd.f32 %v7592, %v7608
    %v7620 = vadd.f32 %v7593, %v7612
    %v7621 = vmax.f32 %v7617, 0.0
    %v7622 = vmax.f32 %v7618, 0.0
    %v7623 = vmax.f32 %v7619, 0.0
    %v7624 = vmax.f32 %v7620, 0.0
    %s7625 = smul.u32 %s556, 1
    %s7626 = sshll.u32 %s7625, 4
    %7627 = dma.done %s290, %s7626
    %v7628 = vpack.c.bf16 %v7621, %v7621
    %v7629 = vpack.c.bf16 %v7622, %v7622
    %v7630 = vpack.c.bf16 %v7623, %v7623
    %v7631 = vpack.c.bf16 %v7624, %v7624
    %v7632 = vld [vmem:[#allocation7] sm:$0xff]
    %v7633 = vld [vmem:[#allocation7 + $0x8] sm:$0xff]
    %v7634 = vld [vmem:[#allocation7 + $0x10] sm:$0xff]
    %v7635 = vld [vmem:[#allocation7 + $0x18] sm:$0xff]
    %v7636 = vld [vmem:[#allocation7 + $0x20] sm:$0xff]
    %v7637 = vld [vmem:[#allocation7 + $0x28] sm:$0xff]
    %v7638 = vld [vmem:[#allocation7 + $0x30] sm:$0xff]
    %v7639 = vld [vmem:[#allocation7 + $0x38] sm:$0xff]
    %v7640 = vld [vmem:[#allocation7 + $0x40] sm:$0xff]
    %v7641 = vld [vmem:[#allocation7 + $0x48] sm:$0xff]
    %v7642 = vld [vmem:[#allocation7 + $0x50] sm:$0xff]
    %v7643 = vld [vmem:[#allocation7 + $0x58] sm:$0xff]
    %v7644 = vld [vmem:[#allocation7 + $0x60] sm:$0xff]
    %v7645 = vld [vmem:[#allocation7 + $0x68] sm:$0xff]
    %v7646 = vld [vmem:[#allocation7 + $0x70] sm:$0xff]
    %v7647 = vld [vmem:[#allocation7 + $0x78] sm:$0xff]
    %v7648 = vld [vmem:[#allocation7 + $0x80] sm:$0xff]
    %v7649 = vld [vmem:[#allocation7 + $0x88] sm:$0xff]
    %v7650 = vld [vmem:[#allocation7 + $0x90] sm:$0xff]
    %v7651 = vld [vmem:[#allocation7 + $0x98] sm:$0xff]
    %v7652 = vld [vmem:[#allocation7 + $0xa0] sm:$0xff]
    %v7653 = vld [vmem:[#allocation7 + $0xa8] sm:$0xff]
    %v7654 = vld [vmem:[#allocation7 + $0xb0] sm:$0xff]
    %v7655 = vld [vmem:[#allocation7 + $0xb8] sm:$0xff]
    %v7656 = vld [vmem:[#allocation7 + $0xc0] sm:$0xff]
    %v7657 = vld [vmem:[#allocation7 + $0xc8] sm:$0xff]
    %v7658 = vld [vmem:[#allocation7 + $0xd0] sm:$0xff]
    %v7659 = vld [vmem:[#allocation7 + $0xd8] sm:$0xff]
    %v7660 = vld [vmem:[#allocation7 + $0xe0] sm:$0xff]
    %v7661 = vld [vmem:[#allocation7 + $0xe8] sm:$0xff]
    %v7662 = vld [vmem:[#allocation7 + $0xf0] sm:$0xff]
    %v7663 = vld [vmem:[#allocation7 + $0xf8] sm:$0xff]
    %v7664 = vld [vmem:[#allocation20] sm:$0x1]
    %v7666 = vlaneseq
    %v7667 = vshrl.u32 %v7666, 7
    %v7668 = vsub.s32 0, %v7667
    %v7669 = vrot.slane %v7664, %v7668
    %7671 = vmatprep.subr.bf16.mxu0 0
    %7672 = vmatpush1.bf16.msra.mxu0 %v7632
    %7673 = vmatprep.subr.bf16.mxu0 0
    %7674 = vmatpush1.bf16.msra.mxu0 %v7633
    %7675 = vmatprep.subr.bf16.mxu0 0
    %7676 = vmatpush1.bf16.msra.mxu0 %v7634
    %7677 = vmatprep.subr.bf16.mxu0 0
    %7678 = vmatpush1.bf16.msra.mxu0 %v7635
    %7679 = vmatprep.subr.bf16.mxu0 0
    %7680 = vmatpush1.bf16.msra.mxu0 %v7636
    %7681 = vmatprep.subr.bf16.mxu0 0
    %7682 = vmatpush1.bf16.msra.mxu0 %v7637
    %7683 = vmatprep.subr.bf16.mxu0 0
    %7684 = vmatpush1.bf16.msra.mxu0 %v7638
    %7685 = vmatprep.subr.bf16.mxu0 0
    %7686 = vmatpush1.bf16.msra.mxu0 %v7639
    %7687 = vmatprep.subr.bf16.mxu0 0
    %7688 = vmatpush1.bf16.msra.mxu0 %v7640
    %7689 = vmatprep.subr.bf16.mxu0 0
    %7690 = vmatpush1.bf16.msra.mxu0 %v7641
    %7691 = vmatprep.subr.bf16.mxu0 0
    %7692 = vmatpush1.bf16.msra.mxu0 %v7642
    %7693 = vmatprep.subr.bf16.mxu0 0
    %7694 = vmatpush1.bf16.msra.mxu0 %v7643
    %7695 = vmatprep.subr.bf16.mxu0 0
    %7696 = vmatpush1.bf16.msra.mxu0 %v7644
    %7697 = vmatprep.subr.bf16.mxu0 0
    %7698 = vmatpush1.bf16.msra.mxu0 %v7645
    %7699 = vmatprep.subr.bf16.mxu0 0
    %7700 = vmatpush1.bf16.msra.mxu0 %v7646
    %7701 = vmatprep.subr.bf16.mxu0 0
    %7702 = vmatpush1.bf16.msra.mxu0 %v7647
    %7703 = vmatprep.mubr.bf16.mxu0 %v7629
    %7704 = vmatmul.mubr.bf16.gmra.mrb[0].mxu0 %v7628
    %v7705 = vpop.f32.mrb[0].mxu0
    %v7706 = vadd.f32 %v7669, %v7705
    %v7707 = vpop.f32.mrb[0].mxu0
    %v7708 = vpop.f32.mrb[0].mxu0
    %v7709 = vpop.f32.mrb[0].mxu0
    %7710 = vdwg.mxu0
    %7711 = vmatprep.subr.bf16.mxu0 0
    %7712 = vmatpush1.bf16.msra.mxu0 %v7648
    %7713 = vmatprep.subr.bf16.mxu0 0
    %7714 = vmatpush1.bf16.msra.mxu0 %v7649
    %7715 = vmatprep.subr.bf16.mxu0 0
    %7716 = vmatpush1.bf16.msra.mxu0 %v7650
    %7717 = vmatprep.subr.bf16.mxu0 0
    %7718 = vmatpush1.bf16.msra.mxu0 %v7651
    %7719 = vmatprep.subr.bf16.mxu0 0
    %7720 = vmatpush1.bf16.msra.mxu0 %v7652
    %7721 = vmatprep.subr.bf16.mxu0 0
    %7722 = vmatpush1.bf16.msra.mxu0 %v7653
    %7723 = vmatprep.subr.bf16.mxu0 0
    %7724 = vmatpush1.bf16.msra.mxu0 %v7654
    %7725 = vmatprep.subr.bf16.mxu0 0
    %7726 = vmatpush1.bf16.msra.mxu0 %v7655
    %7727 = vmatprep.subr.bf16.mxu0 0
    %7728 = vmatpush1.bf16.msra.mxu0 %v7656
    %7729 = vmatprep.subr.bf16.mxu0 0
    %7730 = vmatpush1.bf16.msra.mxu0 %v7657
    %7731 = vmatprep.subr.bf16.mxu0 0
    %7732 = vmatpush1.bf16.msra.mxu0 %v7658
    %7733 = vmatprep.subr.bf16.mxu0 0
    %7734 = vmatpush1.bf16.msra.mxu0 %v7659
    %7735 = vmatprep.subr.bf16.mxu0 0
    %7736 = vmatpush1.bf16.msra.mxu0 %v7660
    %7737 = vmatprep.subr.bf16.mxu0 0
    %7738 = vmatpush1.bf16.msra.mxu0 %v7661
    %7739 = vmatprep.subr.bf16.mxu0 0
    %7740 = vmatpush1.bf16.msra.mxu0 %v7662
    %7741 = vmatprep.subr.bf16.mxu0 0
    %7742 = vmatpush1.bf16.msra.mxu0 %v7663
    %7743 = vmatprep.mubr.bf16.mxu0 %v7631
    %7744 = vmatmul.mubr.bf16.gmra.mrb[0].mxu0 %v7630
    %v7745 = vpop.f32.mrb[0].mxu0
    %v7746 = vadd.f32 %v7706, %v7745
    %v7747 = vpop.f32.mrb[0].mxu0
    %v7748 = vpop.f32.mrb[0].mxu0
    %v7749 = vpop.f32.mrb[0].mxu0
    %7750 = vdwg.mxu0
    %7751 = vst [vmem:[#allocation21] sm:$0xff] %v7746
    // Predicated region
    $region62: #{tpu_custom_call.1} parent=1 // pred_check
      _
    $region63: #{tpu_custom_call.1} parent=1 // pred_check_branch
      %7753 = sbr.rel (0) target = $region65
    $region64: #{tpu_custom_call.1} parent=1 // pred_region
      %s7755 = ssub.s32 128, 128
      %7756 = vsyncadd [#allocation11], %s7755
      %s7758 = sshll.u32 [#allocation21], 4
      %s7759 = int_to_ptr.vmem [resolvable:$true] %s7758
      %7761 = dma.vmem_to_hbm [thread:$0]  %s7759, 128, %s13, [#allocation11]
    $region65: #{tpu_custom_call.1} parent=1 // pred_fallthru
      _
    // Predicated region
    $region66: #{tpu_custom_call.1} parent=1 // pred_check
      _
    $region67: #{tpu_custom_call.1} parent=1 // pred_check_branch
      %7763 = sbr.rel (0) target = $region69
    $region68: #{tpu_custom_call.1} parent=1 // pred_region
      %7764 = dma.done [#allocation11], 128
    $region69: #{tpu_custom_call.1} parent=1 // pred_fallthru
      _
    %7765 = vsyncpa [#allocation10], 1
    %7766 = vsyncpa [#allocation13], 1
    %7767 = vsyncpa [#allocation16], 1
    %7768 = vsyncpa [#allocation19], 1
    %7769 = vsyncpa [#allocation11], 1
  %7770 = vsyncmov [#allocation8]
  %s7771 = vpop.sfrf %7770
  %p7772 = scmp.eq.s32.totalorder %s7771, 0
  %p7773 = pneg %p7772
  %7775 = shalt.err (%p7773)
  %s7776 = scalar_lea.sflag [#allocation8], 1
  %7777 = vsyncmov %s7776
  %s7778 = vpop.sfrf %7777
  %p7779 = scmp.eq.s32.totalorder %s7778, 0
  %p7780 = pneg %p7779
  %7782 = shalt.err (%p7780)
  %s7783 = scalar_lea.sflag [#allocation8], 2
  %7784 = vsyncmov %s7783
  %s7785 = vpop.sfrf %7784
  %p7786 = scmp.eq.s32.totalorder %s7785, 0
  %p7787 = pneg %p7786
  %7789 = shalt.err (%p7787)
  %s7790 = scalar_lea.sflag [#allocation8], 3
  %7791 = vsyncmov %s7790
  %s7792 = vpop.sfrf %7791
  %p7793 = scmp.eq.s32.totalorder %s7792, 0
  %p7794 = pneg %p7793
  %7796 = shalt.err (%p7794)
  %s7797 = scalar_lea.sflag [#allocation8], 4
  %7798 = vsyncmov %s7797
  %s7799 = vpop.sfrf %7798
  %p7800 = scmp.eq.s32.totalorder %s7799, 0
  %p7801 = pneg %p7800
  %7803 = shalt.err (%p7801)
  %s7804 = scalar_lea.sflag [#allocation8], 5
  %7805 = vsyncmov %s7804
  %s7806 = vpop.sfrf %7805
  %p7807 = scmp.eq.s32.totalorder %s7806, 0
  %p7808 = pneg %p7807
  %7810 = shalt.err (%p7808)

</llo_original>
